<compile_context>
chip_gen: v7x
topology: tpu7x:2x2x1
jax: 0.10.0
libtpu: 0.0.40
codegen_flags: <defaults>
</compile_context>

<pallas_src>
import jax
import jax.numpy as jnp
import numpy as np
from jax import lax
from jax.experimental import pallas as pl
from jax.experimental.pallas import tpu as pltpu


def _round_up(x, m):
    return (x + m - 1) // m * m


# -----------------------------------------------------------------------------
# Fused kernel: K-tiled input projection -> 2-layer masked LSTM -> ReLU+Linear
# -----------------------------------------------------------------------------
def _fused_lstm_kernel(x_ref, w0_ref, b0_ref, len_ref,
                       whh0_ref, wih1_ref, whh1_ref, b1_ref, wp_ref, bp_ref,
                       out_ref, xg_acc_ref, xg_tm_ref):
    k = pl.program_id(0)

    # ---- K-tiled layer-0 input projection (bf16 x bf16 -> f32 accumulate) ----
    @pl.when(k == 0)
    def _():
        xg_acc_ref[...] = jnp.zeros_like(xg_acc_ref)

    xg_acc_ref[...] += jnp.dot(x_ref[...].astype(jnp.bfloat16), w0_ref[...],
                               preferred_element_type=jnp.float32)

    # ---- last K step: recurrence + fused ReLU/Linear projection ----
    @pl.when(k == pl.num_programs(0) - 1)
    def _():
        T, B, G = xg_tm_ref.shape
        Hp = whh0_ref.shape[0]

        # One-time repack of the precomputed gates into time-major layout,
        # folding in the layer-0 bias (b_ih0 + b_hh0).  x rows are time-major
        # (row = t*B + b), so this is a plain row-major reshape.
        xg_tm_ref[...] = (xg_acc_ref[...] + b0_ref[...]).reshape(T, B, G)

        lens = len_ref[...]                     # (B, 1) int32, one vreg

        def gates(g):                           # PyTorch gate order [i, f, g, o]
            return (jax.nn.sigmoid(g[:, 0:Hp]),
                    jax.nn.sigmoid(g[:, Hp:2 * Hp]),
                    jnp.tanh(g[:, 2 * Hp:3 * Hp]),
                    jax.nn.sigmoid(g[:, 3 * Hp:4 * Hp]))

        def step(t, carry):
            h0, c0, h1, c1 = carry
            # pack_padded_sequence mask: one compare + one broadcast, 4 uses.
            valid = jnp.broadcast_to(lens > t, (B, Hp))

            # ---- layer 0 (input projection precomputed; bias already folded) ----
            g0 = xg_tm_ref[t] + jnp.dot(h0.astype(jnp.bfloat16), whh0_ref[...],
                                        preferred_element_type=jnp.float32)
            i0, f0, gg0, o0 = gates(g0)
            c0n = f0 * c0 + i0 * gg0
            h0n = o0 * jnp.tanh(c0n)
            h0 = jnp.where(valid, h0n, h0)      # masked update stays in registers
            c0 = jnp.where(valid, c0n, c0)

            # ---- layer 1 ----
            g1 = (jnp.dot(h0.astype(jnp.bfloat16), wih1_ref[...],
                          preferred_element_type=jnp.float32)
                  + jnp.dot(h1.astype(jnp.bfloat16), whh1_ref[...],
                            preferred_element_type=jnp.float32)
                  + b1_ref[...])
            i1, f1, gg1, o1 = gates(g1)
            c1n = f1 * c1 + i1 * gg1
            h1n = o1 * jnp.tanh(c1n)
            h1 = jnp.where(valid, h1n, h1)
            c1 = jnp.where(valid, c1n, c1)
            return h0, c0, h1, c1

        zeros = jnp.zeros((B, Hp), jnp.float32)
        _, _, h1, _ = lax.fori_loop(0, T, step, (zeros, zeros, zeros, zeros),
                                    unroll=min(T, 8))   # cap unroll for large T

        # text_proj(h[-1]) = Linear(Dropout(ReLU(h_top)))  (eval: dropout = id)
        feat = jnp.maximum(h1, 0.0)
        out_ref[...] = (jnp.dot(feat.astype(jnp.bfloat16), wp_ref[...],
                                preferred_element_type=jnp.float32)
                        + bp_ref[...])


# -----------------------------------------------------------------------------
# Wrapper
# -----------------------------------------------------------------------------
def bert_sentence_encoder_lstm(x, mask, params):
    """x: (B, T, D) f32 BERT embeddings; mask: (B, T) {0,1}. Returns (B, latent)."""
    B, T, D = x.shape
    H = params["whh0T"].shape[0]
    L = params["wpT"].shape[1]

    Hp = max(128, _round_up(H, 128))    # lane-align hidden (full-vreg gate slices)
    Lp = max(128, _round_up(L, 128))    # lane-dense output store
    G = 4 * Hp

    # --- pad / remap parameters; zero padding keeps padded hidden units at 0 ---
    def pad_gate_cols(w):               # (..., 4H) -> (..., 4Hp), per-gate padding
        pads = [(0, 0)] * (w.ndim - 1) + [(0, Hp - H)]
        return jnp.concatenate(
            [jnp.pad(w[..., g * H:(g + 1) * H], pads) for g in range(4)], axis=-1)

    def pad_rows(w):                    # (H, X) -> (Hp, X)
        return jnp.pad(w, ((0, Hp - H), (0, 0)))

    bf = jnp.bfloat16
    wih0 = pad_gate_cols(params["wih0T"]).astype(bf)                # (D, 4Hp)
    whh0 = pad_rows(pad_gate_cols(params["whh0T"])).astype(bf)      # (Hp, 4Hp)
    b0 = pad_gate_cols(params["b0"])                                # (1, 4Hp) f32
    wih1 = pad_rows(pad_gate_cols(params["wih1T"])).astype(bf)      # (Hp, 4Hp)
    whh1 = pad_rows(pad_gate_cols(params["whh1T"])).astype(bf)      # (Hp, 4Hp)
    b1 = pad_gate_cols(params["b1"])                                # (1, 4Hp) f32
    wp = jnp.pad(params["wpT"], ((0, Hp - H), (0, Lp - L))).astype(bf)  # (Hp, Lp)
    bp = jnp.pad(params["bp"], ((0, 0), (0, Lp - L)))               # (1, Lp) f32

    # pack_padded_sequence lengths (mask assumed left-aligned / contiguous).
    lengths = mask.sum(axis=-1).astype(jnp.int32).reshape(B, 1)

    # Time-major GEMM LHS (row = t*B + b); f32 — bf16 cast happens in-kernel so
    # no separate HBM convert pass is materialized in the wrapper.
    x_tm = jnp.transpose(x, (1, 0, 2)).reshape(T * B, D)

    M = T * B
    tk = 2048 if D % 2048 == 0 else D
    nk = D // tk

    full = lambda shape: pl.BlockSpec(shape, lambda k: (0,) * len(shape))

    out = pl.pallas_call(
        _fused_lstm_kernel,
        out_shape=jax.ShapeDtypeStruct((B, Lp), jnp.float32),
        grid_spec=pltpu.PrefetchScalarGridSpec(
            num_scalar_prefetch=0,
            grid=(nk,),
            in_specs=[
                pl.BlockSpec((M, tk), lambda k: (0, k)),    # x (time-major, f32)
                pl.BlockSpec((tk, G), lambda k: (k, 0)),    # W_ih0 (bf16)
                full((1, G)),                               # b_ih0 + b_hh0
                full((B, 1)),                               # lengths
                full((Hp, G)),                              # W_hh0 (bf16)
                full((Hp, G)),                              # W_ih1 (bf16)
                full((Hp, G)),                              # W_hh1 (bf16)
                full((1, G)),                               # b_ih1 + b_hh1
                full((Hp, Lp)),                             # W_proj (bf16)
                full((1, Lp)),                              # b_proj
            ],
            out_specs=full((B, Lp)),
            scratch_shapes=[
                pltpu.VMEM((M, G), jnp.float32),            # GEMM accumulator
                pltpu.VMEM((T, B, G), jnp.float32),         # time-major gates
            ],
        ),
        compiler_params=pltpu.CompilerParams(
            dimension_semantics=("arbitrary",)),            # K reduction is serial
    )(x_tm, wih0, b0, lengths, whh0, wih1, whh1, b1, wp, bp)

    return out[:, :L]


# -----------------------------------------------------------------------------
# Deterministic parameter init (shapes from the module's __init__; PyTorch-style
# uniform(-1/sqrt(H), 1/sqrt(H))).  Stored pre-transposed: (in, out).
# -----------------------------------------------------------------------------
def init_params(key, input_size, hidden_size, latent_dim):
    H, D, L = hidden_size, input_size, latent_dim
    k = 1.0 / np.sqrt(H)
    keys = jax.random.split(key, 10)
    u = lambda kk, shape, s: jax.random.uniform(kk, shape, jnp.float32, -s, s)
    return {
        "wih0T": u(keys[0], (D, 4 * H), k),
        "whh0T": u(keys[1], (H, 4 * H), k),
        "b0":    u(keys[2], (1, 4 * H), k) + u(keys[3], (1, 4 * H), k),
        "wih1T": u(keys[4], (H, 4 * H), k),
        "whh1T": u(keys[5], (H, 4 * H), k),
        "b1":    u(keys[6], (1, 4 * H), k) + u(keys[7], (1, 4 * H), k),
        "wpT":   u(keys[8], (H, L), 1.0 / np.sqrt(H)),
        "bp":    u(keys[9], (1, L), 1.0 / np.sqrt(H)),
    }


# -----------------------------------------------------------------------------
# Pure-JAX reference (mirrors the kernel's bf16-operand / f32-accumulate math).
# -----------------------------------------------------------------------------
def reference(x, mask, p):
    B, T, D = x.shape
    H = p["whh0T"].shape[0]
    lengths = mask.sum(axis=-1)
    h0 = c0 = h1 = c1 = jnp.zeros((B, H), jnp.float32)

    bf = jnp.bfloat16
    wih0, whh0 = p["wih0T"].astype(bf), p["whh0T"].astype(bf)
    wih1, whh1 = p["wih1T"].astype(bf), p["whh1T"].astype(bf)
    wp = p["wpT"].astype(bf)
    dot = lambda a, b: jnp.dot(a.astype(bf), b, preferred_element_type=jnp.float32)

    def gates(g):
        return (jax.nn.sigmoid(g[:, :H]), jax.nn.sigmoid(g[:, H:2 * H]),
                jnp.tanh(g[:, 2 * H:3 * H]), jax.nn.sigmoid(g[:, 3 * H:]))

    for t in range(T):
        valid = (lengths > t)[:, None]
        g0 = dot(x[:, t, :], wih0) + dot(h0, whh0) + p["b0"]
        i0, f0, gg0, o0 = gates(g0)
        c0n = f0 * c0 + i0 * gg0
        h0n = o0 * jnp.tanh(c0n)
        h0 = jnp.where(valid, h0n, h0)
        c0 = jnp.where(valid, c0n, c0)

        g1 = dot(h0, wih1) + dot(h1, whh1) + p["b1"]
        i1, f1, gg1, o1 = gates(g1)
        c1n = f1 * c1 + i1 * gg1
        h1n = o1 * jnp.tanh(c1n)
        h1 = jnp.where(valid, h1n, h1)
        c1 = jnp.where(valid, c1n, c1)

    return dot(jnp.maximum(h1, 0.0), wp) + p["bp"]


if __name__ == "__main__":
    # Shapes consistent with the module: input_size fixed at 4096 by __init__,
    # hidden_size=32, latent_dim=256, batch=2, seq_len=8.
    B, T, D, H, LATENT = 2, 8, 4096, 32, 256

    key = jax.random.PRNGKey(0)
    k_x, k_p = jax.random.split(key)

    # Synthetic "BERT embeddings" and padding mask (lengths 8 and 5).
    x = jax.random.normal(k_x, (B, T, D), jnp.float32)
    lens = jnp.array([8, 5], jnp.int32)
    mask = (jnp.arange(T)[None, :] < lens[:, None]).astype(jnp.float32)

    params = init_params(k_p, D, H, LATENT)

    fwd = jax.jit(bert_sentence_encoder_lstm)
    out = jax.block_until_ready(fwd(x, mask, params))

    ref = reference(x, mask, params)
    np.testing.assert_allclose(np.asarray(out), np.asarray(ref),
                               rtol=3e-3, atol=3e-3)
    print("KERNEL_OK")
</pallas_src>

<mosaic_0001>
module attributes {stable_mosaic.version = 11 : i64} {
  func.func @_fused_lstm_kernel(%arg0: i32, %arg1: memref<16x2048xf32, #tpu.memory_space<vmem>>, %arg2: memref<2048x512xbf16, #tpu.memory_space<vmem>>, %arg3: memref<1x512xf32, #tpu.memory_space<vmem>>, %arg4: memref<2x1xi32, #tpu.memory_space<vmem>>, %arg5: memref<128x512xbf16, #tpu.memory_space<vmem>>, %arg6: memref<128x512xbf16, #tpu.memory_space<vmem>>, %arg7: memref<128x512xbf16, #tpu.memory_space<vmem>>, %arg8: memref<1x512xf32, #tpu.memory_space<vmem>>, %arg9: memref<128x256xbf16, #tpu.memory_space<vmem>>, %arg10: memref<1x256xf32, #tpu.memory_space<vmem>>, %arg11: memref<2x256xf32, #tpu.memory_space<vmem>>, %arg12: memref<16x512xf32, #tpu.memory_space<vmem>>, %arg13: memref<8x2x512xf32, #tpu.memory_space<vmem>>) attributes {dimension_semantics = [#tpu.dimension_semantics<arbitrary>], iteration_bounds = array<i64: 2>, scalar_prefetch = 0 : i64, scratch_operands = 2 : i64, tpu.core_type = #tpu.core_type<tc>, window_params = [{transform_indices = @transform_0, window_bounds = array<i64: 16, 2048>}, {transform_indices = @transform_1, window_bounds = array<i64: 2048, 512>}, {pipeline_mode = #tpu.pipeline_mode<synchronous>, transform_indices = @transform_2, window_bounds = array<i64: 1, 512>}, {pipeline_mode = #tpu.pipeline_mode<synchronous>, transform_indices = @transform_3, window_bounds = array<i64: 2, 1>}, {pipeline_mode = #tpu.pipeline_mode<synchronous>, transform_indices = @transform_4, window_bounds = array<i64: 128, 512>}, {pipeline_mode = #tpu.pipeline_mode<synchronous>, transform_indices = @transform_5, window_bounds = array<i64: 128, 512>}, {pipeline_mode = #tpu.pipeline_mode<synchronous>, transform_indices = @transform_6, window_bounds = array<i64: 128, 512>}, {pipeline_mode = #tpu.pipeline_mode<synchronous>, transform_indices = @transform_7, window_bounds = array<i64: 1, 512>}, {pipeline_mode = #tpu.pipeline_mode<synchronous>, transform_indices = @transform_8, window_bounds = array<i64: 128, 256>}, {pipeline_mode = #tpu.pipeline_mode<synchronous>, transform_indices = @transform_9, window_bounds = array<i64: 1, 256>}, {pipeline_mode = #tpu.pipeline_mode<synchronous>, transform_indices = @transform_10, window_bounds = array<i64: 2, 256>}]} {
    %c0_i32 = arith.constant 0 : i32
    %0 = arith.cmpi eq, %arg0, %c0_i32 : i32
    %1 = arith.extui %0 : i1 to i32
    %c0_i32_0 = arith.constant 0 : i32
    %2 = arith.cmpi ne, %1, %c0_i32_0 : i32
    scf.if %2 {
      %cst_9 = arith.constant 0.000000e+00 : f32
      %13 = vector.broadcast %cst_9 : f32 to vector<16x512xf32>
      %c0_10 = arith.constant 0 : index
      %c0_11 = arith.constant 0 : index
      %14 = vector.load %arg12[%c0_10, %c0_11] : memref<16x512xf32, #tpu.memory_space<vmem>>, vector<16x512xf32>
      tpu.vector_store %arg12[%c0_10, %c0_11], %13 {strides = array<i32>} : memref<16x512xf32, #tpu.memory_space<vmem>>, vector<16x512xf32>,
    } else {
    }
    %c0 = arith.constant 0 : index
    %c0_1 = arith.constant 0 : index
    %3 = vector.load %arg12[%c0, %c0_1] : memref<16x512xf32, #tpu.memory_space<vmem>>, vector<16x512xf32>
    %c0_2 = arith.constant 0 : index
    %c0_3 = arith.constant 0 : index
    %4 = vector.load %arg1[%c0_2, %c0_3] : memref<16x2048xf32, #tpu.memory_space<vmem>>, vector<16x2048xf32>
    %5 = arith.truncf %4 : vector<16x2048xf32> to vector<16x2048xbf16>
    %c0_4 = arith.constant 0 : index
    %c0_5 = arith.constant 0 : index
    %6 = vector.load %arg2[%c0_4, %c0_5] : memref<2048x512xbf16, #tpu.memory_space<vmem>>, vector<2048x512xbf16>
    %cst = arith.constant dense<0.000000e+00> : vector<16x512xf32>
    %7 = tpu.matmul %5, %6, %cst {dimension_numbers = #tpu.dot_dimension_numbers<[1], [0], [0], [1], [0, 0, 1, 1], [], []>} : vector<16x2048xbf16>, vector<2048x512xbf16>, vector<16x512xf32> -> vector<16x512xf32>
    %8 = arith.addf %3, %7 : vector<16x512xf32>
    %c0_6 = arith.constant 0 : index
    %c0_7 = arith.constant 0 : index
    %9 = vector.load %arg12[%c0_6, %c0_7] : memref<16x512xf32, #tpu.memory_space<vmem>>, vector<16x512xf32>
    tpu.vector_store %arg12[%c0_6, %c0_7], %8 {strides = array<i32>} : memref<16x512xf32, #tpu.memory_space<vmem>>, vector<16x512xf32>,
    %c1_i32 = arith.constant 1 : i32
    %10 = arith.cmpi eq, %arg0, %c1_i32 : i32
    %11 = arith.extui %10 : i1 to i32
    %c0_i32_8 = arith.constant 0 : i32
    %12 = arith.cmpi ne, %11, %c0_i32_8 : i32
    scf.if %12 {
      %c0_9 = arith.constant 0 : index
      %c0_10 = arith.constant 0 : index
      %13 = vector.load %arg12[%c0_9, %c0_10] : memref<16x512xf32, #tpu.memory_space<vmem>>, vector<16x512xf32>
      %c0_11 = arith.constant 0 : index
      %c0_12 = arith.constant 0 : index
      %14 = vector.load %arg3[%c0_11, %c0_12] : memref<1x512xf32, #tpu.memory_space<vmem>>, vector<1x512xf32>
      %15 = vector.broadcast %14 : vector<1x512xf32> to vector<16x512xf32>
      %16 = arith.addf %13, %15 : vector<16x512xf32>
      %17 = vector.shape_cast %16 : vector<16x512xf32> to vector<8x2x512xf32>
      %c0_13 = arith.constant 0 : index
      %c0_14 = arith.constant 0 : index
      %c0_15 = arith.constant 0 : index
      %18 = vector.load %arg13[%c0_13, %c0_14, %c0_15] : memref<8x2x512xf32, #tpu.memory_space<vmem>>, vector<8x2x512xf32>
      tpu.vector_store %arg13[%c0_13, %c0_14, %c0_15], %17 {strides = array<i32>} : memref<8x2x512xf32, #tpu.memory_space<vmem>>, vector<8x2x512xf32>,
      %c0_16 = arith.constant 0 : index
      %c0_17 = arith.constant 0 : index
      %19 = vector.load %arg4[%c0_16, %c0_17] : memref<2x1xi32, #tpu.memory_space<vmem>>, vector<2x1xi32>
      %cst_18 = arith.constant 0.000000e+00 : f32
      %20 = vector.broadcast %cst_18 : f32 to vector<2x128xf32>
      %c0_i32_19 = arith.constant 0 : i32
      %21 = vector.broadcast %c0_i32_19 : i32 to vector<2x1xi32>
      %22 = arith.cmpi sgt, %19, %21 : vector<2x1xi32>
      %23 = vector.shape_cast %22 : vector<2x1xi1> to vector<2x1xi1>
      %24 = vector.broadcast %23 : vector<2x1xi1> to vector<2x128xi1>
      %25 = arith.index_cast %c0_i32_19 : i32 to index
      %c0_20 = arith.constant 0 : index
      %c0_21 = arith.constant 0 : index
      %26 = vector.load %arg13[%25, %c0_20, %c0_21] : memref<8x2x512xf32, #tpu.memory_space<vmem>>, vector<1x2x512xf32>
      %27 = vector.shape_cast %26 : vector<1x2x512xf32> to vector<2x512xf32>
      %28 = arith.truncf %20 : vector<2x128xf32> to vector<2x128xbf16>
      %c0_22 = arith.constant 0 : index
      %c0_23 = arith.constant 0 : index
      %29 = vector.load %arg5[%c0_22, %c0_23] : memref<128x512xbf16, #tpu.memory_space<vmem>>, vector<128x512xbf16>
      %cst_24 = arith.constant dense<0.000000e+00> : vector<2x512xf32>
      %30 = tpu.matmul %28, %29, %cst_24 {dimension_numbers = #tpu.dot_dimension_numbers<[1], [0], [0], [1], [0, 0, 1, 1], [], []>} : vector<2x128xbf16>, vector<128x512xbf16>, vector<2x512xf32> -> vector<2x512xf32>
      %31 = arith.addf %27, %30 : vector<2x512xf32>
      %32 = vector.extract_strided_slice %31 {offsets = [0, 0], sizes = [2, 128], strides = [1, 1]} : vector<2x512xf32> to vector<2x128xf32>
      %33 = arith.negf %32 : vector<2x128xf32>
      %34 = math.exp %33 : vector<2x128xf32>
      %cst_25 = arith.constant 1.000000e+00 : f32
      %35 = vector.broadcast %cst_25 : f32 to vector<2x128xf32>
      %36 = arith.addf %35, %34 : vector<2x128xf32>
      %37 = arith.divf %35, %36 : vector<2x128xf32>
      %38 = vector.extract_strided_slice %31 {offsets = [0, 128], sizes = [2, 128], strides = [1, 1]} : vector<2x512xf32> to vector<2x128xf32>
      %39 = arith.negf %38 : vector<2x128xf32>
      %40 = math.exp %39 : vector<2x128xf32>
      %cst_26 = arith.constant 1.000000e+00 : f32
      %41 = vector.broadcast %cst_26 : f32 to vector<2x128xf32>
      %42 = arith.addf %41, %40 : vector<2x128xf32>
      %43 = arith.divf %41, %42 : vector<2x128xf32>
      %44 = vector.extract_strided_slice %31 {offsets = [0, 256], sizes = [2, 128], strides = [1, 1]} : vector<2x512xf32> to vector<2x128xf32>
      %45 = math.tanh %44 : vector<2x128xf32>
      %46 = vector.extract_strided_slice %31 {offsets = [0, 384], sizes = [2, 128], strides = [1, 1]} : vector<2x512xf32> to vector<2x128xf32>
      %47 = arith.negf %46 : vector<2x128xf32>
      %48 = math.exp %47 : vector<2x128xf32>
      %cst_27 = arith.constant 1.000000e+00 : f32
      %49 = vector.broadcast %cst_27 : f32 to vector<2x128xf32>
      %50 = arith.addf %49, %48 : vector<2x128xf32>
      %51 = arith.divf %49, %50 : vector<2x128xf32>
      %52 = arith.mulf %43, %20 : vector<2x128xf32>
      %53 = arith.mulf %37, %45 : vector<2x128xf32>
      %54 = arith.addf %52, %53 : vector<2x128xf32>
      %55 = math.tanh %54 : vector<2x128xf32>
      %56 = arith.mulf %51, %55 : vector<2x128xf32>
      %57 = arith.select %24, %56, %20 : vector<2x128xi1>, vector<2x128xf32>
      %58 = arith.select %24, %54, %20 : vector<2x128xi1>, vector<2x128xf32>
      %59 = arith.truncf %57 : vector<2x128xf32> to vector<2x128xbf16>
      %c0_28 = arith.constant 0 : index
      %c0_29 = arith.constant 0 : index
      %60 = vector.load %arg6[%c0_28, %c0_29] : memref<128x512xbf16, #tpu.memory_space<vmem>>, vector<128x512xbf16>
      %cst_30 = arith.constant dense<0.000000e+00> : vector<2x512xf32>
      %61 = tpu.matmul %59, %60, %cst_30 {dimension_numbers = #tpu.dot_dimension_numbers<[1], [0], [0], [1], [0, 0, 1, 1], [], []>} : vector<2x128xbf16>, vector<128x512xbf16>, vector<2x512xf32> -> vector<2x512xf32>
      %62 = arith.truncf %20 : vector<2x128xf32> to vector<2x128xbf16>
      %c0_31 = arith.constant 0 : index
      %c0_32 = arith.constant 0 : index
      %63 = vector.load %arg7[%c0_31, %c0_32] : memref<128x512xbf16, #tpu.memory_space<vmem>>, vector<128x512xbf16>
      %cst_33 = arith.constant dense<0.000000e+00> : vector<2x512xf32>
      %64 = tpu.matmul %62, %63, %cst_33 {dimension_numbers = #tpu.dot_dimension_numbers<[1], [0], [0], [1], [0, 0, 1, 1], [], []>} : vector<2x128xbf16>, vector<128x512xbf16>, vector<2x512xf32> -> vector<2x512xf32>
      %65 = arith.addf %61, %64 : vector<2x512xf32>
      %c0_34 = arith.constant 0 : index
      %c0_35 = arith.constant 0 : index
      %66 = vector.load %arg8[%c0_34, %c0_35] : memref<1x512xf32, #tpu.memory_space<vmem>>, vector<1x512xf32>
      %67 = vector.broadcast %66 : vector<1x512xf32> to vector<2x512xf32>
      %68 = arith.addf %65, %67 : vector<2x512xf32>
      %69 = vector.extract_strided_slice %68 {offsets = [0, 0], sizes = [2, 128], strides = [1, 1]} : vector<2x512xf32> to vector<2x128xf32>
      %70 = arith.negf %69 : vector<2x128xf32>
      %71 = math.exp %70 : vector<2x128xf32>
      %cst_36 = arith.constant 1.000000e+00 : f32
      %72 = vector.broadcast %cst_36 : f32 to vector<2x128xf32>
      %73 = arith.addf %72, %71 : vector<2x128xf32>
      %74 = arith.divf %72, %73 : vector<2x128xf32>
      %75 = vector.extract_strided_slice %68 {offsets = [0, 128], sizes = [2, 128], strides = [1, 1]} : vector<2x512xf32> to vector<2x128xf32>
      %76 = arith.negf %75 : vector<2x128xf32>
      %77 = math.exp %76 : vector<2x128xf32>
      %cst_37 = arith.constant 1.000000e+00 : f32
      %78 = vector.broadcast %cst_37 : f32 to vector<2x128xf32>
      %79 = arith.addf %78, %77 : vector<2x128xf32>
      %80 = arith.divf %78, %79 : vector<2x128xf32>
      %81 = vector.extract_strided_slice %68 {offsets = [0, 256], sizes = [2, 128], strides = [1, 1]} : vector<2x512xf32> to vector<2x128xf32>
      %82 = math.tanh %81 : vector<2x128xf32>
      %83 = vector.extract_strided_slice %68 {offsets = [0, 384], sizes = [2, 128], strides = [1, 1]} : vector<2x512xf32> to vector<2x128xf32>
      %84 = arith.negf %83 : vector<2x128xf32>
      %85 = math.exp %84 : vector<2x128xf32>
      %cst_38 = arith.constant 1.000000e+00 : f32
      %86 = vector.broadcast %cst_38 : f32 to vector<2x128xf32>
      %87 = arith.addf %86, %85 : vector<2x128xf32>
      %88 = arith.divf %86, %87 : vector<2x128xf32>
      %89 = arith.mulf %80, %20 : vector<2x128xf32>
      %90 = arith.mulf %74, %82 : vector<2x128xf32>
      %91 = arith.addf %89, %90 : vector<2x128xf32>
      %92 = math.tanh %91 : vector<2x128xf32>
      %93 = arith.mulf %88, %92 : vector<2x128xf32>
      %94 = arith.select %24, %93, %20 : vector<2x128xi1>, vector<2x128xf32>
      %95 = arith.select %24, %91, %20 : vector<2x128xi1>, vector<2x128xf32>
      %c1_i32_39 = arith.constant 1 : i32
      %96 = vector.broadcast %c1_i32_39 : i32 to vector<2x1xi32>
      %97 = arith.cmpi sgt, %19, %96 : vector<2x1xi32>
      %98 = vector.shape_cast %97 : vector<2x1xi1> to vector<2x1xi1>
      %99 = vector.broadcast %98 : vector<2x1xi1> to vector<2x128xi1>
      %100 = arith.index_cast %c1_i32_39 : i32 to index
      %c0_40 = arith.constant 0 : index
      %c0_41 = arith.constant 0 : index
      %101 = vector.load %arg13[%100, %c0_40, %c0_41] : memref<8x2x512xf32, #tpu.memory_space<vmem>>, vector<1x2x512xf32>
      %102 = vector.shape_cast %101 : vector<1x2x512xf32> to vector<2x512xf32>
      %103 = arith.truncf %57 : vector<2x128xf32> to vector<2x128xbf16>
      %c0_42 = arith.constant 0 : index
      %c0_43 = arith.constant 0 : index
      %104 = vector.load %arg5[%c0_42, %c0_43] : memref<128x512xbf16, #tpu.memory_space<vmem>>, vector<128x512xbf16>
      %cst_44 = arith.constant dense<0.000000e+00> : vector<2x512xf32>
      %105 = tpu.matmul %103, %104, %cst_44 {dimension_numbers = #tpu.dot_dimension_numbers<[1], [0], [0], [1], [0, 0, 1, 1], [], []>} : vector<2x128xbf16>, vector<128x512xbf16>, vector<2x512xf32> -> vector<2x512xf32>
      %106 = arith.addf %102, %105 : vector<2x512xf32>
      %107 = vector.extract_strided_slice %106 {offsets = [0, 0], sizes = [2, 128], strides = [1, 1]} : vector<2x512xf32> to vector<2x128xf32>
      %108 = arith.negf %107 : vector<2x128xf32>
      %109 = math.exp %108 : vector<2x128xf32>
      %cst_45 = arith.constant 1.000000e+00 : f32
      %110 = vector.broadcast %cst_45 : f32 to vector<2x128xf32>
      %111 = arith.addf %110, %109 : vector<2x128xf32>
      %112 = arith.divf %110, %111 : vector<2x128xf32>
      %113 = vector.extract_strided_slice %106 {offsets = [0, 128], sizes = [2, 128], strides = [1, 1]} : vector<2x512xf32> to vector<2x128xf32>
      %114 = arith.negf %113 : vector<2x128xf32>
      %115 = math.exp %114 : vector<2x128xf32>
      %cst_46 = arith.constant 1.000000e+00 : f32
      %116 = vector.broadcast %cst_46 : f32 to vector<2x128xf32>
      %117 = arith.addf %116, %115 : vector<2x128xf32>
      %118 = arith.divf %116, %117 : vector<2x128xf32>
      %119 = vector.extract_strided_slice %106 {offsets = [0, 256], sizes = [2, 128], strides = [1, 1]} : vector<2x512xf32> to vector<2x128xf32>
      %120 = math.tanh %119 : vector<2x128xf32>
      %121 = vector.extract_strided_slice %106 {offsets = [0, 384], sizes = [2, 128], strides = [1, 1]} : vector<2x512xf32> to vector<2x128xf32>
      %122 = arith.negf %121 : vector<2x128xf32>
      %123 = math.exp %122 : vector<2x128xf32>
      %cst_47 = arith.constant 1.000000e+00 : f32
      %124 = vector.broadcast %cst_47 : f32 to vector<2x128xf32>
      %125 = arith.addf %124, %123 : vector<2x128xf32>
      %126 = arith.divf %124, %125 : vector<2x128xf32>
      %127 = arith.mulf %118, %58 : vector<2x128xf32>
      %128 = arith.mulf %112, %120 : vector<2x128xf32>
      %129 = arith.addf %127, %128 : vector<2x128xf32>
      %130 = math.tanh %129 : vector<2x128xf32>
      %131 = arith.mulf %126, %130 : vector<2x128xf32>
      %132 = arith.select %99, %131, %57 : vector<2x128xi1>, vector<2x128xf32>
      %133 = arith.select %99, %129, %58 : vector<2x128xi1>, vector<2x128xf32>
      %134 = arith.truncf %132 : vector<2x128xf32> to vector<2x128xbf16>
      %c0_48 = arith.constant 0 : index
      %c0_49 = arith.constant 0 : index
      %135 = vector.load %arg6[%c0_48, %c0_49] : memref<128x512xbf16, #tpu.memory_space<vmem>>, vector<128x512xbf16>
      %cst_50 = arith.constant dense<0.000000e+00> : vector<2x512xf32>
      %136 = tpu.matmul %134, %135, %cst_50 {dimension_numbers = #tpu.dot_dimension_numbers<[1], [0], [0], [1], [0, 0, 1, 1], [], []>} : vector<2x128xbf16>, vector<128x512xbf16>, vector<2x512xf32> -> vector<2x512xf32>
      %137 = arith.truncf %94 : vector<2x128xf32> to vector<2x128xbf16>
      %c0_51 = arith.constant 0 : index
      %c0_52 = arith.constant 0 : index
      %138 = vector.load %arg7[%c0_51, %c0_52] : memref<128x512xbf16, #tpu.memory_space<vmem>>, vector<128x512xbf16>
      %cst_53 = arith.constant dense<0.000000e+00> : vector<2x512xf32>
      %139 = tpu.matmul %137, %138, %cst_53 {dimension_numbers = #tpu.dot_dimension_numbers<[1], [0], [0], [1], [0, 0, 1, 1], [], []>} : vector<2x128xbf16>, vector<128x512xbf16>, vector<2x512xf32> -> vector<2x512xf32>
      %140 = arith.addf %136, %139 : vector<2x512xf32>
      %c0_54 = arith.constant 0 : index
      %c0_55 = arith.constant 0 : index
      %141 = vector.load %arg8[%c0_54, %c0_55] : memref<1x512xf32, #tpu.memory_space<vmem>>, vector<1x512xf32>
      %142 = vector.broadcast %141 : vector<1x512xf32> to vector<2x512xf32>
      %143 = arith.addf %140, %142 : vector<2x512xf32>
      %144 = vector.extract_strided_slice %143 {offsets = [0, 0], sizes = [2, 128], strides = [1, 1]} : vector<2x512xf32> to vector<2x128xf32>
      %145 = arith.negf %144 : vector<2x128xf32>
      %146 = math.exp %145 : vector<2x128xf32>
      %cst_56 = arith.constant 1.000000e+00 : f32
      %147 = vector.broadcast %cst_56 : f32 to vector<2x128xf32>
      %148 = arith.addf %147, %146 : vector<2x128xf32>
      %149 = arith.divf %147, %148 : vector<2x128xf32>
      %150 = vector.extract_strided_slice %143 {offsets = [0, 128], sizes = [2, 128], strides = [1, 1]} : vector<2x512xf32> to vector<2x128xf32>
      %151 = arith.negf %150 : vector<2x128xf32>
      %152 = math.exp %151 : vector<2x128xf32>
      %cst_57 = arith.constant 1.000000e+00 : f32
      %153 = vector.broadcast %cst_57 : f32 to vector<2x128xf32>
      %154 = arith.addf %153, %152 : vector<2x128xf32>
      %155 = arith.divf %153, %154 : vector<2x128xf32>
      %156 = vector.extract_strided_slice %143 {offsets = [0, 256], sizes = [2, 128], strides = [1, 1]} : vector<2x512xf32> to vector<2x128xf32>
      %157 = math.tanh %156 : vector<2x128xf32>
      %158 = vector.extract_strided_slice %143 {offsets = [0, 384], sizes = [2, 128], strides = [1, 1]} : vector<2x512xf32> to vector<2x128xf32>
      %159 = arith.negf %158 : vector<2x128xf32>
      %160 = math.exp %159 : vector<2x128xf32>
      %cst_58 = arith.constant 1.000000e+00 : f32
      %161 = vector.broadcast %cst_58 : f32 to vector<2x128xf32>
      %162 = arith.addf %161, %160 : vector<2x128xf32>
      %163 = arith.divf %161, %162 : vector<2x128xf32>
      %164 = arith.mulf %155, %95 : vector<2x128xf32>
      %165 = arith.mulf %149, %157 : vector<2x128xf32>
      %166 = arith.addf %164, %165 : vector<2x128xf32>
      %167 = math.tanh %166 : vector<2x128xf32>
      %168 = arith.mulf %163, %167 : vector<2x128xf32>
      %169 = arith.select %99, %168, %94 : vector<2x128xi1>, vector<2x128xf32>
      %170 = arith.select %99, %166, %95 : vector<2x128xi1>, vector<2x128xf32>
      %c2_i32 = arith.constant 2 : i32
      %171 = vector.broadcast %c2_i32 : i32 to vector<2x1xi32>
      %172 = arith.cmpi sgt, %19, %171 : vector<2x1xi32>
      %173 = vector.shape_cast %172 : vector<2x1xi1> to vector<2x1xi1>
      %174 = vector.broadcast %173 : vector<2x1xi1> to vector<2x128xi1>
      %175 = arith.index_cast %c2_i32 : i32 to index
      %c0_59 = arith.constant 0 : index
      %c0_60 = arith.constant 0 : index
      %176 = vector.load %arg13[%175, %c0_59, %c0_60] : memref<8x2x512xf32, #tpu.memory_space<vmem>>, vector<1x2x512xf32>
      %177 = vector.shape_cast %176 : vector<1x2x512xf32> to vector<2x512xf32>
      %178 = arith.truncf %132 : vector<2x128xf32> to vector<2x128xbf16>
      %c0_61 = arith.constant 0 : index
      %c0_62 = arith.constant 0 : index
      %179 = vector.load %arg5[%c0_61, %c0_62] : memref<128x512xbf16, #tpu.memory_space<vmem>>, vector<128x512xbf16>
      %cst_63 = arith.constant dense<0.000000e+00> : vector<2x512xf32>
      %180 = tpu.matmul %178, %179, %cst_63 {dimension_numbers = #tpu.dot_dimension_numbers<[1], [0], [0], [1], [0, 0, 1, 1], [], []>} : vector<2x128xbf16>, vector<128x512xbf16>, vector<2x512xf32> -> vector<2x512xf32>
      %181 = arith.addf %177, %180 : vector<2x512xf32>
      %182 = vector.extract_strided_slice %181 {offsets = [0, 0], sizes = [2, 128], strides = [1, 1]} : vector<2x512xf32> to vector<2x128xf32>
      %183 = arith.negf %182 : vector<2x128xf32>
      %184 = math.exp %183 : vector<2x128xf32>
      %cst_64 = arith.constant 1.000000e+00 : f32
      %185 = vector.broadcast %cst_64 : f32 to vector<2x128xf32>
      %186 = arith.addf %185, %184 : vector<2x128xf32>
      %187 = arith.divf %185, %186 : vector<2x128xf32>
      %188 = vector.extract_strided_slice %181 {offsets = [0, 128], sizes = [2, 128], strides = [1, 1]} : vector<2x512xf32> to vector<2x128xf32>
      %189 = arith.negf %188 : vector<2x128xf32>
      %190 = math.exp %189 : vector<2x128xf32>
      %cst_65 = arith.constant 1.000000e+00 : f32
      %191 = vector.broadcast %cst_65 : f32 to vector<2x128xf32>
      %192 = arith.addf %191, %190 : vector<2x128xf32>
      %193 = arith.divf %191, %192 : vector<2x128xf32>
      %194 = vector.extract_strided_slice %181 {offsets = [0, 256], sizes = [2, 128], strides = [1, 1]} : vector<2x512xf32> to vector<2x128xf32>
      %195 = math.tanh %194 : vector<2x128xf32>
      %196 = vector.extract_strided_slice %181 {offsets = [0, 384], sizes = [2, 128], strides = [1, 1]} : vector<2x512xf32> to vector<2x128xf32>
      %197 = arith.negf %196 : vector<2x128xf32>
      %198 = math.exp %197 : vector<2x128xf32>
      %cst_66 = arith.constant 1.000000e+00 : f32
      %199 = vector.broadcast %cst_66 : f32 to vector<2x128xf32>
      %200 = arith.addf %199, %198 : vector<2x128xf32>
      %201 = arith.divf %199, %200 : vector<2x128xf32>
      %202 = arith.mulf %193, %133 : vector<2x128xf32>
      %203 = arith.mulf %187, %195 : vector<2x128xf32>
      %204 = arith.addf %202, %203 : vector<2x128xf32>
      %205 = math.tanh %204 : vector<2x128xf32>
      %206 = arith.mulf %201, %205 : vector<2x128xf32>
      %207 = arith.select %174, %206, %132 : vector<2x128xi1>, vector<2x128xf32>
      %208 = arith.select %174, %204, %133 : vector<2x128xi1>, vector<2x128xf32>
      %209 = arith.truncf %207 : vector<2x128xf32> to vector<2x128xbf16>
      %c0_67 = arith.constant 0 : index
      %c0_68 = arith.constant 0 : index
      %210 = vector.load %arg6[%c0_67, %c0_68] : memref<128x512xbf16, #tpu.memory_space<vmem>>, vector<128x512xbf16>
      %cst_69 = arith.constant dense<0.000000e+00> : vector<2x512xf32>
      %211 = tpu.matmul %209, %210, %cst_69 {dimension_numbers = #tpu.dot_dimension_numbers<[1], [0], [0], [1], [0, 0, 1, 1], [], []>} : vector<2x128xbf16>, vector<128x512xbf16>, vector<2x512xf32> -> vector<2x512xf32>
      %212 = arith.truncf %169 : vector<2x128xf32> to vector<2x128xbf16>
      %c0_70 = arith.constant 0 : index
      %c0_71 = arith.constant 0 : index
      %213 = vector.load %arg7[%c0_70, %c0_71] : memref<128x512xbf16, #tpu.memory_space<vmem>>, vector<128x512xbf16>
      %cst_72 = arith.constant dense<0.000000e+00> : vector<2x512xf32>
      %214 = tpu.matmul %212, %213, %cst_72 {dimension_numbers = #tpu.dot_dimension_numbers<[1], [0], [0], [1], [0, 0, 1, 1], [], []>} : vector<2x128xbf16>, vector<128x512xbf16>, vector<2x512xf32> -> vector<2x512xf32>
      %215 = arith.addf %211, %214 : vector<2x512xf32>
      %c0_73 = arith.constant 0 : index
      %c0_74 = arith.constant 0 : index
      %216 = vector.load %arg8[%c0_73, %c0_74] : memref<1x512xf32, #tpu.memory_space<vmem>>, vector<1x512xf32>
      %217 = vector.broadcast %216 : vector<1x512xf32> to vector<2x512xf32>
      %218 = arith.addf %215, %217 : vector<2x512xf32>
      %219 = vector.extract_strided_slice %218 {offsets = [0, 0], sizes = [2, 128], strides = [1, 1]} : vector<2x512xf32> to vector<2x128xf32>
      %220 = arith.negf %219 : vector<2x128xf32>
      %221 = math.exp %220 : vector<2x128xf32>
      %cst_75 = arith.constant 1.000000e+00 : f32
      %222 = vector.broadcast %cst_75 : f32 to vector<2x128xf32>
      %223 = arith.addf %222, %221 : vector<2x128xf32>
      %224 = arith.divf %222, %223 : vector<2x128xf32>
      %225 = vector.extract_strided_slice %218 {offsets = [0, 128], sizes = [2, 128], strides = [1, 1]} : vector<2x512xf32> to vector<2x128xf32>
      %226 = arith.negf %225 : vector<2x128xf32>
      %227 = math.exp %226 : vector<2x128xf32>
      %cst_76 = arith.constant 1.000000e+00 : f32
      %228 = vector.broadcast %cst_76 : f32 to vector<2x128xf32>
      %229 = arith.addf %228, %227 : vector<2x128xf32>
      %230 = arith.divf %228, %229 : vector<2x128xf32>
      %231 = vector.extract_strided_slice %218 {offsets = [0, 256], sizes = [2, 128], strides = [1, 1]} : vector<2x512xf32> to vector<2x128xf32>
      %232 = math.tanh %231 : vector<2x128xf32>
      %233 = vector.extract_strided_slice %218 {offsets = [0, 384], sizes = [2, 128], strides = [1, 1]} : vector<2x512xf32> to vector<2x128xf32>
      %234 = arith.negf %233 : vector<2x128xf32>
      %235 = math.exp %234 : vector<2x128xf32>
      %cst_77 = arith.constant 1.000000e+00 : f32
      %236 = vector.broadcast %cst_77 : f32 to vector<2x128xf32>
      %237 = arith.addf %236, %235 : vector<2x128xf32>
      %238 = arith.divf %236, %237 : vector<2x128xf32>
      %239 = arith.mulf %230, %170 : vector<2x128xf32>
      %240 = arith.mulf %224, %232 : vector<2x128xf32>
      %241 = arith.addf %239, %240 : vector<2x128xf32>
      %242 = math.tanh %241 : vector<2x128xf32>
      %243 = arith.mulf %238, %242 : vector<2x128xf32>
      %244 = arith.select %174, %243, %169 : vector<2x128xi1>, vector<2x128xf32>
      %245 = arith.select %174, %241, %170 : vector<2x128xi1>, vector<2x128xf32>
      %c3_i32 = arith.constant 3 : i32
      %246 = vector.broadcast %c3_i32 : i32 to vector<2x1xi32>
      %247 = arith.cmpi sgt, %19, %246 : vector<2x1xi32>
      %248 = vector.shape_cast %247 : vector<2x1xi1> to vector<2x1xi1>
      %249 = vector.broadcast %248 : vector<2x1xi1> to vector<2x128xi1>
      %250 = arith.index_cast %c3_i32 : i32 to index
      %c0_78 = arith.constant 0 : index
      %c0_79 = arith.constant 0 : index
      %251 = vector.load %arg13[%250, %c0_78, %c0_79] : memref<8x2x512xf32, #tpu.memory_space<vmem>>, vector<1x2x512xf32>
      %252 = vector.shape_cast %251 : vector<1x2x512xf32> to vector<2x512xf32>
      %253 = arith.truncf %207 : vector<2x128xf32> to vector<2x128xbf16>
      %c0_80 = arith.constant 0 : index
      %c0_81 = arith.constant 0 : index
      %254 = vector.load %arg5[%c0_80, %c0_81] : memref<128x512xbf16, #tpu.memory_space<vmem>>, vector<128x512xbf16>
      %cst_82 = arith.constant dense<0.000000e+00> : vector<2x512xf32>
      %255 = tpu.matmul %253, %254, %cst_82 {dimension_numbers = #tpu.dot_dimension_numbers<[1], [0], [0], [1], [0, 0, 1, 1], [], []>} : vector<2x128xbf16>, vector<128x512xbf16>, vector<2x512xf32> -> vector<2x512xf32>
      %256 = arith.addf %252, %255 : vector<2x512xf32>
      %257 = vector.extract_strided_slice %256 {offsets = [0, 0], sizes = [2, 128], strides = [1, 1]} : vector<2x512xf32> to vector<2x128xf32>
      %258 = arith.negf %257 : vector<2x128xf32>
      %259 = math.exp %258 : vector<2x128xf32>
      %cst_83 = arith.constant 1.000000e+00 : f32
      %260 = vector.broadcast %cst_83 : f32 to vector<2x128xf32>
      %261 = arith.addf %260, %259 : vector<2x128xf32>
      %262 = arith.divf %260, %261 : vector<2x128xf32>
      %263 = vector.extract_strided_slice %256 {offsets = [0, 128], sizes = [2, 128], strides = [1, 1]} : vector<2x512xf32> to vector<2x128xf32>
      %264 = arith.negf %263 : vector<2x128xf32>
      %265 = math.exp %264 : vector<2x128xf32>
      %cst_84 = arith.constant 1.000000e+00 : f32
      %266 = vector.broadcast %cst_84 : f32 to vector<2x128xf32>
      %267 = arith.addf %266, %265 : vector<2x128xf32>
      %268 = arith.divf %266, %267 : vector<2x128xf32>
      %269 = vector.extract_strided_slice %256 {offsets = [0, 256], sizes = [2, 128], strides = [1, 1]} : vector<2x512xf32> to vector<2x128xf32>
      %270 = math.tanh %269 : vector<2x128xf32>
      %271 = vector.extract_strided_slice %256 {offsets = [0, 384], sizes = [2, 128], strides = [1, 1]} : vector<2x512xf32> to vector<2x128xf32>
      %272 = arith.negf %271 : vector<2x128xf32>
      %273 = math.exp %272 : vector<2x128xf32>
      %cst_85 = arith.constant 1.000000e+00 : f32
      %274 = vector.broadcast %cst_85 : f32 to vector<2x128xf32>
      %275 = arith.addf %274, %273 : vector<2x128xf32>
      %276 = arith.divf %274, %275 : vector<2x128xf32>
      %277 = arith.mulf %268, %208 : vector<2x128xf32>
      %278 = arith.mulf %262, %270 : vector<2x128xf32>
      %279 = arith.addf %277, %278 : vector<2x128xf32>
      %280 = math.tanh %279 : vector<2x128xf32>
      %281 = arith.mulf %276, %280 : vector<2x128xf32>
      %282 = arith.select %249, %281, %207 : vector<2x128xi1>, vector<2x128xf32>
      %283 = arith.select %249, %279, %208 : vector<2x128xi1>, vector<2x128xf32>
      %284 = arith.truncf %282 : vector<2x128xf32> to vector<2x128xbf16>
      %c0_86 = arith.constant 0 : index
      %c0_87 = arith.constant 0 : index
      %285 = vector.load %arg6[%c0_86, %c0_87] : memref<128x512xbf16, #tpu.memory_space<vmem>>, vector<128x512xbf16>
      %cst_88 = arith.constant dense<0.000000e+00> : vector<2x512xf32>
      %286 = tpu.matmul %284, %285, %cst_88 {dimension_numbers = #tpu.dot_dimension_numbers<[1], [0], [0], [1], [0, 0, 1, 1], [], []>} : vector<2x128xbf16>, vector<128x512xbf16>, vector<2x512xf32> -> vector<2x512xf32>
      %287 = arith.truncf %244 : vector<2x128xf32> to vector<2x128xbf16>
      %c0_89 = arith.constant 0 : index
      %c0_90 = arith.constant 0 : index
      %288 = vector.load %arg7[%c0_89, %c0_90] : memref<128x512xbf16, #tpu.memory_space<vmem>>, vector<128x512xbf16>
      %cst_91 = arith.constant dense<0.000000e+00> : vector<2x512xf32>
      %289 = tpu.matmul %287, %288, %cst_91 {dimension_numbers = #tpu.dot_dimension_numbers<[1], [0], [0], [1], [0, 0, 1, 1], [], []>} : vector<2x128xbf16>, vector<128x512xbf16>, vector<2x512xf32> -> vector<2x512xf32>
      %290 = arith.addf %286, %289 : vector<2x512xf32>
      %c0_92 = arith.constant 0 : index
      %c0_93 = arith.constant 0 : index
      %291 = vector.load %arg8[%c0_92, %c0_93] : memref<1x512xf32, #tpu.memory_space<vmem>>, vector<1x512xf32>
      %292 = vector.broadcast %291 : vector<1x512xf32> to vector<2x512xf32>
      %293 = arith.addf %290, %292 : vector<2x512xf32>
      %294 = vector.extract_strided_slice %293 {offsets = [0, 0], sizes = [2, 128], strides = [1, 1]} : vector<2x512xf32> to vector<2x128xf32>
      %295 = arith.negf %294 : vector<2x128xf32>
      %296 = math.exp %295 : vector<2x128xf32>
      %cst_94 = arith.constant 1.000000e+00 : f32
      %297 = vector.broadcast %cst_94 : f32 to vector<2x128xf32>
      %298 = arith.addf %297, %296 : vector<2x128xf32>
      %299 = arith.divf %297, %298 : vector<2x128xf32>
      %300 = vector.extract_strided_slice %293 {offsets = [0, 128], sizes = [2, 128], strides = [1, 1]} : vector<2x512xf32> to vector<2x128xf32>
      %301 = arith.negf %300 : vector<2x128xf32>
      %302 = math.exp %301 : vector<2x128xf32>
      %cst_95 = arith.constant 1.000000e+00 : f32
      %303 = vector.broadcast %cst_95 : f32 to vector<2x128xf32>
      %304 = arith.addf %303, %302 : vector<2x128xf32>
      %305 = arith.divf %303, %304 : vector<2x128xf32>
      %306 = vector.extract_strided_slice %293 {offsets = [0, 256], sizes = [2, 128], strides = [1, 1]} : vector<2x512xf32> to vector<2x128xf32>
      %307 = math.tanh %306 : vector<2x128xf32>
      %308 = vector.extract_strided_slice %293 {offsets = [0, 384], sizes = [2, 128], strides = [1, 1]} : vector<2x512xf32> to vector<2x128xf32>
      %309 = arith.negf %308 : vector<2x128xf32>
      %310 = math.exp %309 : vector<2x128xf32>
      %cst_96 = arith.constant 1.000000e+00 : f32
      %311 = vector.broadcast %cst_96 : f32 to vector<2x128xf32>
      %312 = arith.addf %311, %310 : vector<2x128xf32>
      %313 = arith.divf %311, %312 : vector<2x128xf32>
      %314 = arith.mulf %305, %245 : vector<2x128xf32>
      %315 = arith.mulf %299, %307 : vector<2x128xf32>
      %316 = arith.addf %314, %315 : vector<2x128xf32>
      %317 = math.tanh %316 : vector<2x128xf32>
      %318 = arith.mulf %313, %317 : vector<2x128xf32>
      %319 = arith.select %249, %318, %244 : vector<2x128xi1>, vector<2x128xf32>
      %320 = arith.select %249, %316, %245 : vector<2x128xi1>, vector<2x128xf32>
      %c4_i32 = arith.constant 4 : i32
      %321 = vector.broadcast %c4_i32 : i32 to vector<2x1xi32>
      %322 = arith.cmpi sgt, %19, %321 : vector<2x1xi32>
      %323 = vector.shape_cast %322 : vector<2x1xi1> to vector<2x1xi1>
      %324 = vector.broadcast %323 : vector<2x1xi1> to vector<2x128xi1>
      %325 = arith.index_cast %c4_i32 : i32 to index
      %c0_97 = arith.constant 0 : index
      %c0_98 = arith.constant 0 : index
      %326 = vector.load %arg13[%325, %c0_97, %c0_98] : memref<8x2x512xf32, #tpu.memory_space<vmem>>, vector<1x2x512xf32>
      %327 = vector.shape_cast %326 : vector<1x2x512xf32> to vector<2x512xf32>
      %328 = arith.truncf %282 : vector<2x128xf32> to vector<2x128xbf16>
      %c0_99 = arith.constant 0 : index
      %c0_100 = arith.constant 0 : index
      %329 = vector.load %arg5[%c0_99, %c0_100] : memref<128x512xbf16, #tpu.memory_space<vmem>>, vector<128x512xbf16>
      %cst_101 = arith.constant dense<0.000000e+00> : vector<2x512xf32>
      %330 = tpu.matmul %328, %329, %cst_101 {dimension_numbers = #tpu.dot_dimension_numbers<[1], [0], [0], [1], [0, 0, 1, 1], [], []>} : vector<2x128xbf16>, vector<128x512xbf16>, vector<2x512xf32> -> vector<2x512xf32>
      %331 = arith.addf %327, %330 : vector<2x512xf32>
      %332 = vector.extract_strided_slice %331 {offsets = [0, 0], sizes = [2, 128], strides = [1, 1]} : vector<2x512xf32> to vector<2x128xf32>
      %333 = arith.negf %332 : vector<2x128xf32>
      %334 = math.exp %333 : vector<2x128xf32>
      %cst_102 = arith.constant 1.000000e+00 : f32
      %335 = vector.broadcast %cst_102 : f32 to vector<2x128xf32>
      %336 = arith.addf %335, %334 : vector<2x128xf32>
      %337 = arith.divf %335, %336 : vector<2x128xf32>
      %338 = vector.extract_strided_slice %331 {offsets = [0, 128], sizes = [2, 128], strides = [1, 1]} : vector<2x512xf32> to vector<2x128xf32>
      %339 = arith.negf %338 : vector<2x128xf32>
      %340 = math.exp %339 : vector<2x128xf32>
      %cst_103 = arith.constant 1.000000e+00 : f32
      %341 = vector.broadcast %cst_103 : f32 to vector<2x128xf32>
      %342 = arith.addf %341, %340 : vector<2x128xf32>
      %343 = arith.divf %341, %342 : vector<2x128xf32>
      %344 = vector.extract_strided_slice %331 {offsets = [0, 256], sizes = [2, 128], strides = [1, 1]} : vector<2x512xf32> to vector<2x128xf32>
      %345 = math.tanh %344 : vector<2x128xf32>
      %346 = vector.extract_strided_slice %331 {offsets = [0, 384], sizes = [2, 128], strides = [1, 1]} : vector<2x512xf32> to vector<2x128xf32>
      %347 = arith.negf %346 : vector<2x128xf32>
      %348 = math.exp %347 : vector<2x128xf32>
      %cst_104 = arith.constant 1.000000e+00 : f32
      %349 = vector.broadcast %cst_104 : f32 to vector<2x128xf32>
      %350 = arith.addf %349, %348 : vector<2x128xf32>
      %351 = arith.divf %349, %350 : vector<2x128xf32>
      %352 = arith.mulf %343, %283 : vector<2x128xf32>
      %353 = arith.mulf %337, %345 : vector<2x128xf32>
      %354 = arith.addf %352, %353 : vector<2x128xf32>
      %355 = math.tanh %354 : vector<2x128xf32>
      %356 = arith.mulf %351, %355 : vector<2x128xf32>
      %357 = arith.select %324, %356, %282 : vector<2x128xi1>, vector<2x128xf32>
      %358 = arith.select %324, %354, %283 : vector<2x128xi1>, vector<2x128xf32>
      %359 = arith.truncf %357 : vector<2x128xf32> to vector<2x128xbf16>
      %c0_105 = arith.constant 0 : index
      %c0_106 = arith.constant 0 : index
      %360 = vector.load %arg6[%c0_105, %c0_106] : memref<128x512xbf16, #tpu.memory_space<vmem>>, vector<128x512xbf16>
      %cst_107 = arith.constant dense<0.000000e+00> : vector<2x512xf32>
      %361 = tpu.matmul %359, %360, %cst_107 {dimension_numbers = #tpu.dot_dimension_numbers<[1], [0], [0], [1], [0, 0, 1, 1], [], []>} : vector<2x128xbf16>, vector<128x512xbf16>, vector<2x512xf32> -> vector<2x512xf32>
      %362 = arith.truncf %319 : vector<2x128xf32> to vector<2x128xbf16>
      %c0_108 = arith.constant 0 : index
      %c0_109 = arith.constant 0 : index
      %363 = vector.load %arg7[%c0_108, %c0_109] : memref<128x512xbf16, #tpu.memory_space<vmem>>, vector<128x512xbf16>
      %cst_110 = arith.constant dense<0.000000e+00> : vector<2x512xf32>
      %364 = tpu.matmul %362, %363, %cst_110 {dimension_numbers = #tpu.dot_dimension_numbers<[1], [0], [0], [1], [0, 0, 1, 1], [], []>} : vector<2x128xbf16>, vector<128x512xbf16>, vector<2x512xf32> -> vector<2x512xf32>
      %365 = arith.addf %361, %364 : vector<2x512xf32>
      %c0_111 = arith.constant 0 : index
      %c0_112 = arith.constant 0 : index
      %366 = vector.load %arg8[%c0_111, %c0_112] : memref<1x512xf32, #tpu.memory_space<vmem>>, vector<1x512xf32>
      %367 = vector.broadcast %366 : vector<1x512xf32> to vector<2x512xf32>
      %368 = arith.addf %365, %367 : vector<2x512xf32>
      %369 = vector.extract_strided_slice %368 {offsets = [0, 0], sizes = [2, 128], strides = [1, 1]} : vector<2x512xf32> to vector<2x128xf32>
      %370 = arith.negf %369 : vector<2x128xf32>
      %371 = math.exp %370 : vector<2x128xf32>
      %cst_113 = arith.constant 1.000000e+00 : f32
      %372 = vector.broadcast %cst_113 : f32 to vector<2x128xf32>
      %373 = arith.addf %372, %371 : vector<2x128xf32>
      %374 = arith.divf %372, %373 : vector<2x128xf32>
      %375 = vector.extract_strided_slice %368 {offsets = [0, 128], sizes = [2, 128], strides = [1, 1]} : vector<2x512xf32> to vector<2x128xf32>
      %376 = arith.negf %375 : vector<2x128xf32>
      %377 = math.exp %376 : vector<2x128xf32>
      %cst_114 = arith.constant 1.000000e+00 : f32
      %378 = vector.broadcast %cst_114 : f32 to vector<2x128xf32>
      %379 = arith.addf %378, %377 : vector<2x128xf32>
      %380 = arith.divf %378, %379 : vector<2x128xf32>
      %381 = vector.extract_strided_slice %368 {offsets = [0, 256], sizes = [2, 128], strides = [1, 1]} : vector<2x512xf32> to vector<2x128xf32>
      %382 = math.tanh %381 : vector<2x128xf32>
      %383 = vector.extract_strided_slice %368 {offsets = [0, 384], sizes = [2, 128], strides = [1, 1]} : vector<2x512xf32> to vector<2x128xf32>
      %384 = arith.negf %383 : vector<2x128xf32>
      %385 = math.exp %384 : vector<2x128xf32>
      %cst_115 = arith.constant 1.000000e+00 : f32
      %386 = vector.broadcast %cst_115 : f32 to vector<2x128xf32>
      %387 = arith.addf %386, %385 : vector<2x128xf32>
      %388 = arith.divf %386, %387 : vector<2x128xf32>
      %389 = arith.mulf %380, %320 : vector<2x128xf32>
      %390 = arith.mulf %374, %382 : vector<2x128xf32>
      %391 = arith.addf %389, %390 : vector<2x128xf32>
      %392 = math.tanh %391 : vector<2x128xf32>
      %393 = arith.mulf %388, %392 : vector<2x128xf32>
      %394 = arith.select %324, %393, %319 : vector<2x128xi1>, vector<2x128xf32>
      %395 = arith.select %324, %391, %320 : vector<2x128xi1>, vector<2x128xf32>
      %c5_i32 = arith.constant 5 : i32
      %396 = vector.broadcast %c5_i32 : i32 to vector<2x1xi32>
      %397 = arith.cmpi sgt, %19, %396 : vector<2x1xi32>
      %398 = vector.shape_cast %397 : vector<2x1xi1> to vector<2x1xi1>
      %399 = vector.broadcast %398 : vector<2x1xi1> to vector<2x128xi1>
      %400 = arith.index_cast %c5_i32 : i32 to index
      %c0_116 = arith.constant 0 : index
      %c0_117 = arith.constant 0 : index
      %401 = vector.load %arg13[%400, %c0_116, %c0_117] : memref<8x2x512xf32, #tpu.memory_space<vmem>>, vector<1x2x512xf32>
      %402 = vector.shape_cast %401 : vector<1x2x512xf32> to vector<2x512xf32>
      %403 = arith.truncf %357 : vector<2x128xf32> to vector<2x128xbf16>
      %c0_118 = arith.constant 0 : index
      %c0_119 = arith.constant 0 : index
      %404 = vector.load %arg5[%c0_118, %c0_119] : memref<128x512xbf16, #tpu.memory_space<vmem>>, vector<128x512xbf16>
      %cst_120 = arith.constant dense<0.000000e+00> : vector<2x512xf32>
      %405 = tpu.matmul %403, %404, %cst_120 {dimension_numbers = #tpu.dot_dimension_numbers<[1], [0], [0], [1], [0, 0, 1, 1], [], []>} : vector<2x128xbf16>, vector<128x512xbf16>, vector<2x512xf32> -> vector<2x512xf32>
      %406 = arith.addf %402, %405 : vector<2x512xf32>
      %407 = vector.extract_strided_slice %406 {offsets = [0, 0], sizes = [2, 128], strides = [1, 1]} : vector<2x512xf32> to vector<2x128xf32>
      %408 = arith.negf %407 : vector<2x128xf32>
      %409 = math.exp %408 : vector<2x128xf32>
      %cst_121 = arith.constant 1.000000e+00 : f32
      %410 = vector.broadcast %cst_121 : f32 to vector<2x128xf32>
      %411 = arith.addf %410, %409 : vector<2x128xf32>
      %412 = arith.divf %410, %411 : vector<2x128xf32>
      %413 = vector.extract_strided_slice %406 {offsets = [0, 128], sizes = [2, 128], strides = [1, 1]} : vector<2x512xf32> to vector<2x128xf32>
      %414 = arith.negf %413 : vector<2x128xf32>
      %415 = math.exp %414 : vector<2x128xf32>
      %cst_122 = arith.constant 1.000000e+00 : f32
      %416 = vector.broadcast %cst_122 : f32 to vector<2x128xf32>
      %417 = arith.addf %416, %415 : vector<2x128xf32>
      %418 = arith.divf %416, %417 : vector<2x128xf32>
      %419 = vector.extract_strided_slice %406 {offsets = [0, 256], sizes = [2, 128], strides = [1, 1]} : vector<2x512xf32> to vector<2x128xf32>
      %420 = math.tanh %419 : vector<2x128xf32>
      %421 = vector.extract_strided_slice %406 {offsets = [0, 384], sizes = [2, 128], strides = [1, 1]} : vector<2x512xf32> to vector<2x128xf32>
      %422 = arith.negf %421 : vector<2x128xf32>
      %423 = math.exp %422 : vector<2x128xf32>
      %cst_123 = arith.constant 1.000000e+00 : f32
      %424 = vector.broadcast %cst_123 : f32 to vector<2x128xf32>
      %425 = arith.addf %424, %423 : vector<2x128xf32>
      %426 = arith.divf %424, %425 : vector<2x128xf32>
      %427 = arith.mulf %418, %358 : vector<2x128xf32>
      %428 = arith.mulf %412, %420 : vector<2x128xf32>
      %429 = arith.addf %427, %428 : vector<2x128xf32>
      %430 = math.tanh %429 : vector<2x128xf32>
      %431 = arith.mulf %426, %430 : vector<2x128xf32>
      %432 = arith.select %399, %431, %357 : vector<2x128xi1>, vector<2x128xf32>
      %433 = arith.select %399, %429, %358 : vector<2x128xi1>, vector<2x128xf32>
      %434 = arith.truncf %432 : vector<2x128xf32> to vector<2x128xbf16>
      %c0_124 = arith.constant 0 : index
      %c0_125 = arith.constant 0 : index
      %435 = vector.load %arg6[%c0_124, %c0_125] : memref<128x512xbf16, #tpu.memory_space<vmem>>, vector<128x512xbf16>
      %cst_126 = arith.constant dense<0.000000e+00> : vector<2x512xf32>
      %436 = tpu.matmul %434, %435, %cst_126 {dimension_numbers = #tpu.dot_dimension_numbers<[1], [0], [0], [1], [0, 0, 1, 1], [], []>} : vector<2x128xbf16>, vector<128x512xbf16>, vector<2x512xf32> -> vector<2x512xf32>
      %437 = arith.truncf %394 : vector<2x128xf32> to vector<2x128xbf16>
      %c0_127 = arith.constant 0 : index
      %c0_128 = arith.constant 0 : index
      %438 = vector.load %arg7[%c0_127, %c0_128] : memref<128x512xbf16, #tpu.memory_space<vmem>>, vector<128x512xbf16>
      %cst_129 = arith.constant dense<0.000000e+00> : vector<2x512xf32>
      %439 = tpu.matmul %437, %438, %cst_129 {dimension_numbers = #tpu.dot_dimension_numbers<[1], [0], [0], [1], [0, 0, 1, 1], [], []>} : vector<2x128xbf16>, vector<128x512xbf16>, vector<2x512xf32> -> vector<2x512xf32>
      %440 = arith.addf %436, %439 : vector<2x512xf32>
      %c0_130 = arith.constant 0 : index
      %c0_131 = arith.constant 0 : index
      %441 = vector.load %arg8[%c0_130, %c0_131] : memref<1x512xf32, #tpu.memory_space<vmem>>, vector<1x512xf32>
      %442 = vector.broadcast %441 : vector<1x512xf32> to vector<2x512xf32>
      %443 = arith.addf %440, %442 : vector<2x512xf32>
      %444 = vector.extract_strided_slice %443 {offsets = [0, 0], sizes = [2, 128], strides = [1, 1]} : vector<2x512xf32> to vector<2x128xf32>
      %445 = arith.negf %444 : vector<2x128xf32>
      %446 = math.exp %445 : vector<2x128xf32>
      %cst_132 = arith.constant 1.000000e+00 : f32
      %447 = vector.broadcast %cst_132 : f32 to vector<2x128xf32>
      %448 = arith.addf %447, %446 : vector<2x128xf32>
      %449 = arith.divf %447, %448 : vector<2x128xf32>
      %450 = vector.extract_strided_slice %443 {offsets = [0, 128], sizes = [2, 128], strides = [1, 1]} : vector<2x512xf32> to vector<2x128xf32>
      %451 = arith.negf %450 : vector<2x128xf32>
      %452 = math.exp %451 : vector<2x128xf32>
      %cst_133 = arith.constant 1.000000e+00 : f32
      %453 = vector.broadcast %cst_133 : f32 to vector<2x128xf32>
      %454 = arith.addf %453, %452 : vector<2x128xf32>
      %455 = arith.divf %453, %454 : vector<2x128xf32>
      %456 = vector.extract_strided_slice %443 {offsets = [0, 256], sizes = [2, 128], strides = [1, 1]} : vector<2x512xf32> to vector<2x128xf32>
      %457 = math.tanh %456 : vector<2x128xf32>
      %458 = vector.extract_strided_slice %443 {offsets = [0, 384], sizes = [2, 128], strides = [1, 1]} : vector<2x512xf32> to vector<2x128xf32>
      %459 = arith.negf %458 : vector<2x128xf32>
      %460 = math.exp %459 : vector<2x128xf32>
      %cst_134 = arith.constant 1.000000e+00 : f32
      %461 = vector.broadcast %cst_134 : f32 to vector<2x128xf32>
      %462 = arith.addf %461, %460 : vector<2x128xf32>
      %463 = arith.divf %461, %462 : vector<2x128xf32>
      %464 = arith.mulf %455, %395 : vector<2x128xf32>
      %465 = arith.mulf %449, %457 : vector<2x128xf32>
      %466 = arith.addf %464, %465 : vector<2x128xf32>
      %467 = math.tanh %466 : vector<2x128xf32>
      %468 = arith.mulf %463, %467 : vector<2x128xf32>
      %469 = arith.select %399, %468, %394 : vector<2x128xi1>, vector<2x128xf32>
      %470 = arith.select %399, %466, %395 : vector<2x128xi1>, vector<2x128xf32>
      %c6_i32 = arith.constant 6 : i32
      %471 = vector.broadcast %c6_i32 : i32 to vector<2x1xi32>
      %472 = arith.cmpi sgt, %19, %471 : vector<2x1xi32>
      %473 = vector.shape_cast %472 : vector<2x1xi1> to vector<2x1xi1>
      %474 = vector.broadcast %473 : vector<2x1xi1> to vector<2x128xi1>
      %475 = arith.index_cast %c6_i32 : i32 to index
      %c0_135 = arith.constant 0 : index
      %c0_136 = arith.constant 0 : index
      %476 = vector.load %arg13[%475, %c0_135, %c0_136] : memref<8x2x512xf32, #tpu.memory_space<vmem>>, vector<1x2x512xf32>
      %477 = vector.shape_cast %476 : vector<1x2x512xf32> to vector<2x512xf32>
      %478 = arith.truncf %432 : vector<2x128xf32> to vector<2x128xbf16>
      %c0_137 = arith.constant 0 : index
      %c0_138 = arith.constant 0 : index
      %479 = vector.load %arg5[%c0_137, %c0_138] : memref<128x512xbf16, #tpu.memory_space<vmem>>, vector<128x512xbf16>
      %cst_139 = arith.constant dense<0.000000e+00> : vector<2x512xf32>
      %480 = tpu.matmul %478, %479, %cst_139 {dimension_numbers = #tpu.dot_dimension_numbers<[1], [0], [0], [1], [0, 0, 1, 1], [], []>} : vector<2x128xbf16>, vector<128x512xbf16>, vector<2x512xf32> -> vector<2x512xf32>
      %481 = arith.addf %477, %480 : vector<2x512xf32>
      %482 = vector.extract_strided_slice %481 {offsets = [0, 0], sizes = [2, 128], strides = [1, 1]} : vector<2x512xf32> to vector<2x128xf32>
      %483 = arith.negf %482 : vector<2x128xf32>
      %484 = math.exp %483 : vector<2x128xf32>
      %cst_140 = arith.constant 1.000000e+00 : f32
      %485 = vector.broadcast %cst_140 : f32 to vector<2x128xf32>
      %486 = arith.addf %485, %484 : vector<2x128xf32>
      %487 = arith.divf %485, %486 : vector<2x128xf32>
      %488 = vector.extract_strided_slice %481 {offsets = [0, 128], sizes = [2, 128], strides = [1, 1]} : vector<2x512xf32> to vector<2x128xf32>
      %489 = arith.negf %488 : vector<2x128xf32>
      %490 = math.exp %489 : vector<2x128xf32>
      %cst_141 = arith.constant 1.000000e+00 : f32
      %491 = vector.broadcast %cst_141 : f32 to vector<2x128xf32>
      %492 = arith.addf %491, %490 : vector<2x128xf32>
      %493 = arith.divf %491, %492 : vector<2x128xf32>
      %494 = vector.extract_strided_slice %481 {offsets = [0, 256], sizes = [2, 128], strides = [1, 1]} : vector<2x512xf32> to vector<2x128xf32>
      %495 = math.tanh %494 : vector<2x128xf32>
      %496 = vector.extract_strided_slice %481 {offsets = [0, 384], sizes = [2, 128], strides = [1, 1]} : vector<2x512xf32> to vector<2x128xf32>
      %497 = arith.negf %496 : vector<2x128xf32>
      %498 = math.exp %497 : vector<2x128xf32>
      %cst_142 = arith.constant 1.000000e+00 : f32
      %499 = vector.broadcast %cst_142 : f32 to vector<2x128xf32>
      %500 = arith.addf %499, %498 : vector<2x128xf32>
      %501 = arith.divf %499, %500 : vector<2x128xf32>
      %502 = arith.mulf %493, %433 : vector<2x128xf32>
      %503 = arith.mulf %487, %495 : vector<2x128xf32>
      %504 = arith.addf %502, %503 : vector<2x128xf32>
      %505 = math.tanh %504 : vector<2x128xf32>
      %506 = arith.mulf %501, %505 : vector<2x128xf32>
      %507 = arith.select %474, %506, %432 : vector<2x128xi1>, vector<2x128xf32>
      %508 = arith.select %474, %504, %433 : vector<2x128xi1>, vector<2x128xf32>
      %509 = arith.truncf %507 : vector<2x128xf32> to vector<2x128xbf16>
      %c0_143 = arith.constant 0 : index
      %c0_144 = arith.constant 0 : index
      %510 = vector.load %arg6[%c0_143, %c0_144] : memref<128x512xbf16, #tpu.memory_space<vmem>>, vector<128x512xbf16>
      %cst_145 = arith.constant dense<0.000000e+00> : vector<2x512xf32>
      %511 = tpu.matmul %509, %510, %cst_145 {dimension_numbers = #tpu.dot_dimension_numbers<[1], [0], [0], [1], [0, 0, 1, 1], [], []>} : vector<2x128xbf16>, vector<128x512xbf16>, vector<2x512xf32> -> vector<2x512xf32>
      %512 = arith.truncf %469 : vector<2x128xf32> to vector<2x128xbf16>
      %c0_146 = arith.constant 0 : index
      %c0_147 = arith.constant 0 : index
      %513 = vector.load %arg7[%c0_146, %c0_147] : memref<128x512xbf16, #tpu.memory_space<vmem>>, vector<128x512xbf16>
      %cst_148 = arith.constant dense<0.000000e+00> : vector<2x512xf32>
      %514 = tpu.matmul %512, %513, %cst_148 {dimension_numbers = #tpu.dot_dimension_numbers<[1], [0], [0], [1], [0, 0, 1, 1], [], []>} : vector<2x128xbf16>, vector<128x512xbf16>, vector<2x512xf32> -> vector<2x512xf32>
      %515 = arith.addf %511, %514 : vector<2x512xf32>
      %c0_149 = arith.constant 0 : index
      %c0_150 = arith.constant 0 : index
      %516 = vector.load %arg8[%c0_149, %c0_150] : memref<1x512xf32, #tpu.memory_space<vmem>>, vector<1x512xf32>
      %517 = vector.broadcast %516 : vector<1x512xf32> to vector<2x512xf32>
      %518 = arith.addf %515, %517 : vector<2x512xf32>
      %519 = vector.extract_strided_slice %518 {offsets = [0, 0], sizes = [2, 128], strides = [1, 1]} : vector<2x512xf32> to vector<2x128xf32>
      %520 = arith.negf %519 : vector<2x128xf32>
      %521 = math.exp %520 : vector<2x128xf32>
      %cst_151 = arith.constant 1.000000e+00 : f32
      %522 = vector.broadcast %cst_151 : f32 to vector<2x128xf32>
      %523 = arith.addf %522, %521 : vector<2x128xf32>
      %524 = arith.divf %522, %523 : vector<2x128xf32>
      %525 = vector.extract_strided_slice %518 {offsets = [0, 128], sizes = [2, 128], strides = [1, 1]} : vector<2x512xf32> to vector<2x128xf32>
      %526 = arith.negf %525 : vector<2x128xf32>
      %527 = math.exp %526 : vector<2x128xf32>
      %cst_152 = arith.constant 1.000000e+00 : f32
      %528 = vector.broadcast %cst_152 : f32 to vector<2x128xf32>
      %529 = arith.addf %528, %527 : vector<2x128xf32>
      %530 = arith.divf %528, %529 : vector<2x128xf32>
      %531 = vector.extract_strided_slice %518 {offsets = [0, 256], sizes = [2, 128], strides = [1, 1]} : vector<2x512xf32> to vector<2x128xf32>
      %532 = math.tanh %531 : vector<2x128xf32>
      %533 = vector.extract_strided_slice %518 {offsets = [0, 384], sizes = [2, 128], strides = [1, 1]} : vector<2x512xf32> to vector<2x128xf32>
      %534 = arith.negf %533 : vector<2x128xf32>
      %535 = math.exp %534 : vector<2x128xf32>
      %cst_153 = arith.constant 1.000000e+00 : f32
      %536 = vector.broadcast %cst_153 : f32 to vector<2x128xf32>
      %537 = arith.addf %536, %535 : vector<2x128xf32>
      %538 = arith.divf %536, %537 : vector<2x128xf32>
      %539 = arith.mulf %530, %470 : vector<2x128xf32>
      %540 = arith.mulf %524, %532 : vector<2x128xf32>
      %541 = arith.addf %539, %540 : vector<2x128xf32>
      %542 = math.tanh %541 : vector<2x128xf32>
      %543 = arith.mulf %538, %542 : vector<2x128xf32>
      %544 = arith.select %474, %543, %469 : vector<2x128xi1>, vector<2x128xf32>
      %545 = arith.select %474, %541, %470 : vector<2x128xi1>, vector<2x128xf32>
      %c7_i32 = arith.constant 7 : i32
      %546 = vector.broadcast %c7_i32 : i32 to vector<2x1xi32>
      %547 = arith.cmpi sgt, %19, %546 : vector<2x1xi32>
      %548 = vector.shape_cast %547 : vector<2x1xi1> to vector<2x1xi1>
      %549 = vector.broadcast %548 : vector<2x1xi1> to vector<2x128xi1>
      %550 = arith.index_cast %c7_i32 : i32 to index
      %c0_154 = arith.constant 0 : index
      %c0_155 = arith.constant 0 : index
      %551 = vector.load %arg13[%550, %c0_154, %c0_155] : memref<8x2x512xf32, #tpu.memory_space<vmem>>, vector<1x2x512xf32>
      %552 = vector.shape_cast %551 : vector<1x2x512xf32> to vector<2x512xf32>
      %553 = arith.truncf %507 : vector<2x128xf32> to vector<2x128xbf16>
      %c0_156 = arith.constant 0 : index
      %c0_157 = arith.constant 0 : index
      %554 = vector.load %arg5[%c0_156, %c0_157] : memref<128x512xbf16, #tpu.memory_space<vmem>>, vector<128x512xbf16>
      %cst_158 = arith.constant dense<0.000000e+00> : vector<2x512xf32>
      %555 = tpu.matmul %553, %554, %cst_158 {dimension_numbers = #tpu.dot_dimension_numbers<[1], [0], [0], [1], [0, 0, 1, 1], [], []>} : vector<2x128xbf16>, vector<128x512xbf16>, vector<2x512xf32> -> vector<2x512xf32>
      %556 = arith.addf %552, %555 : vector<2x512xf32>
      %557 = vector.extract_strided_slice %556 {offsets = [0, 0], sizes = [2, 128], strides = [1, 1]} : vector<2x512xf32> to vector<2x128xf32>
      %558 = arith.negf %557 : vector<2x128xf32>
      %559 = math.exp %558 : vector<2x128xf32>
      %cst_159 = arith.constant 1.000000e+00 : f32
      %560 = vector.broadcast %cst_159 : f32 to vector<2x128xf32>
      %561 = arith.addf %560, %559 : vector<2x128xf32>
      %562 = arith.divf %560, %561 : vector<2x128xf32>
      %563 = vector.extract_strided_slice %556 {offsets = [0, 128], sizes = [2, 128], strides = [1, 1]} : vector<2x512xf32> to vector<2x128xf32>
      %564 = arith.negf %563 : vector<2x128xf32>
      %565 = math.exp %564 : vector<2x128xf32>
      %cst_160 = arith.constant 1.000000e+00 : f32
      %566 = vector.broadcast %cst_160 : f32 to vector<2x128xf32>
      %567 = arith.addf %566, %565 : vector<2x128xf32>
      %568 = arith.divf %566, %567 : vector<2x128xf32>
      %569 = vector.extract_strided_slice %556 {offsets = [0, 256], sizes = [2, 128], strides = [1, 1]} : vector<2x512xf32> to vector<2x128xf32>
      %570 = math.tanh %569 : vector<2x128xf32>
      %571 = vector.extract_strided_slice %556 {offsets = [0, 384], sizes = [2, 128], strides = [1, 1]} : vector<2x512xf32> to vector<2x128xf32>
      %572 = arith.negf %571 : vector<2x128xf32>
      %573 = math.exp %572 : vector<2x128xf32>
      %cst_161 = arith.constant 1.000000e+00 : f32
      %574 = vector.broadcast %cst_161 : f32 to vector<2x128xf32>
      %575 = arith.addf %574, %573 : vector<2x128xf32>
      %576 = arith.divf %574, %575 : vector<2x128xf32>
      %577 = arith.mulf %568, %508 : vector<2x128xf32>
      %578 = arith.mulf %562, %570 : vector<2x128xf32>
      %579 = arith.addf %577, %578 : vector<2x128xf32>
      %580 = math.tanh %579 : vector<2x128xf32>
      %581 = arith.mulf %576, %580 : vector<2x128xf32>
      %582 = arith.select %549, %581, %507 : vector<2x128xi1>, vector<2x128xf32>
      %583 = arith.select %549, %579, %508 : vector<2x128xi1>, vector<2x128xf32>
      %584 = arith.truncf %582 : vector<2x128xf32> to vector<2x128xbf16>
      %c0_162 = arith.constant 0 : index
      %c0_163 = arith.constant 0 : index
      %585 = vector.load %arg6[%c0_162, %c0_163] : memref<128x512xbf16, #tpu.memory_space<vmem>>, vector<128x512xbf16>
      %cst_164 = arith.constant dense<0.000000e+00> : vector<2x512xf32>
      %586 = tpu.matmul %584, %585, %cst_164 {dimension_numbers = #tpu.dot_dimension_numbers<[1], [0], [0], [1], [0, 0, 1, 1], [], []>} : vector<2x128xbf16>, vector<128x512xbf16>, vector<2x512xf32> -> vector<2x512xf32>
      %587 = arith.truncf %544 : vector<2x128xf32> to vector<2x128xbf16>
      %c0_165 = arith.constant 0 : index
      %c0_166 = arith.constant 0 : index
      %588 = vector.load %arg7[%c0_165, %c0_166] : memref<128x512xbf16, #tpu.memory_space<vmem>>, vector<128x512xbf16>
      %cst_167 = arith.constant dense<0.000000e+00> : vector<2x512xf32>
      %589 = tpu.matmul %587, %588, %cst_167 {dimension_numbers = #tpu.dot_dimension_numbers<[1], [0], [0], [1], [0, 0, 1, 1], [], []>} : vector<2x128xbf16>, vector<128x512xbf16>, vector<2x512xf32> -> vector<2x512xf32>
      %590 = arith.addf %586, %589 : vector<2x512xf32>
      %c0_168 = arith.constant 0 : index
      %c0_169 = arith.constant 0 : index
      %591 = vector.load %arg8[%c0_168, %c0_169] : memref<1x512xf32, #tpu.memory_space<vmem>>, vector<1x512xf32>
      %592 = vector.broadcast %591 : vector<1x512xf32> to vector<2x512xf32>
      %593 = arith.addf %590, %592 : vector<2x512xf32>
      %594 = vector.extract_strided_slice %593 {offsets = [0, 0], sizes = [2, 128], strides = [1, 1]} : vector<2x512xf32> to vector<2x128xf32>
      %595 = arith.negf %594 : vector<2x128xf32>
      %596 = math.exp %595 : vector<2x128xf32>
      %cst_170 = arith.constant 1.000000e+00 : f32
      %597 = vector.broadcast %cst_170 : f32 to vector<2x128xf32>
      %598 = arith.addf %597, %596 : vector<2x128xf32>
      %599 = arith.divf %597, %598 : vector<2x128xf32>
      %600 = vector.extract_strided_slice %593 {offsets = [0, 128], sizes = [2, 128], strides = [1, 1]} : vector<2x512xf32> to vector<2x128xf32>
      %601 = arith.negf %600 : vector<2x128xf32>
      %602 = math.exp %601 : vector<2x128xf32>
      %cst_171 = arith.constant 1.000000e+00 : f32
      %603 = vector.broadcast %cst_171 : f32 to vector<2x128xf32>
      %604 = arith.addf %603, %602 : vector<2x128xf32>
      %605 = arith.divf %603, %604 : vector<2x128xf32>
      %606 = vector.extract_strided_slice %593 {offsets = [0, 256], sizes = [2, 128], strides = [1, 1]} : vector<2x512xf32> to vector<2x128xf32>
      %607 = math.tanh %606 : vector<2x128xf32>
      %608 = vector.extract_strided_slice %593 {offsets = [0, 384], sizes = [2, 128], strides = [1, 1]} : vector<2x512xf32> to vector<2x128xf32>
      %609 = arith.negf %608 : vector<2x128xf32>
      %610 = math.exp %609 : vector<2x128xf32>
      %cst_172 = arith.constant 1.000000e+00 : f32
      %611 = vector.broadcast %cst_172 : f32 to vector<2x128xf32>
      %612 = arith.addf %611, %610 : vector<2x128xf32>
      %613 = arith.divf %611, %612 : vector<2x128xf32>
      %614 = arith.mulf %605, %545 : vector<2x128xf32>
      %615 = arith.mulf %599, %607 : vector<2x128xf32>
      %616 = arith.addf %614, %615 : vector<2x128xf32>
      %617 = math.tanh %616 : vector<2x128xf32>
      %618 = arith.mulf %613, %617 : vector<2x128xf32>
      %619 = arith.select %549, %618, %544 : vector<2x128xi1>, vector<2x128xf32>
      %620 = arith.select %549, %616, %545 : vector<2x128xi1>, vector<2x128xf32>
      %c8_i32 = arith.constant 8 : i32
      %cst_173 = arith.constant 0.000000e+00 : f32
      %621 = vector.broadcast %cst_173 : f32 to vector<2x128xf32>
      %622 = arith.maximumf %619, %621 : vector<2x128xf32>
      %623 = arith.truncf %622 : vector<2x128xf32> to vector<2x128xbf16>
      %c0_174 = arith.constant 0 : index
      %c0_175 = arith.constant 0 : index
      %624 = vector.load %arg9[%c0_174, %c0_175] : memref<128x256xbf16, #tpu.memory_space<vmem>>, vector<128x256xbf16>
      %cst_176 = arith.constant dense<0.000000e+00> : vector<2x256xf32>
      %625 = tpu.matmul %623, %624, %cst_176 {dimension_numbers = #tpu.dot_dimension_numbers<[1], [0], [0], [1], [0, 0, 1, 1], [], []>} : vector<2x128xbf16>, vector<128x256xbf16>, vector<2x256xf32> -> vector<2x256xf32>
      %c0_177 = arith.constant 0 : index
      %c0_178 = arith.constant 0 : index
      %626 = vector.load %arg10[%c0_177, %c0_178] : memref<1x256xf32, #tpu.memory_space<vmem>>, vector<1x256xf32>
      %627 = vector.broadcast %626 : vector<1x256xf32> to vector<2x256xf32>
      %628 = arith.addf %625, %627 : vector<2x256xf32>
      %c0_179 = arith.constant 0 : index
      %c0_180 = arith.constant 0 : index
      %629 = vector.load %arg11[%c0_179, %c0_180] : memref<2x256xf32, #tpu.memory_space<vmem>>, vector<2x256xf32>
      tpu.vector_store %arg11[%c0_179, %c0_180], %628 {strides = array<i32>} : memref<2x256xf32, #tpu.memory_space<vmem>>, vector<2x256xf32>,
    } else {
    }
    return
  }
  func.func @transform_0(%arg0: i32) -> (i32, i32) {
    %c0_i32 = arith.constant 0 : i32
    %c0_i32_0 = arith.constant 0 : i32
    return %c0_i32, %arg0 : i32, i32
  }
  func.func @transform_1(%arg0: i32) -> (i32, i32) {
    %c0_i32 = arith.constant 0 : i32
    %c0_i32_0 = arith.constant 0 : i32
    return %arg0, %c0_i32 : i32, i32
  }
  func.func @transform_2(%arg0: i32) -> (i32, i32) {
    %c0_i32 = arith.constant 0 : i32
    %c0_i32_0 = arith.constant 0 : i32
    %c0_i32_1 = arith.constant 0 : i32
    return %c0_i32, %c0_i32_0 : i32, i32
  }
  func.func @transform_3(%arg0: i32) -> (i32, i32) {
    %c0_i32 = arith.constant 0 : i32
    %c0_i32_0 = arith.constant 0 : i32
    %c0_i32_1 = arith.constant 0 : i32
    return %c0_i32, %c0_i32_0 : i32, i32
  }
  func.func @transform_4(%arg0: i32) -> (i32, i32) {
    %c0_i32 = arith.constant 0 : i32
    %c0_i32_0 = arith.constant 0 : i32
    %c0_i32_1 = arith.constant 0 : i32
    return %c0_i32, %c0_i32_0 : i32, i32
  }
  func.func @transform_5(%arg0: i32) -> (i32, i32) {
    %c0_i32 = arith.constant 0 : i32
    %c0_i32_0 = arith.constant 0 : i32
    %c0_i32_1 = arith.constant 0 : i32
    return %c0_i32, %c0_i32_0 : i32, i32
  }
  func.func @transform_6(%arg0: i32) -> (i32, i32) {
    %c0_i32 = arith.constant 0 : i32
    %c0_i32_0 = arith.constant 0 : i32
    %c0_i32_1 = arith.constant 0 : i32
    return %c0_i32, %c0_i32_0 : i32, i32
  }
  func.func @transform_7(%arg0: i32) -> (i32, i32) {
    %c0_i32 = arith.constant 0 : i32
    %c0_i32_0 = arith.constant 0 : i32
    %c0_i32_1 = arith.constant 0 : i32
    return %c0_i32, %c0_i32_0 : i32, i32
  }
  func.func @transform_8(%arg0: i32) -> (i32, i32) {
    %c0_i32 = arith.constant 0 : i32
    %c0_i32_0 = arith.constant 0 : i32
    %c0_i32_1 = arith.constant 0 : i32
    return %c0_i32, %c0_i32_0 : i32, i32
  }
  func.func @transform_9(%arg0: i32) -> (i32, i32) {
    %c0_i32 = arith.constant 0 : i32
    %c0_i32_0 = arith.constant 0 : i32
    %c0_i32_1 = arith.constant 0 : i32
    return %c0_i32, %c0_i32_0 : i32, i32
  }
  func.func @transform_10(%arg0: i32) -> (i32, i32) {
    %c0_i32 = arith.constant 0 : i32
    %c0_i32_0 = arith.constant 0 : i32
    %c0_i32_1 = arith.constant 0 : i32
    return %c0_i32, %c0_i32_0 : i32, i32
  }
}

</mosaic_0001>

<llo_original>
// kernel: bert_sentence_encoder_lstm.1
$region0: #{bert_sentence_encoder_lstm.1}
  #allocation0 [shape = 'u32[]', space=smem, size = 0x4, offset = 0x4, fixed_abs, tag = 'smem constant byte address 0x4 - core index']
  #allocation1 [shape = 'u32[144,128]{1,0:T(1,128)}', space=vmem, size = 0x12000, scoped, tag = 'internal scratch']
  #allocation2 [shape = 'f32[16,512]{1,0:T(8,128)}', space=vmem, size = 0x8000, scoped, tag = 'scratch operand']
  #allocation3 [shape = 'f32[8,2,512]{2,1,0:T(2,128)}', space=vmem, size = 0x8000, scoped, tag = 'scratch operand']
  %s0 = inlined_call_operand.vmem [shape: f32[16,4096], index: 0, kind: input, shape index: {}]
  %s1 = inlined_call_operand.vmem [shape: bf16[4096,512], index: 1, kind: input, shape index: {}]
  %s2 = inlined_call_operand.vmem [shape: f32[1,512], index: 2, kind: input, shape index: {}]
  %s3 = inlined_call_operand.vmem [shape: s32[2,1], index: 3, kind: input, shape index: {}]
  %s4 = inlined_call_operand.vmem [shape: bf16[128,512], index: 4, kind: input, shape index: {}]
  %s5 = inlined_call_operand.vmem [shape: bf16[128,512], index: 5, kind: input, shape index: {}]
  %s6 = inlined_call_operand.vmem [shape: bf16[128,512], index: 6, kind: input, shape index: {}]
  %s7 = inlined_call_operand.vmem [shape: f32[1,512], index: 7, kind: input, shape index: {}]
  %s8 = inlined_call_operand.vmem [shape: bf16[128,256], index: 8, kind: input, shape index: {}]
  %s9 = inlined_call_operand.vmem [shape: f32[1,256], index: 9, kind: input, shape index: {}]
  %s10 = inlined_call_operand.hbm [shape: f32[2,256], index: 10, kind: output, shape index: {}]
  %s11 = sld [smem:[#allocation0]]
  $region104: #{bert_sentence_encoder_lstm.1} parent=0
    _
  %s13 = ssub.s32 1, %s11
  %s14 = scalar_select 0, %s13, %s11
  $region1: #{bert_sentence_encoder_lstm.1} parent=0
    #allocation4 [shape = 'u8[262144]{0}', space=vmem, size = 0x40000, scoped, tag = 'input window, operand 0']
    #allocation5 [shape = 'u8[2048]{0}', space=vmem, size = 0x800, scoped, tag = 'output window, operand 0, single buffered']
    #allocation6 [shape = 's32[2]{0}', space=sflag, size = 0x8, scoped, tag = 'scoped memory for bert_sentence_encoder_lstm.1']
    %15 = vsyncpa [#allocation6], 0
    loop: start=0, step=1, limit=4
    $region2: #{bert_sentence_encoder_lstm.1} parent=1 // loop_pre_header
      _
    $region3: #{bert_sentence_encoder_lstm.1} parent=1 // loop_header
      %s17 = sphi 0, %s21
      %p18 = scmp.ge.s32.totalorder %s17, 4
      %s27 = sphi 0, %s29
      %s30 = sphi 0, %s27
      %s31 = sphi 0, %s30
      %s47 = sphi 0, %s31
      %s53 = sphi 0, %s55
      %s56 = sphi 0, %s53
      %s57 = sphi 0, %s56
      %s73 = sphi 0, %s57
      %s77 = sphi 0, %s77
      %s79 = sphi 0, %s77
      %s80 = sphi 0, %s79
      %s94 = sphi 0, %s80
      %s98 = sphi 0, %s98
      %s100 = sphi 0, %s98
      %s101 = sphi 0, %s100
      %s115 = sphi 0, %s101
      %s119 = sphi 0, %s119
      %s121 = sphi 0, %s119
      %s122 = sphi 0, %s121
      %s136 = sphi 0, %s122
      %s140 = sphi 0, %s140
      %s142 = sphi 0, %s140
      %s143 = sphi 0, %s142
      %s157 = sphi 0, %s143
      %s161 = sphi 0, %s161
      %s163 = sphi 0, %s161
      %s164 = sphi 0, %s163
      %s178 = sphi 0, %s164
      %s182 = sphi 0, %s182
      %s184 = sphi 0, %s182
      %s185 = sphi 0, %s184
      %s199 = sphi 0, %s185
      %s203 = sphi 0, %s203
      %s205 = sphi 0, %s203
      %s206 = sphi 0, %s205
      %s220 = sphi 0, %s206
      %s224 = sphi 0, %s224
      %s226 = sphi 0, %s224
      %s227 = sphi 0, %s226
      %s241 = sphi 0, %s227
      %s245 = sphi 0, %s245
      %s247 = sphi 0, %s245
      %s248 = sphi 0, %s247
      %s262 = sphi 0, %s248
    $region4: #{bert_sentence_encoder_lstm.1} parent=1 // loop_header_branch
      %20 = sbr.rel (%p18) target = $region8
    $region5: #{bert_sentence_encoder_lstm.1} parent=1 // loop_body
      %s22 = ssub.s32 %s17, 1
      %s23 = ssub.s32 %s17, 2
      %s24 = sadd.s32 %s17, 1
      %s25 = ssub.s32 %s17, %s24
      %p26 = scmp.eq.s32.totalorder %s25, 0
      %s28 = sadd.s32 %s27, 1
      %s29 = scalar_select %p26, %s27, %s28
      %p32 = pneg %p26
      %p33 = scmp.eq.s32.totalorder %s17, 1
      %p34 = por %p32, %p33
      %p35 = scmp.ne.s32.totalorder %s27, %s30
      %p36 = scmp.eq.s32.totalorder %s17, 0
      %p37 = por %p35, %p36
      %p38 = scmp.ne.s32.totalorder %s27, %s30
      %p39 = scmp.eq.s32.totalorder %s22, 1
      %p40 = por %p38, %p39
      %p41 = scmp.ne.s32.totalorder %s30, %s31
      %p42 = scmp.eq.s32.totalorder %s22, 0
      %p43 = por %p41, %p42
      %p44 = scmp.ne.s32.totalorder %s30, %s31
      %p45 = scmp.eq.s32.totalorder %s23, 1
      %p46 = por %p44, %p45
      %p48 = scmp.ne.s32.totalorder %s31, %s47
      %p49 = scmp.eq.s32.totalorder %s23, 0
      %p50 = por %p48, %p49
      %s51 = ssub.s32 %s17, %s24
      %p52 = scmp.eq.s32.totalorder %s51, 0
      %s54 = sadd.s32 %s53, 1
      %s55 = scalar_select %p52, %s53, %s54
      %p58 = pneg %p52
      %p59 = scmp.eq.s32.totalorder %s17, 1
      %p60 = por %p58, %p59
      %p61 = scmp.ne.s32.totalorder %s53, %s56
      %p62 = scmp.eq.s32.totalorder %s17, 0
      %p63 = por %p61, %p62
      %p64 = scmp.ne.s32.totalorder %s53, %s56
      %p65 = scmp.eq.s32.totalorder %s22, 1
      %p66 = por %p64, %p65
      %p67 = scmp.ne.s32.totalorder %s56, %s57
      %p68 = scmp.eq.s32.totalorder %s22, 0
      %p69 = por %p67, %p68
      %p70 = scmp.ne.s32.totalorder %s56, %s57
      %p71 = scmp.eq.s32.totalorder %s23, 1
      %p72 = por %p70, %p71
      %p74 = scmp.ne.s32.totalorder %s57, %s73
      %p75 = scmp.eq.s32.totalorder %s23, 0
      %p76 = por %p74, %p75
      %s78 = sadd.s32 %s77, 1
      %p81 = scmp.eq.s32.totalorder %s17, 1
      %p82 = scmp.ne.s32.totalorder %s77, %s79
      %p83 = scmp.eq.s32.totalorder %s17, 0
      %p84 = por %p82, %p83
      %p85 = scmp.ne.s32.totalorder %s77, %s79
      %p86 = scmp.eq.s32.totalorder %s22, 1
      %p87 = por %p85, %p86
      %p88 = scmp.ne.s32.totalorder %s79, %s80
      %p89 = scmp.eq.s32.totalorder %s22, 0
      %p90 = por %p88, %p89
      %p91 = scmp.ne.s32.totalorder %s79, %s80
      %p92 = scmp.eq.s32.totalorder %s23, 1
      %p93 = por %p91, %p92
      %p95 = scmp.ne.s32.totalorder %s80, %s94
      %p96 = scmp.eq.s32.totalorder %s23, 0
      %p97 = por %p95, %p96
      %s99 = sadd.s32 %s98, 1
      %p102 = scmp.eq.s32.totalorder %s17, 1
      %p103 = scmp.ne.s32.totalorder %s98, %s100
      %p104 = scmp.eq.s32.totalorder %s17, 0
      %p105 = por %p103, %p104
      %p106 = scmp.ne.s32.totalorder %s98, %s100
      %p107 = scmp.eq.s32.totalorder %s22, 1
      %p108 = por %p106, %p107
      %p109 = scmp.ne.s32.totalorder %s100, %s101
      %p110 = scmp.eq.s32.totalorder %s22, 0
      %p111 = por %p109, %p110
      %p112 = scmp.ne.s32.totalorder %s100, %s101
      %p113 = scmp.eq.s32.totalorder %s23, 1
      %p114 = por %p112, %p113
      %p116 = scmp.ne.s32.totalorder %s101, %s115
      %p117 = scmp.eq.s32.totalorder %s23, 0
      %p118 = por %p116, %p117
      %s120 = sadd.s32 %s119, 1
      %p123 = scmp.eq.s32.totalorder %s17, 1
      %p124 = scmp.ne.s32.totalorder %s119, %s121
      %p125 = scmp.eq.s32.totalorder %s17, 0
      %p126 = por %p124, %p125
      %p127 = scmp.ne.s32.totalorder %s119, %s121
      %p128 = scmp.eq.s32.totalorder %s22, 1
      %p129 = por %p127, %p128
      %p130 = scmp.ne.s32.totalorder %s121, %s122
      %p131 = scmp.eq.s32.totalorder %s22, 0
      %p132 = por %p130, %p131
      %p133 = scmp.ne.s32.totalorder %s121, %s122
      %p134 = scmp.eq.s32.totalorder %s23, 1
      %p135 = por %p133, %p134
      %p137 = scmp.ne.s32.totalorder %s122, %s136
      %p138 = scmp.eq.s32.totalorder %s23, 0
      %p139 = por %p137, %p138
      %s141 = sadd.s32 %s140, 1
      %p144 = scmp.eq.s32.totalorder %s17, 1
      %p145 = scmp.ne.s32.totalorder %s140, %s142
      %p146 = scmp.eq.s32.totalorder %s17, 0
      %p147 = por %p145, %p146
      %p148 = scmp.ne.s32.totalorder %s140, %s142
      %p149 = scmp.eq.s32.totalorder %s22, 1
      %p150 = por %p148, %p149
      %p151 = scmp.ne.s32.totalorder %s142, %s143
      %p152 = scmp.eq.s32.totalorder %s22, 0
      %p153 = por %p151, %p152
      %p154 = scmp.ne.s32.totalorder %s142, %s143
      %p155 = scmp.eq.s32.totalorder %s23, 1
      %p156 = por %p154, %p155
      %p158 = scmp.ne.s32.totalorder %s143, %s157
      %p159 = scmp.eq.s32.totalorder %s23, 0
      %p160 = por %p158, %p159
      %s162 = sadd.s32 %s161, 1
      %p165 = scmp.eq.s32.totalorder %s17, 1
      %p166 = scmp.ne.s32.totalorder %s161, %s163
      %p167 = scmp.eq.s32.totalorder %s17, 0
      %p168 = por %p166, %p167
      %p169 = scmp.ne.s32.totalorder %s161, %s163
      %p170 = scmp.eq.s32.totalorder %s22, 1
      %p171 = por %p169, %p170
      %p172 = scmp.ne.s32.totalorder %s163, %s164
      %p173 = scmp.eq.s32.totalorder %s22, 0
      %p174 = por %p172, %p173
      %p175 = scmp.ne.s32.totalorder %s163, %s164
      %p176 = scmp.eq.s32.totalorder %s23, 1
      %p177 = por %p175, %p176
      %p179 = scmp.ne.s32.totalorder %s164, %s178
      %p180 = scmp.eq.s32.totalorder %s23, 0
      %p181 = por %p179, %p180
      %s183 = sadd.s32 %s182, 1
      %p186 = scmp.eq.s32.totalorder %s17, 1
      %p187 = scmp.ne.s32.totalorder %s182, %s184
      %p188 = scmp.eq.s32.totalorder %s17, 0
      %p189 = por %p187, %p188
      %p190 = scmp.ne.s32.totalorder %s182, %s184
      %p191 = scmp.eq.s32.totalorder %s22, 1
      %p192 = por %p190, %p191
      %p193 = scmp.ne.s32.totalorder %s184, %s185
      %p194 = scmp.eq.s32.totalorder %s22, 0
      %p195 = por %p193, %p194
      %p196 = scmp.ne.s32.totalorder %s184, %s185
      %p197 = scmp.eq.s32.totalorder %s23, 1
      %p198 = por %p196, %p197
      %p200 = scmp.ne.s32.totalorder %s185, %s199
      %p201 = scmp.eq.s32.totalorder %s23, 0
      %p202 = por %p200, %p201
      %s204 = sadd.s32 %s203, 1
      %p207 = scmp.eq.s32.totalorder %s17, 1
      %p208 = scmp.ne.s32.totalorder %s203, %s205
      %p209 = scmp.eq.s32.totalorder %s17, 0
      %p210 = por %p208, %p209
      %p211 = scmp.ne.s32.totalorder %s203, %s205
      %p212 = scmp.eq.s32.totalorder %s22, 1
      %p213 = por %p211, %p212
      %p214 = scmp.ne.s32.totalorder %s205, %s206
      %p215 = scmp.eq.s32.totalorder %s22, 0
      %p216 = por %p214, %p215
      %p217 = scmp.ne.s32.totalorder %s205, %s206
      %p218 = scmp.eq.s32.totalorder %s23, 1
      %p219 = por %p217, %p218
      %p221 = scmp.ne.s32.totalorder %s206, %s220
      %p222 = scmp.eq.s32.totalorder %s23, 0
      %p223 = por %p221, %p222
      %s225 = sadd.s32 %s224, 1
      %p228 = scmp.eq.s32.totalorder %s17, 1
      %p229 = scmp.ne.s32.totalorder %s224, %s226
      %p230 = scmp.eq.s32.totalorder %s17, 0
      %p231 = por %p229, %p230
      %p232 = scmp.ne.s32.totalorder %s224, %s226
      %p233 = scmp.eq.s32.totalorder %s22, 1
      %p234 = por %p232, %p233
      %p235 = scmp.ne.s32.totalorder %s226, %s227
      %p236 = scmp.eq.s32.totalorder %s22, 0
      %p237 = por %p235, %p236
      %p238 = scmp.ne.s32.totalorder %s226, %s227
      %p239 = scmp.eq.s32.totalorder %s23, 1
      %p240 = por %p238, %p239
      %p242 = scmp.ne.s32.totalorder %s227, %s241
      %p243 = scmp.eq.s32.totalorder %s23, 0
      %p244 = por %p242, %p243
      %s246 = sadd.s32 %s245, 1
      %p249 = scmp.eq.s32.totalorder %s17, 1
      %p250 = scmp.ne.s32.totalorder %s245, %s247
      %p251 = scmp.eq.s32.totalorder %s17, 0
      %p252 = por %p250, %p251
      %p253 = scmp.ne.s32.totalorder %s245, %s247
      %p254 = scmp.eq.s32.totalorder %s22, 1
      %p255 = por %p253, %p254
      %p256 = scmp.ne.s32.totalorder %s247, %s248
      %p257 = scmp.eq.s32.totalorder %s22, 0
      %p258 = por %p256, %p257
      %p259 = scmp.ne.s32.totalorder %s247, %s248
      %p260 = scmp.eq.s32.totalorder %s23, 1
      %p261 = por %p259, %p260
      %p263 = scmp.ne.s32.totalorder %s248, %s262
      %p264 = scmp.eq.s32.totalorder %s23, 0
      %p265 = por %p263, %p264
      %p266 = scmp.le.s32.totalorder 1, %s17
      %p267 = scmp.lt.s32.totalorder %s17, 3
      %p268 = pnand %p266, %p267
      %p269 = pneg %p268
      // Predicated region
      $region9: #{bert_sentence_encoder_lstm.1} parent=5 // pred_check
        _
      $region10: #{bert_sentence_encoder_lstm.1} parent=5 // pred_check_branch
        %271 = sbr.rel (%p268) target = $region12
      $region11: #{bert_sentence_encoder_lstm.1} parent=5 // pred_region
        %s272 = ssub.s32 %s17, 1
        // Predicated region
        $region13: #{bert_sentence_encoder_lstm.1} parent=11 // pred_check
          %p273 = pneg %p90
        $region14: #{bert_sentence_encoder_lstm.1} parent=11 // pred_check_branch
          %275 = sbr.rel (%p273) target = $region16
        $region15: #{bert_sentence_encoder_lstm.1} parent=11 // pred_region
          _
        $region16: #{bert_sentence_encoder_lstm.1} parent=11 // pred_fallthru
          _
        // Predicated region
        $region17: #{bert_sentence_encoder_lstm.1} parent=11 // pred_check
          %p276 = pneg %p111
        $region18: #{bert_sentence_encoder_lstm.1} parent=11 // pred_check_branch
          %278 = sbr.rel (%p276) target = $region20
        $region19: #{bert_sentence_encoder_lstm.1} parent=11 // pred_region
          _
        $region20: #{bert_sentence_encoder_lstm.1} parent=11 // pred_fallthru
          _
        // Predicated region
        $region21: #{bert_sentence_encoder_lstm.1} parent=11 // pred_check
          %p279 = pneg %p132
        $region22: #{bert_sentence_encoder_lstm.1} parent=11 // pred_check_branch
          %281 = sbr.rel (%p279) target = $region24
        $region23: #{bert_sentence_encoder_lstm.1} parent=11 // pred_region
          _
        $region24: #{bert_sentence_encoder_lstm.1} parent=11 // pred_fallthru
          _
        // Predicated region
        $region25: #{bert_sentence_encoder_lstm.1} parent=11 // pred_check
          %p282 = pneg %p153
        $region26: #{bert_sentence_encoder_lstm.1} parent=11 // pred_check_branch
          %284 = sbr.rel (%p282) target = $region28
        $region27: #{bert_sentence_encoder_lstm.1} parent=11 // pred_region
          _
        $region28: #{bert_sentence_encoder_lstm.1} parent=11 // pred_fallthru
          _
        // Predicated region
        $region29: #{bert_sentence_encoder_lstm.1} parent=11 // pred_check
          %p285 = pneg %p174
        $region30: #{bert_sentence_encoder_lstm.1} parent=11 // pred_check_branch
          %287 = sbr.rel (%p285) target = $region32
        $region31: #{bert_sentence_encoder_lstm.1} parent=11 // pred_region
          _
        $region32: #{bert_sentence_encoder_lstm.1} parent=11 // pred_fallthru
          _
        // Predicated region
        $region33: #{bert_sentence_encoder_lstm.1} parent=11 // pred_check
          %p288 = pneg %p195
        $region34: #{bert_sentence_encoder_lstm.1} parent=11 // pred_check_branch
          %290 = sbr.rel (%p288) target = $region36
        $region35: #{bert_sentence_encoder_lstm.1} parent=11 // pred_region
          _
        $region36: #{bert_sentence_encoder_lstm.1} parent=11 // pred_fallthru
          _
        // Predicated region
        $region37: #{bert_sentence_encoder_lstm.1} parent=11 // pred_check
          %p291 = pneg %p216
        $region38: #{bert_sentence_encoder_lstm.1} parent=11 // pred_check_branch
          %293 = sbr.rel (%p291) target = $region40
        $region39: #{bert_sentence_encoder_lstm.1} parent=11 // pred_region
          _
        $region40: #{bert_sentence_encoder_lstm.1} parent=11 // pred_fallthru
          _
        // Predicated region
        $region41: #{bert_sentence_encoder_lstm.1} parent=11 // pred_check
          %p294 = pneg %p237
        $region42: #{bert_sentence_encoder_lstm.1} parent=11 // pred_check_branch
          %296 = sbr.rel (%p294) target = $region44
        $region43: #{bert_sentence_encoder_lstm.1} parent=11 // pred_region
          _
        $region44: #{bert_sentence_encoder_lstm.1} parent=11 // pred_fallthru
          _
      $region12: #{bert_sentence_encoder_lstm.1} parent=5 // pred_fallthru
        _
      %p297 = scmp.lt.s32.totalorder %s17, 2
      // Predicated region
      $region45: #{bert_sentence_encoder_lstm.1} parent=5 // pred_check
        %p298 = pneg %p297
      $region46: #{bert_sentence_encoder_lstm.1} parent=5 // pred_check_branch
        %300 = sbr.rel (%p298) target = $region48
      $region47: #{bert_sentence_encoder_lstm.1} parent=5 // pred_region
        // Predicated region
        $region49: #{bert_sentence_encoder_lstm.1} parent=47 // pred_check
          %p301 = pneg %p37
        $region50: #{bert_sentence_encoder_lstm.1} parent=47 // pred_check_branch
          %303 = sbr.rel (%p301) target = $region52
        $region51: #{bert_sentence_encoder_lstm.1} parent=47 // pred_region
          %s304 = sand.u32 %s27, 1
          %s305 = sand.u32 %s27, 1
          %s306 = smul.addr %s305, 256
          %s307 = scalar_lea.vmem [#allocation4], %s306
          %s308 = smul.u32 16, %s17
          %s309 = smul.addr %s308, 8
          %s310 = scalar_lea.vmem %s0, %s309
          // Predicated region
          $region53: #{bert_sentence_encoder_lstm.1} parent=51 // pred_check
            _
          $region54: #{bert_sentence_encoder_lstm.1} parent=51 // pred_check_branch
            %312 = sbr.rel (0) target = $region56
          $region55: #{bert_sentence_encoder_lstm.1} parent=51 // pred_region
            // Predicated region
            $region57: #{bert_sentence_encoder_lstm.1} parent=55 // pred_check
              _
            $region58: #{bert_sentence_encoder_lstm.1} parent=55 // pred_check_branch
              %314 = sbr.rel (0) target = $region60
            $region59: #{bert_sentence_encoder_lstm.1} parent=55 // pred_region
              loop: start=0, step=1, limit=1
              $region61: #{bert_sentence_encoder_lstm.1} parent=59 // loop_pre_header
                _
              $region62: #{bert_sentence_encoder_lstm.1} parent=59 // loop_header
                %s316 = sphi 0, %s320
                %p317 = scmp.ge.s32.totalorder %s316, 1
                %s321 = sphi %s310, %s310
                %s322 = sphi %s307, %s307
              $region63: #{bert_sentence_encoder_lstm.1} parent=59 // loop_header_branch
                %319 = sbr.rel (%p317) target = $region67
              $region64: #{bert_sentence_encoder_lstm.1} parent=59 // loop_body
                %v323 = vld [vmem:[%s321] sm:$0xff]
                %324 = vst [vmem:[%s322] sm:$0xff] %v323
                %v325 = vld [vmem:[%s321 + $0x8] sm:$0xff]
                %326 = vst [vmem:[%s322 + $0x8] sm:$0xff] %v325
                %v327 = vld [vmem:[%s321 + $0x10] sm:$0xff]
                %328 = vst [vmem:[%s322 + $0x10] sm:$0xff] %v327
                %v329 = vld [vmem:[%s321 + $0x18] sm:$0xff]
                %330 = vst [vmem:[%s322 + $0x18] sm:$0xff] %v329
                %v331 = vld [vmem:[%s321 + $0x20] sm:$0xff]
                %332 = vst [vmem:[%s322 + $0x20] sm:$0xff] %v331
                %v333 = vld [vmem:[%s321 + $0x28] sm:$0xff]
                %334 = vst [vmem:[%s322 + $0x28] sm:$0xff] %v333
                %v335 = vld [vmem:[%s321 + $0x30] sm:$0xff]
                %336 = vst [vmem:[%s322 + $0x30] sm:$0xff] %v335
                %v337 = vld [vmem:[%s321 + $0x38] sm:$0xff]
                %338 = vst [vmem:[%s322 + $0x38] sm:$0xff] %v337
                %v339 = vld [vmem:[%s321 + $0x40] sm:$0xff]
                %340 = vst [vmem:[%s322 + $0x40] sm:$0xff] %v339
                %v341 = vld [vmem:[%s321 + $0x48] sm:$0xff]
                %342 = vst [vmem:[%s322 + $0x48] sm:$0xff] %v341
                %v343 = vld [vmem:[%s321 + $0x50] sm:$0xff]
                %344 = vst [vmem:[%s322 + $0x50] sm:$0xff] %v343
                %v345 = vld [vmem:[%s321 + $0x58] sm:$0xff]
                %346 = vst [vmem:[%s322 + $0x58] sm:$0xff] %v345
                %v347 = vld [vmem:[%s321 + $0x60] sm:$0xff]
                %348 = vst [vmem:[%s322 + $0x60] sm:$0xff] %v347
                %v349 = vld [vmem:[%s321 + $0x68] sm:$0xff]
                %350 = vst [vmem:[%s322 + $0x68] sm:$0xff] %v349
                %v351 = vld [vmem:[%s321 + $0x70] sm:$0xff]
                %352 = vst [vmem:[%s322 + $0x70] sm:$0xff] %v351
                %v353 = vld [vmem:[%s321 + $0x78] sm:$0xff]
                %354 = vst [vmem:[%s322 + $0x78] sm:$0xff] %v353
                %v355 = vld [vmem:[%s321 + $0x100] sm:$0xff]
                %356 = vst [vmem:[%s322 + $0x80] sm:$0xff] %v355
                %v357 = vld [vmem:[%s321 + $0x108] sm:$0xff]
                %358 = vst [vmem:[%s322 + $0x88] sm:$0xff] %v357
                %v359 = vld [vmem:[%s321 + $0x110] sm:$0xff]
                %360 = vst [vmem:[%s322 + $0x90] sm:$0xff] %v359
                %v361 = vld [vmem:[%s321 + $0x118] sm:$0xff]
                %362 = vst [vmem:[%s322 + $0x98] sm:$0xff] %v361
                %v363 = vld [vmem:[%s321 + $0x120] sm:$0xff]
                %364 = vst [vmem:[%s322 + $0xa0] sm:$0xff] %v363
                %v365 = vld [vmem:[%s321 + $0x128] sm:$0xff]
                %366 = vst [vmem:[%s322 + $0xa8] sm:$0xff] %v365
                %v367 = vld [vmem:[%s321 + $0x130] sm:$0xff]
                %368 = vst [vmem:[%s322 + $0xb0] sm:$0xff] %v367
                %v369 = vld [vmem:[%s321 + $0x138] sm:$0xff]
                %370 = vst [vmem:[%s322 + $0xb8] sm:$0xff] %v369
                %v371 = vld [vmem:[%s321 + $0x140] sm:$0xff]
                %372 = vst [vmem:[%s322 + $0xc0] sm:$0xff] %v371
                %v373 = vld [vmem:[%s321 + $0x148] sm:$0xff]
                %374 = vst [vmem:[%s322 + $0xc8] sm:$0xff] %v373
                %v375 = vld [vmem:[%s321 + $0x150] sm:$0xff]
                %376 = vst [vmem:[%s322 + $0xd0] sm:$0xff] %v375
                %v377 = vld [vmem:[%s321 + $0x158] sm:$0xff]
                %378 = vst [vmem:[%s322 + $0xd8] sm:$0xff] %v377
                %v379 = vld [vmem:[%s321 + $0x160] sm:$0xff]
                %380 = vst [vmem:[%s322 + $0xe0] sm:$0xff] %v379
                %v381 = vld [vmem:[%s321 + $0x168] sm:$0xff]
                %382 = vst [vmem:[%s322 + $0xe8] sm:$0xff] %v381
                %v383 = vld [vmem:[%s321 + $0x170] sm:$0xff]
                %384 = vst [vmem:[%s322 + $0xf0] sm:$0xff] %v383
                %v385 = vld [vmem:[%s321 + $0x178] sm:$0xff]
                %386 = vst [vmem:[%s322 + $0xf8] sm:$0xff] %v385
              $region65: #{bert_sentence_encoder_lstm.1} parent=59 // loop_footer
                %s320 = sadd.s32 1, %s316
              $region66: #{bert_sentence_encoder_lstm.1} parent=59 // loop_footer_branch
                %315 = sbr.rel target = $region62
              $region67: #{bert_sentence_encoder_lstm.1} parent=59 // loop_exit
                _
            $region60: #{bert_sentence_encoder_lstm.1} parent=55 // pred_fallthru
              _
            // Predicated region
            $region68: #{bert_sentence_encoder_lstm.1} parent=55 // pred_check
              _
            $region69: #{bert_sentence_encoder_lstm.1} parent=55 // pred_check_branch
              %388 = sbr.rel target = $region71
            $region70: #{bert_sentence_encoder_lstm.1} parent=55 // pred_region
              _
            $region71: #{bert_sentence_encoder_lstm.1} parent=55 // pred_fallthru
              _
          $region56: #{bert_sentence_encoder_lstm.1} parent=51 // pred_fallthru
            _
          %389 = vnop
        $region52: #{bert_sentence_encoder_lstm.1} parent=47 // pred_fallthru
          _
        // Predicated region
        $region72: #{bert_sentence_encoder_lstm.1} parent=47 // pred_check
          %p390 = pneg %p63
        $region73: #{bert_sentence_encoder_lstm.1} parent=47 // pred_check_branch
          %392 = sbr.rel (%p390) target = $region75
        $region74: #{bert_sentence_encoder_lstm.1} parent=47 // pred_region
          %s393 = smul.u32 256, %s17
          %p394 = scmp.lt.s32.totalorder %s393, 511
          %s395 = scalar_select %p394, %s393, 511
          %s396 = smul.addr %s395, 4
          %s397 = smul.addr %s396, 4
          %s398 = scalar_lea.vmem %s1, %s397
          %s399 = smul.u32 256, %s17
        $region75: #{bert_sentence_encoder_lstm.1} parent=47 // pred_fallthru
          _
      $region48: #{bert_sentence_encoder_lstm.1} parent=5 // pred_fallthru
        _
      %p400 = scmp.le.s32.totalorder 1, %s17
      %p401 = scmp.lt.s32.totalorder %s17, 3
      %p402 = pnand %p400, %p401
      %p403 = pneg %p402
      // Predicated region
      $region76: #{bert_sentence_encoder_lstm.1} parent=5 // pred_check
        _
      $region77: #{bert_sentence_encoder_lstm.1} parent=5 // pred_check_branch
        %405 = sbr.rel (%p402) target = $region79
      $region78: #{bert_sentence_encoder_lstm.1} parent=5 // pred_region
        %s406 = ssub.s32 %s17, 1
        %s407 = sand.u32 %s30, 1
        %s408 = sand.u32 %s30, 1
        %s409 = smul.addr %s408, 256
        %s410 = scalar_lea.vmem [#allocation4], %s409
        // Predicated region
        $region80: #{bert_sentence_encoder_lstm.1} parent=78 // pred_check
          %p411 = pneg %p43
        $region81: #{bert_sentence_encoder_lstm.1} parent=78 // pred_check_branch
          %413 = sbr.rel (%p411) target = $region83
        $region82: #{bert_sentence_encoder_lstm.1} parent=78 // pred_region
          _
        $region83: #{bert_sentence_encoder_lstm.1} parent=78 // pred_fallthru
          _
        %s414 = sand.u32 %s30, 1
        %s415 = sand.u32 %s30, 1
        %s416 = smul.addr %s415, 256
        %s417 = scalar_lea.vmem [#allocation4], %s416
        %p418 = pneg %p43
        %p419 = pneg %p40
        %s420 = smul.u32 256, %s22
        %p421 = scmp.lt.s32.totalorder %s420, 511
        %s422 = scalar_select %p421, %s420, 511
        %s423 = smul.addr %s422, 4
        %s424 = smul.addr %s423, 4
        %s425 = scalar_lea.vmem %s1, %s424
        %p426 = pneg %p69
        %p427 = pneg %p66
        %p428 = pneg %p90
        %p429 = pneg %p87
        %p430 = pneg %p111
        %p431 = pneg %p108
        %p432 = pneg %p132
        %p433 = pneg %p129
        %p434 = pneg %p153
        %p435 = pneg %p150
        %p436 = pneg %p174
        %p437 = pneg %p171
        %p438 = pneg %p195
        %p439 = pneg %p192
        %p440 = pneg %p216
        %p441 = pneg %p213
        %p442 = pneg %p237
        %p443 = pneg %p234
        %p444 = pneg %p258
        %p445 = pneg %p255
        %s446 = smul.u32 16, %s22
        %s447 = smul.u32 256, %s22
        %p448 = scmp.lt.s32.totalorder %s447, 511
        %s449 = scalar_select %p448, %s447, 511
        %s450 = smul.addr %s449, 4
        %s451 = smul.addr %s450, 4
        %s452 = scalar_lea.vmem %s1, %s451
        %s453 = smul.u32 256, %s22
        %p455 = scmp.eq.s32.totalorder %s22, 0
        // Predicated region
        $region84: #{bert_sentence_encoder_lstm.1} parent=78 // pred_check
          %p456 = pneg %p455
        $region85: #{bert_sentence_encoder_lstm.1} parent=78 // pred_check_branch
          %458 = sbr.rel (%p456) target = $region87
        $region86: #{bert_sentence_encoder_lstm.1} parent=78 // pred_region
          %459 = vst [vmem:[#allocation2] sm:$0xff] 0.0
          %460 = vst [vmem:[#allocation2 + $0x8] sm:$0xff] 0.0
          %461 = vst [vmem:[#allocation2 + $0x10] sm:$0xff] 0.0
          %462 = vst [vmem:[#allocation2 + $0x18] sm:$0xff] 0.0
          %463 = vst [vmem:[#allocation2 + $0x20] sm:$0xff] 0.0
          %464 = vst [vmem:[#allocation2 + $0x28] sm:$0xff] 0.0
          %465 = vst [vmem:[#allocation2 + $0x30] sm:$0xff] 0.0
          %466 = vst [vmem:[#allocation2 + $0x38] sm:$0xff] 0.0
        $region87: #{bert_sentence_encoder_lstm.1} parent=78 // pred_fallthru
          _
        %v467 = vld [vmem:[#allocation2] sm:$0xff]
        %v468 = vld [vmem:[#allocation2 + $0x8] sm:$0xff]
        %v469 = vld [vmem:[#allocation2 + $0x10] sm:$0xff]
        %v470 = vld [vmem:[#allocation2 + $0x18] sm:$0xff]
        %v471 = vld [vmem:[#allocation2 + $0x20] sm:$0xff]
        %v472 = vld [vmem:[#allocation2 + $0x28] sm:$0xff]
        %v473 = vld [vmem:[#allocation2 + $0x30] sm:$0xff]
        %v474 = vld [vmem:[#allocation2 + $0x38] sm:$0xff]
        %v475 = vld [vmem:[%s410] sm:$0xff]
        %v476 = vld [vmem:[%s410 + $0x8] sm:$0xff]
        %v477 = vld [vmem:[%s410 + $0x10] sm:$0xff]
        %v478 = vld [vmem:[%s410 + $0x18] sm:$0xff]
        %v479 = vld [vmem:[%s410 + $0x20] sm:$0xff]
        %v480 = vld [vmem:[%s410 + $0x28] sm:$0xff]
        %v481 = vld [vmem:[%s410 + $0x30] sm:$0xff]
        %v482 = vld [vmem:[%s410 + $0x38] sm:$0xff]
        %v483 = vld [vmem:[%s410 + $0x40] sm:$0xff]
        %v484 = vld [vmem:[%s410 + $0x48] sm:$0xff]
        %v485 = vld [vmem:[%s410 + $0x50] sm:$0xff]
        %v486 = vld [vmem:[%s410 + $0x58] sm:$0xff]
        %v487 = vld [vmem:[%s410 + $0x60] sm:$0xff]
        %v488 = vld [vmem:[%s410 + $0x68] sm:$0xff]
        %v489 = vld [vmem:[%s410 + $0x70] sm:$0xff]
        %v490 = vld [vmem:[%s410 + $0x78] sm:$0xff]
        %v491 = vld [vmem:[%s410 + $0x80] sm:$0xff]
        %v492 = vld [vmem:[%s410 + $0x88] sm:$0xff]
        %v493 = vld [vmem:[%s410 + $0x90] sm:$0xff]
        %v494 = vld [vmem:[%s410 + $0x98] sm:$0xff]
        %v495 = vld [vmem:[%s410 + $0xa0] sm:$0xff]
        %v496 = vld [vmem:[%s410 + $0xa8] sm:$0xff]
        %v497 = vld [vmem:[%s410 + $0xb0] sm:$0xff]
        %v498 = vld [vmem:[%s410 + $0xb8] sm:$0xff]
        %v499 = vld [vmem:[%s410 + $0xc0] sm:$0xff]
        %v500 = vld [vmem:[%s410 + $0xc8] sm:$0xff]
        %v501 = vld [vmem:[%s410 + $0xd0] sm:$0xff]
        %v502 = vld [vmem:[%s410 + $0xd8] sm:$0xff]
        %v503 = vld [vmem:[%s410 + $0xe0] sm:$0xff]
        %v504 = vld [vmem:[%s410 + $0xe8] sm:$0xff]
        %v505 = vld [vmem:[%s410 + $0xf0] sm:$0xff]
        %v506 = vld [vmem:[%s410 + $0xf8] sm:$0xff]
        %v507 = vpack.c.bf16 %v491, %v475
        %v508 = vpack.c.bf16 %v492, %v476
        %v509 = vpack.c.bf16 %v493, %v477
        %v510 = vpack.c.bf16 %v494, %v478
        %v511 = vpack.c.bf16 %v495, %v479
        %v512 = vpack.c.bf16 %v496, %v480
        %v513 = vpack.c.bf16 %v497, %v481
        %v514 = vpack.c.bf16 %v498, %v482
        %v515 = vpack.c.bf16 %v499, %v483
        %v516 = vpack.c.bf16 %v500, %v484
        %v517 = vpack.c.bf16 %v501, %v485
        %v518 = vpack.c.bf16 %v502, %v486
        %v519 = vpack.c.bf16 %v503, %v487
        %v520 = vpack.c.bf16 %v504, %v488
        %v521 = vpack.c.bf16 %v505, %v489
        %v522 = vpack.c.bf16 %v506, %v490
        %v523 = vld [vmem:[%s452] sm:$0xff]
        %v524 = vld [vmem:[%s452 + $0x8] sm:$0xff]
        %v525 = vld [vmem:[%s452 + $0x10] sm:$0xff]
        %v526 = vld [vmem:[%s452 + $0x18] sm:$0xff]
        %v527 = vld [vmem:[%s452 + $0x20] sm:$0xff]
        %v528 = vld [vmem:[%s452 + $0x28] sm:$0xff]
        %v529 = vld [vmem:[%s452 + $0x30] sm:$0xff]
        %v530 = vld [vmem:[%s452 + $0x38] sm:$0xff]
        %v531 = vld [vmem:[%s452 + $0x40] sm:$0xff]
        %v532 = vld [vmem:[%s452 + $0x48] sm:$0xff]
        %v533 = vld [vmem:[%s452 + $0x50] sm:$0xff]
        %v534 = vld [vmem:[%s452 + $0x58] sm:$0xff]
        %v535 = vld [vmem:[%s452 + $0x60] sm:$0xff]
        %v536 = vld [vmem:[%s452 + $0x68] sm:$0xff]
        %v537 = vld [vmem:[%s452 + $0x70] sm:$0xff]
        %v538 = vld [vmem:[%s452 + $0x78] sm:$0xff]
        %v539 = vld [vmem:[%s452 + $0x80] sm:$0xff]
        %v540 = vld [vmem:[%s452 + $0x88] sm:$0xff]
        %v541 = vld [vmem:[%s452 + $0x90] sm:$0xff]
        %v542 = vld [vmem:[%s452 + $0x98] sm:$0xff]
        %v543 = vld [vmem:[%s452 + $0xa0] sm:$0xff]
        %v544 = vld [vmem:[%s452 + $0xa8] sm:$0xff]
        %v545 = vld [vmem:[%s452 + $0xb0] sm:$0xff]
        %v546 = vld [vmem:[%s452 + $0xb8] sm:$0xff]
        %v547 = vld [vmem:[%s452 + $0xc0] sm:$0xff]
        %v548 = vld [vmem:[%s452 + $0xc8] sm:$0xff]
        %v549 = vld [vmem:[%s452 + $0xd0] sm:$0xff]
        %v550 = vld [vmem:[%s452 + $0xd8] sm:$0xff]
        %v551 = vld [vmem:[%s452 + $0xe0] sm:$0xff]
        %v552 = vld [vmem:[%s452 + $0xe8] sm:$0xff]
        %v553 = vld [vmem:[%s452 + $0xf0] sm:$0xff]
        %v554 = vld [vmem:[%s452 + $0xf8] sm:$0xff]
        %v555 = vld [vmem:[%s452 + $0x100] sm:$0xff]
        %v556 = vld [vmem:[%s452 + $0x108] sm:$0xff]
        %v557 = vld [vmem:[%s452 + $0x110] sm:$0xff]
        %v558 = vld [vmem:[%s452 + $0x118] sm:$0xff]
        %v559 = vld [vmem:[%s452 + $0x120] sm:$0xff]
        %v560 = vld [vmem:[%s452 + $0x128] sm:$0xff]
        %v561 = vld [vmem:[%s452 + $0x130] sm:$0xff]
        %v562 = vld [vmem:[%s452 + $0x138] sm:$0xff]
        %v563 = vld [vmem:[%s452 + $0x140] sm:$0xff]
        %v564 = vld [vmem:[%s452 + $0x148] sm:$0xff]
        %v565 = vld [vmem:[%s452 + $0x150] sm:$0xff]
        %v566 = vld [vmem:[%s452 + $0x158] sm:$0xff]
        %v567 = vld [vmem:[%s452 + $0x160] sm:$0xff]
        %v568 = vld [vmem:[%s452 + $0x168] sm:$0xff]
        %v569 = vld [vmem:[%s452 + $0x170] sm:$0xff]
        %v570 = vld [vmem:[%s452 + $0x178] sm:$0xff]
        %v571 = vld [vmem:[%s452 + $0x180] sm:$0xff]
        %v572 = vld [vmem:[%s452 + $0x188] sm:$0xff]
        %v573 = vld [vmem:[%s452 + $0x190] sm:$0xff]
        %v574 = vld [vmem:[%s452 + $0x198] sm:$0xff]
        %v575 = vld [vmem:[%s452 + $0x1a0] sm:$0xff]
        %v576 = vld [vmem:[%s452 + $0x1a8] sm:$0xff]
        %v577 = vld [vmem:[%s452 + $0x1b0] sm:$0xff]
        %v578 = vld [vmem:[%s452 + $0x1b8] sm:$0xff]
        %v579 = vld [vmem:[%s452 + $0x1c0] sm:$0xff]
        %v580 = vld [vmem:[%s452 + $0x1c8] sm:$0xff]
        %v581 = vld [vmem:[%s452 + $0x1d0] sm:$0xff]
        %v582 = vld [vmem:[%s452 + $0x1d8] sm:$0xff]
        %v583 = vld [vmem:[%s452 + $0x1e0] sm:$0xff]
        %v584 = vld [vmem:[%s452 + $0x1e8] sm:$0xff]
        %v585 = vld [vmem:[%s452 + $0x1f0] sm:$0xff]
        %v586 = vld [vmem:[%s452 + $0x1f8] sm:$0xff]
        %v587 = vld [vmem:[%s452 + $0x200] sm:$0xff]
        %v588 = vld [vmem:[%s452 + $0x208] sm:$0xff]
        %v589 = vld [vmem:[%s452 + $0x210] sm:$0xff]
        %v590 = vld [vmem:[%s452 + $0x218] sm:$0xff]
        %v591 = vld [vmem:[%s452 + $0x220] sm:$0xff]
        %v592 = vld [vmem:[%s452 + $0x228] sm:$0xff]
        %v593 = vld [vmem:[%s452 + $0x230] sm:$0xff]
        %v594 = vld [vmem:[%s452 + $0x238] sm:$0xff]
        %v595 = vld [vmem:[%s452 + $0x240] sm:$0xff]
        %v596 = vld [vmem:[%s452 + $0x248] sm:$0xff]
        %v597 = vld [vmem:[%s452 + $0x250] sm:$0xff]
        %v598 = vld [vmem:[%s452 + $0x258] sm:$0xff]
        %v599 = vld [vmem:[%s452 + $0x260] sm:$0xff]
        %v600 = vld [vmem:[%s452 + $0x268] sm:$0xff]
        %v601 = vld [vmem:[%s452 + $0x270] sm:$0xff]
        %v602 = vld [vmem:[%s452 + $0x278] sm:$0xff]
        %v603 = vld [vmem:[%s452 + $0x280] sm:$0xff]
        %v604 = vld [vmem:[%s452 + $0x288] sm:$0xff]
        %v605 = vld [vmem:[%s452 + $0x290] sm:$0xff]
        %v606 = vld [vmem:[%s452 + $0x298] sm:$0xff]
        %v607 = vld [vmem:[%s452 + $0x2a0] sm:$0xff]
        %v608 = vld [vmem:[%s452 + $0x2a8] sm:$0xff]
        %v609 = vld [vmem:[%s452 + $0x2b0] sm:$0xff]
        %v610 = vld [vmem:[%s452 + $0x2b8] sm:$0xff]
        %v611 = vld [vmem:[%s452 + $0x2c0] sm:$0xff]
        %v612 = vld [vmem:[%s452 + $0x2c8] sm:$0xff]
        %v613 = vld [vmem:[%s452 + $0x2d0] sm:$0xff]
        %v614 = vld [vmem:[%s452 + $0x2d8] sm:$0xff]
        %v615 = vld [vmem:[%s452 + $0x2e0] sm:$0xff]
        %v616 = vld [vmem:[%s452 + $0x2e8] sm:$0xff]
        %v617 = vld [vmem:[%s452 + $0x2f0] sm:$0xff]
        %v618 = vld [vmem:[%s452 + $0x2f8] sm:$0xff]
        %v619 = vld [vmem:[%s452 + $0x300] sm:$0xff]
        %v620 = vld [vmem:[%s452 + $0x308] sm:$0xff]
        %v621 = vld [vmem:[%s452 + $0x310] sm:$0xff]
        %v622 = vld [vmem:[%s452 + $0x318] sm:$0xff]
        %v623 = vld [vmem:[%s452 + $0x320] sm:$0xff]
        %v624 = vld [vmem:[%s452 + $0x328] sm:$0xff]
        %v625 = vld [vmem:[%s452 + $0x330] sm:$0xff]
        %v626 = vld [vmem:[%s452 + $0x338] sm:$0xff]
        %v627 = vld [vmem:[%s452 + $0x340] sm:$0xff]
        %v628 = vld [vmem:[%s452 + $0x348] sm:$0xff]
        %v629 = vld [vmem:[%s452 + $0x350] sm:$0xff]
        %v630 = vld [vmem:[%s452 + $0x358] sm:$0xff]
        %v631 = vld [vmem:[%s452 + $0x360] sm:$0xff]
        %v632 = vld [vmem:[%s452 + $0x368] sm:$0xff]
        %v633 = vld [vmem:[%s452 + $0x370] sm:$0xff]
        %v634 = vld [vmem:[%s452 + $0x378] sm:$0xff]
        %v635 = vld [vmem:[%s452 + $0x380] sm:$0xff]
        %v636 = vld [vmem:[%s452 + $0x388] sm:$0xff]
        %v637 = vld [vmem:[%s452 + $0x390] sm:$0xff]
        %v638 = vld [vmem:[%s452 + $0x398] sm:$0xff]
        %v639 = vld [vmem:[%s452 + $0x3a0] sm:$0xff]
        %v640 = vld [vmem:[%s452 + $0x3a8] sm:$0xff]
        %v641 = vld [vmem:[%s452 + $0x3b0] sm:$0xff]
        %v642 = vld [vmem:[%s452 + $0x3b8] sm:$0xff]
        %v643 = vld [vmem:[%s452 + $0x3c0] sm:$0xff]
        %v644 = vld [vmem:[%s452 + $0x3c8] sm:$0xff]
        %v645 = vld [vmem:[%s452 + $0x3d0] sm:$0xff]
        %v646 = vld [vmem:[%s452 + $0x3d8] sm:$0xff]
        %v647 = vld [vmem:[%s452 + $0x3e0] sm:$0xff]
        %v648 = vld [vmem:[%s452 + $0x3e8] sm:$0xff]
        %v649 = vld [vmem:[%s452 + $0x3f0] sm:$0xff]
        %v650 = vld [vmem:[%s452 + $0x3f8] sm:$0xff]
        %v651 = vld [vmem:[%s452 + $0x400] sm:$0xff]
        %v652 = vld [vmem:[%s452 + $0x408] sm:$0xff]
        %v653 = vld [vmem:[%s452 + $0x410] sm:$0xff]
        %v654 = vld [vmem:[%s452 + $0x418] sm:$0xff]
        %v655 = vld [vmem:[%s452 + $0x420] sm:$0xff]
        %v656 = vld [vmem:[%s452 + $0x428] sm:$0xff]
        %v657 = vld [vmem:[%s452 + $0x430] sm:$0xff]
        %v658 = vld [vmem:[%s452 + $0x438] sm:$0xff]
        %v659 = vld [vmem:[%s452 + $0x440] sm:$0xff]
        %v660 = vld [vmem:[%s452 + $0x448] sm:$0xff]
        %v661 = vld [vmem:[%s452 + $0x450] sm:$0xff]
        %v662 = vld [vmem:[%s452 + $0x458] sm:$0xff]
        %v663 = vld [vmem:[%s452 + $0x460] sm:$0xff]
        %v664 = vld [vmem:[%s452 + $0x468] sm:$0xff]
        %v665 = vld [vmem:[%s452 + $0x470] sm:$0xff]
        %v666 = vld [vmem:[%s452 + $0x478] sm:$0xff]
        %v667 = vld [vmem:[%s452 + $0x480] sm:$0xff]
        %v668 = vld [vmem:[%s452 + $0x488] sm:$0xff]
        %v669 = vld [vmem:[%s452 + $0x490] sm:$0xff]
        %v670 = vld [vmem:[%s452 + $0x498] sm:$0xff]
        %v671 = vld [vmem:[%s452 + $0x4a0] sm:$0xff]
        %v672 = vld [vmem:[%s452 + $0x4a8] sm:$0xff]
        %v673 = vld [vmem:[%s452 + $0x4b0] sm:$0xff]
        %v674 = vld [vmem:[%s452 + $0x4b8] sm:$0xff]
        %v675 = vld [vmem:[%s452 + $0x4c0] sm:$0xff]
        %v676 = vld [vmem:[%s452 + $0x4c8] sm:$0xff]
        %v677 = vld [vmem:[%s452 + $0x4d0] sm:$0xff]
        %v678 = vld [vmem:[%s452 + $0x4d8] sm:$0xff]
        %v679 = vld [vmem:[%s452 + $0x4e0] sm:$0xff]
        %v680 = vld [vmem:[%s452 + $0x4e8] sm:$0xff]
        %v681 = vld [vmem:[%s452 + $0x4f0] sm:$0xff]
        %v682 = vld [vmem:[%s452 + $0x4f8] sm:$0xff]
        %v683 = vld [vmem:[%s452 + $0x500] sm:$0xff]
        %v684 = vld [vmem:[%s452 + $0x508] sm:$0xff]
        %v685 = vld [vmem:[%s452 + $0x510] sm:$0xff]
        %v686 = vld [vmem:[%s452 + $0x518] sm:$0xff]
        %v687 = vld [vmem:[%s452 + $0x520] sm:$0xff]
        %v688 = vld [vmem:[%s452 + $0x528] sm:$0xff]
        %v689 = vld [vmem:[%s452 + $0x530] sm:$0xff]
        %v690 = vld [vmem:[%s452 + $0x538] sm:$0xff]
        %v691 = vld [vmem:[%s452 + $0x540] sm:$0xff]
        %v692 = vld [vmem:[%s452 + $0x548] sm:$0xff]
        %v693 = vld [vmem:[%s452 + $0x550] sm:$0xff]
        %v694 = vld [vmem:[%s452 + $0x558] sm:$0xff]
        %v695 = vld [vmem:[%s452 + $0x560] sm:$0xff]
        %v696 = vld [vmem:[%s452 + $0x568] sm:$0xff]
        %v697 = vld [vmem:[%s452 + $0x570] sm:$0xff]
        %v698 = vld [vmem:[%s452 + $0x578] sm:$0xff]
        %v699 = vld [vmem:[%s452 + $0x580] sm:$0xff]
        %v700 = vld [vmem:[%s452 + $0x588] sm:$0xff]
        %v701 = vld [vmem:[%s452 + $0x590] sm:$0xff]
        %v702 = vld [vmem:[%s452 + $0x598] sm:$0xff]
        %v703 = vld [vmem:[%s452 + $0x5a0] sm:$0xff]
        %v704 = vld [vmem:[%s452 + $0x5a8] sm:$0xff]
        %v705 = vld [vmem:[%s452 + $0x5b0] sm:$0xff]
        %v706 = vld [vmem:[%s452 + $0x5b8] sm:$0xff]
        %v707 = vld [vmem:[%s452 + $0x5c0] sm:$0xff]
        %v708 = vld [vmem:[%s452 + $0x5c8] sm:$0xff]
        %v709 = vld [vmem:[%s452 + $0x5d0] sm:$0xff]
        %v710 = vld [vmem:[%s452 + $0x5d8] sm:$0xff]
        %v711 = vld [vmem:[%s452 + $0x5e0] sm:$0xff]
        %v712 = vld [vmem:[%s452 + $0x5e8] sm:$0xff]
        %v713 = vld [vmem:[%s452 + $0x5f0] sm:$0xff]
        %v714 = vld [vmem:[%s452 + $0x5f8] sm:$0xff]
        %v715 = vld [vmem:[%s452 + $0x600] sm:$0xff]
        %v716 = vld [vmem:[%s452 + $0x608] sm:$0xff]
        %v717 = vld [vmem:[%s452 + $0x610] sm:$0xff]
        %v718 = vld [vmem:[%s452 + $0x618] sm:$0xff]
        %v719 = vld [vmem:[%s452 + $0x620] sm:$0xff]
        %v720 = vld [vmem:[%s452 + $0x628] sm:$0xff]
        %v721 = vld [vmem:[%s452 + $0x630] sm:$0xff]
        %v722 = vld [vmem:[%s452 + $0x638] sm:$0xff]
        %v723 = vld [vmem:[%s452 + $0x640] sm:$0xff]
        %v724 = vld [vmem:[%s452 + $0x648] sm:$0xff]
        %v725 = vld [vmem:[%s452 + $0x650] sm:$0xff]
        %v726 = vld [vmem:[%s452 + $0x658] sm:$0xff]
        %v727 = vld [vmem:[%s452 + $0x660] sm:$0xff]
        %v728 = vld [vmem:[%s452 + $0x668] sm:$0xff]
        %v729 = vld [vmem:[%s452 + $0x670] sm:$0xff]
        %v730 = vld [vmem:[%s452 + $0x678] sm:$0xff]
        %v731 = vld [vmem:[%s452 + $0x680] sm:$0xff]
        %v732 = vld [vmem:[%s452 + $0x688] sm:$0xff]
        %v733 = vld [vmem:[%s452 + $0x690] sm:$0xff]
        %v734 = vld [vmem:[%s452 + $0x698] sm:$0xff]
        %v735 = vld [vmem:[%s452 + $0x6a0] sm:$0xff]
        %v736 = vld [vmem:[%s452 + $0x6a8] sm:$0xff]
        %v737 = vld [vmem:[%s452 + $0x6b0] sm:$0xff]
        %v738 = vld [vmem:[%s452 + $0x6b8] sm:$0xff]
        %v739 = vld [vmem:[%s452 + $0x6c0] sm:$0xff]
        %v740 = vld [vmem:[%s452 + $0x6c8] sm:$0xff]
        %v741 = vld [vmem:[%s452 + $0x6d0] sm:$0xff]
        %v742 = vld [vmem:[%s452 + $0x6d8] sm:$0xff]
        %v743 = vld [vmem:[%s452 + $0x6e0] sm:$0xff]
        %v744 = vld [vmem:[%s452 + $0x6e8] sm:$0xff]
        %v745 = vld [vmem:[%s452 + $0x6f0] sm:$0xff]
        %v746 = vld [vmem:[%s452 + $0x6f8] sm:$0xff]
        %v747 = vld [vmem:[%s452 + $0x700] sm:$0xff]
        %v748 = vld [vmem:[%s452 + $0x708] sm:$0xff]
        %v749 = vld [vmem:[%s452 + $0x710] sm:$0xff]
        %v750 = vld [vmem:[%s452 + $0x718] sm:$0xff]
        %v751 = vld [vmem:[%s452 + $0x720] sm:$0xff]
        %v752 = vld [vmem:[%s452 + $0x728] sm:$0xff]
        %v753 = vld [vmem:[%s452 + $0x730] sm:$0xff]
        %v754 = vld [vmem:[%s452 + $0x738] sm:$0xff]
        %v755 = vld [vmem:[%s452 + $0x740] sm:$0xff]
        %v756 = vld [vmem:[%s452 + $0x748] sm:$0xff]
        %v757 = vld [vmem:[%s452 + $0x750] sm:$0xff]
        %v758 = vld [vmem:[%s452 + $0x758] sm:$0xff]
        %v759 = vld [vmem:[%s452 + $0x760] sm:$0xff]
        %v760 = vld [vmem:[%s452 + $0x768] sm:$0xff]
        %v761 = vld [vmem:[%s452 + $0x770] sm:$0xff]
        %v762 = vld [vmem:[%s452 + $0x778] sm:$0xff]
        %v763 = vld [vmem:[%s452 + $0x780] sm:$0xff]
        %v764 = vld [vmem:[%s452 + $0x788] sm:$0xff]
        %v765 = vld [vmem:[%s452 + $0x790] sm:$0xff]
        %v766 = vld [vmem:[%s452 + $0x798] sm:$0xff]
        %v767 = vld [vmem:[%s452 + $0x7a0] sm:$0xff]
        %v768 = vld [vmem:[%s452 + $0x7a8] sm:$0xff]
        %v769 = vld [vmem:[%s452 + $0x7b0] sm:$0xff]
        %v770 = vld [vmem:[%s452 + $0x7b8] sm:$0xff]
        %v771 = vld [vmem:[%s452 + $0x7c0] sm:$0xff]
        %v772 = vld [vmem:[%s452 + $0x7c8] sm:$0xff]
        %v773 = vld [vmem:[%s452 + $0x7d0] sm:$0xff]
        %v774 = vld [vmem:[%s452 + $0x7d8] sm:$0xff]
        %v775 = vld [vmem:[%s452 + $0x7e0] sm:$0xff]
        %v776 = vld [vmem:[%s452 + $0x7e8] sm:$0xff]
        %v777 = vld [vmem:[%s452 + $0x7f0] sm:$0xff]
        %v778 = vld [vmem:[%s452 + $0x7f8] sm:$0xff]
        %v779 = vld [vmem:[%s452 + $0x800] sm:$0xff]
        %v780 = vld [vmem:[%s452 + $0x808] sm:$0xff]
        %v781 = vld [vmem:[%s452 + $0x810] sm:$0xff]
        %v782 = vld [vmem:[%s452 + $0x818] sm:$0xff]
        %v783 = vld [vmem:[%s452 + $0x820] sm:$0xff]
        %v784 = vld [vmem:[%s452 + $0x828] sm:$0xff]
        %v785 = vld [vmem:[%s452 + $0x830] sm:$0xff]
        %v786 = vld [vmem:[%s452 + $0x838] sm:$0xff]
        %v787 = vld [vmem:[%s452 + $0x840] sm:$0xff]
        %v788 = vld [vmem:[%s452 + $0x848] sm:$0xff]
        %v789 = vld [vmem:[%s452 + $0x850] sm:$0xff]
        %v790 = vld [vmem:[%s452 + $0x858] sm:$0xff]
        %v791 = vld [vmem:[%s452 + $0x860] sm:$0xff]
        %v792 = vld [vmem:[%s452 + $0x868] sm:$0xff]
        %v793 = vld [vmem:[%s452 + $0x870] sm:$0xff]
        %v794 = vld [vmem:[%s452 + $0x878] sm:$0xff]
        %v795 = vld [vmem:[%s452 + $0x880] sm:$0xff]
        %v796 = vld [vmem:[%s452 + $0x888] sm:$0xff]
        %v797 = vld [vmem:[%s452 + $0x890] sm:$0xff]
        %v798 = vld [vmem:[%s452 + $0x898] sm:$0xff]
        %v799 = vld [vmem:[%s452 + $0x8a0] sm:$0xff]
        %v800 = vld [vmem:[%s452 + $0x8a8] sm:$0xff]
        %v801 = vld [vmem:[%s452 + $0x8b0] sm:$0xff]
        %v802 = vld [vmem:[%s452 + $0x8b8] sm:$0xff]
        %v803 = vld [vmem:[%s452 + $0x8c0] sm:$0xff]
        %v804 = vld [vmem:[%s452 + $0x8c8] sm:$0xff]
        %v805 = vld [vmem:[%s452 + $0x8d0] sm:$0xff]
        %v806 = vld [vmem:[%s452 + $0x8d8] sm:$0xff]
        %v807 = vld [vmem:[%s452 + $0x8e0] sm:$0xff]
        %v808 = vld [vmem:[%s452 + $0x8e8] sm:$0xff]
        %v809 = vld [vmem:[%s452 + $0x8f0] sm:$0xff]
        %v810 = vld [vmem:[%s452 + $0x8f8] sm:$0xff]
        %v811 = vld [vmem:[%s452 + $0x900] sm:$0xff]
        %v812 = vld [vmem:[%s452 + $0x908] sm:$0xff]
        %v813 = vld [vmem:[%s452 + $0x910] sm:$0xff]
        %v814 = vld [vmem:[%s452 + $0x918] sm:$0xff]
        %v815 = vld [vmem:[%s452 + $0x920] sm:$0xff]
        %v816 = vld [vmem:[%s452 + $0x928] sm:$0xff]
        %v817 = vld [vmem:[%s452 + $0x930] sm:$0xff]
        %v818 = vld [vmem:[%s452 + $0x938] sm:$0xff]
        %v819 = vld [vmem:[%s452 + $0x940] sm:$0xff]
        %v820 = vld [vmem:[%s452 + $0x948] sm:$0xff]
        %v821 = vld [vmem:[%s452 + $0x950] sm:$0xff]
        %v822 = vld [vmem:[%s452 + $0x958] sm:$0xff]
        %v823 = vld [vmem:[%s452 + $0x960] sm:$0xff]
        %v824 = vld [vmem:[%s452 + $0x968] sm:$0xff]
        %v825 = vld [vmem:[%s452 + $0x970] sm:$0xff]
        %v826 = vld [vmem:[%s452 + $0x978] sm:$0xff]
        %v827 = vld [vmem:[%s452 + $0x980] sm:$0xff]
        %v828 = vld [vmem:[%s452 + $0x988] sm:$0xff]
        %v829 = vld [vmem:[%s452 + $0x990] sm:$0xff]
        %v830 = vld [vmem:[%s452 + $0x998] sm:$0xff]
        %v831 = vld [vmem:[%s452 + $0x9a0] sm:$0xff]
        %v832 = vld [vmem:[%s452 + $0x9a8] sm:$0xff]
        %v833 = vld [vmem:[%s452 + $0x9b0] sm:$0xff]
        %v834 = vld [vmem:[%s452 + $0x9b8] sm:$0xff]
        %v835 = vld [vmem:[%s452 + $0x9c0] sm:$0xff]
        %v836 = vld [vmem:[%s452 + $0x9c8] sm:$0xff]
        %v837 = vld [vmem:[%s452 + $0x9d0] sm:$0xff]
        %v838 = vld [vmem:[%s452 + $0x9d8] sm:$0xff]
        %v839 = vld [vmem:[%s452 + $0x9e0] sm:$0xff]
        %v840 = vld [vmem:[%s452 + $0x9e8] sm:$0xff]
        %v841 = vld [vmem:[%s452 + $0x9f0] sm:$0xff]
        %v842 = vld [vmem:[%s452 + $0x9f8] sm:$0xff]
        %v843 = vld [vmem:[%s452 + $0xa00] sm:$0xff]
        %v844 = vld [vmem:[%s452 + $0xa08] sm:$0xff]
        %v845 = vld [vmem:[%s452 + $0xa10] sm:$0xff]
        %v846 = vld [vmem:[%s452 + $0xa18] sm:$0xff]
        %v847 = vld [vmem:[%s452 + $0xa20] sm:$0xff]
        %v848 = vld [vmem:[%s452 + $0xa28] sm:$0xff]
        %v849 = vld [vmem:[%s452 + $0xa30] sm:$0xff]
        %v850 = vld [vmem:[%s452 + $0xa38] sm:$0xff]
        %v851 = vld [vmem:[%s452 + $0xa40] sm:$0xff]
        %v852 = vld [vmem:[%s452 + $0xa48] sm:$0xff]
        %v853 = vld [vmem:[%s452 + $0xa50] sm:$0xff]
        %v854 = vld [vmem:[%s452 + $0xa58] sm:$0xff]
        %v855 = vld [vmem:[%s452 + $0xa60] sm:$0xff]
        %v856 = vld [vmem:[%s452 + $0xa68] sm:$0xff]
        %v857 = vld [vmem:[%s452 + $0xa70] sm:$0xff]
        %v858 = vld [vmem:[%s452 + $0xa78] sm:$0xff]
        %v859 = vld [vmem:[%s452 + $0xa80] sm:$0xff]
        %v860 = vld [vmem:[%s452 + $0xa88] sm:$0xff]
        %v861 = vld [vmem:[%s452 + $0xa90] sm:$0xff]
        %v862 = vld [vmem:[%s452 + $0xa98] sm:$0xff]
        %v863 = vld [vmem:[%s452 + $0xaa0] sm:$0xff]
        %v864 = vld [vmem:[%s452 + $0xaa8] sm:$0xff]
        %v865 = vld [vmem:[%s452 + $0xab0] sm:$0xff]
        %v866 = vld [vmem:[%s452 + $0xab8] sm:$0xff]
        %v867 = vld [vmem:[%s452 + $0xac0] sm:$0xff]
        %v868 = vld [vmem:[%s452 + $0xac8] sm:$0xff]
        %v869 = vld [vmem:[%s452 + $0xad0] sm:$0xff]
        %v870 = vld [vmem:[%s452 + $0xad8] sm:$0xff]
        %v871 = vld [vmem:[%s452 + $0xae0] sm:$0xff]
        %v872 = vld [vmem:[%s452 + $0xae8] sm:$0xff]
        %v873 = vld [vmem:[%s452 + $0xaf0] sm:$0xff]
        %v874 = vld [vmem:[%s452 + $0xaf8] sm:$0xff]
        %v875 = vld [vmem:[%s452 + $0xb00] sm:$0xff]
        %v876 = vld [vmem:[%s452 + $0xb08] sm:$0xff]
        %v877 = vld [vmem:[%s452 + $0xb10] sm:$0xff]
        %v878 = vld [vmem:[%s452 + $0xb18] sm:$0xff]
        %v879 = vld [vmem:[%s452 + $0xb20] sm:$0xff]
        %v880 = vld [vmem:[%s452 + $0xb28] sm:$0xff]
        %v881 = vld [vmem:[%s452 + $0xb30] sm:$0xff]
        %v882 = vld [vmem:[%s452 + $0xb38] sm:$0xff]
        %v883 = vld [vmem:[%s452 + $0xb40] sm:$0xff]
        %v884 = vld [vmem:[%s452 + $0xb48] sm:$0xff]
        %v885 = vld [vmem:[%s452 + $0xb50] sm:$0xff]
        %v886 = vld [vmem:[%s452 + $0xb58] sm:$0xff]
        %v887 = vld [vmem:[%s452 + $0xb60] sm:$0xff]
        %v888 = vld [vmem:[%s452 + $0xb68] sm:$0xff]
        %v889 = vld [vmem:[%s452 + $0xb70] sm:$0xff]
        %v890 = vld [vmem:[%s452 + $0xb78] sm:$0xff]
        %v891 = vld [vmem:[%s452 + $0xb80] sm:$0xff]
        %v892 = vld [vmem:[%s452 + $0xb88] sm:$0xff]
        %v893 = vld [vmem:[%s452 + $0xb90] sm:$0xff]
        %v894 = vld [vmem:[%s452 + $0xb98] sm:$0xff]
        %v895 = vld [vmem:[%s452 + $0xba0] sm:$0xff]
        %v896 = vld [vmem:[%s452 + $0xba8] sm:$0xff]
        %v897 = vld [vmem:[%s452 + $0xbb0] sm:$0xff]
        %v898 = vld [vmem:[%s452 + $0xbb8] sm:$0xff]
        %v899 = vld [vmem:[%s452 + $0xbc0] sm:$0xff]
        %v900 = vld [vmem:[%s452 + $0xbc8] sm:$0xff]
        %v901 = vld [vmem:[%s452 + $0xbd0] sm:$0xff]
        %v902 = vld [vmem:[%s452 + $0xbd8] sm:$0xff]
        %v903 = vld [vmem:[%s452 + $0xbe0] sm:$0xff]
        %v904 = vld [vmem:[%s452 + $0xbe8] sm:$0xff]
        %v905 = vld [vmem:[%s452 + $0xbf0] sm:$0xff]
        %v906 = vld [vmem:[%s452 + $0xbf8] sm:$0xff]
        %v907 = vld [vmem:[%s452 + $0xc00] sm:$0xff]
        %v908 = vld [vmem:[%s452 + $0xc08] sm:$0xff]
        %v909 = vld [vmem:[%s452 + $0xc10] sm:$0xff]
        %v910 = vld [vmem:[%s452 + $0xc18] sm:$0xff]
        %v911 = vld [vmem:[%s452 + $0xc20] sm:$0xff]
        %v912 = vld [vmem:[%s452 + $0xc28] sm:$0xff]
        %v913 = vld [vmem:[%s452 + $0xc30] sm:$0xff]
        %v914 = vld [vmem:[%s452 + $0xc38] sm:$0xff]
        %v915 = vld [vmem:[%s452 + $0xc40] sm:$0xff]
        %v916 = vld [vmem:[%s452 + $0xc48] sm:$0xff]
        %v917 = vld [vmem:[%s452 + $0xc50] sm:$0xff]
        %v918 = vld [vmem:[%s452 + $0xc58] sm:$0xff]
        %v919 = vld [vmem:[%s452 + $0xc60] sm:$0xff]
        %v920 = vld [vmem:[%s452 + $0xc68] sm:$0xff]
        %v921 = vld [vmem:[%s452 + $0xc70] sm:$0xff]
        %v922 = vld [vmem:[%s452 + $0xc78] sm:$0xff]
        %v923 = vld [vmem:[%s452 + $0xc80] sm:$0xff]
        %v924 = vld [vmem:[%s452 + $0xc88] sm:$0xff]
        %v925 = vld [vmem:[%s452 + $0xc90] sm:$0xff]
        %v926 = vld [vmem:[%s452 + $0xc98] sm:$0xff]
        %v927 = vld [vmem:[%s452 + $0xca0] sm:$0xff]
        %v928 = vld [vmem:[%s452 + $0xca8] sm:$0xff]
        %v929 = vld [vmem:[%s452 + $0xcb0] sm:$0xff]
        %v930 = vld [vmem:[%s452 + $0xcb8] sm:$0xff]
        %v931 = vld [vmem:[%s452 + $0xcc0] sm:$0xff]
        %v932 = vld [vmem:[%s452 + $0xcc8] sm:$0xff]
        %v933 = vld [vmem:[%s452 + $0xcd0] sm:$0xff]
        %v934 = vld [vmem:[%s452 + $0xcd8] sm:$0xff]
        %v935 = vld [vmem:[%s452 + $0xce0] sm:$0xff]
        %v936 = vld [vmem:[%s452 + $0xce8] sm:$0xff]
        %v937 = vld [vmem:[%s452 + $0xcf0] sm:$0xff]
        %v938 = vld [vmem:[%s452 + $0xcf8] sm:$0xff]
        %v939 = vld [vmem:[%s452 + $0xd00] sm:$0xff]
        %v940 = vld [vmem:[%s452 + $0xd08] sm:$0xff]
        %v941 = vld [vmem:[%s452 + $0xd10] sm:$0xff]
        %v942 = vld [vmem:[%s452 + $0xd18] sm:$0xff]
        %v943 = vld [vmem:[%s452 + $0xd20] sm:$0xff]
        %v944 = vld [vmem:[%s452 + $0xd28] sm:$0xff]
        %v945 = vld [vmem:[%s452 + $0xd30] sm:$0xff]
        %v946 = vld [vmem:[%s452 + $0xd38] sm:$0xff]
        %v947 = vld [vmem:[%s452 + $0xd40] sm:$0xff]
        %v948 = vld [vmem:[%s452 + $0xd48] sm:$0xff]
        %v949 = vld [vmem:[%s452 + $0xd50] sm:$0xff]
        %v950 = vld [vmem:[%s452 + $0xd58] sm:$0xff]
        %v951 = vld [vmem:[%s452 + $0xd60] sm:$0xff]
        %v952 = vld [vmem:[%s452 + $0xd68] sm:$0xff]
        %v953 = vld [vmem:[%s452 + $0xd70] sm:$0xff]
        %v954 = vld [vmem:[%s452 + $0xd78] sm:$0xff]
        %v955 = vld [vmem:[%s452 + $0xd80] sm:$0xff]
        %v956 = vld [vmem:[%s452 + $0xd88] sm:$0xff]
        %v957 = vld [vmem:[%s452 + $0xd90] sm:$0xff]
        %v958 = vld [vmem:[%s452 + $0xd98] sm:$0xff]
        %v959 = vld [vmem:[%s452 + $0xda0] sm:$0xff]
        %v960 = vld [vmem:[%s452 + $0xda8] sm:$0xff]
        %v961 = vld [vmem:[%s452 + $0xdb0] sm:$0xff]
        %v962 = vld [vmem:[%s452 + $0xdb8] sm:$0xff]
        %v963 = vld [vmem:[%s452 + $0xdc0] sm:$0xff]
        %v964 = vld [vmem:[%s452 + $0xdc8] sm:$0xff]
        %v965 = vld [vmem:[%s452 + $0xdd0] sm:$0xff]
        %v966 = vld [vmem:[%s452 + $0xdd8] sm:$0xff]
        %v967 = vld [vmem:[%s452 + $0xde0] sm:$0xff]
        %v968 = vld [vmem:[%s452 + $0xde8] sm:$0xff]
        %v969 = vld [vmem:[%s452 + $0xdf0] sm:$0xff]
        %v970 = vld [vmem:[%s452 + $0xdf8] sm:$0xff]
        %v971 = vld [vmem:[%s452 + $0xe00] sm:$0xff]
        %v972 = vld [vmem:[%s452 + $0xe08] sm:$0xff]
        %v973 = vld [vmem:[%s452 + $0xe10] sm:$0xff]
        %v974 = vld [vmem:[%s452 + $0xe18] sm:$0xff]
        %v975 = vld [vmem:[%s452 + $0xe20] sm:$0xff]
        %v976 = vld [vmem:[%s452 + $0xe28] sm:$0xff]
        %v977 = vld [vmem:[%s452 + $0xe30] sm:$0xff]
        %v978 = vld [vmem:[%s452 + $0xe38] sm:$0xff]
        %v979 = vld [vmem:[%s452 + $0xe40] sm:$0xff]
        %v980 = vld [vmem:[%s452 + $0xe48] sm:$0xff]
        %v981 = vld [vmem:[%s452 + $0xe50] sm:$0xff]
        %v982 = vld [vmem:[%s452 + $0xe58] sm:$0xff]
        %v983 = vld [vmem:[%s452 + $0xe60] sm:$0xff]
        %v984 = vld [vmem:[%s452 + $0xe68] sm:$0xff]
        %v985 = vld [vmem:[%s452 + $0xe70] sm:$0xff]
        %v986 = vld [vmem:[%s452 + $0xe78] sm:$0xff]
        %v987 = vld [vmem:[%s452 + $0xe80] sm:$0xff]
        %v988 = vld [vmem:[%s452 + $0xe88] sm:$0xff]
        %v989 = vld [vmem:[%s452 + $0xe90] sm:$0xff]
        %v990 = vld [vmem:[%s452 + $0xe98] sm:$0xff]
        %v991 = vld [vmem:[%s452 + $0xea0] sm:$0xff]
        %v992 = vld [vmem:[%s452 + $0xea8] sm:$0xff]
        %v993 = vld [vmem:[%s452 + $0xeb0] sm:$0xff]
        %v994 = vld [vmem:[%s452 + $0xeb8] sm:$0xff]
        %v995 = vld [vmem:[%s452 + $0xec0] sm:$0xff]
        %v996 = vld [vmem:[%s452 + $0xec8] sm:$0xff]
        %v997 = vld [vmem:[%s452 + $0xed0] sm:$0xff]
        %v998 = vld [vmem:[%s452 + $0xed8] sm:$0xff]
        %v999 = vld [vmem:[%s452 + $0xee0] sm:$0xff]
        %v1000 = vld [vmem:[%s452 + $0xee8] sm:$0xff]
        %v1001 = vld [vmem:[%s452 + $0xef0] sm:$0xff]
        %v1002 = vld [vmem:[%s452 + $0xef8] sm:$0xff]
        %v1003 = vld [vmem:[%s452 + $0xf00] sm:$0xff]
        %v1004 = vld [vmem:[%s452 + $0xf08] sm:$0xff]
        %v1005 = vld [vmem:[%s452 + $0xf10] sm:$0xff]
        %v1006 = vld [vmem:[%s452 + $0xf18] sm:$0xff]
        %v1007 = vld [vmem:[%s452 + $0xf20] sm:$0xff]
        %v1008 = vld [vmem:[%s452 + $0xf28] sm:$0xff]
        %v1009 = vld [vmem:[%s452 + $0xf30] sm:$0xff]
        %v1010 = vld [vmem:[%s452 + $0xf38] sm:$0xff]
        %v1011 = vld [vmem:[%s452 + $0xf40] sm:$0xff]
        %v1012 = vld [vmem:[%s452 + $0xf48] sm:$0xff]
        %v1013 = vld [vmem:[%s452 + $0xf50] sm:$0xff]
        %v1014 = vld [vmem:[%s452 + $0xf58] sm:$0xff]
        %v1015 = vld [vmem:[%s452 + $0xf60] sm:$0xff]
        %v1016 = vld [vmem:[%s452 + $0xf68] sm:$0xff]
        %v1017 = vld [vmem:[%s452 + $0xf70] sm:$0xff]
        %v1018 = vld [vmem:[%s452 + $0xf78] sm:$0xff]
        %v1019 = vld [vmem:[%s452 + $0xf80] sm:$0xff]
        %v1020 = vld [vmem:[%s452 + $0xf88] sm:$0xff]
        %v1021 = vld [vmem:[%s452 + $0xf90] sm:$0xff]
        %v1022 = vld [vmem:[%s452 + $0xf98] sm:$0xff]
        %v1023 = vld [vmem:[%s452 + $0xfa0] sm:$0xff]
        %v1024 = vld [vmem:[%s452 + $0xfa8] sm:$0xff]
        %v1025 = vld [vmem:[%s452 + $0xfb0] sm:$0xff]
        %v1026 = vld [vmem:[%s452 + $0xfb8] sm:$0xff]
        %v1027 = vld [vmem:[%s452 + $0xfc0] sm:$0xff]
        %v1028 = vld [vmem:[%s452 + $0xfc8] sm:$0xff]
        %v1029 = vld [vmem:[%s452 + $0xfd0] sm:$0xff]
        %v1030 = vld [vmem:[%s452 + $0xfd8] sm:$0xff]
        %v1031 = vld [vmem:[%s452 + $0xfe0] sm:$0xff]
        %v1032 = vld [vmem:[%s452 + $0xfe8] sm:$0xff]
        %v1033 = vld [vmem:[%s452 + $0xff0] sm:$0xff]
        %v1034 = vld [vmem:[%s452 + $0xff8] sm:$0xff]
        %v1547 = vunpack.c.l.b16 %v523
        %v1548 = vunpack.c.h.b16 %v523
        %v1549 = vunpack.c.l.b16 %v524
        %v1550 = vunpack.c.h.b16 %v524
        %v1551 = vunpack.c.l.b16 %v525
        %v1552 = vunpack.c.h.b16 %v525
        %v1553 = vunpack.c.l.b16 %v526
        %v1554 = vunpack.c.h.b16 %v526
        %v1555 = vunpack.c.l.b16 %v527
        %v1556 = vunpack.c.h.b16 %v527
        %v1557 = vunpack.c.l.b16 %v528
        %v1558 = vunpack.c.h.b16 %v528
        %v1559 = vunpack.c.l.b16 %v529
        %v1560 = vunpack.c.h.b16 %v529
        %v1561 = vunpack.c.l.b16 %v530
        %v1562 = vunpack.c.h.b16 %v530
        %v1563 = vunpack.c.l.b16 %v531
        %v1564 = vunpack.c.h.b16 %v531
        %v1565 = vunpack.c.l.b16 %v532
        %v1566 = vunpack.c.h.b16 %v532
        %v1567 = vunpack.c.l.b16 %v533
        %v1568 = vunpack.c.h.b16 %v533
        %v1569 = vunpack.c.l.b16 %v534
        %v1570 = vunpack.c.h.b16 %v534
        %v1571 = vunpack.c.l.b16 %v535
        %v1572 = vunpack.c.h.b16 %v535
        %v1573 = vunpack.c.l.b16 %v536
        %v1574 = vunpack.c.h.b16 %v536
        %v1575 = vunpack.c.l.b16 %v537
        %v1576 = vunpack.c.h.b16 %v537
        %v1577 = vunpack.c.l.b16 %v538
        %v1578 = vunpack.c.h.b16 %v538
        %v1579 = vunpack.c.l.b16 %v539
        %v1580 = vunpack.c.h.b16 %v539
        %v1581 = vunpack.c.l.b16 %v540
        %v1582 = vunpack.c.h.b16 %v540
        %v1583 = vunpack.c.l.b16 %v541
        %v1584 = vunpack.c.h.b16 %v541
        %v1585 = vunpack.c.l.b16 %v542
        %v1586 = vunpack.c.h.b16 %v542
        %v1587 = vunpack.c.l.b16 %v543
        %v1588 = vunpack.c.h.b16 %v543
        %v1589 = vunpack.c.l.b16 %v544
        %v1590 = vunpack.c.h.b16 %v544
        %v1591 = vunpack.c.l.b16 %v545
        %v1592 = vunpack.c.h.b16 %v545
        %v1593 = vunpack.c.l.b16 %v546
        %v1594 = vunpack.c.h.b16 %v546
        %v1595 = vunpack.c.l.b16 %v547
        %v1596 = vunpack.c.h.b16 %v547
        %v1597 = vunpack.c.l.b16 %v548
        %v1598 = vunpack.c.h.b16 %v548
        %v1599 = vunpack.c.l.b16 %v549
        %v1600 = vunpack.c.h.b16 %v549
        %v1601 = vunpack.c.l.b16 %v550
        %v1602 = vunpack.c.h.b16 %v550
        %v1603 = vunpack.c.l.b16 %v551
        %v1604 = vunpack.c.h.b16 %v551
        %v1605 = vunpack.c.l.b16 %v552
        %v1606 = vunpack.c.h.b16 %v552
        %v1607 = vunpack.c.l.b16 %v553
        %v1608 = vunpack.c.h.b16 %v553
        %v1609 = vunpack.c.l.b16 %v554
        %v1610 = vunpack.c.h.b16 %v554
        %v1611 = vunpack.c.l.b16 %v555
        %v1612 = vunpack.c.h.b16 %v555
        %v1613 = vunpack.c.l.b16 %v556
        %v1614 = vunpack.c.h.b16 %v556
        %v1615 = vunpack.c.l.b16 %v557
        %v1616 = vunpack.c.h.b16 %v557
        %v1617 = vunpack.c.l.b16 %v558
        %v1618 = vunpack.c.h.b16 %v558
        %v1619 = vunpack.c.l.b16 %v559
        %v1620 = vunpack.c.h.b16 %v559
        %v1621 = vunpack.c.l.b16 %v560
        %v1622 = vunpack.c.h.b16 %v560
        %v1623 = vunpack.c.l.b16 %v561
        %v1624 = vunpack.c.h.b16 %v561
        %v1625 = vunpack.c.l.b16 %v562
        %v1626 = vunpack.c.h.b16 %v562
        %v1627 = vunpack.c.l.b16 %v563
        %v1628 = vunpack.c.h.b16 %v563
        %v1629 = vunpack.c.l.b16 %v564
        %v1630 = vunpack.c.h.b16 %v564
        %v1631 = vunpack.c.l.b16 %v565
        %v1632 = vunpack.c.h.b16 %v565
        %v1633 = vunpack.c.l.b16 %v566
        %v1634 = vunpack.c.h.b16 %v566
        %v1635 = vunpack.c.l.b16 %v567
        %v1636 = vunpack.c.h.b16 %v567
        %v1637 = vunpack.c.l.b16 %v568
        %v1638 = vunpack.c.h.b16 %v568
        %v1639 = vunpack.c.l.b16 %v569
        %v1640 = vunpack.c.h.b16 %v569
        %v1641 = vunpack.c.l.b16 %v570
        %v1642 = vunpack.c.h.b16 %v570
        %v1643 = vunpack.c.l.b16 %v571
        %v1644 = vunpack.c.h.b16 %v571
        %v1645 = vunpack.c.l.b16 %v572
        %v1646 = vunpack.c.h.b16 %v572
        %v1647 = vunpack.c.l.b16 %v573
        %v1648 = vunpack.c.h.b16 %v573
        %v1649 = vunpack.c.l.b16 %v574
        %v1650 = vunpack.c.h.b16 %v574
        %v1651 = vunpack.c.l.b16 %v575
        %v1652 = vunpack.c.h.b16 %v575
        %v1653 = vunpack.c.l.b16 %v576
        %v1654 = vunpack.c.h.b16 %v576
        %v1655 = vunpack.c.l.b16 %v577
        %v1656 = vunpack.c.h.b16 %v577
        %v1657 = vunpack.c.l.b16 %v578
        %v1658 = vunpack.c.h.b16 %v578
        %v1659 = vunpack.c.l.b16 %v579
        %v1660 = vunpack.c.h.b16 %v579
        %v1661 = vunpack.c.l.b16 %v580
        %v1662 = vunpack.c.h.b16 %v580
        %v1663 = vunpack.c.l.b16 %v581
        %v1664 = vunpack.c.h.b16 %v581
        %v1665 = vunpack.c.l.b16 %v582
        %v1666 = vunpack.c.h.b16 %v582
        %v1667 = vunpack.c.l.b16 %v583
        %v1668 = vunpack.c.h.b16 %v583
        %v1669 = vunpack.c.l.b16 %v584
        %v1670 = vunpack.c.h.b16 %v584
        %v1671 = vunpack.c.l.b16 %v585
        %v1672 = vunpack.c.h.b16 %v585
        %v1673 = vunpack.c.l.b16 %v586
        %v1674 = vunpack.c.h.b16 %v586
        %v1675 = vunpack.c.l.b16 %v587
        %v1676 = vunpack.c.h.b16 %v587
        %v1677 = vunpack.c.l.b16 %v588
        %v1678 = vunpack.c.h.b16 %v588
        %v1679 = vunpack.c.l.b16 %v589
        %v1680 = vunpack.c.h.b16 %v589
        %v1681 = vunpack.c.l.b16 %v590
        %v1682 = vunpack.c.h.b16 %v590
        %v1683 = vunpack.c.l.b16 %v591
        %v1684 = vunpack.c.h.b16 %v591
        %v1685 = vunpack.c.l.b16 %v592
        %v1686 = vunpack.c.h.b16 %v592
        %v1687 = vunpack.c.l.b16 %v593
        %v1688 = vunpack.c.h.b16 %v593
        %v1689 = vunpack.c.l.b16 %v594
        %v1690 = vunpack.c.h.b16 %v594
        %v1691 = vunpack.c.l.b16 %v595
        %v1692 = vunpack.c.h.b16 %v595
        %v1693 = vunpack.c.l.b16 %v596
        %v1694 = vunpack.c.h.b16 %v596
        %v1695 = vunpack.c.l.b16 %v597
        %v1696 = vunpack.c.h.b16 %v597
        %v1697 = vunpack.c.l.b16 %v598
        %v1698 = vunpack.c.h.b16 %v598
        %v1699 = vunpack.c.l.b16 %v599
        %v1700 = vunpack.c.h.b16 %v599
        %v1701 = vunpack.c.l.b16 %v600
        %v1702 = vunpack.c.h.b16 %v600
        %v1703 = vunpack.c.l.b16 %v601
        %v1704 = vunpack.c.h.b16 %v601
        %v1705 = vunpack.c.l.b16 %v602
        %v1706 = vunpack.c.h.b16 %v602
        %v1707 = vunpack.c.l.b16 %v603
        %v1708 = vunpack.c.h.b16 %v603
        %v1709 = vunpack.c.l.b16 %v604
        %v1710 = vunpack.c.h.b16 %v604
        %v1711 = vunpack.c.l.b16 %v605
        %v1712 = vunpack.c.h.b16 %v605
        %v1713 = vunpack.c.l.b16 %v606
        %v1714 = vunpack.c.h.b16 %v606
        %v1715 = vunpack.c.l.b16 %v607
        %v1716 = vunpack.c.h.b16 %v607
        %v1717 = vunpack.c.l.b16 %v608
        %v1718 = vunpack.c.h.b16 %v608
        %v1719 = vunpack.c.l.b16 %v609
        %v1720 = vunpack.c.h.b16 %v609
        %v1721 = vunpack.c.l.b16 %v610
        %v1722 = vunpack.c.h.b16 %v610
        %v1723 = vunpack.c.l.b16 %v611
        %v1724 = vunpack.c.h.b16 %v611
        %v1725 = vunpack.c.l.b16 %v612
        %v1726 = vunpack.c.h.b16 %v612
        %v1727 = vunpack.c.l.b16 %v613
        %v1728 = vunpack.c.h.b16 %v613
        %v1729 = vunpack.c.l.b16 %v614
        %v1730 = vunpack.c.h.b16 %v614
        %v1731 = vunpack.c.l.b16 %v615
        %v1732 = vunpack.c.h.b16 %v615
        %v1733 = vunpack.c.l.b16 %v616
        %v1734 = vunpack.c.h.b16 %v616
        %v1735 = vunpack.c.l.b16 %v617
        %v1736 = vunpack.c.h.b16 %v617
        %v1737 = vunpack.c.l.b16 %v618
        %v1738 = vunpack.c.h.b16 %v618
        %v1739 = vunpack.c.l.b16 %v619
        %v1740 = vunpack.c.h.b16 %v619
        %v1741 = vunpack.c.l.b16 %v620
        %v1742 = vunpack.c.h.b16 %v620
        %v1743 = vunpack.c.l.b16 %v621
        %v1744 = vunpack.c.h.b16 %v621
        %v1745 = vunpack.c.l.b16 %v622
        %v1746 = vunpack.c.h.b16 %v622
        %v1747 = vunpack.c.l.b16 %v623
        %v1748 = vunpack.c.h.b16 %v623
        %v1749 = vunpack.c.l.b16 %v624
        %v1750 = vunpack.c.h.b16 %v624
        %v1751 = vunpack.c.l.b16 %v625
        %v1752 = vunpack.c.h.b16 %v625
        %v1753 = vunpack.c.l.b16 %v626
        %v1754 = vunpack.c.h.b16 %v626
        %v1755 = vunpack.c.l.b16 %v627
        %v1756 = vunpack.c.h.b16 %v627
        %v1757 = vunpack.c.l.b16 %v628
        %v1758 = vunpack.c.h.b16 %v628
        %v1759 = vunpack.c.l.b16 %v629
        %v1760 = vunpack.c.h.b16 %v629
        %v1761 = vunpack.c.l.b16 %v630
        %v1762 = vunpack.c.h.b16 %v630
        %v1763 = vunpack.c.l.b16 %v631
        %v1764 = vunpack.c.h.b16 %v631
        %v1765 = vunpack.c.l.b16 %v632
        %v1766 = vunpack.c.h.b16 %v632
        %v1767 = vunpack.c.l.b16 %v633
        %v1768 = vunpack.c.h.b16 %v633
        %v1769 = vunpack.c.l.b16 %v634
        %v1770 = vunpack.c.h.b16 %v634
        %v1771 = vunpack.c.l.b16 %v635
        %v1772 = vunpack.c.h.b16 %v635
        %v1773 = vunpack.c.l.b16 %v636
        %v1774 = vunpack.c.h.b16 %v636
        %v1775 = vunpack.c.l.b16 %v637
        %v1776 = vunpack.c.h.b16 %v637
        %v1777 = vunpack.c.l.b16 %v638
        %v1778 = vunpack.c.h.b16 %v638
        %v1779 = vunpack.c.l.b16 %v639
        %v1780 = vunpack.c.h.b16 %v639
        %v1781 = vunpack.c.l.b16 %v640
        %v1782 = vunpack.c.h.b16 %v640
        %v1783 = vunpack.c.l.b16 %v641
        %v1784 = vunpack.c.h.b16 %v641
        %v1785 = vunpack.c.l.b16 %v642
        %v1786 = vunpack.c.h.b16 %v642
        %v1787 = vunpack.c.l.b16 %v643
        %v1788 = vunpack.c.h.b16 %v643
        %v1789 = vunpack.c.l.b16 %v644
        %v1790 = vunpack.c.h.b16 %v644
        %v1791 = vunpack.c.l.b16 %v645
        %v1792 = vunpack.c.h.b16 %v645
        %v1793 = vunpack.c.l.b16 %v646
        %v1794 = vunpack.c.h.b16 %v646
        %v1795 = vunpack.c.l.b16 %v647
        %v1796 = vunpack.c.h.b16 %v647
        %v1797 = vunpack.c.l.b16 %v648
        %v1798 = vunpack.c.h.b16 %v648
        %v1799 = vunpack.c.l.b16 %v649
        %v1800 = vunpack.c.h.b16 %v649
        %v1801 = vunpack.c.l.b16 %v650
        %v1802 = vunpack.c.h.b16 %v650
        %v1803 = vunpack.c.l.b16 %v651
        %v1804 = vunpack.c.h.b16 %v651
        %v1805 = vunpack.c.l.b16 %v652
        %v1806 = vunpack.c.h.b16 %v652
        %v1807 = vunpack.c.l.b16 %v653
        %v1808 = vunpack.c.h.b16 %v653
        %v1809 = vunpack.c.l.b16 %v654
        %v1810 = vunpack.c.h.b16 %v654
        %v1811 = vunpack.c.l.b16 %v655
        %v1812 = vunpack.c.h.b16 %v655
        %v1813 = vunpack.c.l.b16 %v656
        %v1814 = vunpack.c.h.b16 %v656
        %v1815 = vunpack.c.l.b16 %v657
        %v1816 = vunpack.c.h.b16 %v657
        %v1817 = vunpack.c.l.b16 %v658
        %v1818 = vunpack.c.h.b16 %v658
        %v1819 = vunpack.c.l.b16 %v659
        %v1820 = vunpack.c.h.b16 %v659
        %v1821 = vunpack.c.l.b16 %v660
        %v1822 = vunpack.c.h.b16 %v660
        %v1823 = vunpack.c.l.b16 %v661
        %v1824 = vunpack.c.h.b16 %v661
        %v1825 = vunpack.c.l.b16 %v662
        %v1826 = vunpack.c.h.b16 %v662
        %v1827 = vunpack.c.l.b16 %v663
        %v1828 = vunpack.c.h.b16 %v663
        %v1829 = vunpack.c.l.b16 %v664
        %v1830 = vunpack.c.h.b16 %v664
        %v1831 = vunpack.c.l.b16 %v665
        %v1832 = vunpack.c.h.b16 %v665
        %v1833 = vunpack.c.l.b16 %v666
        %v1834 = vunpack.c.h.b16 %v666
        %v1835 = vunpack.c.l.b16 %v667
        %v1836 = vunpack.c.h.b16 %v667
        %v1837 = vunpack.c.l.b16 %v668
        %v1838 = vunpack.c.h.b16 %v668
        %v1839 = vunpack.c.l.b16 %v669
        %v1840 = vunpack.c.h.b16 %v669
        %v1841 = vunpack.c.l.b16 %v670
        %v1842 = vunpack.c.h.b16 %v670
        %v1843 = vunpack.c.l.b16 %v671
        %v1844 = vunpack.c.h.b16 %v671
        %v1845 = vunpack.c.l.b16 %v672
        %v1846 = vunpack.c.h.b16 %v672
        %v1847 = vunpack.c.l.b16 %v673
        %v1848 = vunpack.c.h.b16 %v673
        %v1849 = vunpack.c.l.b16 %v674
        %v1850 = vunpack.c.h.b16 %v674
        %v1851 = vunpack.c.l.b16 %v675
        %v1852 = vunpack.c.h.b16 %v675
        %v1853 = vunpack.c.l.b16 %v676
        %v1854 = vunpack.c.h.b16 %v676
        %v1855 = vunpack.c.l.b16 %v677
        %v1856 = vunpack.c.h.b16 %v677
        %v1857 = vunpack.c.l.b16 %v678
        %v1858 = vunpack.c.h.b16 %v678
        %v1859 = vunpack.c.l.b16 %v679
        %v1860 = vunpack.c.h.b16 %v679
        %v1861 = vunpack.c.l.b16 %v680
        %v1862 = vunpack.c.h.b16 %v680
        %v1863 = vunpack.c.l.b16 %v681
        %v1864 = vunpack.c.h.b16 %v681
        %v1865 = vunpack.c.l.b16 %v682
        %v1866 = vunpack.c.h.b16 %v682
        %v1867 = vunpack.c.l.b16 %v683
        %v1868 = vunpack.c.h.b16 %v683
        %v1869 = vunpack.c.l.b16 %v684
        %v1870 = vunpack.c.h.b16 %v684
        %v1871 = vunpack.c.l.b16 %v685
        %v1872 = vunpack.c.h.b16 %v685
        %v1873 = vunpack.c.l.b16 %v686
        %v1874 = vunpack.c.h.b16 %v686
        %v1875 = vunpack.c.l.b16 %v687
        %v1876 = vunpack.c.h.b16 %v687
        %v1877 = vunpack.c.l.b16 %v688
        %v1878 = vunpack.c.h.b16 %v688
        %v1879 = vunpack.c.l.b16 %v689
        %v1880 = vunpack.c.h.b16 %v689
        %v1881 = vunpack.c.l.b16 %v690
        %v1882 = vunpack.c.h.b16 %v690
        %v1883 = vunpack.c.l.b16 %v691
        %v1884 = vunpack.c.h.b16 %v691
        %v1885 = vunpack.c.l.b16 %v692
        %v1886 = vunpack.c.h.b16 %v692
        %v1887 = vunpack.c.l.b16 %v693
        %v1888 = vunpack.c.h.b16 %v693
        %v1889 = vunpack.c.l.b16 %v694
        %v1890 = vunpack.c.h.b16 %v694
        %v1891 = vunpack.c.l.b16 %v695
        %v1892 = vunpack.c.h.b16 %v695
        %v1893 = vunpack.c.l.b16 %v696
        %v1894 = vunpack.c.h.b16 %v696
        %v1895 = vunpack.c.l.b16 %v697
        %v1896 = vunpack.c.h.b16 %v697
        %v1897 = vunpack.c.l.b16 %v698
        %v1898 = vunpack.c.h.b16 %v698
        %v1899 = vunpack.c.l.b16 %v699
        %v1900 = vunpack.c.h.b16 %v699
        %v1901 = vunpack.c.l.b16 %v700
        %v1902 = vunpack.c.h.b16 %v700
        %v1903 = vunpack.c.l.b16 %v701
        %v1904 = vunpack.c.h.b16 %v701
        %v1905 = vunpack.c.l.b16 %v702
        %v1906 = vunpack.c.h.b16 %v702
        %v1907 = vunpack.c.l.b16 %v703
        %v1908 = vunpack.c.h.b16 %v703
        %v1909 = vunpack.c.l.b16 %v704
        %v1910 = vunpack.c.h.b16 %v704
        %v1911 = vunpack.c.l.b16 %v705
        %v1912 = vunpack.c.h.b16 %v705
        %v1913 = vunpack.c.l.b16 %v706
        %v1914 = vunpack.c.h.b16 %v706
        %v1915 = vunpack.c.l.b16 %v707
        %v1916 = vunpack.c.h.b16 %v707
        %v1917 = vunpack.c.l.b16 %v708
        %v1918 = vunpack.c.h.b16 %v708
        %v1919 = vunpack.c.l.b16 %v709
        %v1920 = vunpack.c.h.b16 %v709
        %v1921 = vunpack.c.l.b16 %v710
        %v1922 = vunpack.c.h.b16 %v710
        %v1923 = vunpack.c.l.b16 %v711
        %v1924 = vunpack.c.h.b16 %v711
        %v1925 = vunpack.c.l.b16 %v712
        %v1926 = vunpack.c.h.b16 %v712
        %v1927 = vunpack.c.l.b16 %v713
        %v1928 = vunpack.c.h.b16 %v713
        %v1929 = vunpack.c.l.b16 %v714
        %v1930 = vunpack.c.h.b16 %v714
        %v1931 = vunpack.c.l.b16 %v715
        %v1932 = vunpack.c.h.b16 %v715
        %v1933 = vunpack.c.l.b16 %v716
        %v1934 = vunpack.c.h.b16 %v716
        %v1935 = vunpack.c.l.b16 %v717
        %v1936 = vunpack.c.h.b16 %v717
        %v1937 = vunpack.c.l.b16 %v718
        %v1938 = vunpack.c.h.b16 %v718
        %v1939 = vunpack.c.l.b16 %v719
        %v1940 = vunpack.c.h.b16 %v719
        %v1941 = vunpack.c.l.b16 %v720
        %v1942 = vunpack.c.h.b16 %v720
        %v1943 = vunpack.c.l.b16 %v721
        %v1944 = vunpack.c.h.b16 %v721
        %v1945 = vunpack.c.l.b16 %v722
        %v1946 = vunpack.c.h.b16 %v722
        %v1947 = vunpack.c.l.b16 %v723
        %v1948 = vunpack.c.h.b16 %v723
        %v1949 = vunpack.c.l.b16 %v724
        %v1950 = vunpack.c.h.b16 %v724
        %v1951 = vunpack.c.l.b16 %v725
        %v1952 = vunpack.c.h.b16 %v725
        %v1953 = vunpack.c.l.b16 %v726
        %v1954 = vunpack.c.h.b16 %v726
        %v1955 = vunpack.c.l.b16 %v727
        %v1956 = vunpack.c.h.b16 %v727
        %v1957 = vunpack.c.l.b16 %v728
        %v1958 = vunpack.c.h.b16 %v728
        %v1959 = vunpack.c.l.b16 %v729
        %v1960 = vunpack.c.h.b16 %v729
        %v1961 = vunpack.c.l.b16 %v730
        %v1962 = vunpack.c.h.b16 %v730
        %v1963 = vunpack.c.l.b16 %v731
        %v1964 = vunpack.c.h.b16 %v731
        %v1965 = vunpack.c.l.b16 %v732
        %v1966 = vunpack.c.h.b16 %v732
        %v1967 = vunpack.c.l.b16 %v733
        %v1968 = vunpack.c.h.b16 %v733
        %v1969 = vunpack.c.l.b16 %v734
        %v1970 = vunpack.c.h.b16 %v734
        %v1971 = vunpack.c.l.b16 %v735
        %v1972 = vunpack.c.h.b16 %v735
        %v1973 = vunpack.c.l.b16 %v736
        %v1974 = vunpack.c.h.b16 %v736
        %v1975 = vunpack.c.l.b16 %v737
        %v1976 = vunpack.c.h.b16 %v737
        %v1977 = vunpack.c.l.b16 %v738
        %v1978 = vunpack.c.h.b16 %v738
        %v1979 = vunpack.c.l.b16 %v739
        %v1980 = vunpack.c.h.b16 %v739
        %v1981 = vunpack.c.l.b16 %v740
        %v1982 = vunpack.c.h.b16 %v740
        %v1983 = vunpack.c.l.b16 %v741
        %v1984 = vunpack.c.h.b16 %v741
        %v1985 = vunpack.c.l.b16 %v742
        %v1986 = vunpack.c.h.b16 %v742
        %v1987 = vunpack.c.l.b16 %v743
        %v1988 = vunpack.c.h.b16 %v743
        %v1989 = vunpack.c.l.b16 %v744
        %v1990 = vunpack.c.h.b16 %v744
        %v1991 = vunpack.c.l.b16 %v745
        %v1992 = vunpack.c.h.b16 %v745
        %v1993 = vunpack.c.l.b16 %v746
        %v1994 = vunpack.c.h.b16 %v746
        %v1995 = vunpack.c.l.b16 %v747
        %v1996 = vunpack.c.h.b16 %v747
        %v1997 = vunpack.c.l.b16 %v748
        %v1998 = vunpack.c.h.b16 %v748
        %v1999 = vunpack.c.l.b16 %v749
        %v2000 = vunpack.c.h.b16 %v749
        %v2001 = vunpack.c.l.b16 %v750
        %v2002 = vunpack.c.h.b16 %v750
        %v2003 = vunpack.c.l.b16 %v751
        %v2004 = vunpack.c.h.b16 %v751
        %v2005 = vunpack.c.l.b16 %v752
        %v2006 = vunpack.c.h.b16 %v752
        %v2007 = vunpack.c.l.b16 %v753
        %v2008 = vunpack.c.h.b16 %v753
        %v2009 = vunpack.c.l.b16 %v754
        %v2010 = vunpack.c.h.b16 %v754
        %v2011 = vunpack.c.l.b16 %v755
        %v2012 = vunpack.c.h.b16 %v755
        %v2013 = vunpack.c.l.b16 %v756
        %v2014 = vunpack.c.h.b16 %v756
        %v2015 = vunpack.c.l.b16 %v757
        %v2016 = vunpack.c.h.b16 %v757
        %v2017 = vunpack.c.l.b16 %v758
        %v2018 = vunpack.c.h.b16 %v758
        %v2019 = vunpack.c.l.b16 %v759
        %v2020 = vunpack.c.h.b16 %v759
        %v2021 = vunpack.c.l.b16 %v760
        %v2022 = vunpack.c.h.b16 %v760
        %v2023 = vunpack.c.l.b16 %v761
        %v2024 = vunpack.c.h.b16 %v761
        %v2025 = vunpack.c.l.b16 %v762
        %v2026 = vunpack.c.h.b16 %v762
        %v2027 = vunpack.c.l.b16 %v763
        %v2028 = vunpack.c.h.b16 %v763
        %v2029 = vunpack.c.l.b16 %v764
        %v2030 = vunpack.c.h.b16 %v764
        %v2031 = vunpack.c.l.b16 %v765
        %v2032 = vunpack.c.h.b16 %v765
        %v2033 = vunpack.c.l.b16 %v766
        %v2034 = vunpack.c.h.b16 %v766
        %v2035 = vunpack.c.l.b16 %v767
        %v2036 = vunpack.c.h.b16 %v767
        %v2037 = vunpack.c.l.b16 %v768
        %v2038 = vunpack.c.h.b16 %v768
        %v2039 = vunpack.c.l.b16 %v769
        %v2040 = vunpack.c.h.b16 %v769
        %v2041 = vunpack.c.l.b16 %v770
        %v2042 = vunpack.c.h.b16 %v770
        %v2043 = vunpack.c.l.b16 %v771
        %v2044 = vunpack.c.h.b16 %v771
        %v2045 = vunpack.c.l.b16 %v772
        %v2046 = vunpack.c.h.b16 %v772
        %v2047 = vunpack.c.l.b16 %v773
        %v2048 = vunpack.c.h.b16 %v773
        %v2049 = vunpack.c.l.b16 %v774
        %v2050 = vunpack.c.h.b16 %v774
        %v2051 = vunpack.c.l.b16 %v775
        %v2052 = vunpack.c.h.b16 %v775
        %v2053 = vunpack.c.l.b16 %v776
        %v2054 = vunpack.c.h.b16 %v776
        %v2055 = vunpack.c.l.b16 %v777
        %v2056 = vunpack.c.h.b16 %v777
        %v2057 = vunpack.c.l.b16 %v778
        %v2058 = vunpack.c.h.b16 %v778
        %v2059 = vunpack.c.l.b16 %v779
        %v2060 = vunpack.c.h.b16 %v779
        %v2061 = vunpack.c.l.b16 %v780
        %v2062 = vunpack.c.h.b16 %v780
        %v2063 = vunpack.c.l.b16 %v781
        %v2064 = vunpack.c.h.b16 %v781
        %v2065 = vunpack.c.l.b16 %v782
        %v2066 = vunpack.c.h.b16 %v782
        %v2067 = vunpack.c.l.b16 %v783
        %v2068 = vunpack.c.h.b16 %v783
        %v2069 = vunpack.c.l.b16 %v784
        %v2070 = vunpack.c.h.b16 %v784
        %v2071 = vunpack.c.l.b16 %v785
        %v2072 = vunpack.c.h.b16 %v785
        %v2073 = vunpack.c.l.b16 %v786
        %v2074 = vunpack.c.h.b16 %v786
        %v2075 = vunpack.c.l.b16 %v787
        %v2076 = vunpack.c.h.b16 %v787
        %v2077 = vunpack.c.l.b16 %v788
        %v2078 = vunpack.c.h.b16 %v788
        %v2079 = vunpack.c.l.b16 %v789
        %v2080 = vunpack.c.h.b16 %v789
        %v2081 = vunpack.c.l.b16 %v790
        %v2082 = vunpack.c.h.b16 %v790
        %v2083 = vunpack.c.l.b16 %v791
        %v2084 = vunpack.c.h.b16 %v791
        %v2085 = vunpack.c.l.b16 %v792
        %v2086 = vunpack.c.h.b16 %v792
        %v2087 = vunpack.c.l.b16 %v793
        %v2088 = vunpack.c.h.b16 %v793
        %v2089 = vunpack.c.l.b16 %v794
        %v2090 = vunpack.c.h.b16 %v794
        %v2091 = vunpack.c.l.b16 %v795
        %v2092 = vunpack.c.h.b16 %v795
        %v2093 = vunpack.c.l.b16 %v796
        %v2094 = vunpack.c.h.b16 %v796
        %v2095 = vunpack.c.l.b16 %v797
        %v2096 = vunpack.c.h.b16 %v797
        %v2097 = vunpack.c.l.b16 %v798
        %v2098 = vunpack.c.h.b16 %v798
        %v2099 = vunpack.c.l.b16 %v799
        %v2100 = vunpack.c.h.b16 %v799
        %v2101 = vunpack.c.l.b16 %v800
        %v2102 = vunpack.c.h.b16 %v800
        %v2103 = vunpack.c.l.b16 %v801
        %v2104 = vunpack.c.h.b16 %v801
        %v2105 = vunpack.c.l.b16 %v802
        %v2106 = vunpack.c.h.b16 %v802
        %v2107 = vunpack.c.l.b16 %v803
        %v2108 = vunpack.c.h.b16 %v803
        %v2109 = vunpack.c.l.b16 %v804
        %v2110 = vunpack.c.h.b16 %v804
        %v2111 = vunpack.c.l.b16 %v805
        %v2112 = vunpack.c.h.b16 %v805
        %v2113 = vunpack.c.l.b16 %v806
        %v2114 = vunpack.c.h.b16 %v806
        %v2115 = vunpack.c.l.b16 %v807
        %v2116 = vunpack.c.h.b16 %v807
        %v2117 = vunpack.c.l.b16 %v808
        %v2118 = vunpack.c.h.b16 %v808
        %v2119 = vunpack.c.l.b16 %v809
        %v2120 = vunpack.c.h.b16 %v809
        %v2121 = vunpack.c.l.b16 %v810
        %v2122 = vunpack.c.h.b16 %v810
        %v2123 = vunpack.c.l.b16 %v811
        %v2124 = vunpack.c.h.b16 %v811
        %v2125 = vunpack.c.l.b16 %v812
        %v2126 = vunpack.c.h.b16 %v812
        %v2127 = vunpack.c.l.b16 %v813
        %v2128 = vunpack.c.h.b16 %v813
        %v2129 = vunpack.c.l.b16 %v814
        %v2130 = vunpack.c.h.b16 %v814
        %v2131 = vunpack.c.l.b16 %v815
        %v2132 = vunpack.c.h.b16 %v815
        %v2133 = vunpack.c.l.b16 %v816
        %v2134 = vunpack.c.h.b16 %v816
        %v2135 = vunpack.c.l.b16 %v817
        %v2136 = vunpack.c.h.b16 %v817
        %v2137 = vunpack.c.l.b16 %v818
        %v2138 = vunpack.c.h.b16 %v818
        %v2139 = vunpack.c.l.b16 %v819
        %v2140 = vunpack.c.h.b16 %v819
        %v2141 = vunpack.c.l.b16 %v820
        %v2142 = vunpack.c.h.b16 %v820
        %v2143 = vunpack.c.l.b16 %v821
        %v2144 = vunpack.c.h.b16 %v821
        %v2145 = vunpack.c.l.b16 %v822
        %v2146 = vunpack.c.h.b16 %v822
        %v2147 = vunpack.c.l.b16 %v823
        %v2148 = vunpack.c.h.b16 %v823
        %v2149 = vunpack.c.l.b16 %v824
        %v2150 = vunpack.c.h.b16 %v824
        %v2151 = vunpack.c.l.b16 %v825
        %v2152 = vunpack.c.h.b16 %v825
        %v2153 = vunpack.c.l.b16 %v826
        %v2154 = vunpack.c.h.b16 %v826
        %v2155 = vunpack.c.l.b16 %v827
        %v2156 = vunpack.c.h.b16 %v827
        %v2157 = vunpack.c.l.b16 %v828
        %v2158 = vunpack.c.h.b16 %v828
        %v2159 = vunpack.c.l.b16 %v829
        %v2160 = vunpack.c.h.b16 %v829
        %v2161 = vunpack.c.l.b16 %v830
        %v2162 = vunpack.c.h.b16 %v830
        %v2163 = vunpack.c.l.b16 %v831
        %v2164 = vunpack.c.h.b16 %v831
        %v2165 = vunpack.c.l.b16 %v832
        %v2166 = vunpack.c.h.b16 %v832
        %v2167 = vunpack.c.l.b16 %v833
        %v2168 = vunpack.c.h.b16 %v833
        %v2169 = vunpack.c.l.b16 %v834
        %v2170 = vunpack.c.h.b16 %v834
        %v2171 = vunpack.c.l.b16 %v835
        %v2172 = vunpack.c.h.b16 %v835
        %v2173 = vunpack.c.l.b16 %v836
        %v2174 = vunpack.c.h.b16 %v836
        %v2175 = vunpack.c.l.b16 %v837
        %v2176 = vunpack.c.h.b16 %v837
        %v2177 = vunpack.c.l.b16 %v838
        %v2178 = vunpack.c.h.b16 %v838
        %v2179 = vunpack.c.l.b16 %v839
        %v2180 = vunpack.c.h.b16 %v839
        %v2181 = vunpack.c.l.b16 %v840
        %v2182 = vunpack.c.h.b16 %v840
        %v2183 = vunpack.c.l.b16 %v841
        %v2184 = vunpack.c.h.b16 %v841
        %v2185 = vunpack.c.l.b16 %v842
        %v2186 = vunpack.c.h.b16 %v842
        %v2187 = vunpack.c.l.b16 %v843
        %v2188 = vunpack.c.h.b16 %v843
        %v2189 = vunpack.c.l.b16 %v844
        %v2190 = vunpack.c.h.b16 %v844
        %v2191 = vunpack.c.l.b16 %v845
        %v2192 = vunpack.c.h.b16 %v845
        %v2193 = vunpack.c.l.b16 %v846
        %v2194 = vunpack.c.h.b16 %v846
        %v2195 = vunpack.c.l.b16 %v847
        %v2196 = vunpack.c.h.b16 %v847
        %v2197 = vunpack.c.l.b16 %v848
        %v2198 = vunpack.c.h.b16 %v848
        %v2199 = vunpack.c.l.b16 %v849
        %v2200 = vunpack.c.h.b16 %v849
        %v2201 = vunpack.c.l.b16 %v850
        %v2202 = vunpack.c.h.b16 %v850
        %v2203 = vunpack.c.l.b16 %v851
        %v2204 = vunpack.c.h.b16 %v851
        %v2205 = vunpack.c.l.b16 %v852
        %v2206 = vunpack.c.h.b16 %v852
        %v2207 = vunpack.c.l.b16 %v853
        %v2208 = vunpack.c.h.b16 %v853
        %v2209 = vunpack.c.l.b16 %v854
        %v2210 = vunpack.c.h.b16 %v854
        %v2211 = vunpack.c.l.b16 %v855
        %v2212 = vunpack.c.h.b16 %v855
        %v2213 = vunpack.c.l.b16 %v856
        %v2214 = vunpack.c.h.b16 %v856
        %v2215 = vunpack.c.l.b16 %v857
        %v2216 = vunpack.c.h.b16 %v857
        %v2217 = vunpack.c.l.b16 %v858
        %v2218 = vunpack.c.h.b16 %v858
        %v2219 = vunpack.c.l.b16 %v859
        %v2220 = vunpack.c.h.b16 %v859
        %v2221 = vunpack.c.l.b16 %v860
        %v2222 = vunpack.c.h.b16 %v860
        %v2223 = vunpack.c.l.b16 %v861
        %v2224 = vunpack.c.h.b16 %v861
        %v2225 = vunpack.c.l.b16 %v862
        %v2226 = vunpack.c.h.b16 %v862
        %v2227 = vunpack.c.l.b16 %v863
        %v2228 = vunpack.c.h.b16 %v863
        %v2229 = vunpack.c.l.b16 %v864
        %v2230 = vunpack.c.h.b16 %v864
        %v2231 = vunpack.c.l.b16 %v865
        %v2232 = vunpack.c.h.b16 %v865
        %v2233 = vunpack.c.l.b16 %v866
        %v2234 = vunpack.c.h.b16 %v866
        %v2235 = vunpack.c.l.b16 %v867
        %v2236 = vunpack.c.h.b16 %v867
        %v2237 = vunpack.c.l.b16 %v868
        %v2238 = vunpack.c.h.b16 %v868
        %v2239 = vunpack.c.l.b16 %v869
        %v2240 = vunpack.c.h.b16 %v869
        %v2241 = vunpack.c.l.b16 %v870
        %v2242 = vunpack.c.h.b16 %v870
        %v2243 = vunpack.c.l.b16 %v871
        %v2244 = vunpack.c.h.b16 %v871
        %v2245 = vunpack.c.l.b16 %v872
        %v2246 = vunpack.c.h.b16 %v872
        %v2247 = vunpack.c.l.b16 %v873
        %v2248 = vunpack.c.h.b16 %v873
        %v2249 = vunpack.c.l.b16 %v874
        %v2250 = vunpack.c.h.b16 %v874
        %v2251 = vunpack.c.l.b16 %v875
        %v2252 = vunpack.c.h.b16 %v875
        %v2253 = vunpack.c.l.b16 %v876
        %v2254 = vunpack.c.h.b16 %v876
        %v2255 = vunpack.c.l.b16 %v877
        %v2256 = vunpack.c.h.b16 %v877
        %v2257 = vunpack.c.l.b16 %v878
        %v2258 = vunpack.c.h.b16 %v878
        %v2259 = vunpack.c.l.b16 %v879
        %v2260 = vunpack.c.h.b16 %v879
        %v2261 = vunpack.c.l.b16 %v880
        %v2262 = vunpack.c.h.b16 %v880
        %v2263 = vunpack.c.l.b16 %v881
        %v2264 = vunpack.c.h.b16 %v881
        %v2265 = vunpack.c.l.b16 %v882
        %v2266 = vunpack.c.h.b16 %v882
        %v2267 = vunpack.c.l.b16 %v883
        %v2268 = vunpack.c.h.b16 %v883
        %v2269 = vunpack.c.l.b16 %v884
        %v2270 = vunpack.c.h.b16 %v884
        %v2271 = vunpack.c.l.b16 %v885
        %v2272 = vunpack.c.h.b16 %v885
        %v2273 = vunpack.c.l.b16 %v886
        %v2274 = vunpack.c.h.b16 %v886
        %v2275 = vunpack.c.l.b16 %v887
        %v2276 = vunpack.c.h.b16 %v887
        %v2277 = vunpack.c.l.b16 %v888
        %v2278 = vunpack.c.h.b16 %v888
        %v2279 = vunpack.c.l.b16 %v889
        %v2280 = vunpack.c.h.b16 %v889
        %v2281 = vunpack.c.l.b16 %v890
        %v2282 = vunpack.c.h.b16 %v890
        %v2283 = vunpack.c.l.b16 %v891
        %v2284 = vunpack.c.h.b16 %v891
        %v2285 = vunpack.c.l.b16 %v892
        %v2286 = vunpack.c.h.b16 %v892
        %v2287 = vunpack.c.l.b16 %v893
        %v2288 = vunpack.c.h.b16 %v893
        %v2289 = vunpack.c.l.b16 %v894
        %v2290 = vunpack.c.h.b16 %v894
        %v2291 = vunpack.c.l.b16 %v895
        %v2292 = vunpack.c.h.b16 %v895
        %v2293 = vunpack.c.l.b16 %v896
        %v2294 = vunpack.c.h.b16 %v896
        %v2295 = vunpack.c.l.b16 %v897
        %v2296 = vunpack.c.h.b16 %v897
        %v2297 = vunpack.c.l.b16 %v898
        %v2298 = vunpack.c.h.b16 %v898
        %v2299 = vunpack.c.l.b16 %v899
        %v2300 = vunpack.c.h.b16 %v899
        %v2301 = vunpack.c.l.b16 %v900
        %v2302 = vunpack.c.h.b16 %v900
        %v2303 = vunpack.c.l.b16 %v901
        %v2304 = vunpack.c.h.b16 %v901
        %v2305 = vunpack.c.l.b16 %v902
        %v2306 = vunpack.c.h.b16 %v902
        %v2307 = vunpack.c.l.b16 %v903
        %v2308 = vunpack.c.h.b16 %v903
        %v2309 = vunpack.c.l.b16 %v904
        %v2310 = vunpack.c.h.b16 %v904
        %v2311 = vunpack.c.l.b16 %v905
        %v2312 = vunpack.c.h.b16 %v905
        %v2313 = vunpack.c.l.b16 %v906
        %v2314 = vunpack.c.h.b16 %v906
        %v2315 = vunpack.c.l.b16 %v907
        %v2316 = vunpack.c.h.b16 %v907
        %v2317 = vunpack.c.l.b16 %v908
        %v2318 = vunpack.c.h.b16 %v908
        %v2319 = vunpack.c.l.b16 %v909
        %v2320 = vunpack.c.h.b16 %v909
        %v2321 = vunpack.c.l.b16 %v910
        %v2322 = vunpack.c.h.b16 %v910
        %v2323 = vunpack.c.l.b16 %v911
        %v2324 = vunpack.c.h.b16 %v911
        %v2325 = vunpack.c.l.b16 %v912
        %v2326 = vunpack.c.h.b16 %v912
        %v2327 = vunpack.c.l.b16 %v913
        %v2328 = vunpack.c.h.b16 %v913
        %v2329 = vunpack.c.l.b16 %v914
        %v2330 = vunpack.c.h.b16 %v914
        %v2331 = vunpack.c.l.b16 %v915
        %v2332 = vunpack.c.h.b16 %v915
        %v2333 = vunpack.c.l.b16 %v916
        %v2334 = vunpack.c.h.b16 %v916
        %v2335 = vunpack.c.l.b16 %v917
        %v2336 = vunpack.c.h.b16 %v917
        %v2337 = vunpack.c.l.b16 %v918
        %v2338 = vunpack.c.h.b16 %v918
        %v2339 = vunpack.c.l.b16 %v919
        %v2340 = vunpack.c.h.b16 %v919
        %v2341 = vunpack.c.l.b16 %v920
        %v2342 = vunpack.c.h.b16 %v920
        %v2343 = vunpack.c.l.b16 %v921
        %v2344 = vunpack.c.h.b16 %v921
        %v2345 = vunpack.c.l.b16 %v922
        %v2346 = vunpack.c.h.b16 %v922
        %v2347 = vunpack.c.l.b16 %v923
        %v2348 = vunpack.c.h.b16 %v923
        %v2349 = vunpack.c.l.b16 %v924
        %v2350 = vunpack.c.h.b16 %v924
        %v2351 = vunpack.c.l.b16 %v925
        %v2352 = vunpack.c.h.b16 %v925
        %v2353 = vunpack.c.l.b16 %v926
        %v2354 = vunpack.c.h.b16 %v926
        %v2355 = vunpack.c.l.b16 %v927
        %v2356 = vunpack.c.h.b16 %v927
        %v2357 = vunpack.c.l.b16 %v928
        %v2358 = vunpack.c.h.b16 %v928
        %v2359 = vunpack.c.l.b16 %v929
        %v2360 = vunpack.c.h.b16 %v929
        %v2361 = vunpack.c.l.b16 %v930
        %v2362 = vunpack.c.h.b16 %v930
        %v2363 = vunpack.c.l.b16 %v931
        %v2364 = vunpack.c.h.b16 %v931
        %v2365 = vunpack.c.l.b16 %v932
        %v2366 = vunpack.c.h.b16 %v932
        %v2367 = vunpack.c.l.b16 %v933
        %v2368 = vunpack.c.h.b16 %v933
        %v2369 = vunpack.c.l.b16 %v934
        %v2370 = vunpack.c.h.b16 %v934
        %v2371 = vunpack.c.l.b16 %v935
        %v2372 = vunpack.c.h.b16 %v935
        %v2373 = vunpack.c.l.b16 %v936
        %v2374 = vunpack.c.h.b16 %v936
        %v2375 = vunpack.c.l.b16 %v937
        %v2376 = vunpack.c.h.b16 %v937
        %v2377 = vunpack.c.l.b16 %v938
        %v2378 = vunpack.c.h.b16 %v938
        %v2379 = vunpack.c.l.b16 %v939
        %v2380 = vunpack.c.h.b16 %v939
        %v2381 = vunpack.c.l.b16 %v940
        %v2382 = vunpack.c.h.b16 %v940
        %v2383 = vunpack.c.l.b16 %v941
        %v2384 = vunpack.c.h.b16 %v941
        %v2385 = vunpack.c.l.b16 %v942
        %v2386 = vunpack.c.h.b16 %v942
        %v2387 = vunpack.c.l.b16 %v943
        %v2388 = vunpack.c.h.b16 %v943
        %v2389 = vunpack.c.l.b16 %v944
        %v2390 = vunpack.c.h.b16 %v944
        %v2391 = vunpack.c.l.b16 %v945
        %v2392 = vunpack.c.h.b16 %v945
        %v2393 = vunpack.c.l.b16 %v946
        %v2394 = vunpack.c.h.b16 %v946
        %v2395 = vunpack.c.l.b16 %v947
        %v2396 = vunpack.c.h.b16 %v947
        %v2397 = vunpack.c.l.b16 %v948
        %v2398 = vunpack.c.h.b16 %v948
        %v2399 = vunpack.c.l.b16 %v949
        %v2400 = vunpack.c.h.b16 %v949
        %v2401 = vunpack.c.l.b16 %v950
        %v2402 = vunpack.c.h.b16 %v950
        %v2403 = vunpack.c.l.b16 %v951
        %v2404 = vunpack.c.h.b16 %v951
        %v2405 = vunpack.c.l.b16 %v952
        %v2406 = vunpack.c.h.b16 %v952
        %v2407 = vunpack.c.l.b16 %v953
        %v2408 = vunpack.c.h.b16 %v953
        %v2409 = vunpack.c.l.b16 %v954
        %v2410 = vunpack.c.h.b16 %v954
        %v2411 = vunpack.c.l.b16 %v955
        %v2412 = vunpack.c.h.b16 %v955
        %v2413 = vunpack.c.l.b16 %v956
        %v2414 = vunpack.c.h.b16 %v956
        %v2415 = vunpack.c.l.b16 %v957
        %v2416 = vunpack.c.h.b16 %v957
        %v2417 = vunpack.c.l.b16 %v958
        %v2418 = vunpack.c.h.b16 %v958
        %v2419 = vunpack.c.l.b16 %v959
        %v2420 = vunpack.c.h.b16 %v959
        %v2421 = vunpack.c.l.b16 %v960
        %v2422 = vunpack.c.h.b16 %v960
        %v2423 = vunpack.c.l.b16 %v961
        %v2424 = vunpack.c.h.b16 %v961
        %v2425 = vunpack.c.l.b16 %v962
        %v2426 = vunpack.c.h.b16 %v962
        %v2427 = vunpack.c.l.b16 %v963
        %v2428 = vunpack.c.h.b16 %v963
        %v2429 = vunpack.c.l.b16 %v964
        %v2430 = vunpack.c.h.b16 %v964
        %v2431 = vunpack.c.l.b16 %v965
        %v2432 = vunpack.c.h.b16 %v965
        %v2433 = vunpack.c.l.b16 %v966
        %v2434 = vunpack.c.h.b16 %v966
        %v2435 = vunpack.c.l.b16 %v967
        %v2436 = vunpack.c.h.b16 %v967
        %v2437 = vunpack.c.l.b16 %v968
        %v2438 = vunpack.c.h.b16 %v968
        %v2439 = vunpack.c.l.b16 %v969
        %v2440 = vunpack.c.h.b16 %v969
        %v2441 = vunpack.c.l.b16 %v970
        %v2442 = vunpack.c.h.b16 %v970
        %v2443 = vunpack.c.l.b16 %v971
        %v2444 = vunpack.c.h.b16 %v971
        %v2445 = vunpack.c.l.b16 %v972
        %v2446 = vunpack.c.h.b16 %v972
        %v2447 = vunpack.c.l.b16 %v973
        %v2448 = vunpack.c.h.b16 %v973
        %v2449 = vunpack.c.l.b16 %v974
        %v2450 = vunpack.c.h.b16 %v974
        %v2451 = vunpack.c.l.b16 %v975
        %v2452 = vunpack.c.h.b16 %v975
        %v2453 = vunpack.c.l.b16 %v976
        %v2454 = vunpack.c.h.b16 %v976
        %v2455 = vunpack.c.l.b16 %v977
        %v2456 = vunpack.c.h.b16 %v977
        %v2457 = vunpack.c.l.b16 %v978
        %v2458 = vunpack.c.h.b16 %v978
        %v2459 = vunpack.c.l.b16 %v979
        %v2460 = vunpack.c.h.b16 %v979
        %v2461 = vunpack.c.l.b16 %v980
        %v2462 = vunpack.c.h.b16 %v980
        %v2463 = vunpack.c.l.b16 %v981
        %v2464 = vunpack.c.h.b16 %v981
        %v2465 = vunpack.c.l.b16 %v982
        %v2466 = vunpack.c.h.b16 %v982
        %v2467 = vunpack.c.l.b16 %v983
        %v2468 = vunpack.c.h.b16 %v983
        %v2469 = vunpack.c.l.b16 %v984
        %v2470 = vunpack.c.h.b16 %v984
        %v2471 = vunpack.c.l.b16 %v985
        %v2472 = vunpack.c.h.b16 %v985
        %v2473 = vunpack.c.l.b16 %v986
        %v2474 = vunpack.c.h.b16 %v986
        %v2475 = vunpack.c.l.b16 %v987
        %v2476 = vunpack.c.h.b16 %v987
        %v2477 = vunpack.c.l.b16 %v988
        %v2478 = vunpack.c.h.b16 %v988
        %v2479 = vunpack.c.l.b16 %v989
        %v2480 = vunpack.c.h.b16 %v989
        %v2481 = vunpack.c.l.b16 %v990
        %v2482 = vunpack.c.h.b16 %v990
        %v2483 = vunpack.c.l.b16 %v991
        %v2484 = vunpack.c.h.b16 %v991
        %v2485 = vunpack.c.l.b16 %v992
        %v2486 = vunpack.c.h.b16 %v992
        %v2487 = vunpack.c.l.b16 %v993
        %v2488 = vunpack.c.h.b16 %v993
        %v2489 = vunpack.c.l.b16 %v994
        %v2490 = vunpack.c.h.b16 %v994
        %v2491 = vunpack.c.l.b16 %v995
        %v2492 = vunpack.c.h.b16 %v995
        %v2493 = vunpack.c.l.b16 %v996
        %v2494 = vunpack.c.h.b16 %v996
        %v2495 = vunpack.c.l.b16 %v997
        %v2496 = vunpack.c.h.b16 %v997
        %v2497 = vunpack.c.l.b16 %v998
        %v2498 = vunpack.c.h.b16 %v998
        %v2499 = vunpack.c.l.b16 %v999
        %v2500 = vunpack.c.h.b16 %v999
        %v2501 = vunpack.c.l.b16 %v1000
        %v2502 = vunpack.c.h.b16 %v1000
        %v2503 = vunpack.c.l.b16 %v1001
        %v2504 = vunpack.c.h.b16 %v1001
        %v2505 = vunpack.c.l.b16 %v1002
        %v2506 = vunpack.c.h.b16 %v1002
        %v2507 = vunpack.c.l.b16 %v1003
        %v2508 = vunpack.c.h.b16 %v1003
        %v2509 = vunpack.c.l.b16 %v1004
        %v2510 = vunpack.c.h.b16 %v1004
        %v2511 = vunpack.c.l.b16 %v1005
        %v2512 = vunpack.c.h.b16 %v1005
        %v2513 = vunpack.c.l.b16 %v1006
        %v2514 = vunpack.c.h.b16 %v1006
        %v2515 = vunpack.c.l.b16 %v1007
        %v2516 = vunpack.c.h.b16 %v1007
        %v2517 = vunpack.c.l.b16 %v1008
        %v2518 = vunpack.c.h.b16 %v1008
        %v2519 = vunpack.c.l.b16 %v1009
        %v2520 = vunpack.c.h.b16 %v1009
        %v2521 = vunpack.c.l.b16 %v1010
        %v2522 = vunpack.c.h.b16 %v1010
        %v2523 = vunpack.c.l.b16 %v1011
        %v2524 = vunpack.c.h.b16 %v1011
        %v2525 = vunpack.c.l.b16 %v1012
        %v2526 = vunpack.c.h.b16 %v1012
        %v2527 = vunpack.c.l.b16 %v1013
        %v2528 = vunpack.c.h.b16 %v1013
        %v2529 = vunpack.c.l.b16 %v1014
        %v2530 = vunpack.c.h.b16 %v1014
        %v2531 = vunpack.c.l.b16 %v1015
        %v2532 = vunpack.c.h.b16 %v1015
        %v2533 = vunpack.c.l.b16 %v1016
        %v2534 = vunpack.c.h.b16 %v1016
        %v2535 = vunpack.c.l.b16 %v1017
        %v2536 = vunpack.c.h.b16 %v1017
        %v2537 = vunpack.c.l.b16 %v1018
        %v2538 = vunpack.c.h.b16 %v1018
        %v2539 = vunpack.c.l.b16 %v1019
        %v2540 = vunpack.c.h.b16 %v1019
        %v2541 = vunpack.c.l.b16 %v1020
        %v2542 = vunpack.c.h.b16 %v1020
        %v2543 = vunpack.c.l.b16 %v1021
        %v2544 = vunpack.c.h.b16 %v1021
        %v2545 = vunpack.c.l.b16 %v1022
        %v2546 = vunpack.c.h.b16 %v1022
        %v2547 = vunpack.c.l.b16 %v1023
        %v2548 = vunpack.c.h.b16 %v1023
        %v2549 = vunpack.c.l.b16 %v1024
        %v2550 = vunpack.c.h.b16 %v1024
        %v2551 = vunpack.c.l.b16 %v1025
        %v2552 = vunpack.c.h.b16 %v1025
        %v2553 = vunpack.c.l.b16 %v1026
        %v2554 = vunpack.c.h.b16 %v1026
        %v2555 = vunpack.c.l.b16 %v1027
        %v2556 = vunpack.c.h.b16 %v1027
        %v2557 = vunpack.c.l.b16 %v1028
        %v2558 = vunpack.c.h.b16 %v1028
        %v2559 = vunpack.c.l.b16 %v1029
        %v2560 = vunpack.c.h.b16 %v1029
        %v2561 = vunpack.c.l.b16 %v1030
        %v2562 = vunpack.c.h.b16 %v1030
        %v2563 = vunpack.c.l.b16 %v1031
        %v2564 = vunpack.c.h.b16 %v1031
        %v2565 = vunpack.c.l.b16 %v1032
        %v2566 = vunpack.c.h.b16 %v1032
        %v2567 = vunpack.c.l.b16 %v1033
        %v2568 = vunpack.c.h.b16 %v1033
        %v2569 = vunpack.c.l.b16 %v1034
        %v2570 = vunpack.c.h.b16 %v1034
        %v2571 = vpack.c.b16 %v1551, %v1547
        %v2572 = vpack.c.b16 %v1552, %v1548
        %v2573 = vpack.c.b16 %v1553, %v1549
        %v2574 = vpack.c.b16 %v1554, %v1550
        %v2575 = vpack.c.b16 %v1559, %v1555
        %v2576 = vpack.c.b16 %v1560, %v1556
        %v2577 = vpack.c.b16 %v1561, %v1557
        %v2578 = vpack.c.b16 %v1562, %v1558
        %v2579 = vpack.c.b16 %v1567, %v1563
        %v2580 = vpack.c.b16 %v1568, %v1564
        %v2581 = vpack.c.b16 %v1569, %v1565
        %v2582 = vpack.c.b16 %v1570, %v1566
        %v2583 = vpack.c.b16 %v1575, %v1571
        %v2584 = vpack.c.b16 %v1576, %v1572
        %v2585 = vpack.c.b16 %v1577, %v1573
        %v2586 = vpack.c.b16 %v1578, %v1574
        %v2587 = vpack.c.b16 %v1583, %v1579
        %v2588 = vpack.c.b16 %v1584, %v1580
        %v2589 = vpack.c.b16 %v1585, %v1581
        %v2590 = vpack.c.b16 %v1586, %v1582
        %v2591 = vpack.c.b16 %v1591, %v1587
        %v2592 = vpack.c.b16 %v1592, %v1588
        %v2593 = vpack.c.b16 %v1593, %v1589
        %v2594 = vpack.c.b16 %v1594, %v1590
        %v2595 = vpack.c.b16 %v1599, %v1595
        %v2596 = vpack.c.b16 %v1600, %v1596
        %v2597 = vpack.c.b16 %v1601, %v1597
        %v2598 = vpack.c.b16 %v1602, %v1598
        %v2599 = vpack.c.b16 %v1607, %v1603
        %v2600 = vpack.c.b16 %v1608, %v1604
        %v2601 = vpack.c.b16 %v1609, %v1605
        %v2602 = vpack.c.b16 %v1610, %v1606
        %v2603 = vpack.c.b16 %v1615, %v1611
        %v2604 = vpack.c.b16 %v1616, %v1612
        %v2605 = vpack.c.b16 %v1617, %v1613
        %v2606 = vpack.c.b16 %v1618, %v1614
        %v2607 = vpack.c.b16 %v1623, %v1619
        %v2608 = vpack.c.b16 %v1624, %v1620
        %v2609 = vpack.c.b16 %v1625, %v1621
        %v2610 = vpack.c.b16 %v1626, %v1622
        %v2611 = vpack.c.b16 %v1631, %v1627
        %v2612 = vpack.c.b16 %v1632, %v1628
        %v2613 = vpack.c.b16 %v1633, %v1629
        %v2614 = vpack.c.b16 %v1634, %v1630
        %v2615 = vpack.c.b16 %v1639, %v1635
        %v2616 = vpack.c.b16 %v1640, %v1636
        %v2617 = vpack.c.b16 %v1641, %v1637
        %v2618 = vpack.c.b16 %v1642, %v1638
        %v2619 = vpack.c.b16 %v1647, %v1643
        %v2620 = vpack.c.b16 %v1648, %v1644
        %v2621 = vpack.c.b16 %v1649, %v1645
        %v2622 = vpack.c.b16 %v1650, %v1646
        %v2623 = vpack.c.b16 %v1655, %v1651
        %v2624 = vpack.c.b16 %v1656, %v1652
        %v2625 = vpack.c.b16 %v1657, %v1653
        %v2626 = vpack.c.b16 %v1658, %v1654
        %v2627 = vpack.c.b16 %v1663, %v1659
        %v2628 = vpack.c.b16 %v1664, %v1660
        %v2629 = vpack.c.b16 %v1665, %v1661
        %v2630 = vpack.c.b16 %v1666, %v1662
        %v2631 = vpack.c.b16 %v1671, %v1667
        %v2632 = vpack.c.b16 %v1672, %v1668
        %v2633 = vpack.c.b16 %v1673, %v1669
        %v2634 = vpack.c.b16 %v1674, %v1670
        %v2635 = vpack.c.b16 %v1679, %v1675
        %v2636 = vpack.c.b16 %v1680, %v1676
        %v2637 = vpack.c.b16 %v1681, %v1677
        %v2638 = vpack.c.b16 %v1682, %v1678
        %v2639 = vpack.c.b16 %v1687, %v1683
        %v2640 = vpack.c.b16 %v1688, %v1684
        %v2641 = vpack.c.b16 %v1689, %v1685
        %v2642 = vpack.c.b16 %v1690, %v1686
        %v2643 = vpack.c.b16 %v1695, %v1691
        %v2644 = vpack.c.b16 %v1696, %v1692
        %v2645 = vpack.c.b16 %v1697, %v1693
        %v2646 = vpack.c.b16 %v1698, %v1694
        %v2647 = vpack.c.b16 %v1703, %v1699
        %v2648 = vpack.c.b16 %v1704, %v1700
        %v2649 = vpack.c.b16 %v1705, %v1701
        %v2650 = vpack.c.b16 %v1706, %v1702
        %v2651 = vpack.c.b16 %v1711, %v1707
        %v2652 = vpack.c.b16 %v1712, %v1708
        %v2653 = vpack.c.b16 %v1713, %v1709
        %v2654 = vpack.c.b16 %v1714, %v1710
        %v2655 = vpack.c.b16 %v1719, %v1715
        %v2656 = vpack.c.b16 %v1720, %v1716
        %v2657 = vpack.c.b16 %v1721, %v1717
        %v2658 = vpack.c.b16 %v1722, %v1718
        %v2659 = vpack.c.b16 %v1727, %v1723
        %v2660 = vpack.c.b16 %v1728, %v1724
        %v2661 = vpack.c.b16 %v1729, %v1725
        %v2662 = vpack.c.b16 %v1730, %v1726
        %v2663 = vpack.c.b16 %v1735, %v1731
        %v2664 = vpack.c.b16 %v1736, %v1732
        %v2665 = vpack.c.b16 %v1737, %v1733
        %v2666 = vpack.c.b16 %v1738, %v1734
        %v2667 = vpack.c.b16 %v1743, %v1739
        %v2668 = vpack.c.b16 %v1744, %v1740
        %v2669 = vpack.c.b16 %v1745, %v1741
        %v2670 = vpack.c.b16 %v1746, %v1742
        %v2671 = vpack.c.b16 %v1751, %v1747
        %v2672 = vpack.c.b16 %v1752, %v1748
        %v2673 = vpack.c.b16 %v1753, %v1749
        %v2674 = vpack.c.b16 %v1754, %v1750
        %v2675 = vpack.c.b16 %v1759, %v1755
        %v2676 = vpack.c.b16 %v1760, %v1756
        %v2677 = vpack.c.b16 %v1761, %v1757
        %v2678 = vpack.c.b16 %v1762, %v1758
        %v2679 = vpack.c.b16 %v1767, %v1763
        %v2680 = vpack.c.b16 %v1768, %v1764
        %v2681 = vpack.c.b16 %v1769, %v1765
        %v2682 = vpack.c.b16 %v1770, %v1766
        %v2683 = vpack.c.b16 %v1775, %v1771
        %v2684 = vpack.c.b16 %v1776, %v1772
        %v2685 = vpack.c.b16 %v1777, %v1773
        %v2686 = vpack.c.b16 %v1778, %v1774
        %v2687 = vpack.c.b16 %v1783, %v1779
        %v2688 = vpack.c.b16 %v1784, %v1780
        %v2689 = vpack.c.b16 %v1785, %v1781
        %v2690 = vpack.c.b16 %v1786, %v1782
        %v2691 = vpack.c.b16 %v1791, %v1787
        %v2692 = vpack.c.b16 %v1792, %v1788
        %v2693 = vpack.c.b16 %v1793, %v1789
        %v2694 = vpack.c.b16 %v1794, %v1790
        %v2695 = vpack.c.b16 %v1799, %v1795
        %v2696 = vpack.c.b16 %v1800, %v1796
        %v2697 = vpack.c.b16 %v1801, %v1797
        %v2698 = vpack.c.b16 %v1802, %v1798
        %v2699 = vpack.c.b16 %v1807, %v1803
        %v2700 = vpack.c.b16 %v1808, %v1804
        %v2701 = vpack.c.b16 %v1809, %v1805
        %v2702 = vpack.c.b16 %v1810, %v1806
        %v2703 = vpack.c.b16 %v1815, %v1811
        %v2704 = vpack.c.b16 %v1816, %v1812
        %v2705 = vpack.c.b16 %v1817, %v1813
        %v2706 = vpack.c.b16 %v1818, %v1814
        %v2707 = vpack.c.b16 %v1823, %v1819
        %v2708 = vpack.c.b16 %v1824, %v1820
        %v2709 = vpack.c.b16 %v1825, %v1821
        %v2710 = vpack.c.b16 %v1826, %v1822
        %v2711 = vpack.c.b16 %v1831, %v1827
        %v2712 = vpack.c.b16 %v1832, %v1828
        %v2713 = vpack.c.b16 %v1833, %v1829
        %v2714 = vpack.c.b16 %v1834, %v1830
        %v2715 = vpack.c.b16 %v1839, %v1835
        %v2716 = vpack.c.b16 %v1840, %v1836
        %v2717 = vpack.c.b16 %v1841, %v1837
        %v2718 = vpack.c.b16 %v1842, %v1838
        %v2719 = vpack.c.b16 %v1847, %v1843
        %v2720 = vpack.c.b16 %v1848, %v1844
        %v2721 = vpack.c.b16 %v1849, %v1845
        %v2722 = vpack.c.b16 %v1850, %v1846
        %v2723 = vpack.c.b16 %v1855, %v1851
        %v2724 = vpack.c.b16 %v1856, %v1852
        %v2725 = vpack.c.b16 %v1857, %v1853
        %v2726 = vpack.c.b16 %v1858, %v1854
        %v2727 = vpack.c.b16 %v1863, %v1859
        %v2728 = vpack.c.b16 %v1864, %v1860
        %v2729 = vpack.c.b16 %v1865, %v1861
        %v2730 = vpack.c.b16 %v1866, %v1862
        %v2731 = vpack.c.b16 %v1871, %v1867
        %v2732 = vpack.c.b16 %v1872, %v1868
        %v2733 = vpack.c.b16 %v1873, %v1869
        %v2734 = vpack.c.b16 %v1874, %v1870
        %v2735 = vpack.c.b16 %v1879, %v1875
        %v2736 = vpack.c.b16 %v1880, %v1876
        %v2737 = vpack.c.b16 %v1881, %v1877
        %v2738 = vpack.c.b16 %v1882, %v1878
        %v2739 = vpack.c.b16 %v1887, %v1883
        %v2740 = vpack.c.b16 %v1888, %v1884
        %v2741 = vpack.c.b16 %v1889, %v1885
        %v2742 = vpack.c.b16 %v1890, %v1886
        %v2743 = vpack.c.b16 %v1895, %v1891
        %v2744 = vpack.c.b16 %v1896, %v1892
        %v2745 = vpack.c.b16 %v1897, %v1893
        %v2746 = vpack.c.b16 %v1898, %v1894
        %v2747 = vpack.c.b16 %v1903, %v1899
        %v2748 = vpack.c.b16 %v1904, %v1900
        %v2749 = vpack.c.b16 %v1905, %v1901
        %v2750 = vpack.c.b16 %v1906, %v1902
        %v2751 = vpack.c.b16 %v1911, %v1907
        %v2752 = vpack.c.b16 %v1912, %v1908
        %v2753 = vpack.c.b16 %v1913, %v1909
        %v2754 = vpack.c.b16 %v1914, %v1910
        %v2755 = vpack.c.b16 %v1919, %v1915
        %v2756 = vpack.c.b16 %v1920, %v1916
        %v2757 = vpack.c.b16 %v1921, %v1917
        %v2758 = vpack.c.b16 %v1922, %v1918
        %v2759 = vpack.c.b16 %v1927, %v1923
        %v2760 = vpack.c.b16 %v1928, %v1924
        %v2761 = vpack.c.b16 %v1929, %v1925
        %v2762 = vpack.c.b16 %v1930, %v1926
        %v2763 = vpack.c.b16 %v1935, %v1931
        %v2764 = vpack.c.b16 %v1936, %v1932
        %v2765 = vpack.c.b16 %v1937, %v1933
        %v2766 = vpack.c.b16 %v1938, %v1934
        %v2767 = vpack.c.b16 %v1943, %v1939
        %v2768 = vpack.c.b16 %v1944, %v1940
        %v2769 = vpack.c.b16 %v1945, %v1941
        %v2770 = vpack.c.b16 %v1946, %v1942
        %v2771 = vpack.c.b16 %v1951, %v1947
        %v2772 = vpack.c.b16 %v1952, %v1948
        %v2773 = vpack.c.b16 %v1953, %v1949
        %v2774 = vpack.c.b16 %v1954, %v1950
        %v2775 = vpack.c.b16 %v1959, %v1955
        %v2776 = vpack.c.b16 %v1960, %v1956
        %v2777 = vpack.c.b16 %v1961, %v1957
        %v2778 = vpack.c.b16 %v1962, %v1958
        %v2779 = vpack.c.b16 %v1967, %v1963
        %v2780 = vpack.c.b16 %v1968, %v1964
        %v2781 = vpack.c.b16 %v1969, %v1965
        %v2782 = vpack.c.b16 %v1970, %v1966
        %v2783 = vpack.c.b16 %v1975, %v1971
        %v2784 = vpack.c.b16 %v1976, %v1972
        %v2785 = vpack.c.b16 %v1977, %v1973
        %v2786 = vpack.c.b16 %v1978, %v1974
        %v2787 = vpack.c.b16 %v1983, %v1979
        %v2788 = vpack.c.b16 %v1984, %v1980
        %v2789 = vpack.c.b16 %v1985, %v1981
        %v2790 = vpack.c.b16 %v1986, %v1982
        %v2791 = vpack.c.b16 %v1991, %v1987
        %v2792 = vpack.c.b16 %v1992, %v1988
        %v2793 = vpack.c.b16 %v1993, %v1989
        %v2794 = vpack.c.b16 %v1994, %v1990
        %v2795 = vpack.c.b16 %v1999, %v1995
        %v2796 = vpack.c.b16 %v2000, %v1996
        %v2797 = vpack.c.b16 %v2001, %v1997
        %v2798 = vpack.c.b16 %v2002, %v1998
        %v2799 = vpack.c.b16 %v2007, %v2003
        %v2800 = vpack.c.b16 %v2008, %v2004
        %v2801 = vpack.c.b16 %v2009, %v2005
        %v2802 = vpack.c.b16 %v2010, %v2006
        %v2803 = vpack.c.b16 %v2015, %v2011
        %v2804 = vpack.c.b16 %v2016, %v2012
        %v2805 = vpack.c.b16 %v2017, %v2013
        %v2806 = vpack.c.b16 %v2018, %v2014
        %v2807 = vpack.c.b16 %v2023, %v2019
        %v2808 = vpack.c.b16 %v2024, %v2020
        %v2809 = vpack.c.b16 %v2025, %v2021
        %v2810 = vpack.c.b16 %v2026, %v2022
        %v2811 = vpack.c.b16 %v2031, %v2027
        %v2812 = vpack.c.b16 %v2032, %v2028
        %v2813 = vpack.c.b16 %v2033, %v2029
        %v2814 = vpack.c.b16 %v2034, %v2030
        %v2815 = vpack.c.b16 %v2039, %v2035
        %v2816 = vpack.c.b16 %v2040, %v2036
        %v2817 = vpack.c.b16 %v2041, %v2037
        %v2818 = vpack.c.b16 %v2042, %v2038
        %v2819 = vpack.c.b16 %v2047, %v2043
        %v2820 = vpack.c.b16 %v2048, %v2044
        %v2821 = vpack.c.b16 %v2049, %v2045
        %v2822 = vpack.c.b16 %v2050, %v2046
        %v2823 = vpack.c.b16 %v2055, %v2051
        %v2824 = vpack.c.b16 %v2056, %v2052
        %v2825 = vpack.c.b16 %v2057, %v2053
        %v2826 = vpack.c.b16 %v2058, %v2054
        %v2827 = vpack.c.b16 %v2063, %v2059
        %v2828 = vpack.c.b16 %v2064, %v2060
        %v2829 = vpack.c.b16 %v2065, %v2061
        %v2830 = vpack.c.b16 %v2066, %v2062
        %v2831 = vpack.c.b16 %v2071, %v2067
        %v2832 = vpack.c.b16 %v2072, %v2068
        %v2833 = vpack.c.b16 %v2073, %v2069
        %v2834 = vpack.c.b16 %v2074, %v2070
        %v2835 = vpack.c.b16 %v2079, %v2075
        %v2836 = vpack.c.b16 %v2080, %v2076
        %v2837 = vpack.c.b16 %v2081, %v2077
        %v2838 = vpack.c.b16 %v2082, %v2078
        %v2839 = vpack.c.b16 %v2087, %v2083
        %v2840 = vpack.c.b16 %v2088, %v2084
        %v2841 = vpack.c.b16 %v2089, %v2085
        %v2842 = vpack.c.b16 %v2090, %v2086
        %v2843 = vpack.c.b16 %v2095, %v2091
        %v2844 = vpack.c.b16 %v2096, %v2092
        %v2845 = vpack.c.b16 %v2097, %v2093
        %v2846 = vpack.c.b16 %v2098, %v2094
        %v2847 = vpack.c.b16 %v2103, %v2099
        %v2848 = vpack.c.b16 %v2104, %v2100
        %v2849 = vpack.c.b16 %v2105, %v2101
        %v2850 = vpack.c.b16 %v2106, %v2102
        %v2851 = vpack.c.b16 %v2111, %v2107
        %v2852 = vpack.c.b16 %v2112, %v2108
        %v2853 = vpack.c.b16 %v2113, %v2109
        %v2854 = vpack.c.b16 %v2114, %v2110
        %v2855 = vpack.c.b16 %v2119, %v2115
        %v2856 = vpack.c.b16 %v2120, %v2116
        %v2857 = vpack.c.b16 %v2121, %v2117
        %v2858 = vpack.c.b16 %v2122, %v2118
        %v2859 = vpack.c.b16 %v2127, %v2123
        %v2860 = vpack.c.b16 %v2128, %v2124
        %v2861 = vpack.c.b16 %v2129, %v2125
        %v2862 = vpack.c.b16 %v2130, %v2126
        %v2863 = vpack.c.b16 %v2135, %v2131
        %v2864 = vpack.c.b16 %v2136, %v2132
        %v2865 = vpack.c.b16 %v2137, %v2133
        %v2866 = vpack.c.b16 %v2138, %v2134
        %v2867 = vpack.c.b16 %v2143, %v2139
        %v2868 = vpack.c.b16 %v2144, %v2140
        %v2869 = vpack.c.b16 %v2145, %v2141
        %v2870 = vpack.c.b16 %v2146, %v2142
        %v2871 = vpack.c.b16 %v2151, %v2147
        %v2872 = vpack.c.b16 %v2152, %v2148
        %v2873 = vpack.c.b16 %v2153, %v2149
        %v2874 = vpack.c.b16 %v2154, %v2150
        %v2875 = vpack.c.b16 %v2159, %v2155
        %v2876 = vpack.c.b16 %v2160, %v2156
        %v2877 = vpack.c.b16 %v2161, %v2157
        %v2878 = vpack.c.b16 %v2162, %v2158
        %v2879 = vpack.c.b16 %v2167, %v2163
        %v2880 = vpack.c.b16 %v2168, %v2164
        %v2881 = vpack.c.b16 %v2169, %v2165
        %v2882 = vpack.c.b16 %v2170, %v2166
        %v2883 = vpack.c.b16 %v2175, %v2171
        %v2884 = vpack.c.b16 %v2176, %v2172
        %v2885 = vpack.c.b16 %v2177, %v2173
        %v2886 = vpack.c.b16 %v2178, %v2174
        %v2887 = vpack.c.b16 %v2183, %v2179
        %v2888 = vpack.c.b16 %v2184, %v2180
        %v2889 = vpack.c.b16 %v2185, %v2181
        %v2890 = vpack.c.b16 %v2186, %v2182
        %v2891 = vpack.c.b16 %v2191, %v2187
        %v2892 = vpack.c.b16 %v2192, %v2188
        %v2893 = vpack.c.b16 %v2193, %v2189
        %v2894 = vpack.c.b16 %v2194, %v2190
        %v2895 = vpack.c.b16 %v2199, %v2195
        %v2896 = vpack.c.b16 %v2200, %v2196
        %v2897 = vpack.c.b16 %v2201, %v2197
        %v2898 = vpack.c.b16 %v2202, %v2198
        %v2899 = vpack.c.b16 %v2207, %v2203
        %v2900 = vpack.c.b16 %v2208, %v2204
        %v2901 = vpack.c.b16 %v2209, %v2205
        %v2902 = vpack.c.b16 %v2210, %v2206
        %v2903 = vpack.c.b16 %v2215, %v2211
        %v2904 = vpack.c.b16 %v2216, %v2212
        %v2905 = vpack.c.b16 %v2217, %v2213
        %v2906 = vpack.c.b16 %v2218, %v2214
        %v2907 = vpack.c.b16 %v2223, %v2219
        %v2908 = vpack.c.b16 %v2224, %v2220
        %v2909 = vpack.c.b16 %v2225, %v2221
        %v2910 = vpack.c.b16 %v2226, %v2222
        %v2911 = vpack.c.b16 %v2231, %v2227
        %v2912 = vpack.c.b16 %v2232, %v2228
        %v2913 = vpack.c.b16 %v2233, %v2229
        %v2914 = vpack.c.b16 %v2234, %v2230
        %v2915 = vpack.c.b16 %v2239, %v2235
        %v2916 = vpack.c.b16 %v2240, %v2236
        %v2917 = vpack.c.b16 %v2241, %v2237
        %v2918 = vpack.c.b16 %v2242, %v2238
        %v2919 = vpack.c.b16 %v2247, %v2243
        %v2920 = vpack.c.b16 %v2248, %v2244
        %v2921 = vpack.c.b16 %v2249, %v2245
        %v2922 = vpack.c.b16 %v2250, %v2246
        %v2923 = vpack.c.b16 %v2255, %v2251
        %v2924 = vpack.c.b16 %v2256, %v2252
        %v2925 = vpack.c.b16 %v2257, %v2253
        %v2926 = vpack.c.b16 %v2258, %v2254
        %v2927 = vpack.c.b16 %v2263, %v2259
        %v2928 = vpack.c.b16 %v2264, %v2260
        %v2929 = vpack.c.b16 %v2265, %v2261
        %v2930 = vpack.c.b16 %v2266, %v2262
        %v2931 = vpack.c.b16 %v2271, %v2267
        %v2932 = vpack.c.b16 %v2272, %v2268
        %v2933 = vpack.c.b16 %v2273, %v2269
        %v2934 = vpack.c.b16 %v2274, %v2270
        %v2935 = vpack.c.b16 %v2279, %v2275
        %v2936 = vpack.c.b16 %v2280, %v2276
        %v2937 = vpack.c.b16 %v2281, %v2277
        %v2938 = vpack.c.b16 %v2282, %v2278
        %v2939 = vpack.c.b16 %v2287, %v2283
        %v2940 = vpack.c.b16 %v2288, %v2284
        %v2941 = vpack.c.b16 %v2289, %v2285
        %v2942 = vpack.c.b16 %v2290, %v2286
        %v2943 = vpack.c.b16 %v2295, %v2291
        %v2944 = vpack.c.b16 %v2296, %v2292
        %v2945 = vpack.c.b16 %v2297, %v2293
        %v2946 = vpack.c.b16 %v2298, %v2294
        %v2947 = vpack.c.b16 %v2303, %v2299
        %v2948 = vpack.c.b16 %v2304, %v2300
        %v2949 = vpack.c.b16 %v2305, %v2301
        %v2950 = vpack.c.b16 %v2306, %v2302
        %v2951 = vpack.c.b16 %v2311, %v2307
        %v2952 = vpack.c.b16 %v2312, %v2308
        %v2953 = vpack.c.b16 %v2313, %v2309
        %v2954 = vpack.c.b16 %v2314, %v2310
        %v2955 = vpack.c.b16 %v2319, %v2315
        %v2956 = vpack.c.b16 %v2320, %v2316
        %v2957 = vpack.c.b16 %v2321, %v2317
        %v2958 = vpack.c.b16 %v2322, %v2318
        %v2959 = vpack.c.b16 %v2327, %v2323
        %v2960 = vpack.c.b16 %v2328, %v2324
        %v2961 = vpack.c.b16 %v2329, %v2325
        %v2962 = vpack.c.b16 %v2330, %v2326
        %v2963 = vpack.c.b16 %v2335, %v2331
        %v2964 = vpack.c.b16 %v2336, %v2332
        %v2965 = vpack.c.b16 %v2337, %v2333
        %v2966 = vpack.c.b16 %v2338, %v2334
        %v2967 = vpack.c.b16 %v2343, %v2339
        %v2968 = vpack.c.b16 %v2344, %v2340
        %v2969 = vpack.c.b16 %v2345, %v2341
        %v2970 = vpack.c.b16 %v2346, %v2342
        %v2971 = vpack.c.b16 %v2351, %v2347
        %v2972 = vpack.c.b16 %v2352, %v2348
        %v2973 = vpack.c.b16 %v2353, %v2349
        %v2974 = vpack.c.b16 %v2354, %v2350
        %v2975 = vpack.c.b16 %v2359, %v2355
        %v2976 = vpack.c.b16 %v2360, %v2356
        %v2977 = vpack.c.b16 %v2361, %v2357
        %v2978 = vpack.c.b16 %v2362, %v2358
        %v2979 = vpack.c.b16 %v2367, %v2363
        %v2980 = vpack.c.b16 %v2368, %v2364
        %v2981 = vpack.c.b16 %v2369, %v2365
        %v2982 = vpack.c.b16 %v2370, %v2366
        %v2983 = vpack.c.b16 %v2375, %v2371
        %v2984 = vpack.c.b16 %v2376, %v2372
        %v2985 = vpack.c.b16 %v2377, %v2373
        %v2986 = vpack.c.b16 %v2378, %v2374
        %v2987 = vpack.c.b16 %v2383, %v2379
        %v2988 = vpack.c.b16 %v2384, %v2380
        %v2989 = vpack.c.b16 %v2385, %v2381
        %v2990 = vpack.c.b16 %v2386, %v2382
        %v2991 = vpack.c.b16 %v2391, %v2387
        %v2992 = vpack.c.b16 %v2392, %v2388
        %v2993 = vpack.c.b16 %v2393, %v2389
        %v2994 = vpack.c.b16 %v2394, %v2390
        %v2995 = vpack.c.b16 %v2399, %v2395
        %v2996 = vpack.c.b16 %v2400, %v2396
        %v2997 = vpack.c.b16 %v2401, %v2397
        %v2998 = vpack.c.b16 %v2402, %v2398
        %v2999 = vpack.c.b16 %v2407, %v2403
        %v3000 = vpack.c.b16 %v2408, %v2404
        %v3001 = vpack.c.b16 %v2409, %v2405
        %v3002 = vpack.c.b16 %v2410, %v2406
        %v3003 = vpack.c.b16 %v2415, %v2411
        %v3004 = vpack.c.b16 %v2416, %v2412
        %v3005 = vpack.c.b16 %v2417, %v2413
        %v3006 = vpack.c.b16 %v2418, %v2414
        %v3007 = vpack.c.b16 %v2423, %v2419
        %v3008 = vpack.c.b16 %v2424, %v2420
        %v3009 = vpack.c.b16 %v2425, %v2421
        %v3010 = vpack.c.b16 %v2426, %v2422
        %v3011 = vpack.c.b16 %v2431, %v2427
        %v3012 = vpack.c.b16 %v2432, %v2428
        %v3013 = vpack.c.b16 %v2433, %v2429
        %v3014 = vpack.c.b16 %v2434, %v2430
        %v3015 = vpack.c.b16 %v2439, %v2435
        %v3016 = vpack.c.b16 %v2440, %v2436
        %v3017 = vpack.c.b16 %v2441, %v2437
        %v3018 = vpack.c.b16 %v2442, %v2438
        %v3019 = vpack.c.b16 %v2447, %v2443
        %v3020 = vpack.c.b16 %v2448, %v2444
        %v3021 = vpack.c.b16 %v2449, %v2445
        %v3022 = vpack.c.b16 %v2450, %v2446
        %v3023 = vpack.c.b16 %v2455, %v2451
        %v3024 = vpack.c.b16 %v2456, %v2452
        %v3025 = vpack.c.b16 %v2457, %v2453
        %v3026 = vpack.c.b16 %v2458, %v2454
        %v3027 = vpack.c.b16 %v2463, %v2459
        %v3028 = vpack.c.b16 %v2464, %v2460
        %v3029 = vpack.c.b16 %v2465, %v2461
        %v3030 = vpack.c.b16 %v2466, %v2462
        %v3031 = vpack.c.b16 %v2471, %v2467
        %v3032 = vpack.c.b16 %v2472, %v2468
        %v3033 = vpack.c.b16 %v2473, %v2469
        %v3034 = vpack.c.b16 %v2474, %v2470
        %v3035 = vpack.c.b16 %v2479, %v2475
        %v3036 = vpack.c.b16 %v2480, %v2476
        %v3037 = vpack.c.b16 %v2481, %v2477
        %v3038 = vpack.c.b16 %v2482, %v2478
        %v3039 = vpack.c.b16 %v2487, %v2483
        %v3040 = vpack.c.b16 %v2488, %v2484
        %v3041 = vpack.c.b16 %v2489, %v2485
        %v3042 = vpack.c.b16 %v2490, %v2486
        %v3043 = vpack.c.b16 %v2495, %v2491
        %v3044 = vpack.c.b16 %v2496, %v2492
        %v3045 = vpack.c.b16 %v2497, %v2493
        %v3046 = vpack.c.b16 %v2498, %v2494
        %v3047 = vpack.c.b16 %v2503, %v2499
        %v3048 = vpack.c.b16 %v2504, %v2500
        %v3049 = vpack.c.b16 %v2505, %v2501
        %v3050 = vpack.c.b16 %v2506, %v2502
        %v3051 = vpack.c.b16 %v2511, %v2507
        %v3052 = vpack.c.b16 %v2512, %v2508
        %v3053 = vpack.c.b16 %v2513, %v2509
        %v3054 = vpack.c.b16 %v2514, %v2510
        %v3055 = vpack.c.b16 %v2519, %v2515
        %v3056 = vpack.c.b16 %v2520, %v2516
        %v3057 = vpack.c.b16 %v2521, %v2517
        %v3058 = vpack.c.b16 %v2522, %v2518
        %v3059 = vpack.c.b16 %v2527, %v2523
        %v3060 = vpack.c.b16 %v2528, %v2524
        %v3061 = vpack.c.b16 %v2529, %v2525
        %v3062 = vpack.c.b16 %v2530, %v2526
        %v3063 = vpack.c.b16 %v2535, %v2531
        %v3064 = vpack.c.b16 %v2536, %v2532
        %v3065 = vpack.c.b16 %v2537, %v2533
        %v3066 = vpack.c.b16 %v2538, %v2534
        %v3067 = vpack.c.b16 %v2543, %v2539
        %v3068 = vpack.c.b16 %v2544, %v2540
        %v3069 = vpack.c.b16 %v2545, %v2541
        %v3070 = vpack.c.b16 %v2546, %v2542
        %v3071 = vpack.c.b16 %v2551, %v2547
        %v3072 = vpack.c.b16 %v2552, %v2548
        %v3073 = vpack.c.b16 %v2553, %v2549
        %v3074 = vpack.c.b16 %v2554, %v2550
        %v3075 = vpack.c.b16 %v2559, %v2555
        %v3076 = vpack.c.b16 %v2560, %v2556
        %v3077 = vpack.c.b16 %v2561, %v2557
        %v3078 = vpack.c.b16 %v2562, %v2558
        %v3079 = vpack.c.b16 %v2567, %v2563
        %v3080 = vpack.c.b16 %v2568, %v2564
        %v3081 = vpack.c.b16 %v2569, %v2565
        %v3082 = vpack.c.b16 %v2570, %v2566
        %3595 = vmatprep.subr.bf16.mxu0 %v2572
        %3596 = vmatpush1.bf16.msra.mxu0 %v2571
        %3597 = vmatprep.subr.bf16.mxu0 %v2576
        %3598 = vmatpush1.bf16.msra.mxu0 %v2575
        %3599 = vmatprep.subr.bf16.mxu0 %v2580
        %3600 = vmatpush1.bf16.msra.mxu0 %v2579
        %3601 = vmatprep.subr.bf16.mxu0 %v2584
        %3602 = vmatpush1.bf16.msra.mxu0 %v2583
        %3603 = vmatprep.subr.bf16.mxu0 %v2588
        %3604 = vmatpush1.bf16.msra.mxu0 %v2587
        %3605 = vmatprep.subr.bf16.mxu0 %v2592
        %3606 = vmatpush1.bf16.msra.mxu0 %v2591
        %3607 = vmatprep.subr.bf16.mxu0 %v2596
        %3608 = vmatpush1.bf16.msra.mxu0 %v2595
        %3609 = vmatprep.subr.bf16.mxu0 %v2600
        %3610 = vmatpush1.bf16.msra.mxu0 %v2599
        %3611 = vmatprep.subr.bf16.mxu0 %v2604
        %3612 = vmatpush1.bf16.msra.mxu0 %v2603
        %3613 = vmatprep.subr.bf16.mxu0 %v2608
        %3614 = vmatpush1.bf16.msra.mxu0 %v2607
        %3615 = vmatprep.subr.bf16.mxu0 %v2612
        %3616 = vmatpush1.bf16.msra.mxu0 %v2611
        %3617 = vmatprep.subr.bf16.mxu0 %v2616
        %3618 = vmatpush1.bf16.msra.mxu0 %v2615
        %3619 = vmatprep.subr.bf16.mxu0 %v2620
        %3620 = vmatpush1.bf16.msra.mxu0 %v2619
        %3621 = vmatprep.subr.bf16.mxu0 %v2624
        %3622 = vmatpush1.bf16.msra.mxu0 %v2623
        %3623 = vmatprep.subr.bf16.mxu0 %v2628
        %3624 = vmatpush1.bf16.msra.mxu0 %v2627
        %3625 = vmatprep.subr.bf16.mxu0 %v2632
        %3626 = vmatpush1.bf16.msra.mxu0 %v2631
        %3627 = vmatprep.mubr.bf16.mxu0 %v508
        %3628 = vmatmul.mubr.bf16.gmra.mrb[0].mxu0 %v507
        %v3629 = vpop.f32.mrb[0].mxu0
        %v3630 = vadd.f32 0.0, %v3629
        %v3631 = vpop.f32.mrb[0].mxu0
        %v3632 = vadd.f32 0.0, %v3631
        %v3633 = vpop.f32.mrb[0].mxu0
        %v3634 = vadd.f32 0.0, %v3633
        %v3635 = vpop.f32.mrb[0].mxu0
        %v3636 = vadd.f32 0.0, %v3635
        %3637 = vdwg.mxu0
        %3638 = vmatprep.subr.bf16.mxu0 %v2636
        %3639 = vmatpush1.bf16.msra.mxu0 %v2635
        %3640 = vmatprep.subr.bf16.mxu0 %v2640
        %3641 = vmatpush1.bf16.msra.mxu0 %v2639
        %3642 = vmatprep.subr.bf16.mxu0 %v2644
        %3643 = vmatpush1.bf16.msra.mxu0 %v2643
        %3644 = vmatprep.subr.bf16.mxu0 %v2648
        %3645 = vmatpush1.bf16.msra.mxu0 %v2647
        %3646 = vmatprep.subr.bf16.mxu0 %v2652
        %3647 = vmatpush1.bf16.msra.mxu0 %v2651
        %3648 = vmatprep.subr.bf16.mxu0 %v2656
        %3649 = vmatpush1.bf16.msra.mxu0 %v2655
        %3650 = vmatprep.subr.bf16.mxu0 %v2660
        %3651 = vmatpush1.bf16.msra.mxu0 %v2659
        %3652 = vmatprep.subr.bf16.mxu0 %v2664
        %3653 = vmatpush1.bf16.msra.mxu0 %v2663
        %3654 = vmatprep.subr.bf16.mxu0 %v2668
        %3655 = vmatpush1.bf16.msra.mxu0 %v2667
        %3656 = vmatprep.subr.bf16.mxu0 %v2672
        %3657 = vmatpush1.bf16.msra.mxu0 %v2671
        %3658 = vmatprep.subr.bf16.mxu0 %v2676
        %3659 = vmatpush1.bf16.msra.mxu0 %v2675
        %3660 = vmatprep.subr.bf16.mxu0 %v2680
        %3661 = vmatpush1.bf16.msra.mxu0 %v2679
        %3662 = vmatprep.subr.bf16.mxu0 %v2684
        %3663 = vmatpush1.bf16.msra.mxu0 %v2683
        %3664 = vmatprep.subr.bf16.mxu0 %v2688
        %3665 = vmatpush1.bf16.msra.mxu0 %v2687
        %3666 = vmatprep.subr.bf16.mxu0 %v2692
        %3667 = vmatpush1.bf16.msra.mxu0 %v2691
        %3668 = vmatprep.subr.bf16.mxu0 %v2696
        %3669 = vmatpush1.bf16.msra.mxu0 %v2695
        %3670 = vmatprep.mubr.bf16.mxu0 %v510
        %3671 = vmatmul.mubr.bf16.gmra.mrb[0].mxu0 %v509
        %v3672 = vpop.f32.mrb[0].mxu0
        %v3673 = vadd.f32 %v3630, %v3672
        %v3674 = vpop.f32.mrb[0].mxu0
        %v3675 = vadd.f32 %v3632, %v3674
        %v3676 = vpop.f32.mrb[0].mxu0
        %v3677 = vadd.f32 %v3634, %v3676
        %v3678 = vpop.f32.mrb[0].mxu0
        %v3679 = vadd.f32 %v3636, %v3678
        %3680 = vdwg.mxu0
        %3681 = vmatprep.subr.bf16.mxu0 %v2700
        %3682 = vmatpush1.bf16.msra.mxu0 %v2699
        %3683 = vmatprep.subr.bf16.mxu0 %v2704
        %3684 = vmatpush1.bf16.msra.mxu0 %v2703
        %3685 = vmatprep.subr.bf16.mxu0 %v2708
        %3686 = vmatpush1.bf16.msra.mxu0 %v2707
        %3687 = vmatprep.subr.bf16.mxu0 %v2712
        %3688 = vmatpush1.bf16.msra.mxu0 %v2711
        %3689 = vmatprep.subr.bf16.mxu0 %v2716
        %3690 = vmatpush1.bf16.msra.mxu0 %v2715
        %3691 = vmatprep.subr.bf16.mxu0 %v2720
        %3692 = vmatpush1.bf16.msra.mxu0 %v2719
        %3693 = vmatprep.subr.bf16.mxu0 %v2724
        %3694 = vmatpush1.bf16.msra.mxu0 %v2723
        %3695 = vmatprep.subr.bf16.mxu0 %v2728
        %3696 = vmatpush1.bf16.msra.mxu0 %v2727
        %3697 = vmatprep.subr.bf16.mxu0 %v2732
        %3698 = vmatpush1.bf16.msra.mxu0 %v2731
        %3699 = vmatprep.subr.bf16.mxu0 %v2736
        %3700 = vmatpush1.bf16.msra.mxu0 %v2735
        %3701 = vmatprep.subr.bf16.mxu0 %v2740
        %3702 = vmatpush1.bf16.msra.mxu0 %v2739
        %3703 = vmatprep.subr.bf16.mxu0 %v2744
        %3704 = vmatpush1.bf16.msra.mxu0 %v2743
        %3705 = vmatprep.subr.bf16.mxu0 %v2748
        %3706 = vmatpush1.bf16.msra.mxu0 %v2747
        %3707 = vmatprep.subr.bf16.mxu0 %v2752
        %3708 = vmatpush1.bf16.msra.mxu0 %v2751
        %3709 = vmatprep.subr.bf16.mxu0 %v2756
        %3710 = vmatpush1.bf16.msra.mxu0 %v2755
        %3711 = vmatprep.subr.bf16.mxu0 %v2760
        %3712 = vmatpush1.bf16.msra.mxu0 %v2759
        %3713 = vmatprep.mubr.bf16.mxu0 %v512
        %3714 = vmatmul.mubr.bf16.gmra.mrb[0].mxu0 %v511
        %v3715 = vpop.f32.mrb[0].mxu0
        %v3716 = vadd.f32 %v3673, %v3715
        %v3717 = vpop.f32.mrb[0].mxu0
        %v3718 = vadd.f32 %v3675, %v3717
        %v3719 = vpop.f32.mrb[0].mxu0
        %v3720 = vadd.f32 %v3677, %v3719
        %v3721 = vpop.f32.mrb[0].mxu0
        %v3722 = vadd.f32 %v3679, %v3721
        %3723 = vdwg.mxu0
        %3724 = vmatprep.subr.bf16.mxu0 %v2764
        %3725 = vmatpush1.bf16.msra.mxu0 %v2763
        %3726 = vmatprep.subr.bf16.mxu0 %v2768
        %3727 = vmatpush1.bf16.msra.mxu0 %v2767
        %3728 = vmatprep.subr.bf16.mxu0 %v2772
        %3729 = vmatpush1.bf16.msra.mxu0 %v2771
        %3730 = vmatprep.subr.bf16.mxu0 %v2776
        %3731 = vmatpush1.bf16.msra.mxu0 %v2775
        %3732 = vmatprep.subr.bf16.mxu0 %v2780
        %3733 = vmatpush1.bf16.msra.mxu0 %v2779
        %3734 = vmatprep.subr.bf16.mxu0 %v2784
        %3735 = vmatpush1.bf16.msra.mxu0 %v2783
        %3736 = vmatprep.subr.bf16.mxu0 %v2788
        %3737 = vmatpush1.bf16.msra.mxu0 %v2787
        %3738 = vmatprep.subr.bf16.mxu0 %v2792
        %3739 = vmatpush1.bf16.msra.mxu0 %v2791
        %3740 = vmatprep.subr.bf16.mxu0 %v2796
        %3741 = vmatpush1.bf16.msra.mxu0 %v2795
        %3742 = vmatprep.subr.bf16.mxu0 %v2800
        %3743 = vmatpush1.bf16.msra.mxu0 %v2799
        %3744 = vmatprep.subr.bf16.mxu0 %v2804
        %3745 = vmatpush1.bf16.msra.mxu0 %v2803
        %3746 = vmatprep.subr.bf16.mxu0 %v2808
        %3747 = vmatpush1.bf16.msra.mxu0 %v2807
        %3748 = vmatprep.subr.bf16.mxu0 %v2812
        %3749 = vmatpush1.bf16.msra.mxu0 %v2811
        %3750 = vmatprep.subr.bf16.mxu0 %v2816
        %3751 = vmatpush1.bf16.msra.mxu0 %v2815
        %3752 = vmatprep.subr.bf16.mxu0 %v2820
        %3753 = vmatpush1.bf16.msra.mxu0 %v2819
        %3754 = vmatprep.subr.bf16.mxu0 %v2824
        %3755 = vmatpush1.bf16.msra.mxu0 %v2823
        %3756 = vmatprep.mubr.bf16.mxu0 %v514
        %3757 = vmatmul.mubr.bf16.gmra.mrb[0].mxu0 %v513
        %v3758 = vpop.f32.mrb[0].mxu0
        %v3759 = vadd.f32 %v3716, %v3758
        %v3760 = vpop.f32.mrb[0].mxu0
        %v3761 = vadd.f32 %v3718, %v3760
        %v3762 = vpop.f32.mrb[0].mxu0
        %v3763 = vadd.f32 %v3720, %v3762
        %v3764 = vpop.f32.mrb[0].mxu0
        %v3765 = vadd.f32 %v3722, %v3764
        %3766 = vdwg.mxu0
        %3767 = vmatprep.subr.bf16.mxu0 %v2828
        %3768 = vmatpush1.bf16.msra.mxu0 %v2827
        %3769 = vmatprep.subr.bf16.mxu0 %v2832
        %3770 = vmatpush1.bf16.msra.mxu0 %v2831
        %3771 = vmatprep.subr.bf16.mxu0 %v2836
        %3772 = vmatpush1.bf16.msra.mxu0 %v2835
        %3773 = vmatprep.subr.bf16.mxu0 %v2840
        %3774 = vmatpush1.bf16.msra.mxu0 %v2839
        %3775 = vmatprep.subr.bf16.mxu0 %v2844
        %3776 = vmatpush1.bf16.msra.mxu0 %v2843
        %3777 = vmatprep.subr.bf16.mxu0 %v2848
        %3778 = vmatpush1.bf16.msra.mxu0 %v2847
        %3779 = vmatprep.subr.bf16.mxu0 %v2852
        %3780 = vmatpush1.bf16.msra.mxu0 %v2851
        %3781 = vmatprep.subr.bf16.mxu0 %v2856
        %3782 = vmatpush1.bf16.msra.mxu0 %v2855
        %3783 = vmatprep.subr.bf16.mxu0 %v2860
        %3784 = vmatpush1.bf16.msra.mxu0 %v2859
        %3785 = vmatprep.subr.bf16.mxu0 %v2864
        %3786 = vmatpush1.bf16.msra.mxu0 %v2863
        %3787 = vmatprep.subr.bf16.mxu0 %v2868
        %3788 = vmatpush1.bf16.msra.mxu0 %v2867
        %3789 = vmatprep.subr.bf16.mxu0 %v2872
        %3790 = vmatpush1.bf16.msra.mxu0 %v2871
        %3791 = vmatprep.subr.bf16.mxu0 %v2876
        %3792 = vmatpush1.bf16.msra.mxu0 %v2875
        %3793 = vmatprep.subr.bf16.mxu0 %v2880
        %3794 = vmatpush1.bf16.msra.mxu0 %v2879
        %3795 = vmatprep.subr.bf16.mxu0 %v2884
        %3796 = vmatpush1.bf16.msra.mxu0 %v2883
        %3797 = vmatprep.subr.bf16.mxu0 %v2888
        %3798 = vmatpush1.bf16.msra.mxu0 %v2887
        %3799 = vmatprep.mubr.bf16.mxu0 %v516
        %3800 = vmatmul.mubr.bf16.gmra.mrb[0].mxu0 %v515
        %v3801 = vpop.f32.mrb[0].mxu0
        %v3802 = vadd.f32 %v3759, %v3801
        %v3803 = vpop.f32.mrb[0].mxu0
        %v3804 = vadd.f32 %v3761, %v3803
        %v3805 = vpop.f32.mrb[0].mxu0
        %v3806 = vadd.f32 %v3763, %v3805
        %v3807 = vpop.f32.mrb[0].mxu0
        %v3808 = vadd.f32 %v3765, %v3807
        %3809 = vdwg.mxu0
        %3810 = vmatprep.subr.bf16.mxu0 %v2892
        %3811 = vmatpush1.bf16.msra.mxu0 %v2891
        %3812 = vmatprep.subr.bf16.mxu0 %v2896
        %3813 = vmatpush1.bf16.msra.mxu0 %v2895
        %3814 = vmatprep.subr.bf16.mxu0 %v2900
        %3815 = vmatpush1.bf16.msra.mxu0 %v2899
        %3816 = vmatprep.subr.bf16.mxu0 %v2904
        %3817 = vmatpush1.bf16.msra.mxu0 %v2903
        %3818 = vmatprep.subr.bf16.mxu0 %v2908
        %3819 = vmatpush1.bf16.msra.mxu0 %v2907
        %3820 = vmatprep.subr.bf16.mxu0 %v2912
        %3821 = vmatpush1.bf16.msra.mxu0 %v2911
        %3822 = vmatprep.subr.bf16.mxu0 %v2916
        %3823 = vmatpush1.bf16.msra.mxu0 %v2915
        %3824 = vmatprep.subr.bf16.mxu0 %v2920
        %3825 = vmatpush1.bf16.msra.mxu0 %v2919
        %3826 = vmatprep.subr.bf16.mxu0 %v2924
        %3827 = vmatpush1.bf16.msra.mxu0 %v2923
        %3828 = vmatprep.subr.bf16.mxu0 %v2928
        %3829 = vmatpush1.bf16.msra.mxu0 %v2927
        %3830 = vmatprep.subr.bf16.mxu0 %v2932
        %3831 = vmatpush1.bf16.msra.mxu0 %v2931
        %3832 = vmatprep.subr.bf16.mxu0 %v2936
        %3833 = vmatpush1.bf16.msra.mxu0 %v2935
        %3834 = vmatprep.subr.bf16.mxu0 %v2940
        %3835 = vmatpush1.bf16.msra.mxu0 %v2939
        %3836 = vmatprep.subr.bf16.mxu0 %v2944
        %3837 = vmatpush1.bf16.msra.mxu0 %v2943
        %3838 = vmatprep.subr.bf16.mxu0 %v2948
        %3839 = vmatpush1.bf16.msra.mxu0 %v2947
        %3840 = vmatprep.subr.bf16.mxu0 %v2952
        %3841 = vmatpush1.bf16.msra.mxu0 %v2951
        %3842 = vmatprep.mubr.bf16.mxu0 %v518
        %3843 = vmatmul.mubr.bf16.gmra.mrb[0].mxu0 %v517
        %v3844 = vpop.f32.mrb[0].mxu0
        %v3845 = vadd.f32 %v3802, %v3844
        %v3846 = vpop.f32.mrb[0].mxu0
        %v3847 = vadd.f32 %v3804, %v3846
        %v3848 = vpop.f32.mrb[0].mxu0
        %v3849 = vadd.f32 %v3806, %v3848
        %v3850 = vpop.f32.mrb[0].mxu0
        %v3851 = vadd.f32 %v3808, %v3850
        %3852 = vdwg.mxu0
        %3853 = vmatprep.subr.bf16.mxu0 %v2956
        %3854 = vmatpush1.bf16.msra.mxu0 %v2955
        %3855 = vmatprep.subr.bf16.mxu0 %v2960
        %3856 = vmatpush1.bf16.msra.mxu0 %v2959
        %3857 = vmatprep.subr.bf16.mxu0 %v2964
        %3858 = vmatpush1.bf16.msra.mxu0 %v2963
        %3859 = vmatprep.subr.bf16.mxu0 %v2968
        %3860 = vmatpush1.bf16.msra.mxu0 %v2967
        %3861 = vmatprep.subr.bf16.mxu0 %v2972
        %3862 = vmatpush1.bf16.msra.mxu0 %v2971
        %3863 = vmatprep.subr.bf16.mxu0 %v2976
        %3864 = vmatpush1.bf16.msra.mxu0 %v2975
        %3865 = vmatprep.subr.bf16.mxu0 %v2980
        %3866 = vmatpush1.bf16.msra.mxu0 %v2979
        %3867 = vmatprep.subr.bf16.mxu0 %v2984
        %3868 = vmatpush1.bf16.msra.mxu0 %v2983
        %3869 = vmatprep.subr.bf16.mxu0 %v2988
        %3870 = vmatpush1.bf16.msra.mxu0 %v2987
        %3871 = vmatprep.subr.bf16.mxu0 %v2992
        %3872 = vmatpush1.bf16.msra.mxu0 %v2991
        %3873 = vmatprep.subr.bf16.mxu0 %v2996
        %3874 = vmatpush1.bf16.msra.mxu0 %v2995
        %3875 = vmatprep.subr.bf16.mxu0 %v3000
        %3876 = vmatpush1.bf16.msra.mxu0 %v2999
        %3877 = vmatprep.subr.bf16.mxu0 %v3004
        %3878 = vmatpush1.bf16.msra.mxu0 %v3003
        %3879 = vmatprep.subr.bf16.mxu0 %v3008
        %3880 = vmatpush1.bf16.msra.mxu0 %v3007
        %3881 = vmatprep.subr.bf16.mxu0 %v3012
        %3882 = vmatpush1.bf16.msra.mxu0 %v3011
        %3883 = vmatprep.subr.bf16.mxu0 %v3016
        %3884 = vmatpush1.bf16.msra.mxu0 %v3015
        %3885 = vmatprep.mubr.bf16.mxu0 %v520
        %3886 = vmatmul.mubr.bf16.gmra.mrb[0].mxu0 %v519
        %v3887 = vpop.f32.mrb[0].mxu0
        %v3888 = vadd.f32 %v3845, %v3887
        %v3889 = vpop.f32.mrb[0].mxu0
        %v3890 = vadd.f32 %v3847, %v3889
        %v3891 = vpop.f32.mrb[0].mxu0
        %v3892 = vadd.f32 %v3849, %v3891
        %v3893 = vpop.f32.mrb[0].mxu0
        %v3894 = vadd.f32 %v3851, %v3893
        %3895 = vdwg.mxu0
        %3896 = vmatprep.subr.bf16.mxu0 %v3020
        %3897 = vmatpush1.bf16.msra.mxu0 %v3019
        %3898 = vmatprep.subr.bf16.mxu0 %v3024
        %3899 = vmatpush1.bf16.msra.mxu0 %v3023
        %3900 = vmatprep.subr.bf16.mxu0 %v3028
        %3901 = vmatpush1.bf16.msra.mxu0 %v3027
        %3902 = vmatprep.subr.bf16.mxu0 %v3032
        %3903 = vmatpush1.bf16.msra.mxu0 %v3031
        %3904 = vmatprep.subr.bf16.mxu0 %v3036
        %3905 = vmatpush1.bf16.msra.mxu0 %v3035
        %3906 = vmatprep.subr.bf16.mxu0 %v3040
        %3907 = vmatpush1.bf16.msra.mxu0 %v3039
        %3908 = vmatprep.subr.bf16.mxu0 %v3044
        %3909 = vmatpush1.bf16.msra.mxu0 %v3043
        %3910 = vmatprep.subr.bf16.mxu0 %v3048
        %3911 = vmatpush1.bf16.msra.mxu0 %v3047
        %3912 = vmatprep.subr.bf16.mxu0 %v3052
        %3913 = vmatpush1.bf16.msra.mxu0 %v3051
        %3914 = vmatprep.subr.bf16.mxu0 %v3056
        %3915 = vmatpush1.bf16.msra.mxu0 %v3055
        %3916 = vmatprep.subr.bf16.mxu0 %v3060
        %3917 = vmatpush1.bf16.msra.mxu0 %v3059
        %3918 = vmatprep.subr.bf16.mxu0 %v3064
        %3919 = vmatpush1.bf16.msra.mxu0 %v3063
        %3920 = vmatprep.subr.bf16.mxu0 %v3068
        %3921 = vmatpush1.bf16.msra.mxu0 %v3067
        %3922 = vmatprep.subr.bf16.mxu0 %v3072
        %3923 = vmatpush1.bf16.msra.mxu0 %v3071
        %3924 = vmatprep.subr.bf16.mxu0 %v3076
        %3925 = vmatpush1.bf16.msra.mxu0 %v3075
        %3926 = vmatprep.subr.bf16.mxu0 %v3080
        %3927 = vmatpush1.bf16.msra.mxu0 %v3079
        %3928 = vmatprep.mubr.bf16.mxu0 %v522
        %3929 = vmatmul.mubr.bf16.gmra.mrb[0].mxu0 %v521
        %v3930 = vpop.f32.mrb[0].mxu0
        %v3931 = vadd.f32 %v3888, %v3930
        %v3932 = vpop.f32.mrb[0].mxu0
        %v3933 = vadd.f32 %v3890, %v3932
        %v3934 = vpop.f32.mrb[0].mxu0
        %v3935 = vadd.f32 %v3892, %v3934
        %v3936 = vpop.f32.mrb[0].mxu0
        %v3937 = vadd.f32 %v3894, %v3936
        %3938 = vdwg.mxu0
        %3939 = vmatprep.subr.bf16.mxu0 %v2574
        %3940 = vmatpush1.bf16.msra.mxu0 %v2573
        %3941 = vmatprep.subr.bf16.mxu0 %v2578
        %3942 = vmatpush1.bf16.msra.mxu0 %v2577
        %3943 = vmatprep.subr.bf16.mxu0 %v2582
        %3944 = vmatpush1.bf16.msra.mxu0 %v2581
        %3945 = vmatprep.subr.bf16.mxu0 %v2586
        %3946 = vmatpush1.bf16.msra.mxu0 %v2585
        %3947 = vmatprep.subr.bf16.mxu0 %v2590
        %3948 = vmatpush1.bf16.msra.mxu0 %v2589
        %3949 = vmatprep.subr.bf16.mxu0 %v2594
        %3950 = vmatpush1.bf16.msra.mxu0 %v2593
        %3951 = vmatprep.subr.bf16.mxu0 %v2598
        %3952 = vmatpush1.bf16.msra.mxu0 %v2597
        %3953 = vmatprep.subr.bf16.mxu0 %v2602
        %3954 = vmatpush1.bf16.msra.mxu0 %v2601
        %3955 = vmatprep.subr.bf16.mxu0 %v2606
        %3956 = vmatpush1.bf16.msra.mxu0 %v2605
        %3957 = vmatprep.subr.bf16.mxu0 %v2610
        %3958 = vmatpush1.bf16.msra.mxu0 %v2609
        %3959 = vmatprep.subr.bf16.mxu0 %v2614
        %3960 = vmatpush1.bf16.msra.mxu0 %v2613
        %3961 = vmatprep.subr.bf16.mxu0 %v2618
        %3962 = vmatpush1.bf16.msra.mxu0 %v2617
        %3963 = vmatprep.subr.bf16.mxu0 %v2622
        %3964 = vmatpush1.bf16.msra.mxu0 %v2621
        %3965 = vmatprep.subr.bf16.mxu0 %v2626
        %3966 = vmatpush1.bf16.msra.mxu0 %v2625
        %3967 = vmatprep.subr.bf16.mxu0 %v2630
        %3968 = vmatpush1.bf16.msra.mxu0 %v2629
        %3969 = vmatprep.subr.bf16.mxu0 %v2634
        %3970 = vmatpush1.bf16.msra.mxu0 %v2633
        %3971 = vmatprep.mubr.bf16.mxu0 %v508
        %3972 = vmatmul.mubr.bf16.gmra.mrb[0].mxu0 %v507
        %v3973 = vpop.f32.mrb[0].mxu0
        %v3974 = vadd.f32 0.0, %v3973
        %v3975 = vpop.f32.mrb[0].mxu0
        %v3976 = vadd.f32 0.0, %v3975
        %v3977 = vpop.f32.mrb[0].mxu0
        %v3978 = vadd.f32 0.0, %v3977
        %v3979 = vpop.f32.mrb[0].mxu0
        %v3980 = vadd.f32 0.0, %v3979
        %3981 = vdwg.mxu0
        %3982 = vmatprep.subr.bf16.mxu0 %v2638
        %3983 = vmatpush1.bf16.msra.mxu0 %v2637
        %3984 = vmatprep.subr.bf16.mxu0 %v2642
        %3985 = vmatpush1.bf16.msra.mxu0 %v2641
        %3986 = vmatprep.subr.bf16.mxu0 %v2646
        %3987 = vmatpush1.bf16.msra.mxu0 %v2645
        %3988 = vmatprep.subr.bf16.mxu0 %v2650
        %3989 = vmatpush1.bf16.msra.mxu0 %v2649
        %3990 = vmatprep.subr.bf16.mxu0 %v2654
        %3991 = vmatpush1.bf16.msra.mxu0 %v2653
        %3992 = vmatprep.subr.bf16.mxu0 %v2658
        %3993 = vmatpush1.bf16.msra.mxu0 %v2657
        %3994 = vmatprep.subr.bf16.mxu0 %v2662
        %3995 = vmatpush1.bf16.msra.mxu0 %v2661
        %3996 = vmatprep.subr.bf16.mxu0 %v2666
        %3997 = vmatpush1.bf16.msra.mxu0 %v2665
        %3998 = vmatprep.subr.bf16.mxu0 %v2670
        %3999 = vmatpush1.bf16.msra.mxu0 %v2669
        %4000 = vmatprep.subr.bf16.mxu0 %v2674
        %4001 = vmatpush1.bf16.msra.mxu0 %v2673
        %4002 = vmatprep.subr.bf16.mxu0 %v2678
        %4003 = vmatpush1.bf16.msra.mxu0 %v2677
        %4004 = vmatprep.subr.bf16.mxu0 %v2682
        %4005 = vmatpush1.bf16.msra.mxu0 %v2681
        %4006 = vmatprep.subr.bf16.mxu0 %v2686
        %4007 = vmatpush1.bf16.msra.mxu0 %v2685
        %4008 = vmatprep.subr.bf16.mxu0 %v2690
        %4009 = vmatpush1.bf16.msra.mxu0 %v2689
        %4010 = vmatprep.subr.bf16.mxu0 %v2694
        %4011 = vmatpush1.bf16.msra.mxu0 %v2693
        %4012 = vmatprep.subr.bf16.mxu0 %v2698
        %4013 = vmatpush1.bf16.msra.mxu0 %v2697
        %4014 = vmatprep.mubr.bf16.mxu0 %v510
        %4015 = vmatmul.mubr.bf16.gmra.mrb[0].mxu0 %v509
        %v4016 = vpop.f32.mrb[0].mxu0
        %v4017 = vadd.f32 %v3974, %v4016
        %v4018 = vpop.f32.mrb[0].mxu0
        %v4019 = vadd.f32 %v3976, %v4018
        %v4020 = vpop.f32.mrb[0].mxu0
        %v4021 = vadd.f32 %v3978, %v4020
        %v4022 = vpop.f32.mrb[0].mxu0
        %v4023 = vadd.f32 %v3980, %v4022
        %4024 = vdwg.mxu0
        %4025 = vmatprep.subr.bf16.mxu0 %v2702
        %4026 = vmatpush1.bf16.msra.mxu0 %v2701
        %4027 = vmatprep.subr.bf16.mxu0 %v2706
        %4028 = vmatpush1.bf16.msra.mxu0 %v2705
        %4029 = vmatprep.subr.bf16.mxu0 %v2710
        %4030 = vmatpush1.bf16.msra.mxu0 %v2709
        %4031 = vmatprep.subr.bf16.mxu0 %v2714
        %4032 = vmatpush1.bf16.msra.mxu0 %v2713
        %4033 = vmatprep.subr.bf16.mxu0 %v2718
        %4034 = vmatpush1.bf16.msra.mxu0 %v2717
        %4035 = vmatprep.subr.bf16.mxu0 %v2722
        %4036 = vmatpush1.bf16.msra.mxu0 %v2721
        %4037 = vmatprep.subr.bf16.mxu0 %v2726
        %4038 = vmatpush1.bf16.msra.mxu0 %v2725
        %4039 = vmatprep.subr.bf16.mxu0 %v2730
        %4040 = vmatpush1.bf16.msra.mxu0 %v2729
        %4041 = vmatprep.subr.bf16.mxu0 %v2734
        %4042 = vmatpush1.bf16.msra.mxu0 %v2733
        %4043 = vmatprep.subr.bf16.mxu0 %v2738
        %4044 = vmatpush1.bf16.msra.mxu0 %v2737
        %4045 = vmatprep.subr.bf16.mxu0 %v2742
        %4046 = vmatpush1.bf16.msra.mxu0 %v2741
        %4047 = vmatprep.subr.bf16.mxu0 %v2746
        %4048 = vmatpush1.bf16.msra.mxu0 %v2745
        %4049 = vmatprep.subr.bf16.mxu0 %v2750
        %4050 = vmatpush1.bf16.msra.mxu0 %v2749
        %4051 = vmatprep.subr.bf16.mxu0 %v2754
        %4052 = vmatpush1.bf16.msra.mxu0 %v2753
        %4053 = vmatprep.subr.bf16.mxu0 %v2758
        %4054 = vmatpush1.bf16.msra.mxu0 %v2757
        %4055 = vmatprep.subr.bf16.mxu0 %v2762
        %4056 = vmatpush1.bf16.msra.mxu0 %v2761
        %4057 = vmatprep.mubr.bf16.mxu0 %v512
        %4058 = vmatmul.mubr.bf16.gmra.mrb[0].mxu0 %v511
        %v4059 = vpop.f32.mrb[0].mxu0
        %v4060 = vadd.f32 %v4017, %v4059
        %v4061 = vpop.f32.mrb[0].mxu0
        %v4062 = vadd.f32 %v4019, %v4061
        %v4063 = vpop.f32.mrb[0].mxu0
        %v4064 = vadd.f32 %v4021, %v4063
        %v4065 = vpop.f32.mrb[0].mxu0
        %v4066 = vadd.f32 %v4023, %v4065
        %4067 = vdwg.mxu0
        %4068 = vmatprep.subr.bf16.mxu0 %v2766
        %4069 = vmatpush1.bf16.msra.mxu0 %v2765
        %4070 = vmatprep.subr.bf16.mxu0 %v2770
        %4071 = vmatpush1.bf16.msra.mxu0 %v2769
        %4072 = vmatprep.subr.bf16.mxu0 %v2774
        %4073 = vmatpush1.bf16.msra.mxu0 %v2773
        %4074 = vmatprep.subr.bf16.mxu0 %v2778
        %4075 = vmatpush1.bf16.msra.mxu0 %v2777
        %4076 = vmatprep.subr.bf16.mxu0 %v2782
        %4077 = vmatpush1.bf16.msra.mxu0 %v2781
        %4078 = vmatprep.subr.bf16.mxu0 %v2786
        %4079 = vmatpush1.bf16.msra.mxu0 %v2785
        %4080 = vmatprep.subr.bf16.mxu0 %v2790
        %4081 = vmatpush1.bf16.msra.mxu0 %v2789
        %4082 = vmatprep.subr.bf16.mxu0 %v2794
        %4083 = vmatpush1.bf16.msra.mxu0 %v2793
        %4084 = vmatprep.subr.bf16.mxu0 %v2798
        %4085 = vmatpush1.bf16.msra.mxu0 %v2797
        %4086 = vmatprep.subr.bf16.mxu0 %v2802
        %4087 = vmatpush1.bf16.msra.mxu0 %v2801
        %4088 = vmatprep.subr.bf16.mxu0 %v2806
        %4089 = vmatpush1.bf16.msra.mxu0 %v2805
        %4090 = vmatprep.subr.bf16.mxu0 %v2810
        %4091 = vmatpush1.bf16.msra.mxu0 %v2809
        %4092 = vmatprep.subr.bf16.mxu0 %v2814
        %4093 = vmatpush1.bf16.msra.mxu0 %v2813
        %4094 = vmatprep.subr.bf16.mxu0 %v2818
        %4095 = vmatpush1.bf16.msra.mxu0 %v2817
        %4096 = vmatprep.subr.bf16.mxu0 %v2822
        %4097 = vmatpush1.bf16.msra.mxu0 %v2821
        %4098 = vmatprep.subr.bf16.mxu0 %v2826
        %4099 = vmatpush1.bf16.msra.mxu0 %v2825
        %4100 = vmatprep.mubr.bf16.mxu0 %v514
        %4101 = vmatmul.mubr.bf16.gmra.mrb[0].mxu0 %v513
        %v4102 = vpop.f32.mrb[0].mxu0
        %v4103 = vadd.f32 %v4060, %v4102
        %v4104 = vpop.f32.mrb[0].mxu0
        %v4105 = vadd.f32 %v4062, %v4104
        %v4106 = vpop.f32.mrb[0].mxu0
        %v4107 = vadd.f32 %v4064, %v4106
        %v4108 = vpop.f32.mrb[0].mxu0
        %v4109 = vadd.f32 %v4066, %v4108
        %4110 = vdwg.mxu0
        %4111 = vmatprep.subr.bf16.mxu0 %v2830
        %4112 = vmatpush1.bf16.msra.mxu0 %v2829
        %4113 = vmatprep.subr.bf16.mxu0 %v2834
        %4114 = vmatpush1.bf16.msra.mxu0 %v2833
        %4115 = vmatprep.subr.bf16.mxu0 %v2838
        %4116 = vmatpush1.bf16.msra.mxu0 %v2837
        %4117 = vmatprep.subr.bf16.mxu0 %v2842
        %4118 = vmatpush1.bf16.msra.mxu0 %v2841
        %4119 = vmatprep.subr.bf16.mxu0 %v2846
        %4120 = vmatpush1.bf16.msra.mxu0 %v2845
        %4121 = vmatprep.subr.bf16.mxu0 %v2850
        %4122 = vmatpush1.bf16.msra.mxu0 %v2849
        %4123 = vmatprep.subr.bf16.mxu0 %v2854
        %4124 = vmatpush1.bf16.msra.mxu0 %v2853
        %4125 = vmatprep.subr.bf16.mxu0 %v2858
        %4126 = vmatpush1.bf16.msra.mxu0 %v2857
        %4127 = vmatprep.subr.bf16.mxu0 %v2862
        %4128 = vmatpush1.bf16.msra.mxu0 %v2861
        %4129 = vmatprep.subr.bf16.mxu0 %v2866
        %4130 = vmatpush1.bf16.msra.mxu0 %v2865
        %4131 = vmatprep.subr.bf16.mxu0 %v2870
        %4132 = vmatpush1.bf16.msra.mxu0 %v2869
        %4133 = vmatprep.subr.bf16.mxu0 %v2874
        %4134 = vmatpush1.bf16.msra.mxu0 %v2873
        %4135 = vmatprep.subr.bf16.mxu0 %v2878
        %4136 = vmatpush1.bf16.msra.mxu0 %v2877
        %4137 = vmatprep.subr.bf16.mxu0 %v2882
        %4138 = vmatpush1.bf16.msra.mxu0 %v2881
        %4139 = vmatprep.subr.bf16.mxu0 %v2886
        %4140 = vmatpush1.bf16.msra.mxu0 %v2885
        %4141 = vmatprep.subr.bf16.mxu0 %v2890
        %4142 = vmatpush1.bf16.msra.mxu0 %v2889
        %4143 = vmatprep.mubr.bf16.mxu0 %v516
        %4144 = vmatmul.mubr.bf16.gmra.mrb[0].mxu0 %v515
        %v4145 = vpop.f32.mrb[0].mxu0
        %v4146 = vadd.f32 %v4103, %v4145
        %v4147 = vpop.f32.mrb[0].mxu0
        %v4148 = vadd.f32 %v4105, %v4147
        %v4149 = vpop.f32.mrb[0].mxu0
        %v4150 = vadd.f32 %v4107, %v4149
        %v4151 = vpop.f32.mrb[0].mxu0
        %v4152 = vadd.f32 %v4109, %v4151
        %4153 = vdwg.mxu0
        %4154 = vmatprep.subr.bf16.mxu0 %v2894
        %4155 = vmatpush1.bf16.msra.mxu0 %v2893
        %4156 = vmatprep.subr.bf16.mxu0 %v2898
        %4157 = vmatpush1.bf16.msra.mxu0 %v2897
        %4158 = vmatprep.subr.bf16.mxu0 %v2902
        %4159 = vmatpush1.bf16.msra.mxu0 %v2901
        %4160 = vmatprep.subr.bf16.mxu0 %v2906
        %4161 = vmatpush1.bf16.msra.mxu0 %v2905
        %4162 = vmatprep.subr.bf16.mxu0 %v2910
        %4163 = vmatpush1.bf16.msra.mxu0 %v2909
        %4164 = vmatprep.subr.bf16.mxu0 %v2914
        %4165 = vmatpush1.bf16.msra.mxu0 %v2913
        %4166 = vmatprep.subr.bf16.mxu0 %v2918
        %4167 = vmatpush1.bf16.msra.mxu0 %v2917
        %4168 = vmatprep.subr.bf16.mxu0 %v2922
        %4169 = vmatpush1.bf16.msra.mxu0 %v2921
        %4170 = vmatprep.subr.bf16.mxu0 %v2926
        %4171 = vmatpush1.bf16.msra.mxu0 %v2925
        %4172 = vmatprep.subr.bf16.mxu0 %v2930
        %4173 = vmatpush1.bf16.msra.mxu0 %v2929
        %4174 = vmatprep.subr.bf16.mxu0 %v2934
        %4175 = vmatpush1.bf16.msra.mxu0 %v2933
        %4176 = vmatprep.subr.bf16.mxu0 %v2938
        %4177 = vmatpush1.bf16.msra.mxu0 %v2937
        %4178 = vmatprep.subr.bf16.mxu0 %v2942
        %4179 = vmatpush1.bf16.msra.mxu0 %v2941
        %4180 = vmatprep.subr.bf16.mxu0 %v2946
        %4181 = vmatpush1.bf16.msra.mxu0 %v2945
        %4182 = vmatprep.subr.bf16.mxu0 %v2950
        %4183 = vmatpush1.bf16.msra.mxu0 %v2949
        %4184 = vmatprep.subr.bf16.mxu0 %v2954
        %4185 = vmatpush1.bf16.msra.mxu0 %v2953
        %4186 = vmatprep.mubr.bf16.mxu0 %v518
        %4187 = vmatmul.mubr.bf16.gmra.mrb[0].mxu0 %v517
        %v4188 = vpop.f32.mrb[0].mxu0
        %v4189 = vadd.f32 %v4146, %v4188
        %v4190 = vpop.f32.mrb[0].mxu0
        %v4191 = vadd.f32 %v4148, %v4190
        %v4192 = vpop.f32.mrb[0].mxu0
        %v4193 = vadd.f32 %v4150, %v4192
        %v4194 = vpop.f32.mrb[0].mxu0
        %v4195 = vadd.f32 %v4152, %v4194
        %4196 = vdwg.mxu0
        %4197 = vmatprep.subr.bf16.mxu0 %v2958
        %4198 = vmatpush1.bf16.msra.mxu0 %v2957
        %4199 = vmatprep.subr.bf16.mxu0 %v2962
        %4200 = vmatpush1.bf16.msra.mxu0 %v2961
        %4201 = vmatprep.subr.bf16.mxu0 %v2966
        %4202 = vmatpush1.bf16.msra.mxu0 %v2965
        %4203 = vmatprep.subr.bf16.mxu0 %v2970
        %4204 = vmatpush1.bf16.msra.mxu0 %v2969
        %4205 = vmatprep.subr.bf16.mxu0 %v2974
        %4206 = vmatpush1.bf16.msra.mxu0 %v2973
        %4207 = vmatprep.subr.bf16.mxu0 %v2978
        %4208 = vmatpush1.bf16.msra.mxu0 %v2977
        %4209 = vmatprep.subr.bf16.mxu0 %v2982
        %4210 = vmatpush1.bf16.msra.mxu0 %v2981
        %4211 = vmatprep.subr.bf16.mxu0 %v2986
        %4212 = vmatpush1.bf16.msra.mxu0 %v2985
        %4213 = vmatprep.subr.bf16.mxu0 %v2990
        %4214 = vmatpush1.bf16.msra.mxu0 %v2989
        %4215 = vmatprep.subr.bf16.mxu0 %v2994
        %4216 = vmatpush1.bf16.msra.mxu0 %v2993
        %4217 = vmatprep.subr.bf16.mxu0 %v2998
        %4218 = vmatpush1.bf16.msra.mxu0 %v2997
        %4219 = vmatprep.subr.bf16.mxu0 %v3002
        %4220 = vmatpush1.bf16.msra.mxu0 %v3001
        %4221 = vmatprep.subr.bf16.mxu0 %v3006
        %4222 = vmatpush1.bf16.msra.mxu0 %v3005
        %4223 = vmatprep.subr.bf16.mxu0 %v3010
        %4224 = vmatpush1.bf16.msra.mxu0 %v3009
        %4225 = vmatprep.subr.bf16.mxu0 %v3014
        %4226 = vmatpush1.bf16.msra.mxu0 %v3013
        %4227 = vmatprep.subr.bf16.mxu0 %v3018
        %4228 = vmatpush1.bf16.msra.mxu0 %v3017
        %4229 = vmatprep.mubr.bf16.mxu0 %v520
        %4230 = vmatmul.mubr.bf16.gmra.mrb[0].mxu0 %v519
        %v4231 = vpop.f32.mrb[0].mxu0
        %v4232 = vadd.f32 %v4189, %v4231
        %v4233 = vpop.f32.mrb[0].mxu0
        %v4234 = vadd.f32 %v4191, %v4233
        %v4235 = vpop.f32.mrb[0].mxu0
        %v4236 = vadd.f32 %v4193, %v4235
        %v4237 = vpop.f32.mrb[0].mxu0
        %v4238 = vadd.f32 %v4195, %v4237
        %4239 = vdwg.mxu0
        %4240 = vmatprep.subr.bf16.mxu0 %v3022
        %4241 = vmatpush1.bf16.msra.mxu0 %v3021
        %4242 = vmatprep.subr.bf16.mxu0 %v3026
        %4243 = vmatpush1.bf16.msra.mxu0 %v3025
        %4244 = vmatprep.subr.bf16.mxu0 %v3030
        %4245 = vmatpush1.bf16.msra.mxu0 %v3029
        %4246 = vmatprep.subr.bf16.mxu0 %v3034
        %4247 = vmatpush1.bf16.msra.mxu0 %v3033
        %4248 = vmatprep.subr.bf16.mxu0 %v3038
        %4249 = vmatpush1.bf16.msra.mxu0 %v3037
        %4250 = vmatprep.subr.bf16.mxu0 %v3042
        %4251 = vmatpush1.bf16.msra.mxu0 %v3041
        %4252 = vmatprep.subr.bf16.mxu0 %v3046
        %4253 = vmatpush1.bf16.msra.mxu0 %v3045
        %4254 = vmatprep.subr.bf16.mxu0 %v3050
        %4255 = vmatpush1.bf16.msra.mxu0 %v3049
        %4256 = vmatprep.subr.bf16.mxu0 %v3054
        %4257 = vmatpush1.bf16.msra.mxu0 %v3053
        %4258 = vmatprep.subr.bf16.mxu0 %v3058
        %4259 = vmatpush1.bf16.msra.mxu0 %v3057
        %4260 = vmatprep.subr.bf16.mxu0 %v3062
        %4261 = vmatpush1.bf16.msra.mxu0 %v3061
        %4262 = vmatprep.subr.bf16.mxu0 %v3066
        %4263 = vmatpush1.bf16.msra.mxu0 %v3065
        %4264 = vmatprep.subr.bf16.mxu0 %v3070
        %4265 = vmatpush1.bf16.msra.mxu0 %v3069
        %4266 = vmatprep.subr.bf16.mxu0 %v3074
        %4267 = vmatpush1.bf16.msra.mxu0 %v3073
        %4268 = vmatprep.subr.bf16.mxu0 %v3078
        %4269 = vmatpush1.bf16.msra.mxu0 %v3077
        %4270 = vmatprep.subr.bf16.mxu0 %v3082
        %4271 = vmatpush1.bf16.msra.mxu0 %v3081
        %4272 = vmatprep.mubr.bf16.mxu0 %v522
        %4273 = vmatmul.mubr.bf16.gmra.mrb[0].mxu0 %v521
        %v4274 = vpop.f32.mrb[0].mxu0
        %v4275 = vadd.f32 %v4232, %v4274
        %v4276 = vpop.f32.mrb[0].mxu0
        %v4277 = vadd.f32 %v4234, %v4276
        %v4278 = vpop.f32.mrb[0].mxu0
        %v4279 = vadd.f32 %v4236, %v4278
        %v4280 = vpop.f32.mrb[0].mxu0
        %v4281 = vadd.f32 %v4238, %v4280
        %4282 = vdwg.mxu0
        %v4283 = vadd.f32 %v467, %v3931
        %v4284 = vadd.f32 %v468, %v3933
        %v4285 = vadd.f32 %v469, %v4275
        %v4286 = vadd.f32 %v470, %v4277
        %v4287 = vadd.f32 %v471, %v3935
        %v4288 = vadd.f32 %v472, %v3937
        %v4289 = vadd.f32 %v473, %v4279
        %v4290 = vadd.f32 %v474, %v4281
        %4291 = vst [vmem:[#allocation2] sm:$0xff] %v4283
        %4292 = vst [vmem:[#allocation2 + $0x8] sm:$0xff] %v4284
        %4293 = vst [vmem:[#allocation2 + $0x10] sm:$0xff] %v4285
        %4294 = vst [vmem:[#allocation2 + $0x18] sm:$0xff] %v4286
        %4295 = vst [vmem:[#allocation2 + $0x20] sm:$0xff] %v4287
        %4296 = vst [vmem:[#allocation2 + $0x28] sm:$0xff] %v4288
        %4297 = vst [vmem:[#allocation2 + $0x30] sm:$0xff] %v4289
        %4298 = vst [vmem:[#allocation2 + $0x38] sm:$0xff] %v4290
        %p4299 = scmp.eq.s32.totalorder %s22, 1
        // Predicated region
        $region88: #{bert_sentence_encoder_lstm.1} parent=78 // pred_check
          %p4300 = pneg %p4299
        $region89: #{bert_sentence_encoder_lstm.1} parent=78 // pred_check_branch
          %4302 = sbr.rel (%p4300) target = $region91
        $region90: #{bert_sentence_encoder_lstm.1} parent=78 // pred_region
          %v4303 = vld [vmem:[#allocation2] sm:$0xff]
          %v4304 = vld [vmem:[#allocation2 + $0x8] sm:$0xff]
          %v4305 = vld [vmem:[#allocation2 + $0x10] sm:$0xff]
          %v4306 = vld [vmem:[#allocation2 + $0x18] sm:$0xff]
          %v4307 = vld [vmem:[#allocation2 + $0x20] sm:$0xff]
          %v4308 = vld [vmem:[#allocation2 + $0x28] sm:$0xff]
          %v4309 = vld [vmem:[#allocation2 + $0x30] sm:$0xff]
          %v4310 = vld [vmem:[#allocation2 + $0x38] sm:$0xff]
          %v4311 = vld [vmem:[%s2] sm:$0xf]
          %v4313 = vlaneseq
          %v4314 = vshrl.u32 %v4313, 7
          %v4315 = vsub.s32 0, %v4314
          %v4316 = vrot.slane %v4311, %v4315
          %v4317 = vlaneseq
          %v4318 = vshrl.u32 %v4317, 7
          %v4319 = vsub.s32 1, %v4318
          %v4320 = vrot.slane %v4311, %v4319
          %v4321 = vlaneseq
          %v4322 = vshrl.u32 %v4321, 7
          %v4323 = vsub.s32 2, %v4322
          %v4324 = vrot.slane %v4311, %v4323
          %v4325 = vlaneseq
          %v4326 = vshrl.u32 %v4325, 7
          %v4327 = vsub.s32 3, %v4326
          %v4328 = vrot.slane %v4311, %v4327
          %v4333 = vadd.f32 %v4303, %v4316
          %v4334 = vadd.f32 %v4304, %v4320
          %v4335 = vadd.f32 %v4305, %v4324
          %v4336 = vadd.f32 %v4306, %v4328
          %v4337 = vadd.f32 %v4307, %v4316
          %v4338 = vadd.f32 %v4308, %v4320
          %v4339 = vadd.f32 %v4309, %v4324
          %v4340 = vadd.f32 %v4310, %v4328
          %v4349 = vcombine.low %v4333, %v4334
          %v4350 = vcombine.high %v4333, %v4334
          %v4351 = vcombine.low %v4335, %v4336
          %v4352 = vcombine.high %v4335, %v4336
          %v4354 = vunpack.c.l.s4 1983009808
          %v4355 = vunpack.c.0.s8 %v4354
          %v4356 = vlaneseq
          %v4357 = vshrl.u32 %v4356, 7
          %v4358 = vsub.s32 %v4355, %v4357
          %v4359 = vrot.slane %v4349, %v4358
          %v4361 = vunpack.c.l.s4 1983009808
          %v4362 = vunpack.c.0.s8 %v4361
          %v4363 = vlaneseq
          %v4364 = vshrl.u32 %v4363, 7
          %v4365 = vsub.s32 %v4362, %v4364
          %v4366 = vrot.slane %v4350, %v4365
          %v4368 = vunpack.c.l.s4 1983009808
          %v4369 = vunpack.c.0.s8 %v4368
          %v4370 = vlaneseq
          %v4371 = vshrl.u32 %v4370, 7
          %v4372 = vsub.s32 %v4369, %v4371
          %v4373 = vrot.slane %v4351, %v4372
          %v4375 = vunpack.c.l.s4 1983009808
          %v4376 = vunpack.c.0.s8 %v4375
          %v4377 = vlaneseq
          %v4378 = vshrl.u32 %v4377, 7
          %v4379 = vsub.s32 %v4376, %v4378
          %v4380 = vrot.slane %v4352, %v4379
          %v4381 = vcombine.low %v4359, %v4373
          %v4382 = vcombine.high %v4359, %v4373
          %v4383 = vcombine.low %v4366, %v4380
          %v4384 = vcombine.high %v4366, %v4380
          %v4385 = vcombine.low %v4337, %v4338
          %v4386 = vcombine.high %v4337, %v4338
          %v4387 = vcombine.low %v4339, %v4340
          %v4388 = vcombine.high %v4339, %v4340
          %v4390 = vunpack.c.l.s4 1983009808
          %v4391 = vunpack.c.0.s8 %v4390
          %v4392 = vlaneseq
          %v4393 = vshrl.u32 %v4392, 7
          %v4394 = vsub.s32 %v4391, %v4393
          %v4395 = vrot.slane %v4385, %v4394
          %v4397 = vunpack.c.l.s4 1983009808
          %v4398 = vunpack.c.0.s8 %v4397
          %v4399 = vlaneseq
          %v4400 = vshrl.u32 %v4399, 7
          %v4401 = vsub.s32 %v4398, %v4400
          %v4402 = vrot.slane %v4386, %v4401
          %v4404 = vunpack.c.l.s4 1983009808
          %v4405 = vunpack.c.0.s8 %v4404
          %v4406 = vlaneseq
          %v4407 = vshrl.u32 %v4406, 7
          %v4408 = vsub.s32 %v4405, %v4407
          %v4409 = vrot.slane %v4387, %v4408
          %v4411 = vunpack.c.l.s4 1983009808
          %v4412 = vunpack.c.0.s8 %v4411
          %v4413 = vlaneseq
          %v4414 = vshrl.u32 %v4413, 7
          %v4415 = vsub.s32 %v4412, %v4414
          %v4416 = vrot.slane %v4388, %v4415
          %v4417 = vcombine.low %v4395, %v4409
          %v4418 = vcombine.high %v4395, %v4409
          %v4419 = vcombine.low %v4402, %v4416
          %v4420 = vcombine.high %v4402, %v4416
          %4429 = vst [vmem:[#allocation3] sm:$0xff] %v4381
          %4430 = vst [vmem:[#allocation3 + $0x8] sm:$0xff] %v4382
          %4431 = vst [vmem:[#allocation3 + $0x10] sm:$0xff] %v4383
          %4432 = vst [vmem:[#allocation3 + $0x18] sm:$0xff] %v4384
          %4433 = vst [vmem:[#allocation3 + $0x20] sm:$0xff] %v4417
          %4434 = vst [vmem:[#allocation3 + $0x28] sm:$0xff] %v4418
          %4435 = vst [vmem:[#allocation3 + $0x30] sm:$0xff] %v4419
          %4436 = vst [vmem:[#allocation3 + $0x38] sm:$0xff] %v4420
          %v4437 = vld [vmem:[%s3] sm:$0x3]
          %vm4438 = vcmp.gt.s32.totalorder %v4437, 0
          %v4439 = vsel %vm4438, 1, 0
          %4440 = vset.pattern.permute.xlu0 0
          %4441 = vperm.xlu0 %4440, %v4439
          %v4442 = vpop.permute.xlu0 %4441
          %vm4443 = vcmp.eq.s32.totalorder %v4442, 1
          %v4444 = vld [vmem:[#allocation3] sm:$0xff]
          %v4445 = vld [vmem:[%s4] sm:$0xff]
          %v4446 = vld [vmem:[%s4 + $0x8] sm:$0xff]
          %v4447 = vld [vmem:[%s4 + $0x10] sm:$0xff]
          %v4448 = vld [vmem:[%s4 + $0x18] sm:$0xff]
          %v4449 = vld [vmem:[%s4 + $0x20] sm:$0xff]
          %v4450 = vld [vmem:[%s4 + $0x28] sm:$0xff]
          %v4451 = vld [vmem:[%s4 + $0x30] sm:$0xff]
          %v4452 = vld [vmem:[%s4 + $0x38] sm:$0xff]
          %v4453 = vld [vmem:[%s4 + $0x40] sm:$0xff]
          %v4454 = vld [vmem:[%s4 + $0x48] sm:$0xff]
          %v4455 = vld [vmem:[%s4 + $0x50] sm:$0xff]
          %v4456 = vld [vmem:[%s4 + $0x58] sm:$0xff]
          %v4457 = vld [vmem:[%s4 + $0x60] sm:$0xff]
          %v4458 = vld [vmem:[%s4 + $0x68] sm:$0xff]
          %v4459 = vld [vmem:[%s4 + $0x70] sm:$0xff]
          %v4460 = vld [vmem:[%s4 + $0x78] sm:$0xff]
          %v4461 = vld [vmem:[%s4 + $0x80] sm:$0xff]
          %v4462 = vld [vmem:[%s4 + $0x88] sm:$0xff]
          %v4463 = vld [vmem:[%s4 + $0x90] sm:$0xff]
          %v4464 = vld [vmem:[%s4 + $0x98] sm:$0xff]
          %v4465 = vld [vmem:[%s4 + $0xa0] sm:$0xff]
          %v4466 = vld [vmem:[%s4 + $0xa8] sm:$0xff]
          %v4467 = vld [vmem:[%s4 + $0xb0] sm:$0xff]
          %v4468 = vld [vmem:[%s4 + $0xb8] sm:$0xff]
          %v4469 = vld [vmem:[%s4 + $0xc0] sm:$0xff]
          %v4470 = vld [vmem:[%s4 + $0xc8] sm:$0xff]
          %v4471 = vld [vmem:[%s4 + $0xd0] sm:$0xff]
          %v4472 = vld [vmem:[%s4 + $0xd8] sm:$0xff]
          %v4473 = vld [vmem:[%s4 + $0xe0] sm:$0xff]
          %v4474 = vld [vmem:[%s4 + $0xe8] sm:$0xff]
          %v4475 = vld [vmem:[%s4 + $0xf0] sm:$0xff]
          %v4476 = vld [vmem:[%s4 + $0xf8] sm:$0xff]
          %v4509 = vunpack.c.l.b16 %v4445
          %v4510 = vunpack.c.h.b16 %v4445
          %v4511 = vunpack.c.l.b16 %v4446
          %v4512 = vunpack.c.h.b16 %v4446
          %v4513 = vunpack.c.l.b16 %v4447
          %v4514 = vunpack.c.h.b16 %v4447
          %v4515 = vunpack.c.l.b16 %v4448
          %v4516 = vunpack.c.h.b16 %v4448
          %v4517 = vunpack.c.l.b16 %v4449
          %v4518 = vunpack.c.h.b16 %v4449
          %v4519 = vunpack.c.l.b16 %v4450
          %v4520 = vunpack.c.h.b16 %v4450
          %v4521 = vunpack.c.l.b16 %v4451
          %v4522 = vunpack.c.h.b16 %v4451
          %v4523 = vunpack.c.l.b16 %v4452
          %v4524 = vunpack.c.h.b16 %v4452
          %v4525 = vunpack.c.l.b16 %v4453
          %v4526 = vunpack.c.h.b16 %v4453
          %v4527 = vunpack.c.l.b16 %v4454
          %v4528 = vunpack.c.h.b16 %v4454
          %v4529 = vunpack.c.l.b16 %v4455
          %v4530 = vunpack.c.h.b16 %v4455
          %v4531 = vunpack.c.l.b16 %v4456
          %v4532 = vunpack.c.h.b16 %v4456
          %v4533 = vunpack.c.l.b16 %v4457
          %v4534 = vunpack.c.h.b16 %v4457
          %v4535 = vunpack.c.l.b16 %v4458
          %v4536 = vunpack.c.h.b16 %v4458
          %v4537 = vunpack.c.l.b16 %v4459
          %v4538 = vunpack.c.h.b16 %v4459
          %v4539 = vunpack.c.l.b16 %v4460
          %v4540 = vunpack.c.h.b16 %v4460
          %v4541 = vunpack.c.l.b16 %v4461
          %v4542 = vunpack.c.h.b16 %v4461
          %v4543 = vunpack.c.l.b16 %v4462
          %v4544 = vunpack.c.h.b16 %v4462
          %v4545 = vunpack.c.l.b16 %v4463
          %v4546 = vunpack.c.h.b16 %v4463
          %v4547 = vunpack.c.l.b16 %v4464
          %v4548 = vunpack.c.h.b16 %v4464
          %v4549 = vunpack.c.l.b16 %v4465
          %v4550 = vunpack.c.h.b16 %v4465
          %v4551 = vunpack.c.l.b16 %v4466
          %v4552 = vunpack.c.h.b16 %v4466
          %v4553 = vunpack.c.l.b16 %v4467
          %v4554 = vunpack.c.h.b16 %v4467
          %v4555 = vunpack.c.l.b16 %v4468
          %v4556 = vunpack.c.h.b16 %v4468
          %v4557 = vunpack.c.l.b16 %v4469
          %v4558 = vunpack.c.h.b16 %v4469
          %v4559 = vunpack.c.l.b16 %v4470
          %v4560 = vunpack.c.h.b16 %v4470
          %v4561 = vunpack.c.l.b16 %v4471
          %v4562 = vunpack.c.h.b16 %v4471
          %v4563 = vunpack.c.l.b16 %v4472
          %v4564 = vunpack.c.h.b16 %v4472
          %v4565 = vunpack.c.l.b16 %v4473
          %v4566 = vunpack.c.h.b16 %v4473
          %v4567 = vunpack.c.l.b16 %v4474
          %v4568 = vunpack.c.h.b16 %v4474
          %v4569 = vunpack.c.l.b16 %v4475
          %v4570 = vunpack.c.h.b16 %v4475
          %v4571 = vunpack.c.l.b16 %v4476
          %v4572 = vunpack.c.h.b16 %v4476
          %v4573 = vpack.c.b16 %v4513, %v4509
          %v4574 = vpack.c.b16 %v4514, %v4510
          %v4575 = vpack.c.b16 %v4515, %v4511
          %v4576 = vpack.c.b16 %v4516, %v4512
          %v4577 = vpack.c.b16 %v4521, %v4517
          %v4578 = vpack.c.b16 %v4522, %v4518
          %v4579 = vpack.c.b16 %v4523, %v4519
          %v4580 = vpack.c.b16 %v4524, %v4520
          %v4581 = vpack.c.b16 %v4529, %v4525
          %v4582 = vpack.c.b16 %v4530, %v4526
          %v4583 = vpack.c.b16 %v4531, %v4527
          %v4584 = vpack.c.b16 %v4532, %v4528
          %v4585 = vpack.c.b16 %v4537, %v4533
          %v4586 = vpack.c.b16 %v4538, %v4534
          %v4587 = vpack.c.b16 %v4539, %v4535
          %v4588 = vpack.c.b16 %v4540, %v4536
          %v4589 = vpack.c.b16 %v4545, %v4541
          %v4590 = vpack.c.b16 %v4546, %v4542
          %v4591 = vpack.c.b16 %v4547, %v4543
          %v4592 = vpack.c.b16 %v4548, %v4544
          %v4593 = vpack.c.b16 %v4553, %v4549
          %v4594 = vpack.c.b16 %v4554, %v4550
          %v4595 = vpack.c.b16 %v4555, %v4551
          %v4596 = vpack.c.b16 %v4556, %v4552
          %v4597 = vpack.c.b16 %v4561, %v4557
          %v4598 = vpack.c.b16 %v4562, %v4558
          %v4599 = vpack.c.b16 %v4563, %v4559
          %v4600 = vpack.c.b16 %v4564, %v4560
          %v4601 = vpack.c.b16 %v4569, %v4565
          %v4602 = vpack.c.b16 %v4570, %v4566
          %v4603 = vpack.c.b16 %v4571, %v4567
          %v4604 = vpack.c.b16 %v4572, %v4568
          %4637 = vmatprep.subr.bf16.mxu0 %v4574
          %4638 = vmatpush1.bf16.msra.mxu0 %v4573
          %4639 = vmatprep.subr.bf16.mxu0 %v4578
          %4640 = vmatpush1.bf16.msra.mxu0 %v4577
          %4641 = vmatprep.subr.bf16.mxu0 %v4582
          %4642 = vmatpush1.bf16.msra.mxu0 %v4581
          %4643 = vmatprep.subr.bf16.mxu0 %v4586
          %4644 = vmatpush1.bf16.msra.mxu0 %v4585
          %4645 = vmatprep.subr.bf16.mxu0 %v4590
          %4646 = vmatpush1.bf16.msra.mxu0 %v4589
          %4647 = vmatprep.subr.bf16.mxu0 %v4594
          %4648 = vmatpush1.bf16.msra.mxu0 %v4593
          %4649 = vmatprep.subr.bf16.mxu0 %v4598
          %4650 = vmatpush1.bf16.msra.mxu0 %v4597
          %4651 = vmatprep.subr.bf16.mxu0 %v4602
          %4652 = vmatpush1.bf16.msra.mxu0 %v4601
          %4653 = vmatprep.subr.bf16.mxu0 0
          %4654 = vmatpush1.bf16.msra.mxu0 0
          %4655 = vmatprep.subr.bf16.mxu0 0
          %4656 = vmatpush1.bf16.msra.mxu0 0
          %4657 = vmatprep.subr.bf16.mxu0 0
          %4658 = vmatpush1.bf16.msra.mxu0 0
          %4659 = vmatprep.subr.bf16.mxu0 0
          %4660 = vmatpush1.bf16.msra.mxu0 0
          %4661 = vmatprep.subr.bf16.mxu0 0
          %4662 = vmatpush1.bf16.msra.mxu0 0
          %4663 = vmatprep.subr.bf16.mxu0 0
          %4664 = vmatpush1.bf16.msra.mxu0 0
          %4665 = vmatprep.subr.bf16.mxu0 0
          %4666 = vmatpush1.bf16.msra.mxu0 0
          %4667 = vmatprep.subr.bf16.mxu0 0
          %4668 = vmatpush1.bf16.msra.mxu0 0
          %4669 = vmatprep.mubr.bf16.mxu0 0
          %4670 = vmatmul.mubr.bf16.gmra.mrb[0].mxu0 0
          %v4671 = vpop.f32.mrb[0].mxu0
          %v4672 = vadd.f32 0.0, %v4671
          %v4673 = vpop.f32.mrb[0].mxu0
          %v4674 = vadd.f32 0.0, %v4673
          %v4675 = vpop.f32.mrb[0].mxu0
          %v4676 = vpop.f32.mrb[0].mxu0
          %4677 = vdwg.mxu0
          %4678 = vmatprep.subr.bf16.mxu0 %v4576
          %4679 = vmatpush1.bf16.msra.mxu0 %v4575
          %4680 = vmatprep.subr.bf16.mxu0 %v4580
          %4681 = vmatpush1.bf16.msra.mxu0 %v4579
          %4682 = vmatprep.subr.bf16.mxu0 %v4584
          %4683 = vmatpush1.bf16.msra.mxu0 %v4583
          %4684 = vmatprep.subr.bf16.mxu0 %v4588
          %4685 = vmatpush1.bf16.msra.mxu0 %v4587
          %4686 = vmatprep.subr.bf16.mxu0 %v4592
          %4687 = vmatpush1.bf16.msra.mxu0 %v4591
          %4688 = vmatprep.subr.bf16.mxu0 %v4596
          %4689 = vmatpush1.bf16.msra.mxu0 %v4595
          %4690 = vmatprep.subr.bf16.mxu0 %v4600
          %4691 = vmatpush1.bf16.msra.mxu0 %v4599
          %4692 = vmatprep.subr.bf16.mxu0 %v4604
          %4693 = vmatpush1.bf16.msra.mxu0 %v4603
          %4694 = vmatprep.subr.bf16.mxu0 0
          %4695 = vmatpush1.bf16.msra.mxu0 0
          %4696 = vmatprep.subr.bf16.mxu0 0
          %4697 = vmatpush1.bf16.msra.mxu0 0
          %4698 = vmatprep.subr.bf16.mxu0 0
          %4699 = vmatpush1.bf16.msra.mxu0 0
          %4700 = vmatprep.subr.bf16.mxu0 0
          %4701 = vmatpush1.bf16.msra.mxu0 0
          %4702 = vmatprep.subr.bf16.mxu0 0
          %4703 = vmatpush1.bf16.msra.mxu0 0
          %4704 = vmatprep.subr.bf16.mxu0 0
          %4705 = vmatpush1.bf16.msra.mxu0 0
          %4706 = vmatprep.subr.bf16.mxu0 0
          %4707 = vmatpush1.bf16.msra.mxu0 0
          %4708 = vmatprep.subr.bf16.mxu0 0
          %4709 = vmatpush1.bf16.msra.mxu0 0
          %4710 = vmatprep.mubr.bf16.mxu0 0
          %4711 = vmatmul.mubr.bf16.gmra.mrb[0].mxu0 0
          %v4712 = vpop.f32.mrb[0].mxu0
          %v4713 = vadd.f32 0.0, %v4712
          %v4714 = vpop.f32.mrb[0].mxu0
          %v4715 = vadd.f32 0.0, %v4714
          %v4716 = vpop.f32.mrb[0].mxu0
          %v4717 = vpop.f32.mrb[0].mxu0
          %4718 = vdwg.mxu0
          %v4723 = vcombine.low %v4672, %v4674
          %v4724 = vcombine.low %v4713, %v4715
          %v4726 = vunpack.c.l.s4 1983009808
          %v4727 = vunpack.c.0.s8 %v4726
          %v4728 = vlaneseq
          %v4729 = vshrl.u32 %v4728, 7
          %v4730 = vsub.s32 %v4727, %v4729
          %v4731 = vrot.slane %v4723, %v4730
          %v4733 = vunpack.c.l.s4 1983009808
          %v4734 = vunpack.c.0.s8 %v4733
          %v4735 = vlaneseq
          %v4736 = vshrl.u32 %v4735, 7
          %v4737 = vsub.s32 %v4734, %v4736
          %v4738 = vrot.slane %v4724, %v4737
          %v4739 = vcombine.low %v4731, %v4738
          %v4741 = vadd.f32 %v4444, %v4739
          %v4742 = vxor.u32 %v4741, 2147483648
          %v4743 = vmul.f32 %v4742, 1.442695
          %v4744 = vpow.pop %v4743
          %v4745 = vadd.f32 %v4744, 1.0
          %v4746 = vrcp.pop %v4745
          %v4747 = vmul.f32 1.0, %v4746
          %v4749 = vrot.slane %v4741, 2
          %v4751 = vxor.u32 %v4749, 2147483648
          %v4752 = vmul.f32 %v4751, 1.442695
          %v4753 = vpow.pop %v4752
          %v4754 = vadd.f32 %v4753, 1.0
          %v4755 = vrcp.pop %v4754
          %v4756 = vmul.f32 1.0, %v4755
          %v4757 = vrot.slane %v4741, 4
          %v4759 = vtanh.pop %v4757
          %v4760 = vrot.slane %v4741, 6
          %v4762 = vxor.u32 %v4760, 2147483648
          %v4763 = vmul.f32 %v4762, 1.442695
          %v4764 = vpow.pop %v4763
          %v4765 = vadd.f32 %v4764, 1.0
          %v4766 = vrcp.pop %v4765
          %v4767 = vmul.f32 1.0, %v4766
          %v4768 = vmul.f32 %v4756, 0.0
          %v4769 = vmul.f32 %v4747, %v4759
          %v4770 = vadd.f32 %v4768, %v4769
          %v4771 = vtanh.pop %v4770
          %v4772 = vmul.f32 %v4767, %v4771
          %v4773 = vsel %vm4443, %v4772, 0.0
          %v4774 = vsel %vm4443, %v4770, 0.0
          %v4775 = vpack.c.bf16 %v4773, %v4773
          %v4776 = vld [vmem:[%s5] sm:$0xff]
          %v4777 = vld [vmem:[%s5 + $0x8] sm:$0xff]
          %v4778 = vld [vmem:[%s5 + $0x10] sm:$0xff]
          %v4779 = vld [vmem:[%s5 + $0x18] sm:$0xff]
          %v4780 = vld [vmem:[%s5 + $0x20] sm:$0xff]
          %v4781 = vld [vmem:[%s5 + $0x28] sm:$0xff]
          %v4782 = vld [vmem:[%s5 + $0x30] sm:$0xff]
          %v4783 = vld [vmem:[%s5 + $0x38] sm:$0xff]
          %v4784 = vld [vmem:[%s5 + $0x40] sm:$0xff]
          %v4785 = vld [vmem:[%s5 + $0x48] sm:$0xff]
          %v4786 = vld [vmem:[%s5 + $0x50] sm:$0xff]
          %v4787 = vld [vmem:[%s5 + $0x58] sm:$0xff]
          %v4788 = vld [vmem:[%s5 + $0x60] sm:$0xff]
          %v4789 = vld [vmem:[%s5 + $0x68] sm:$0xff]
          %v4790 = vld [vmem:[%s5 + $0x70] sm:$0xff]
          %v4791 = vld [vmem:[%s5 + $0x78] sm:$0xff]
          %v4792 = vld [vmem:[%s5 + $0x80] sm:$0xff]
          %v4793 = vld [vmem:[%s5 + $0x88] sm:$0xff]
          %v4794 = vld [vmem:[%s5 + $0x90] sm:$0xff]
          %v4795 = vld [vmem:[%s5 + $0x98] sm:$0xff]
          %v4796 = vld [vmem:[%s5 + $0xa0] sm:$0xff]
          %v4797 = vld [vmem:[%s5 + $0xa8] sm:$0xff]
          %v4798 = vld [vmem:[%s5 + $0xb0] sm:$0xff]
          %v4799 = vld [vmem:[%s5 + $0xb8] sm:$0xff]
          %v4800 = vld [vmem:[%s5 + $0xc0] sm:$0xff]
          %v4801 = vld [vmem:[%s5 + $0xc8] sm:$0xff]
          %v4802 = vld [vmem:[%s5 + $0xd0] sm:$0xff]
          %v4803 = vld [vmem:[%s5 + $0xd8] sm:$0xff]
          %v4804 = vld [vmem:[%s5 + $0xe0] sm:$0xff]
          %v4805 = vld [vmem:[%s5 + $0xe8] sm:$0xff]
          %v4806 = vld [vmem:[%s5 + $0xf0] sm:$0xff]
          %v4807 = vld [vmem:[%s5 + $0xf8] sm:$0xff]
          %v4808 = vld [vmem:[%s6] sm:$0xff]
          %v4809 = vld [vmem:[%s6 + $0x8] sm:$0xff]
          %v4810 = vld [vmem:[%s6 + $0x10] sm:$0xff]
          %v4811 = vld [vmem:[%s6 + $0x18] sm:$0xff]
          %v4812 = vld [vmem:[%s6 + $0x20] sm:$0xff]
          %v4813 = vld [vmem:[%s6 + $0x28] sm:$0xff]
          %v4814 = vld [vmem:[%s6 + $0x30] sm:$0xff]
          %v4815 = vld [vmem:[%s6 + $0x38] sm:$0xff]
          %v4816 = vld [vmem:[%s6 + $0x40] sm:$0xff]
          %v4817 = vld [vmem:[%s6 + $0x48] sm:$0xff]
          %v4818 = vld [vmem:[%s6 + $0x50] sm:$0xff]
          %v4819 = vld [vmem:[%s6 + $0x58] sm:$0xff]
          %v4820 = vld [vmem:[%s6 + $0x60] sm:$0xff]
          %v4821 = vld [vmem:[%s6 + $0x68] sm:$0xff]
          %v4822 = vld [vmem:[%s6 + $0x70] sm:$0xff]
          %v4823 = vld [vmem:[%s6 + $0x78] sm:$0xff]
          %v4824 = vld [vmem:[%s6 + $0x80] sm:$0xff]
          %v4825 = vld [vmem:[%s6 + $0x88] sm:$0xff]
          %v4826 = vld [vmem:[%s6 + $0x90] sm:$0xff]
          %v4827 = vld [vmem:[%s6 + $0x98] sm:$0xff]
          %v4828 = vld [vmem:[%s6 + $0xa0] sm:$0xff]
          %v4829 = vld [vmem:[%s6 + $0xa8] sm:$0xff]
          %v4830 = vld [vmem:[%s6 + $0xb0] sm:$0xff]
          %v4831 = vld [vmem:[%s6 + $0xb8] sm:$0xff]
          %v4832 = vld [vmem:[%s6 + $0xc0] sm:$0xff]
          %v4833 = vld [vmem:[%s6 + $0xc8] sm:$0xff]
          %v4834 = vld [vmem:[%s6 + $0xd0] sm:$0xff]
          %v4835 = vld [vmem:[%s6 + $0xd8] sm:$0xff]
          %v4836 = vld [vmem:[%s6 + $0xe0] sm:$0xff]
          %v4837 = vld [vmem:[%s6 + $0xe8] sm:$0xff]
          %v4838 = vld [vmem:[%s6 + $0xf0] sm:$0xff]
          %v4839 = vld [vmem:[%s6 + $0xf8] sm:$0xff]
          %v4872 = vunpack.c.l.b16 %v4808
          %v4873 = vunpack.c.h.b16 %v4808
          %v4874 = vunpack.c.l.b16 %v4809
          %v4875 = vunpack.c.h.b16 %v4809
          %v4876 = vunpack.c.l.b16 %v4810
          %v4877 = vunpack.c.h.b16 %v4810
          %v4878 = vunpack.c.l.b16 %v4811
          %v4879 = vunpack.c.h.b16 %v4811
          %v4880 = vunpack.c.l.b16 %v4812
          %v4881 = vunpack.c.h.b16 %v4812
          %v4882 = vunpack.c.l.b16 %v4813
          %v4883 = vunpack.c.h.b16 %v4813
          %v4884 = vunpack.c.l.b16 %v4814
          %v4885 = vunpack.c.h.b16 %v4814
          %v4886 = vunpack.c.l.b16 %v4815
          %v4887 = vunpack.c.h.b16 %v4815
          %v4888 = vunpack.c.l.b16 %v4816
          %v4889 = vunpack.c.h.b16 %v4816
          %v4890 = vunpack.c.l.b16 %v4817
          %v4891 = vunpack.c.h.b16 %v4817
          %v4892 = vunpack.c.l.b16 %v4818
          %v4893 = vunpack.c.h.b16 %v4818
          %v4894 = vunpack.c.l.b16 %v4819
          %v4895 = vunpack.c.h.b16 %v4819
          %v4896 = vunpack.c.l.b16 %v4820
          %v4897 = vunpack.c.h.b16 %v4820
          %v4898 = vunpack.c.l.b16 %v4821
          %v4899 = vunpack.c.h.b16 %v4821
          %v4900 = vunpack.c.l.b16 %v4822
          %v4901 = vunpack.c.h.b16 %v4822
          %v4902 = vunpack.c.l.b16 %v4823
          %v4903 = vunpack.c.h.b16 %v4823
          %v4904 = vunpack.c.l.b16 %v4824
          %v4905 = vunpack.c.h.b16 %v4824
          %v4906 = vunpack.c.l.b16 %v4825
          %v4907 = vunpack.c.h.b16 %v4825
          %v4908 = vunpack.c.l.b16 %v4826
          %v4909 = vunpack.c.h.b16 %v4826
          %v4910 = vunpack.c.l.b16 %v4827
          %v4911 = vunpack.c.h.b16 %v4827
          %v4912 = vunpack.c.l.b16 %v4828
          %v4913 = vunpack.c.h.b16 %v4828
          %v4914 = vunpack.c.l.b16 %v4829
          %v4915 = vunpack.c.h.b16 %v4829
          %v4916 = vunpack.c.l.b16 %v4830
          %v4917 = vunpack.c.h.b16 %v4830
          %v4918 = vunpack.c.l.b16 %v4831
          %v4919 = vunpack.c.h.b16 %v4831
          %v4920 = vunpack.c.l.b16 %v4832
          %v4921 = vunpack.c.h.b16 %v4832
          %v4922 = vunpack.c.l.b16 %v4833
          %v4923 = vunpack.c.h.b16 %v4833
          %v4924 = vunpack.c.l.b16 %v4834
          %v4925 = vunpack.c.h.b16 %v4834
          %v4926 = vunpack.c.l.b16 %v4835
          %v4927 = vunpack.c.h.b16 %v4835
          %v4928 = vunpack.c.l.b16 %v4836
          %v4929 = vunpack.c.h.b16 %v4836
          %v4930 = vunpack.c.l.b16 %v4837
          %v4931 = vunpack.c.h.b16 %v4837
          %v4932 = vunpack.c.l.b16 %v4838
          %v4933 = vunpack.c.h.b16 %v4838
          %v4934 = vunpack.c.l.b16 %v4839
          %v4935 = vunpack.c.h.b16 %v4839
          %v4936 = vpack.c.b16 %v4876, %v4872
          %v4937 = vpack.c.b16 %v4877, %v4873
          %v4938 = vpack.c.b16 %v4878, %v4874
          %v4939 = vpack.c.b16 %v4879, %v4875
          %v4940 = vpack.c.b16 %v4884, %v4880
          %v4941 = vpack.c.b16 %v4885, %v4881
          %v4942 = vpack.c.b16 %v4886, %v4882
          %v4943 = vpack.c.b16 %v4887, %v4883
          %v4944 = vpack.c.b16 %v4892, %v4888
          %v4945 = vpack.c.b16 %v4893, %v4889
          %v4946 = vpack.c.b16 %v4894, %v4890
          %v4947 = vpack.c.b16 %v4895, %v4891
          %v4948 = vpack.c.b16 %v4900, %v4896
          %v4949 = vpack.c.b16 %v4901, %v4897
          %v4950 = vpack.c.b16 %v4902, %v4898
          %v4951 = vpack.c.b16 %v4903, %v4899
          %v4952 = vpack.c.b16 %v4908, %v4904
          %v4953 = vpack.c.b16 %v4909, %v4905
          %v4954 = vpack.c.b16 %v4910, %v4906
          %v4955 = vpack.c.b16 %v4911, %v4907
          %v4956 = vpack.c.b16 %v4916, %v4912
          %v4957 = vpack.c.b16 %v4917, %v4913
          %v4958 = vpack.c.b16 %v4918, %v4914
          %v4959 = vpack.c.b16 %v4919, %v4915
          %v4960 = vpack.c.b16 %v4924, %v4920
          %v4961 = vpack.c.b16 %v4925, %v4921
          %v4962 = vpack.c.b16 %v4926, %v4922
          %v4963 = vpack.c.b16 %v4927, %v4923
          %v4964 = vpack.c.b16 %v4932, %v4928
          %v4965 = vpack.c.b16 %v4933, %v4929
          %v4966 = vpack.c.b16 %v4934, %v4930
          %v4967 = vpack.c.b16 %v4935, %v4931
          %5000 = vmatprep.subr.bf16.mxu0 %v4937
          %5001 = vmatpush1.bf16.msra.mxu0 %v4936
          %5002 = vmatprep.subr.bf16.mxu0 %v4941
          %5003 = vmatpush1.bf16.msra.mxu0 %v4940
          %5004 = vmatprep.subr.bf16.mxu0 %v4945
          %5005 = vmatpush1.bf16.msra.mxu0 %v4944
          %5006 = vmatprep.subr.bf16.mxu0 %v4949
          %5007 = vmatpush1.bf16.msra.mxu0 %v4948
          %5008 = vmatprep.subr.bf16.mxu0 %v4953
          %5009 = vmatpush1.bf16.msra.mxu0 %v4952
          %5010 = vmatprep.subr.bf16.mxu0 %v4957
          %5011 = vmatpush1.bf16.msra.mxu0 %v4956
          %5012 = vmatprep.subr.bf16.mxu0 %v4961
          %5013 = vmatpush1.bf16.msra.mxu0 %v4960
          %5014 = vmatprep.subr.bf16.mxu0 %v4965
          %5015 = vmatpush1.bf16.msra.mxu0 %v4964
          %5016 = vmatprep.subr.bf16.mxu0 0
          %5017 = vmatpush1.bf16.msra.mxu0 0
          %5018 = vmatprep.subr.bf16.mxu0 0
          %5019 = vmatpush1.bf16.msra.mxu0 0
          %5020 = vmatprep.subr.bf16.mxu0 0
          %5021 = vmatpush1.bf16.msra.mxu0 0
          %5022 = vmatprep.subr.bf16.mxu0 0
          %5023 = vmatpush1.bf16.msra.mxu0 0
          %5024 = vmatprep.subr.bf16.mxu0 0
          %5025 = vmatpush1.bf16.msra.mxu0 0
          %5026 = vmatprep.subr.bf16.mxu0 0
          %5027 = vmatpush1.bf16.msra.mxu0 0
          %5028 = vmatprep.subr.bf16.mxu0 0
          %5029 = vmatpush1.bf16.msra.mxu0 0
          %5030 = vmatprep.subr.bf16.mxu0 0
          %5031 = vmatpush1.bf16.msra.mxu0 0
          %5032 = vmatprep.mubr.bf16.mxu0 0
          %5033 = vmatmul.mubr.bf16.gmra.mrb[0].mxu0 0
          %v5034 = vpop.f32.mrb[0].mxu0
          %v5035 = vadd.f32 0.0, %v5034
          %v5036 = vpop.f32.mrb[0].mxu0
          %v5037 = vadd.f32 0.0, %v5036
          %v5038 = vpop.f32.mrb[0].mxu0
          %v5039 = vpop.f32.mrb[0].mxu0
          %5040 = vdwg.mxu0
          %5041 = vmatprep.subr.bf16.mxu0 %v4939
          %5042 = vmatpush1.bf16.msra.mxu0 %v4938
          %5043 = vmatprep.subr.bf16.mxu0 %v4943
          %5044 = vmatpush1.bf16.msra.mxu0 %v4942
          %5045 = vmatprep.subr.bf16.mxu0 %v4947
          %5046 = vmatpush1.bf16.msra.mxu0 %v4946
          %5047 = vmatprep.subr.bf16.mxu0 %v4951
          %5048 = vmatpush1.bf16.msra.mxu0 %v4950
          %5049 = vmatprep.subr.bf16.mxu0 %v4955
          %5050 = vmatpush1.bf16.msra.mxu0 %v4954
          %5051 = vmatprep.subr.bf16.mxu0 %v4959
          %5052 = vmatpush1.bf16.msra.mxu0 %v4958
          %5053 = vmatprep.subr.bf16.mxu0 %v4963
          %5054 = vmatpush1.bf16.msra.mxu0 %v4962
          %5055 = vmatprep.subr.bf16.mxu0 %v4967
          %5056 = vmatpush1.bf16.msra.mxu0 %v4966
          %5057 = vmatprep.subr.bf16.mxu0 0
          %5058 = vmatpush1.bf16.msra.mxu0 0
          %5059 = vmatprep.subr.bf16.mxu0 0
          %5060 = vmatpush1.bf16.msra.mxu0 0
          %5061 = vmatprep.subr.bf16.mxu0 0
          %5062 = vmatpush1.bf16.msra.mxu0 0
          %5063 = vmatprep.subr.bf16.mxu0 0
          %5064 = vmatpush1.bf16.msra.mxu0 0
          %5065 = vmatprep.subr.bf16.mxu0 0
          %5066 = vmatpush1.bf16.msra.mxu0 0
          %5067 = vmatprep.subr.bf16.mxu0 0
          %5068 = vmatpush1.bf16.msra.mxu0 0
          %5069 = vmatprep.subr.bf16.mxu0 0
          %5070 = vmatpush1.bf16.msra.mxu0 0
          %5071 = vmatprep.subr.bf16.mxu0 0
          %5072 = vmatpush1.bf16.msra.mxu0 0
          %5073 = vmatprep.mubr.bf16.mxu0 0
          %5074 = vmatmul.mubr.bf16.gmra.mrb[0].mxu0 0
          %v5075 = vpop.f32.mrb[0].mxu0
          %v5076 = vadd.f32 0.0, %v5075
          %v5077 = vpop.f32.mrb[0].mxu0
          %v5078 = vadd.f32 0.0, %v5077
          %v5079 = vpop.f32.mrb[0].mxu0
          %v5080 = vpop.f32.mrb[0].mxu0
          %5081 = vdwg.mxu0
          %v5114 = vunpack.c.l.b16 %v4776
          %v5115 = vunpack.c.h.b16 %v4776
          %v5116 = vunpack.c.l.b16 %v4777
          %v5117 = vunpack.c.h.b16 %v4777
          %v5118 = vunpack.c.l.b16 %v4778
          %v5119 = vunpack.c.h.b16 %v4778
          %v5120 = vunpack.c.l.b16 %v4779
          %v5121 = vunpack.c.h.b16 %v4779
          %v5122 = vunpack.c.l.b16 %v4780
          %v5123 = vunpack.c.h.b16 %v4780
          %v5124 = vunpack.c.l.b16 %v4781
          %v5125 = vunpack.c.h.b16 %v4781
          %v5126 = vunpack.c.l.b16 %v4782
          %v5127 = vunpack.c.h.b16 %v4782
          %v5128 = vunpack.c.l.b16 %v4783
          %v5129 = vunpack.c.h.b16 %v4783
          %v5130 = vunpack.c.l.b16 %v4784
          %v5131 = vunpack.c.h.b16 %v4784
          %v5132 = vunpack.c.l.b16 %v4785
          %v5133 = vunpack.c.h.b16 %v4785
          %v5134 = vunpack.c.l.b16 %v4786
          %v5135 = vunpack.c.h.b16 %v4786
          %v5136 = vunpack.c.l.b16 %v4787
          %v5137 = vunpack.c.h.b16 %v4787
          %v5138 = vunpack.c.l.b16 %v4788
          %v5139 = vunpack.c.h.b16 %v4788
          %v5140 = vunpack.c.l.b16 %v4789
          %v5141 = vunpack.c.h.b16 %v4789
          %v5142 = vunpack.c.l.b16 %v4790
          %v5143 = vunpack.c.h.b16 %v4790
          %v5144 = vunpack.c.l.b16 %v4791
          %v5145 = vunpack.c.h.b16 %v4791
          %v5146 = vunpack.c.l.b16 %v4792
          %v5147 = vunpack.c.h.b16 %v4792
          %v5148 = vunpack.c.l.b16 %v4793
          %v5149 = vunpack.c.h.b16 %v4793
          %v5150 = vunpack.c.l.b16 %v4794
          %v5151 = vunpack.c.h.b16 %v4794
          %v5152 = vunpack.c.l.b16 %v4795
          %v5153 = vunpack.c.h.b16 %v4795
          %v5154 = vunpack.c.l.b16 %v4796
          %v5155 = vunpack.c.h.b16 %v4796
          %v5156 = vunpack.c.l.b16 %v4797
          %v5157 = vunpack.c.h.b16 %v4797
          %v5158 = vunpack.c.l.b16 %v4798
          %v5159 = vunpack.c.h.b16 %v4798
          %v5160 = vunpack.c.l.b16 %v4799
          %v5161 = vunpack.c.h.b16 %v4799
          %v5162 = vunpack.c.l.b16 %v4800
          %v5163 = vunpack.c.h.b16 %v4800
          %v5164 = vunpack.c.l.b16 %v4801
          %v5165 = vunpack.c.h.b16 %v4801
          %v5166 = vunpack.c.l.b16 %v4802
          %v5167 = vunpack.c.h.b16 %v4802
          %v5168 = vunpack.c.l.b16 %v4803
          %v5169 = vunpack.c.h.b16 %v4803
          %v5170 = vunpack.c.l.b16 %v4804
          %v5171 = vunpack.c.h.b16 %v4804
          %v5172 = vunpack.c.l.b16 %v4805
          %v5173 = vunpack.c.h.b16 %v4805
          %v5174 = vunpack.c.l.b16 %v4806
          %v5175 = vunpack.c.h.b16 %v4806
          %v5176 = vunpack.c.l.b16 %v4807
          %v5177 = vunpack.c.h.b16 %v4807
          %v5178 = vpack.c.b16 %v5118, %v5114
          %v5179 = vpack.c.b16 %v5119, %v5115
          %v5180 = vpack.c.b16 %v5120, %v5116
          %v5181 = vpack.c.b16 %v5121, %v5117
          %v5182 = vpack.c.b16 %v5126, %v5122
          %v5183 = vpack.c.b16 %v5127, %v5123
          %v5184 = vpack.c.b16 %v5128, %v5124
          %v5185 = vpack.c.b16 %v5129, %v5125
          %v5186 = vpack.c.b16 %v5134, %v5130
          %v5187 = vpack.c.b16 %v5135, %v5131
          %v5188 = vpack.c.b16 %v5136, %v5132
          %v5189 = vpack.c.b16 %v5137, %v5133
          %v5190 = vpack.c.b16 %v5142, %v5138
          %v5191 = vpack.c.b16 %v5143, %v5139
          %v5192 = vpack.c.b16 %v5144, %v5140
          %v5193 = vpack.c.b16 %v5145, %v5141
          %v5194 = vpack.c.b16 %v5150, %v5146
          %v5195 = vpack.c.b16 %v5151, %v5147
          %v5196 = vpack.c.b16 %v5152, %v5148
          %v5197 = vpack.c.b16 %v5153, %v5149
          %v5198 = vpack.c.b16 %v5158, %v5154
          %v5199 = vpack.c.b16 %v5159, %v5155
          %v5200 = vpack.c.b16 %v5160, %v5156
          %v5201 = vpack.c.b16 %v5161, %v5157
          %v5202 = vpack.c.b16 %v5166, %v5162
          %v5203 = vpack.c.b16 %v5167, %v5163
          %v5204 = vpack.c.b16 %v5168, %v5164
          %v5205 = vpack.c.b16 %v5169, %v5165
          %v5206 = vpack.c.b16 %v5174, %v5170
          %v5207 = vpack.c.b16 %v5175, %v5171
          %v5208 = vpack.c.b16 %v5176, %v5172
          %v5209 = vpack.c.b16 %v5177, %v5173
          %5242 = vmatprep.subr.bf16.mxu0 %v5179
          %5243 = vmatpush1.bf16.msra.mxu0 %v5178
          %5244 = vmatprep.subr.bf16.mxu0 %v5183
          %5245 = vmatpush1.bf16.msra.mxu0 %v5182
          %5246 = vmatprep.subr.bf16.mxu0 %v5187
          %5247 = vmatpush1.bf16.msra.mxu0 %v5186
          %5248 = vmatprep.subr.bf16.mxu0 %v5191
          %5249 = vmatpush1.bf16.msra.mxu0 %v5190
          %5250 = vmatprep.subr.bf16.mxu0 %v5195
          %5251 = vmatpush1.bf16.msra.mxu0 %v5194
          %5252 = vmatprep.subr.bf16.mxu0 %v5199
          %5253 = vmatpush1.bf16.msra.mxu0 %v5198
          %5254 = vmatprep.subr.bf16.mxu0 %v5203
          %5255 = vmatpush1.bf16.msra.mxu0 %v5202
          %5256 = vmatprep.subr.bf16.mxu0 %v5207
          %5257 = vmatpush1.bf16.msra.mxu0 %v5206
          %5258 = vmatprep.subr.bf16.mxu0 0
          %5259 = vmatpush1.bf16.msra.mxu0 0
          %5260 = vmatprep.subr.bf16.mxu0 0
          %5261 = vmatpush1.bf16.msra.mxu0 0
          %5262 = vmatprep.subr.bf16.mxu0 0
          %5263 = vmatpush1.bf16.msra.mxu0 0
          %5264 = vmatprep.subr.bf16.mxu0 0
          %5265 = vmatpush1.bf16.msra.mxu0 0
          %5266 = vmatprep.subr.bf16.mxu0 0
          %5267 = vmatpush1.bf16.msra.mxu0 0
          %5268 = vmatprep.subr.bf16.mxu0 0
          %5269 = vmatpush1.bf16.msra.mxu0 0
          %5270 = vmatprep.subr.bf16.mxu0 0
          %5271 = vmatpush1.bf16.msra.mxu0 0
          %5272 = vmatprep.subr.bf16.mxu0 0
          %5273 = vmatpush1.bf16.msra.mxu0 0
          %5274 = vmatprep.mubr.bf16.mxu0 0
          %5275 = vmatmul.mubr.bf16.gmra.mrb[0].mxu0 %v4775
          %v5276 = vpop.f32.mrb[0].mxu0
          %v5277 = vadd.f32 %v5035, %v5276
          %v5278 = vpop.f32.mrb[0].mxu0
          %v5279 = vadd.f32 %v5037, %v5278
          %v5280 = vpop.f32.mrb[0].mxu0
          %v5281 = vpop.f32.mrb[0].mxu0
          %5282 = vdwg.mxu0
          %5283 = vmatprep.subr.bf16.mxu0 %v5181
          %5284 = vmatpush1.bf16.msra.mxu0 %v5180
          %5285 = vmatprep.subr.bf16.mxu0 %v5185
          %5286 = vmatpush1.bf16.msra.mxu0 %v5184
          %5287 = vmatprep.subr.bf16.mxu0 %v5189
          %5288 = vmatpush1.bf16.msra.mxu0 %v5188
          %5289 = vmatprep.subr.bf16.mxu0 %v5193
          %5290 = vmatpush1.bf16.msra.mxu0 %v5192
          %5291 = vmatprep.subr.bf16.mxu0 %v5197
          %5292 = vmatpush1.bf16.msra.mxu0 %v5196
          %5293 = vmatprep.subr.bf16.mxu0 %v5201
          %5294 = vmatpush1.bf16.msra.mxu0 %v5200
          %5295 = vmatprep.subr.bf16.mxu0 %v5205
          %5296 = vmatpush1.bf16.msra.mxu0 %v5204
          %5297 = vmatprep.subr.bf16.mxu0 %v5209
          %5298 = vmatpush1.bf16.msra.mxu0 %v5208
          %5299 = vmatprep.subr.bf16.mxu0 0
          %5300 = vmatpush1.bf16.msra.mxu0 0
          %5301 = vmatprep.subr.bf16.mxu0 0
          %5302 = vmatpush1.bf16.msra.mxu0 0
          %5303 = vmatprep.subr.bf16.mxu0 0
          %5304 = vmatpush1.bf16.msra.mxu0 0
          %5305 = vmatprep.subr.bf16.mxu0 0
          %5306 = vmatpush1.bf16.msra.mxu0 0
          %5307 = vmatprep.subr.bf16.mxu0 0
          %5308 = vmatpush1.bf16.msra.mxu0 0
          %5309 = vmatprep.subr.bf16.mxu0 0
          %5310 = vmatpush1.bf16.msra.mxu0 0
          %5311 = vmatprep.subr.bf16.mxu0 0
          %5312 = vmatpush1.bf16.msra.mxu0 0
          %5313 = vmatprep.subr.bf16.mxu0 0
          %5314 = vmatpush1.bf16.msra.mxu0 0
          %5315 = vmatprep.mubr.bf16.mxu0 0
          %5316 = vmatmul.mubr.bf16.gmra.mrb[0].mxu0 %v4775
          %v5317 = vpop.f32.mrb[0].mxu0
          %v5318 = vadd.f32 %v5076, %v5317
          %v5319 = vpop.f32.mrb[0].mxu0
          %v5320 = vadd.f32 %v5078, %v5319
          %v5321 = vpop.f32.mrb[0].mxu0
          %v5322 = vpop.f32.mrb[0].mxu0
          %5323 = vdwg.mxu0
          %v5324 = vld [vmem:[%s7] sm:$0xf]
          %v5326 = vlaneseq
          %v5327 = vshrl.u32 %v5326, 7
          %v5328 = vsub.s32 0, %v5327
          %v5329 = vrot.slane %v5324, %v5328
          %v5330 = vlaneseq
          %v5331 = vshrl.u32 %v5330, 7
          %v5332 = vsub.s32 1, %v5331
          %v5333 = vrot.slane %v5324, %v5332
          %v5334 = vlaneseq
          %v5335 = vshrl.u32 %v5334, 7
          %v5336 = vsub.s32 2, %v5335
          %v5337 = vrot.slane %v5324, %v5336
          %v5338 = vlaneseq
          %v5339 = vshrl.u32 %v5338, 7
          %v5340 = vsub.s32 3, %v5339
          %v5341 = vrot.slane %v5324, %v5340
          %v5346 = vadd.f32 %v5277, %v5329
          %v5347 = vadd.f32 %v5279, %v5333
          %v5348 = vadd.f32 %v5318, %v5337
          %v5349 = vadd.f32 %v5320, %v5341
          %v5350 = vxor.u32 %v5346, 2147483648
          %v5351 = vmul.f32 %v5350, 1.442695
          %v5352 = vpow.pop %v5351
          %v5353 = vadd.f32 %v5352, 1.0
          %v5354 = vrcp.pop %v5353
          %v5355 = vmul.f32 1.0, %v5354
          %v5356 = vxor.u32 %v5347, 2147483648
          %v5357 = vmul.f32 %v5356, 1.442695
          %v5358 = vpow.pop %v5357
          %v5359 = vadd.f32 %v5358, 1.0
          %v5360 = vrcp.pop %v5359
          %v5361 = vmul.f32 1.0, %v5360
          %v5362 = vtanh.pop %v5348
          %v5363 = vxor.u32 %v5349, 2147483648
          %v5364 = vmul.f32 %v5363, 1.442695
          %v5365 = vpow.pop %v5364
          %v5366 = vadd.f32 %v5365, 1.0
          %v5367 = vrcp.pop %v5366
          %v5368 = vmul.f32 1.0, %v5367
          %v5369 = vmul.f32 %v5361, 0.0
          %v5370 = vmul.f32 %v5355, %v5362
          %v5371 = vadd.f32 %v5369, %v5370
          %v5372 = vtanh.pop %v5371
          %v5373 = vmul.f32 %v5368, %v5372
          %v5374 = vsel %vm4443, %v5373, 0.0
          %v5375 = vsel %vm4443, %v5371, 0.0
          %vm5376 = vcmp.gt.s32.totalorder %v4437, 1
          %v5377 = vsel %vm5376, 1, 0
          %5378 = vset.pattern.permute.xlu0 0
          %5379 = vperm.xlu0 %5378, %v5377
          %v5380 = vpop.permute.xlu0 %5379
          %vm5381 = vcmp.eq.s32.totalorder %v5380, 1
          %s5382 = scalar_lea.vmem [#allocation3], 8
          %v5383 = vld [vmem:[%s5382] sm:$0xff]
          %5384 = vmatprep.subr.bf16.mxu0 %v4574
          %5385 = vmatpush1.bf16.msra.mxu0 %v4573
          %5386 = vmatprep.subr.bf16.mxu0 %v4578
          %5387 = vmatpush1.bf16.msra.mxu0 %v4577
          %5388 = vmatprep.subr.bf16.mxu0 %v4582
          %5389 = vmatpush1.bf16.msra.mxu0 %v4581
          %5390 = vmatprep.subr.bf16.mxu0 %v4586
          %5391 = vmatpush1.bf16.msra.mxu0 %v4585
          %5392 = vmatprep.subr.bf16.mxu0 %v4590
          %5393 = vmatpush1.bf16.msra.mxu0 %v4589
          %5394 = vmatprep.subr.bf16.mxu0 %v4594
          %5395 = vmatpush1.bf16.msra.mxu0 %v4593
          %5396 = vmatprep.subr.bf16.mxu0 %v4598
          %5397 = vmatpush1.bf16.msra.mxu0 %v4597
          %5398 = vmatprep.subr.bf16.mxu0 %v4602
          %5399 = vmatpush1.bf16.msra.mxu0 %v4601
          %5400 = vmatprep.subr.bf16.mxu0 0
          %5401 = vmatpush1.bf16.msra.mxu0 0
          %5402 = vmatprep.subr.bf16.mxu0 0
          %5403 = vmatpush1.bf16.msra.mxu0 0
          %5404 = vmatprep.subr.bf16.mxu0 0
          %5405 = vmatpush1.bf16.msra.mxu0 0
          %5406 = vmatprep.subr.bf16.mxu0 0
          %5407 = vmatpush1.bf16.msra.mxu0 0
          %5408 = vmatprep.subr.bf16.mxu0 0
          %5409 = vmatpush1.bf16.msra.mxu0 0
          %5410 = vmatprep.subr.bf16.mxu0 0
          %5411 = vmatpush1.bf16.msra.mxu0 0
          %5412 = vmatprep.subr.bf16.mxu0 0
          %5413 = vmatpush1.bf16.msra.mxu0 0
          %5414 = vmatprep.subr.bf16.mxu0 0
          %5415 = vmatpush1.bf16.msra.mxu0 0
          %5416 = vmatprep.mubr.bf16.mxu0 0
          %5417 = vmatmul.mubr.bf16.gmra.mrb[0].mxu0 %v4775
          %v5418 = vpop.f32.mrb[0].mxu0
          %v5419 = vadd.f32 0.0, %v5418
          %v5420 = vpop.f32.mrb[0].mxu0
          %v5421 = vadd.f32 0.0, %v5420
          %v5422 = vpop.f32.mrb[0].mxu0
          %v5423 = vpop.f32.mrb[0].mxu0
          %5424 = vdwg.mxu0
          %5425 = vmatprep.subr.bf16.mxu0 %v4576
          %5426 = vmatpush1.bf16.msra.mxu0 %v4575
          %5427 = vmatprep.subr.bf16.mxu0 %v4580
          %5428 = vmatpush1.bf16.msra.mxu0 %v4579
          %5429 = vmatprep.subr.bf16.mxu0 %v4584
          %5430 = vmatpush1.bf16.msra.mxu0 %v4583
          %5431 = vmatprep.subr.bf16.mxu0 %v4588
          %5432 = vmatpush1.bf16.msra.mxu0 %v4587
          %5433 = vmatprep.subr.bf16.mxu0 %v4592
          %5434 = vmatpush1.bf16.msra.mxu0 %v4591
          %5435 = vmatprep.subr.bf16.mxu0 %v4596
          %5436 = vmatpush1.bf16.msra.mxu0 %v4595
          %5437 = vmatprep.subr.bf16.mxu0 %v4600
          %5438 = vmatpush1.bf16.msra.mxu0 %v4599
          %5439 = vmatprep.subr.bf16.mxu0 %v4604
          %5440 = vmatpush1.bf16.msra.mxu0 %v4603
          %5441 = vmatprep.subr.bf16.mxu0 0
          %5442 = vmatpush1.bf16.msra.mxu0 0
          %5443 = vmatprep.subr.bf16.mxu0 0
          %5444 = vmatpush1.bf16.msra.mxu0 0
          %5445 = vmatprep.subr.bf16.mxu0 0
          %5446 = vmatpush1.bf16.msra.mxu0 0
          %5447 = vmatprep.subr.bf16.mxu0 0
          %5448 = vmatpush1.bf16.msra.mxu0 0
          %5449 = vmatprep.subr.bf16.mxu0 0
          %5450 = vmatpush1.bf16.msra.mxu0 0
          %5451 = vmatprep.subr.bf16.mxu0 0
          %5452 = vmatpush1.bf16.msra.mxu0 0
          %5453 = vmatprep.subr.bf16.mxu0 0
          %5454 = vmatpush1.bf16.msra.mxu0 0
          %5455 = vmatprep.subr.bf16.mxu0 0
          %5456 = vmatpush1.bf16.msra.mxu0 0
          %5457 = vmatprep.mubr.bf16.mxu0 0
          %5458 = vmatmul.mubr.bf16.gmra.mrb[0].mxu0 %v4775
          %v5459 = vpop.f32.mrb[0].mxu0
          %v5460 = vadd.f32 0.0, %v5459
          %v5461 = vpop.f32.mrb[0].mxu0
          %v5462 = vadd.f32 0.0, %v5461
          %v5463 = vpop.f32.mrb[0].mxu0
          %v5464 = vpop.f32.mrb[0].mxu0
          %5465 = vdwg.mxu0
          %v5470 = vcombine.low %v5419, %v5421
          %v5471 = vcombine.low %v5460, %v5462
          %v5473 = vunpack.c.l.s4 1983009808
          %v5474 = vunpack.c.0.s8 %v5473
          %v5475 = vlaneseq
          %v5476 = vshrl.u32 %v5475, 7
          %v5477 = vsub.s32 %v5474, %v5476
          %v5478 = vrot.slane %v5470, %v5477
          %v5480 = vunpack.c.l.s4 1983009808
          %v5481 = vunpack.c.0.s8 %v5480
          %v5482 = vlaneseq
          %v5483 = vshrl.u32 %v5482, 7
          %v5484 = vsub.s32 %v5481, %v5483
          %v5485 = vrot.slane %v5471, %v5484
          %v5486 = vcombine.low %v5478, %v5485
          %v5488 = vadd.f32 %v5383, %v5486
          %v5489 = vxor.u32 %v5488, 2147483648
          %v5490 = vmul.f32 %v5489, 1.442695
          %v5491 = vpow.pop %v5490
          %v5492 = vadd.f32 %v5491, 1.0
          %v5493 = vrcp.pop %v5492
          %v5494 = vmul.f32 1.0, %v5493
          %v5496 = vrot.slane %v5488, 2
          %v5498 = vxor.u32 %v5496, 2147483648
          %v5499 = vmul.f32 %v5498, 1.442695
          %v5500 = vpow.pop %v5499
          %v5501 = vadd.f32 %v5500, 1.0
          %v5502 = vrcp.pop %v5501
          %v5503 = vmul.f32 1.0, %v5502
          %v5504 = vrot.slane %v5488, 4
          %v5506 = vtanh.pop %v5504
          %v5507 = vrot.slane %v5488, 6
          %v5509 = vxor.u32 %v5507, 2147483648
          %v5510 = vmul.f32 %v5509, 1.442695
          %v5511 = vpow.pop %v5510
          %v5512 = vadd.f32 %v5511, 1.0
          %v5513 = vrcp.pop %v5512
          %v5514 = vmul.f32 1.0, %v5513
          %v5515 = vmul.f32 %v5503, %v4774
          %v5516 = vmul.f32 %v5494, %v5506
          %v5517 = vadd.f32 %v5515, %v5516
          %v5518 = vtanh.pop %v5517
          %v5519 = vmul.f32 %v5514, %v5518
          %v5520 = vsel %vm5381, %v5519, %v4773
          %v5521 = vsel %vm5381, %v5517, %v4774
          %v5522 = vpack.c.bf16 %v5520, %v5520
          %v5523 = vpack.c.bf16 %v5374, %v5374
          %5524 = vmatprep.subr.bf16.mxu0 %v4937
          %5525 = vmatpush1.bf16.msra.mxu0 %v4936
          %5526 = vmatprep.subr.bf16.mxu0 %v4941
          %5527 = vmatpush1.bf16.msra.mxu0 %v4940
          %5528 = vmatprep.subr.bf16.mxu0 %v4945
          %5529 = vmatpush1.bf16.msra.mxu0 %v4944
          %5530 = vmatprep.subr.bf16.mxu0 %v4949
          %5531 = vmatpush1.bf16.msra.mxu0 %v4948
          %5532 = vmatprep.subr.bf16.mxu0 %v4953
          %5533 = vmatpush1.bf16.msra.mxu0 %v4952
          %5534 = vmatprep.subr.bf16.mxu0 %v4957
          %5535 = vmatpush1.bf16.msra.mxu0 %v4956
          %5536 = vmatprep.subr.bf16.mxu0 %v4961
          %5537 = vmatpush1.bf16.msra.mxu0 %v4960
          %5538 = vmatprep.subr.bf16.mxu0 %v4965
          %5539 = vmatpush1.bf16.msra.mxu0 %v4964
          %5540 = vmatprep.subr.bf16.mxu0 0
          %5541 = vmatpush1.bf16.msra.mxu0 0
          %5542 = vmatprep.subr.bf16.mxu0 0
          %5543 = vmatpush1.bf16.msra.mxu0 0
          %5544 = vmatprep.subr.bf16.mxu0 0
          %5545 = vmatpush1.bf16.msra.mxu0 0
          %5546 = vmatprep.subr.bf16.mxu0 0
          %5547 = vmatpush1.bf16.msra.mxu0 0
          %5548 = vmatprep.subr.bf16.mxu0 0
          %5549 = vmatpush1.bf16.msra.mxu0 0
          %5550 = vmatprep.subr.bf16.mxu0 0
          %5551 = vmatpush1.bf16.msra.mxu0 0
          %5552 = vmatprep.subr.bf16.mxu0 0
          %5553 = vmatpush1.bf16.msra.mxu0 0
          %5554 = vmatprep.subr.bf16.mxu0 0
          %5555 = vmatpush1.bf16.msra.mxu0 0
          %5556 = vmatprep.mubr.bf16.mxu0 0
          %5557 = vmatmul.mubr.bf16.gmra.mrb[0].mxu0 %v5523
          %v5558 = vpop.f32.mrb[0].mxu0
          %v5559 = vadd.f32 0.0, %v5558
          %v5560 = vpop.f32.mrb[0].mxu0
          %v5561 = vadd.f32 0.0, %v5560
          %v5562 = vpop.f32.mrb[0].mxu0
          %v5563 = vpop.f32.mrb[0].mxu0
          %5564 = vdwg.mxu0
          %5565 = vmatprep.subr.bf16.mxu0 %v4939
          %5566 = vmatpush1.bf16.msra.mxu0 %v4938
          %5567 = vmatprep.subr.bf16.mxu0 %v4943
          %5568 = vmatpush1.bf16.msra.mxu0 %v4942
          %5569 = vmatprep.subr.bf16.mxu0 %v4947
          %5570 = vmatpush1.bf16.msra.mxu0 %v4946
          %5571 = vmatprep.subr.bf16.mxu0 %v4951
          %5572 = vmatpush1.bf16.msra.mxu0 %v4950
          %5573 = vmatprep.subr.bf16.mxu0 %v4955
          %5574 = vmatpush1.bf16.msra.mxu0 %v4954
          %5575 = vmatprep.subr.bf16.mxu0 %v4959
          %5576 = vmatpush1.bf16.msra.mxu0 %v4958
          %5577 = vmatprep.subr.bf16.mxu0 %v4963
          %5578 = vmatpush1.bf16.msra.mxu0 %v4962
          %5579 = vmatprep.subr.bf16.mxu0 %v4967
          %5580 = vmatpush1.bf16.msra.mxu0 %v4966
          %5581 = vmatprep.subr.bf16.mxu0 0
          %5582 = vmatpush1.bf16.msra.mxu0 0
          %5583 = vmatprep.subr.bf16.mxu0 0
          %5584 = vmatpush1.bf16.msra.mxu0 0
          %5585 = vmatprep.subr.bf16.mxu0 0
          %5586 = vmatpush1.bf16.msra.mxu0 0
          %5587 = vmatprep.subr.bf16.mxu0 0
          %5588 = vmatpush1.bf16.msra.mxu0 0
          %5589 = vmatprep.subr.bf16.mxu0 0
          %5590 = vmatpush1.bf16.msra.mxu0 0
          %5591 = vmatprep.subr.bf16.mxu0 0
          %5592 = vmatpush1.bf16.msra.mxu0 0
          %5593 = vmatprep.subr.bf16.mxu0 0
          %5594 = vmatpush1.bf16.msra.mxu0 0
          %5595 = vmatprep.subr.bf16.mxu0 0
          %5596 = vmatpush1.bf16.msra.mxu0 0
          %5597 = vmatprep.mubr.bf16.mxu0 0
          %5598 = vmatmul.mubr.bf16.gmra.mrb[0].mxu0 %v5523
          %v5599 = vpop.f32.mrb[0].mxu0
          %v5600 = vadd.f32 0.0, %v5599
          %v5601 = vpop.f32.mrb[0].mxu0
          %v5602 = vadd.f32 0.0, %v5601
          %v5603 = vpop.f32.mrb[0].mxu0
          %v5604 = vpop.f32.mrb[0].mxu0
          %5605 = vdwg.mxu0
          %5606 = vmatprep.subr.bf16.mxu0 %v5179
          %5607 = vmatpush1.bf16.msra.mxu0 %v5178
          %5608 = vmatprep.subr.bf16.mxu0 %v5183
          %5609 = vmatpush1.bf16.msra.mxu0 %v5182
          %5610 = vmatprep.subr.bf16.mxu0 %v5187
          %5611 = vmatpush1.bf16.msra.mxu0 %v5186
          %5612 = vmatprep.subr.bf16.mxu0 %v5191
          %5613 = vmatpush1.bf16.msra.mxu0 %v5190
          %5614 = vmatprep.subr.bf16.mxu0 %v5195
          %5615 = vmatpush1.bf16.msra.mxu0 %v5194
          %5616 = vmatprep.subr.bf16.mxu0 %v5199
          %5617 = vmatpush1.bf16.msra.mxu0 %v5198
          %5618 = vmatprep.subr.bf16.mxu0 %v5203
          %5619 = vmatpush1.bf16.msra.mxu0 %v5202
          %5620 = vmatprep.subr.bf16.mxu0 %v5207
          %5621 = vmatpush1.bf16.msra.mxu0 %v5206
          %5622 = vmatprep.subr.bf16.mxu0 0
          %5623 = vmatpush1.bf16.msra.mxu0 0
          %5624 = vmatprep.subr.bf16.mxu0 0
          %5625 = vmatpush1.bf16.msra.mxu0 0
          %5626 = vmatprep.subr.bf16.mxu0 0
          %5627 = vmatpush1.bf16.msra.mxu0 0
          %5628 = vmatprep.subr.bf16.mxu0 0
          %5629 = vmatpush1.bf16.msra.mxu0 0
          %5630 = vmatprep.subr.bf16.mxu0 0
          %5631 = vmatpush1.bf16.msra.mxu0 0
          %5632 = vmatprep.subr.bf16.mxu0 0
          %5633 = vmatpush1.bf16.msra.mxu0 0
          %5634 = vmatprep.subr.bf16.mxu0 0
          %5635 = vmatpush1.bf16.msra.mxu0 0
          %5636 = vmatprep.subr.bf16.mxu0 0
          %5637 = vmatpush1.bf16.msra.mxu0 0
          %5638 = vmatprep.mubr.bf16.mxu0 0
          %5639 = vmatmul.mubr.bf16.gmra.mrb[0].mxu0 %v5522
          %v5640 = vpop.f32.mrb[0].mxu0
          %v5641 = vadd.f32 %v5559, %v5640
          %v5642 = vpop.f32.mrb[0].mxu0
          %v5643 = vadd.f32 %v5561, %v5642
          %v5644 = vpop.f32.mrb[0].mxu0
          %v5645 = vpop.f32.mrb[0].mxu0
          %5646 = vdwg.mxu0
          %5647 = vmatprep.subr.bf16.mxu0 %v5181
          %5648 = vmatpush1.bf16.msra.mxu0 %v5180
          %5649 = vmatprep.subr.bf16.mxu0 %v5185
          %5650 = vmatpush1.bf16.msra.mxu0 %v5184
          %5651 = vmatprep.subr.bf16.mxu0 %v5189
          %5652 = vmatpush1.bf16.msra.mxu0 %v5188
          %5653 = vmatprep.subr.bf16.mxu0 %v5193
          %5654 = vmatpush1.bf16.msra.mxu0 %v5192
          %5655 = vmatprep.subr.bf16.mxu0 %v5197
          %5656 = vmatpush1.bf16.msra.mxu0 %v5196
          %5657 = vmatprep.subr.bf16.mxu0 %v5201
          %5658 = vmatpush1.bf16.msra.mxu0 %v5200
          %5659 = vmatprep.subr.bf16.mxu0 %v5205
          %5660 = vmatpush1.bf16.msra.mxu0 %v5204
          %5661 = vmatprep.subr.bf16.mxu0 %v5209
          %5662 = vmatpush1.bf16.msra.mxu0 %v5208
          %5663 = vmatprep.subr.bf16.mxu0 0
          %5664 = vmatpush1.bf16.msra.mxu0 0
          %5665 = vmatprep.subr.bf16.mxu0 0
          %5666 = vmatpush1.bf16.msra.mxu0 0
          %5667 = vmatprep.subr.bf16.mxu0 0
          %5668 = vmatpush1.bf16.msra.mxu0 0
          %5669 = vmatprep.subr.bf16.mxu0 0
          %5670 = vmatpush1.bf16.msra.mxu0 0
          %5671 = vmatprep.subr.bf16.mxu0 0
          %5672 = vmatpush1.bf16.msra.mxu0 0
          %5673 = vmatprep.subr.bf16.mxu0 0
          %5674 = vmatpush1.bf16.msra.mxu0 0
          %5675 = vmatprep.subr.bf16.mxu0 0
          %5676 = vmatpush1.bf16.msra.mxu0 0
          %5677 = vmatprep.subr.bf16.mxu0 0
          %5678 = vmatpush1.bf16.msra.mxu0 0
          %5679 = vmatprep.mubr.bf16.mxu0 0
          %5680 = vmatmul.mubr.bf16.gmra.mrb[0].mxu0 %v5522
          %v5681 = vpop.f32.mrb[0].mxu0
          %v5682 = vadd.f32 %v5600, %v5681
          %v5683 = vpop.f32.mrb[0].mxu0
          %v5684 = vadd.f32 %v5602, %v5683
          %v5685 = vpop.f32.mrb[0].mxu0
          %v5686 = vpop.f32.mrb[0].mxu0
          %5687 = vdwg.mxu0
          %v5688 = vadd.f32 %v5641, %v5329
          %v5689 = vadd.f32 %v5643, %v5333
          %v5690 = vadd.f32 %v5682, %v5337
          %v5691 = vadd.f32 %v5684, %v5341
          %v5692 = vxor.u32 %v5688, 2147483648
          %v5693 = vmul.f32 %v5692, 1.442695
          %v5694 = vpow.pop %v5693
          %v5695 = vadd.f32 %v5694, 1.0
          %v5696 = vrcp.pop %v5695
          %v5697 = vmul.f32 1.0, %v5696
          %v5698 = vxor.u32 %v5689, 2147483648
          %v5699 = vmul.f32 %v5698, 1.442695
          %v5700 = vpow.pop %v5699
          %v5701 = vadd.f32 %v5700, 1.0
          %v5702 = vrcp.pop %v5701
          %v5703 = vmul.f32 1.0, %v5702
          %v5704 = vtanh.pop %v5690
          %v5705 = vxor.u32 %v5691, 2147483648
          %v5706 = vmul.f32 %v5705, 1.442695
          %v5707 = vpow.pop %v5706
          %v5708 = vadd.f32 %v5707, 1.0
          %v5709 = vrcp.pop %v5708
          %v5710 = vmul.f32 1.0, %v5709
          %v5711 = vmul.f32 %v5703, %v5375
          %v5712 = vmul.f32 %v5697, %v5704
          %v5713 = vadd.f32 %v5711, %v5712
          %v5714 = vtanh.pop %v5713
          %v5715 = vmul.f32 %v5710, %v5714
          %v5716 = vsel %vm5381, %v5715, %v5374
          %v5717 = vsel %vm5381, %v5713, %v5375
          %vm5718 = vcmp.gt.s32.totalorder %v4437, 2
          %v5719 = vsel %vm5718, 1, 0
          %5720 = vset.pattern.permute.xlu0 0
          %5721 = vperm.xlu0 %5720, %v5719
          %v5722 = vpop.permute.xlu0 %5721
          %vm5723 = vcmp.eq.s32.totalorder %v5722, 1
          %s5724 = scalar_lea.vmem [#allocation3], 16
          %v5725 = vld [vmem:[%s5724] sm:$0xff]
          %5726 = vmatprep.subr.bf16.mxu0 %v4574
          %5727 = vmatpush1.bf16.msra.mxu0 %v4573
          %5728 = vmatprep.subr.bf16.mxu0 %v4578
          %5729 = vmatpush1.bf16.msra.mxu0 %v4577
          %5730 = vmatprep.subr.bf16.mxu0 %v4582
          %5731 = vmatpush1.bf16.msra.mxu0 %v4581
          %5732 = vmatprep.subr.bf16.mxu0 %v4586
          %5733 = vmatpush1.bf16.msra.mxu0 %v4585
          %5734 = vmatprep.subr.bf16.mxu0 %v4590
          %5735 = vmatpush1.bf16.msra.mxu0 %v4589
          %5736 = vmatprep.subr.bf16.mxu0 %v4594
          %5737 = vmatpush1.bf16.msra.mxu0 %v4593
          %5738 = vmatprep.subr.bf16.mxu0 %v4598
          %5739 = vmatpush1.bf16.msra.mxu0 %v4597
          %5740 = vmatprep.subr.bf16.mxu0 %v4602
          %5741 = vmatpush1.bf16.msra.mxu0 %v4601
          %5742 = vmatprep.subr.bf16.mxu0 0
          %5743 = vmatpush1.bf16.msra.mxu0 0
          %5744 = vmatprep.subr.bf16.mxu0 0
          %5745 = vmatpush1.bf16.msra.mxu0 0
          %5746 = vmatprep.subr.bf16.mxu0 0
          %5747 = vmatpush1.bf16.msra.mxu0 0
          %5748 = vmatprep.subr.bf16.mxu0 0
          %5749 = vmatpush1.bf16.msra.mxu0 0
          %5750 = vmatprep.subr.bf16.mxu0 0
          %5751 = vmatpush1.bf16.msra.mxu0 0
          %5752 = vmatprep.subr.bf16.mxu0 0
          %5753 = vmatpush1.bf16.msra.mxu0 0
          %5754 = vmatprep.subr.bf16.mxu0 0
          %5755 = vmatpush1.bf16.msra.mxu0 0
          %5756 = vmatprep.subr.bf16.mxu0 0
          %5757 = vmatpush1.bf16.msra.mxu0 0
          %5758 = vmatprep.mubr.bf16.mxu0 0
          %5759 = vmatmul.mubr.bf16.gmra.mrb[0].mxu0 %v5522
          %v5760 = vpop.f32.mrb[0].mxu0
          %v5761 = vadd.f32 0.0, %v5760
          %v5762 = vpop.f32.mrb[0].mxu0
          %v5763 = vadd.f32 0.0, %v5762
          %v5764 = vpop.f32.mrb[0].mxu0
          %v5765 = vpop.f32.mrb[0].mxu0
          %5766 = vdwg.mxu0
          %5767 = vmatprep.subr.bf16.mxu0 %v4576
          %5768 = vmatpush1.bf16.msra.mxu0 %v4575
          %5769 = vmatprep.subr.bf16.mxu0 %v4580
          %5770 = vmatpush1.bf16.msra.mxu0 %v4579
          %5771 = vmatprep.subr.bf16.mxu0 %v4584
          %5772 = vmatpush1.bf16.msra.mxu0 %v4583
          %5773 = vmatprep.subr.bf16.mxu0 %v4588
          %5774 = vmatpush1.bf16.msra.mxu0 %v4587
          %5775 = vmatprep.subr.bf16.mxu0 %v4592
          %5776 = vmatpush1.bf16.msra.mxu0 %v4591
          %5777 = vmatprep.subr.bf16.mxu0 %v4596
          %5778 = vmatpush1.bf16.msra.mxu0 %v4595
          %5779 = vmatprep.subr.bf16.mxu0 %v4600
          %5780 = vmatpush1.bf16.msra.mxu0 %v4599
          %5781 = vmatprep.subr.bf16.mxu0 %v4604
          %5782 = vmatpush1.bf16.msra.mxu0 %v4603
          %5783 = vmatprep.subr.bf16.mxu0 0
          %5784 = vmatpush1.bf16.msra.mxu0 0
          %5785 = vmatprep.subr.bf16.mxu0 0
          %5786 = vmatpush1.bf16.msra.mxu0 0
          %5787 = vmatprep.subr.bf16.mxu0 0
          %5788 = vmatpush1.bf16.msra.mxu0 0
          %5789 = vmatprep.subr.bf16.mxu0 0
          %5790 = vmatpush1.bf16.msra.mxu0 0
          %5791 = vmatprep.subr.bf16.mxu0 0
          %5792 = vmatpush1.bf16.msra.mxu0 0
          %5793 = vmatprep.subr.bf16.mxu0 0
          %5794 = vmatpush1.bf16.msra.mxu0 0
          %5795 = vmatprep.subr.bf16.mxu0 0
          %5796 = vmatpush1.bf16.msra.mxu0 0
          %5797 = vmatprep.subr.bf16.mxu0 0
          %5798 = vmatpush1.bf16.msra.mxu0 0
          %5799 = vmatprep.mubr.bf16.mxu0 0
          %5800 = vmatmul.mubr.bf16.gmra.mrb[0].mxu0 %v5522
          %v5801 = vpop.f32.mrb[0].mxu0
          %v5802 = vadd.f32 0.0, %v5801
          %v5803 = vpop.f32.mrb[0].mxu0
          %v5804 = vadd.f32 0.0, %v5803
          %v5805 = vpop.f32.mrb[0].mxu0
          %v5806 = vpop.f32.mrb[0].mxu0
          %5807 = vdwg.mxu0
          %v5812 = vcombine.low %v5761, %v5763
          %v5813 = vcombine.low %v5802, %v5804
          %v5815 = vunpack.c.l.s4 1983009808
          %v5816 = vunpack.c.0.s8 %v5815
          %v5817 = vlaneseq
          %v5818 = vshrl.u32 %v5817, 7
          %v5819 = vsub.s32 %v5816, %v5818
          %v5820 = vrot.slane %v5812, %v5819
          %v5822 = vunpack.c.l.s4 1983009808
          %v5823 = vunpack.c.0.s8 %v5822
          %v5824 = vlaneseq
          %v5825 = vshrl.u32 %v5824, 7
          %v5826 = vsub.s32 %v5823, %v5825
          %v5827 = vrot.slane %v5813, %v5826
          %v5828 = vcombine.low %v5820, %v5827
          %v5830 = vadd.f32 %v5725, %v5828
          %v5831 = vxor.u32 %v5830, 2147483648
          %v5832 = vmul.f32 %v5831, 1.442695
          %v5833 = vpow.pop %v5832
          %v5834 = vadd.f32 %v5833, 1.0
          %v5835 = vrcp.pop %v5834
          %v5836 = vmul.f32 1.0, %v5835
          %v5838 = vrot.slane %v5830, 2
          %v5840 = vxor.u32 %v5838, 2147483648
          %v5841 = vmul.f32 %v5840, 1.442695
          %v5842 = vpow.pop %v5841
          %v5843 = vadd.f32 %v5842, 1.0
          %v5844 = vrcp.pop %v5843
          %v5845 = vmul.f32 1.0, %v5844
          %v5846 = vrot.slane %v5830, 4
          %v5848 = vtanh.pop %v5846
          %v5849 = vrot.slane %v5830, 6
          %v5851 = vxor.u32 %v5849, 2147483648
          %v5852 = vmul.f32 %v5851, 1.442695
          %v5853 = vpow.pop %v5852
          %v5854 = vadd.f32 %v5853, 1.0
          %v5855 = vrcp.pop %v5854
          %v5856 = vmul.f32 1.0, %v5855
          %v5857 = vmul.f32 %v5845, %v5521
          %v5858 = vmul.f32 %v5836, %v5848
          %v5859 = vadd.f32 %v5857, %v5858
          %v5860 = vtanh.pop %v5859
          %v5861 = vmul.f32 %v5856, %v5860
          %v5862 = vsel %vm5723, %v5861, %v5520
          %v5863 = vsel %vm5723, %v5859, %v5521
          %v5864 = vpack.c.bf16 %v5862, %v5862
          %v5865 = vpack.c.bf16 %v5716, %v5716
          %5866 = vmatprep.subr.bf16.mxu0 %v4937
          %5867 = vmatpush1.bf16.msra.mxu0 %v4936
          %5868 = vmatprep.subr.bf16.mxu0 %v4941
          %5869 = vmatpush1.bf16.msra.mxu0 %v4940
          %5870 = vmatprep.subr.bf16.mxu0 %v4945
          %5871 = vmatpush1.bf16.msra.mxu0 %v4944
          %5872 = vmatprep.subr.bf16.mxu0 %v4949
          %5873 = vmatpush1.bf16.msra.mxu0 %v4948
          %5874 = vmatprep.subr.bf16.mxu0 %v4953
          %5875 = vmatpush1.bf16.msra.mxu0 %v4952
          %5876 = vmatprep.subr.bf16.mxu0 %v4957
          %5877 = vmatpush1.bf16.msra.mxu0 %v4956
          %5878 = vmatprep.subr.bf16.mxu0 %v4961
          %5879 = vmatpush1.bf16.msra.mxu0 %v4960
          %5880 = vmatprep.subr.bf16.mxu0 %v4965
          %5881 = vmatpush1.bf16.msra.mxu0 %v4964
          %5882 = vmatprep.subr.bf16.mxu0 0
          %5883 = vmatpush1.bf16.msra.mxu0 0
          %5884 = vmatprep.subr.bf16.mxu0 0
          %5885 = vmatpush1.bf16.msra.mxu0 0
          %5886 = vmatprep.subr.bf16.mxu0 0
          %5887 = vmatpush1.bf16.msra.mxu0 0
          %5888 = vmatprep.subr.bf16.mxu0 0
          %5889 = vmatpush1.bf16.msra.mxu0 0
          %5890 = vmatprep.subr.bf16.mxu0 0
          %5891 = vmatpush1.bf16.msra.mxu0 0
          %5892 = vmatprep.subr.bf16.mxu0 0
          %5893 = vmatpush1.bf16.msra.mxu0 0
          %5894 = vmatprep.subr.bf16.mxu0 0
          %5895 = vmatpush1.bf16.msra.mxu0 0
          %5896 = vmatprep.subr.bf16.mxu0 0
          %5897 = vmatpush1.bf16.msra.mxu0 0
          %5898 = vmatprep.mubr.bf16.mxu0 0
          %5899 = vmatmul.mubr.bf16.gmra.mrb[0].mxu0 %v5865
          %v5900 = vpop.f32.mrb[0].mxu0
          %v5901 = vadd.f32 0.0, %v5900
          %v5902 = vpop.f32.mrb[0].mxu0
          %v5903 = vadd.f32 0.0, %v5902
          %v5904 = vpop.f32.mrb[0].mxu0
          %v5905 = vpop.f32.mrb[0].mxu0
          %5906 = vdwg.mxu0
          %5907 = vmatprep.subr.bf16.mxu0 %v4939
          %5908 = vmatpush1.bf16.msra.mxu0 %v4938
          %5909 = vmatprep.subr.bf16.mxu0 %v4943
          %5910 = vmatpush1.bf16.msra.mxu0 %v4942
          %5911 = vmatprep.subr.bf16.mxu0 %v4947
          %5912 = vmatpush1.bf16.msra.mxu0 %v4946
          %5913 = vmatprep.subr.bf16.mxu0 %v4951
          %5914 = vmatpush1.bf16.msra.mxu0 %v4950
          %5915 = vmatprep.subr.bf16.mxu0 %v4955
          %5916 = vmatpush1.bf16.msra.mxu0 %v4954
          %5917 = vmatprep.subr.bf16.mxu0 %v4959
          %5918 = vmatpush1.bf16.msra.mxu0 %v4958
          %5919 = vmatprep.subr.bf16.mxu0 %v4963
          %5920 = vmatpush1.bf16.msra.mxu0 %v4962
          %5921 = vmatprep.subr.bf16.mxu0 %v4967
          %5922 = vmatpush1.bf16.msra.mxu0 %v4966
          %5923 = vmatprep.subr.bf16.mxu0 0
          %5924 = vmatpush1.bf16.msra.mxu0 0
          %5925 = vmatprep.subr.bf16.mxu0 0
          %5926 = vmatpush1.bf16.msra.mxu0 0
          %5927 = vmatprep.subr.bf16.mxu0 0
          %5928 = vmatpush1.bf16.msra.mxu0 0
          %5929 = vmatprep.subr.bf16.mxu0 0
          %5930 = vmatpush1.bf16.msra.mxu0 0
          %5931 = vmatprep.subr.bf16.mxu0 0
          %5932 = vmatpush1.bf16.msra.mxu0 0
          %5933 = vmatprep.subr.bf16.mxu0 0
          %5934 = vmatpush1.bf16.msra.mxu0 0
          %5935 = vmatprep.subr.bf16.mxu0 0
          %5936 = vmatpush1.bf16.msra.mxu0 0
          %5937 = vmatprep.subr.bf16.mxu0 0
          %5938 = vmatpush1.bf16.msra.mxu0 0
          %5939 = vmatprep.mubr.bf16.mxu0 0
          %5940 = vmatmul.mubr.bf16.gmra.mrb[0].mxu0 %v5865
          %v5941 = vpop.f32.mrb[0].mxu0
          %v5942 = vadd.f32 0.0, %v5941
          %v5943 = vpop.f32.mrb[0].mxu0
          %v5944 = vadd.f32 0.0, %v5943
          %v5945 = vpop.f32.mrb[0].mxu0
          %v5946 = vpop.f32.mrb[0].mxu0
          %5947 = vdwg.mxu0
          %5948 = vmatprep.subr.bf16.mxu0 %v5179
          %5949 = vmatpush1.bf16.msra.mxu0 %v5178
          %5950 = vmatprep.subr.bf16.mxu0 %v5183
          %5951 = vmatpush1.bf16.msra.mxu0 %v5182
          %5952 = vmatprep.subr.bf16.mxu0 %v5187
          %5953 = vmatpush1.bf16.msra.mxu0 %v5186
          %5954 = vmatprep.subr.bf16.mxu0 %v5191
          %5955 = vmatpush1.bf16.msra.mxu0 %v5190
          %5956 = vmatprep.subr.bf16.mxu0 %v5195
          %5957 = vmatpush1.bf16.msra.mxu0 %v5194
          %5958 = vmatprep.subr.bf16.mxu0 %v5199
          %5959 = vmatpush1.bf16.msra.mxu0 %v5198
          %5960 = vmatprep.subr.bf16.mxu0 %v5203
          %5961 = vmatpush1.bf16.msra.mxu0 %v5202
          %5962 = vmatprep.subr.bf16.mxu0 %v5207
          %5963 = vmatpush1.bf16.msra.mxu0 %v5206
          %5964 = vmatprep.subr.bf16.mxu0 0
          %5965 = vmatpush1.bf16.msra.mxu0 0
          %5966 = vmatprep.subr.bf16.mxu0 0
          %5967 = vmatpush1.bf16.msra.mxu0 0
          %5968 = vmatprep.subr.bf16.mxu0 0
          %5969 = vmatpush1.bf16.msra.mxu0 0
          %5970 = vmatprep.subr.bf16.mxu0 0
          %5971 = vmatpush1.bf16.msra.mxu0 0
          %5972 = vmatprep.subr.bf16.mxu0 0
          %5973 = vmatpush1.bf16.msra.mxu0 0
          %5974 = vmatprep.subr.bf16.mxu0 0
          %5975 = vmatpush1.bf16.msra.mxu0 0
          %5976 = vmatprep.subr.bf16.mxu0 0
          %5977 = vmatpush1.bf16.msra.mxu0 0
          %5978 = vmatprep.subr.bf16.mxu0 0
          %5979 = vmatpush1.bf16.msra.mxu0 0
          %5980 = vmatprep.mubr.bf16.mxu0 0
          %5981 = vmatmul.mubr.bf16.gmra.mrb[0].mxu0 %v5864
          %v5982 = vpop.f32.mrb[0].mxu0
          %v5983 = vadd.f32 %v5901, %v5982
          %v5984 = vpop.f32.mrb[0].mxu0
          %v5985 = vadd.f32 %v5903, %v5984
          %v5986 = vpop.f32.mrb[0].mxu0
          %v5987 = vpop.f32.mrb[0].mxu0
          %5988 = vdwg.mxu0
          %5989 = vmatprep.subr.bf16.mxu0 %v5181
          %5990 = vmatpush1.bf16.msra.mxu0 %v5180
          %5991 = vmatprep.subr.bf16.mxu0 %v5185
          %5992 = vmatpush1.bf16.msra.mxu0 %v5184
          %5993 = vmatprep.subr.bf16.mxu0 %v5189
          %5994 = vmatpush1.bf16.msra.mxu0 %v5188
          %5995 = vmatprep.subr.bf16.mxu0 %v5193
          %5996 = vmatpush1.bf16.msra.mxu0 %v5192
          %5997 = vmatprep.subr.bf16.mxu0 %v5197
          %5998 = vmatpush1.bf16.msra.mxu0 %v5196
          %5999 = vmatprep.subr.bf16.mxu0 %v5201
          %6000 = vmatpush1.bf16.msra.mxu0 %v5200
          %6001 = vmatprep.subr.bf16.mxu0 %v5205
          %6002 = vmatpush1.bf16.msra.mxu0 %v5204
          %6003 = vmatprep.subr.bf16.mxu0 %v5209
          %6004 = vmatpush1.bf16.msra.mxu0 %v5208
          %6005 = vmatprep.subr.bf16.mxu0 0
          %6006 = vmatpush1.bf16.msra.mxu0 0
          %6007 = vmatprep.subr.bf16.mxu0 0
          %6008 = vmatpush1.bf16.msra.mxu0 0
          %6009 = vmatprep.subr.bf16.mxu0 0
          %6010 = vmatpush1.bf16.msra.mxu0 0
          %6011 = vmatprep.subr.bf16.mxu0 0
          %6012 = vmatpush1.bf16.msra.mxu0 0
          %6013 = vmatprep.subr.bf16.mxu0 0
          %6014 = vmatpush1.bf16.msra.mxu0 0
          %6015 = vmatprep.subr.bf16.mxu0 0
          %6016 = vmatpush1.bf16.msra.mxu0 0
          %6017 = vmatprep.subr.bf16.mxu0 0
          %6018 = vmatpush1.bf16.msra.mxu0 0
          %6019 = vmatprep.subr.bf16.mxu0 0
          %6020 = vmatpush1.bf16.msra.mxu0 0
          %6021 = vmatprep.mubr.bf16.mxu0 0
          %6022 = vmatmul.mubr.bf16.gmra.mrb[0].mxu0 %v5864
          %v6023 = vpop.f32.mrb[0].mxu0
          %v6024 = vadd.f32 %v5942, %v6023
          %v6025 = vpop.f32.mrb[0].mxu0
          %v6026 = vadd.f32 %v5944, %v6025
          %v6027 = vpop.f32.mrb[0].mxu0
          %v6028 = vpop.f32.mrb[0].mxu0
          %6029 = vdwg.mxu0
          %v6030 = vadd.f32 %v5983, %v5329
          %v6031 = vadd.f32 %v5985, %v5333
          %v6032 = vadd.f32 %v6024, %v5337
          %v6033 = vadd.f32 %v6026, %v5341
          %v6034 = vxor.u32 %v6030, 2147483648
          %v6035 = vmul.f32 %v6034, 1.442695
          %v6036 = vpow.pop %v6035
          %v6037 = vadd.f32 %v6036, 1.0
          %v6038 = vrcp.pop %v6037
          %v6039 = vmul.f32 1.0, %v6038
          %v6040 = vxor.u32 %v6031, 2147483648
          %v6041 = vmul.f32 %v6040, 1.442695
          %v6042 = vpow.pop %v6041
          %v6043 = vadd.f32 %v6042, 1.0
          %v6044 = vrcp.pop %v6043
          %v6045 = vmul.f32 1.0, %v6044
          %v6046 = vtanh.pop %v6032
          %v6047 = vxor.u32 %v6033, 2147483648
          %v6048 = vmul.f32 %v6047, 1.442695
          %v6049 = vpow.pop %v6048
          %v6050 = vadd.f32 %v6049, 1.0
          %v6051 = vrcp.pop %v6050
          %v6052 = vmul.f32 1.0, %v6051
          %v6053 = vmul.f32 %v6045, %v5717
          %v6054 = vmul.f32 %v6039, %v6046
          %v6055 = vadd.f32 %v6053, %v6054
          %v6056 = vtanh.pop %v6055
          %v6057 = vmul.f32 %v6052, %v6056
          %v6058 = vsel %vm5723, %v6057, %v5716
          %v6059 = vsel %vm5723, %v6055, %v5717
          %vm6060 = vcmp.gt.s32.totalorder %v4437, 3
          %v6061 = vsel %vm6060, 1, 0
          %6062 = vset.pattern.permute.xlu0 0
          %6063 = vperm.xlu0 %6062, %v6061
          %v6064 = vpop.permute.xlu0 %6063
          %vm6065 = vcmp.eq.s32.totalorder %v6064, 1
          %s6066 = scalar_lea.vmem [#allocation3], 24
          %v6067 = vld [vmem:[%s6066] sm:$0xff]
          %6068 = vmatprep.subr.bf16.mxu0 %v4574
          %6069 = vmatpush1.bf16.msra.mxu0 %v4573
          %6070 = vmatprep.subr.bf16.mxu0 %v4578
          %6071 = vmatpush1.bf16.msra.mxu0 %v4577
          %6072 = vmatprep.subr.bf16.mxu0 %v4582
          %6073 = vmatpush1.bf16.msra.mxu0 %v4581
          %6074 = vmatprep.subr.bf16.mxu0 %v4586
          %6075 = vmatpush1.bf16.msra.mxu0 %v4585
          %6076 = vmatprep.subr.bf16.mxu0 %v4590
          %6077 = vmatpush1.bf16.msra.mxu0 %v4589
          %6078 = vmatprep.subr.bf16.mxu0 %v4594
          %6079 = vmatpush1.bf16.msra.mxu0 %v4593
          %6080 = vmatprep.subr.bf16.mxu0 %v4598
          %6081 = vmatpush1.bf16.msra.mxu0 %v4597
          %6082 = vmatprep.subr.bf16.mxu0 %v4602
          %6083 = vmatpush1.bf16.msra.mxu0 %v4601
          %6084 = vmatprep.subr.bf16.mxu0 0
          %6085 = vmatpush1.bf16.msra.mxu0 0
          %6086 = vmatprep.subr.bf16.mxu0 0
          %6087 = vmatpush1.bf16.msra.mxu0 0
          %6088 = vmatprep.subr.bf16.mxu0 0
          %6089 = vmatpush1.bf16.msra.mxu0 0
          %6090 = vmatprep.subr.bf16.mxu0 0
          %6091 = vmatpush1.bf16.msra.mxu0 0
          %6092 = vmatprep.subr.bf16.mxu0 0
          %6093 = vmatpush1.bf16.msra.mxu0 0
          %6094 = vmatprep.subr.bf16.mxu0 0
          %6095 = vmatpush1.bf16.msra.mxu0 0
          %6096 = vmatprep.subr.bf16.mxu0 0
          %6097 = vmatpush1.bf16.msra.mxu0 0
          %6098 = vmatprep.subr.bf16.mxu0 0
          %6099 = vmatpush1.bf16.msra.mxu0 0
          %6100 = vmatprep.mubr.bf16.mxu0 0
          %6101 = vmatmul.mubr.bf16.gmra.mrb[0].mxu0 %v5864
          %v6102 = vpop.f32.mrb[0].mxu0
          %v6103 = vadd.f32 0.0, %v6102
          %v6104 = vpop.f32.mrb[0].mxu0
          %v6105 = vadd.f32 0.0, %v6104
          %v6106 = vpop.f32.mrb[0].mxu0
          %v6107 = vpop.f32.mrb[0].mxu0
          %6108 = vdwg.mxu0
          %6109 = vmatprep.subr.bf16.mxu0 %v4576
          %6110 = vmatpush1.bf16.msra.mxu0 %v4575
          %6111 = vmatprep.subr.bf16.mxu0 %v4580
          %6112 = vmatpush1.bf16.msra.mxu0 %v4579
          %6113 = vmatprep.subr.bf16.mxu0 %v4584
          %6114 = vmatpush1.bf16.msra.mxu0 %v4583
          %6115 = vmatprep.subr.bf16.mxu0 %v4588
          %6116 = vmatpush1.bf16.msra.mxu0 %v4587
          %6117 = vmatprep.subr.bf16.mxu0 %v4592
          %6118 = vmatpush1.bf16.msra.mxu0 %v4591
          %6119 = vmatprep.subr.bf16.mxu0 %v4596
          %6120 = vmatpush1.bf16.msra.mxu0 %v4595
          %6121 = vmatprep.subr.bf16.mxu0 %v4600
          %6122 = vmatpush1.bf16.msra.mxu0 %v4599
          %6123 = vmatprep.subr.bf16.mxu0 %v4604
          %6124 = vmatpush1.bf16.msra.mxu0 %v4603
          %6125 = vmatprep.subr.bf16.mxu0 0
          %6126 = vmatpush1.bf16.msra.mxu0 0
          %6127 = vmatprep.subr.bf16.mxu0 0
          %6128 = vmatpush1.bf16.msra.mxu0 0
          %6129 = vmatprep.subr.bf16.mxu0 0
          %6130 = vmatpush1.bf16.msra.mxu0 0
          %6131 = vmatprep.subr.bf16.mxu0 0
          %6132 = vmatpush1.bf16.msra.mxu0 0
          %6133 = vmatprep.subr.bf16.mxu0 0
          %6134 = vmatpush1.bf16.msra.mxu0 0
          %6135 = vmatprep.subr.bf16.mxu0 0
          %6136 = vmatpush1.bf16.msra.mxu0 0
          %6137 = vmatprep.subr.bf16.mxu0 0
          %6138 = vmatpush1.bf16.msra.mxu0 0
          %6139 = vmatprep.subr.bf16.mxu0 0
          %6140 = vmatpush1.bf16.msra.mxu0 0
          %6141 = vmatprep.mubr.bf16.mxu0 0
          %6142 = vmatmul.mubr.bf16.gmra.mrb[0].mxu0 %v5864
          %v6143 = vpop.f32.mrb[0].mxu0
          %v6144 = vadd.f32 0.0, %v6143
          %v6145 = vpop.f32.mrb[0].mxu0
          %v6146 = vadd.f32 0.0, %v6145
          %v6147 = vpop.f32.mrb[0].mxu0
          %v6148 = vpop.f32.mrb[0].mxu0
          %6149 = vdwg.mxu0
          %v6154 = vcombine.low %v6103, %v6105
          %v6155 = vcombine.low %v6144, %v6146
          %v6157 = vunpack.c.l.s4 1983009808
          %v6158 = vunpack.c.0.s8 %v6157
          %v6159 = vlaneseq
          %v6160 = vshrl.u32 %v6159, 7
          %v6161 = vsub.s32 %v6158, %v6160
          %v6162 = vrot.slane %v6154, %v6161
          %v6164 = vunpack.c.l.s4 1983009808
          %v6165 = vunpack.c.0.s8 %v6164
          %v6166 = vlaneseq
          %v6167 = vshrl.u32 %v6166, 7
          %v6168 = vsub.s32 %v6165, %v6167
          %v6169 = vrot.slane %v6155, %v6168
          %v6170 = vcombine.low %v6162, %v6169
          %v6172 = vadd.f32 %v6067, %v6170
          %v6173 = vxor.u32 %v6172, 2147483648
          %v6174 = vmul.f32 %v6173, 1.442695
          %v6175 = vpow.pop %v6174
          %v6176 = vadd.f32 %v6175, 1.0
          %v6177 = vrcp.pop %v6176
          %v6178 = vmul.f32 1.0, %v6177
          %v6180 = vrot.slane %v6172, 2
          %v6182 = vxor.u32 %v6180, 2147483648
          %v6183 = vmul.f32 %v6182, 1.442695
          %v6184 = vpow.pop %v6183
          %v6185 = vadd.f32 %v6184, 1.0
          %v6186 = vrcp.pop %v6185
          %v6187 = vmul.f32 1.0, %v6186
          %v6188 = vrot.slane %v6172, 4
          %v6190 = vtanh.pop %v6188
          %v6191 = vrot.slane %v6172, 6
          %v6193 = vxor.u32 %v6191, 2147483648
          %v6194 = vmul.f32 %v6193, 1.442695
          %v6195 = vpow.pop %v6194
          %v6196 = vadd.f32 %v6195, 1.0
          %v6197 = vrcp.pop %v6196
          %v6198 = vmul.f32 1.0, %v6197
          %v6199 = vmul.f32 %v6187, %v5863
          %v6200 = vmul.f32 %v6178, %v6190
          %v6201 = vadd.f32 %v6199, %v6200
          %v6202 = vtanh.pop %v6201
          %v6203 = vmul.f32 %v6198, %v6202
          %v6204 = vsel %vm6065, %v6203, %v5862
          %v6205 = vsel %vm6065, %v6201, %v5863
          %v6206 = vpack.c.bf16 %v6204, %v6204
          %v6207 = vpack.c.bf16 %v6058, %v6058
          %6208 = vmatprep.subr.bf16.mxu0 %v4937
          %6209 = vmatpush1.bf16.msra.mxu0 %v4936
          %6210 = vmatprep.subr.bf16.mxu0 %v4941
          %6211 = vmatpush1.bf16.msra.mxu0 %v4940
          %6212 = vmatprep.subr.bf16.mxu0 %v4945
          %6213 = vmatpush1.bf16.msra.mxu0 %v4944
          %6214 = vmatprep.subr.bf16.mxu0 %v4949
          %6215 = vmatpush1.bf16.msra.mxu0 %v4948
          %6216 = vmatprep.subr.bf16.mxu0 %v4953
          %6217 = vmatpush1.bf16.msra.mxu0 %v4952
          %6218 = vmatprep.subr.bf16.mxu0 %v4957
          %6219 = vmatpush1.bf16.msra.mxu0 %v4956
          %6220 = vmatprep.subr.bf16.mxu0 %v4961
          %6221 = vmatpush1.bf16.msra.mxu0 %v4960
          %6222 = vmatprep.subr.bf16.mxu0 %v4965
          %6223 = vmatpush1.bf16.msra.mxu0 %v4964
          %6224 = vmatprep.subr.bf16.mxu0 0
          %6225 = vmatpush1.bf16.msra.mxu0 0
          %6226 = vmatprep.subr.bf16.mxu0 0
          %6227 = vmatpush1.bf16.msra.mxu0 0
          %6228 = vmatprep.subr.bf16.mxu0 0
          %6229 = vmatpush1.bf16.msra.mxu0 0
          %6230 = vmatprep.subr.bf16.mxu0 0
          %6231 = vmatpush1.bf16.msra.mxu0 0
          %6232 = vmatprep.subr.bf16.mxu0 0
          %6233 = vmatpush1.bf16.msra.mxu0 0
          %6234 = vmatprep.subr.bf16.mxu0 0
          %6235 = vmatpush1.bf16.msra.mxu0 0
          %6236 = vmatprep.subr.bf16.mxu0 0
          %6237 = vmatpush1.bf16.msra.mxu0 0
          %6238 = vmatprep.subr.bf16.mxu0 0
          %6239 = vmatpush1.bf16.msra.mxu0 0
          %6240 = vmatprep.mubr.bf16.mxu0 0
          %6241 = vmatmul.mubr.bf16.gmra.mrb[0].mxu0 %v6207
          %v6242 = vpop.f32.mrb[0].mxu0
          %v6243 = vadd.f32 0.0, %v6242
          %v6244 = vpop.f32.mrb[0].mxu0
          %v6245 = vadd.f32 0.0, %v6244
          %v6246 = vpop.f32.mrb[0].mxu0
          %v6247 = vpop.f32.mrb[0].mxu0
          %6248 = vdwg.mxu0
          %6249 = vmatprep.subr.bf16.mxu0 %v4939
          %6250 = vmatpush1.bf16.msra.mxu0 %v4938
          %6251 = vmatprep.subr.bf16.mxu0 %v4943
          %6252 = vmatpush1.bf16.msra.mxu0 %v4942
          %6253 = vmatprep.subr.bf16.mxu0 %v4947
          %6254 = vmatpush1.bf16.msra.mxu0 %v4946
          %6255 = vmatprep.subr.bf16.mxu0 %v4951
          %6256 = vmatpush1.bf16.msra.mxu0 %v4950
          %6257 = vmatprep.subr.bf16.mxu0 %v4955
          %6258 = vmatpush1.bf16.msra.mxu0 %v4954
          %6259 = vmatprep.subr.bf16.mxu0 %v4959
          %6260 = vmatpush1.bf16.msra.mxu0 %v4958
          %6261 = vmatprep.subr.bf16.mxu0 %v4963
          %6262 = vmatpush1.bf16.msra.mxu0 %v4962
          %6263 = vmatprep.subr.bf16.mxu0 %v4967
          %6264 = vmatpush1.bf16.msra.mxu0 %v4966
          %6265 = vmatprep.subr.bf16.mxu0 0
          %6266 = vmatpush1.bf16.msra.mxu0 0
          %6267 = vmatprep.subr.bf16.mxu0 0
          %6268 = vmatpush1.bf16.msra.mxu0 0
          %6269 = vmatprep.subr.bf16.mxu0 0
          %6270 = vmatpush1.bf16.msra.mxu0 0
          %6271 = vmatprep.subr.bf16.mxu0 0
          %6272 = vmatpush1.bf16.msra.mxu0 0
          %6273 = vmatprep.subr.bf16.mxu0 0
          %6274 = vmatpush1.bf16.msra.mxu0 0
          %6275 = vmatprep.subr.bf16.mxu0 0
          %6276 = vmatpush1.bf16.msra.mxu0 0
          %6277 = vmatprep.subr.bf16.mxu0 0
          %6278 = vmatpush1.bf16.msra.mxu0 0
          %6279 = vmatprep.subr.bf16.mxu0 0
          %6280 = vmatpush1.bf16.msra.mxu0 0
          %6281 = vmatprep.mubr.bf16.mxu0 0
          %6282 = vmatmul.mubr.bf16.gmra.mrb[0].mxu0 %v6207
          %v6283 = vpop.f32.mrb[0].mxu0
          %v6284 = vadd.f32 0.0, %v6283
          %v6285 = vpop.f32.mrb[0].mxu0
          %v6286 = vadd.f32 0.0, %v6285
          %v6287 = vpop.f32.mrb[0].mxu0
          %v6288 = vpop.f32.mrb[0].mxu0
          %6289 = vdwg.mxu0
          %6290 = vmatprep.subr.bf16.mxu0 %v5179
          %6291 = vmatpush1.bf16.msra.mxu0 %v5178
          %6292 = vmatprep.subr.bf16.mxu0 %v5183
          %6293 = vmatpush1.bf16.msra.mxu0 %v5182
          %6294 = vmatprep.subr.bf16.mxu0 %v5187
          %6295 = vmatpush1.bf16.msra.mxu0 %v5186
          %6296 = vmatprep.subr.bf16.mxu0 %v5191
          %6297 = vmatpush1.bf16.msra.mxu0 %v5190
          %6298 = vmatprep.subr.bf16.mxu0 %v5195
          %6299 = vmatpush1.bf16.msra.mxu0 %v5194
          %6300 = vmatprep.subr.bf16.mxu0 %v5199
          %6301 = vmatpush1.bf16.msra.mxu0 %v5198
          %6302 = vmatprep.subr.bf16.mxu0 %v5203
          %6303 = vmatpush1.bf16.msra.mxu0 %v5202
          %6304 = vmatprep.subr.bf16.mxu0 %v5207
          %6305 = vmatpush1.bf16.msra.mxu0 %v5206
          %6306 = vmatprep.subr.bf16.mxu0 0
          %6307 = vmatpush1.bf16.msra.mxu0 0
          %6308 = vmatprep.subr.bf16.mxu0 0
          %6309 = vmatpush1.bf16.msra.mxu0 0
          %6310 = vmatprep.subr.bf16.mxu0 0
          %6311 = vmatpush1.bf16.msra.mxu0 0
          %6312 = vmatprep.subr.bf16.mxu0 0
          %6313 = vmatpush1.bf16.msra.mxu0 0
          %6314 = vmatprep.subr.bf16.mxu0 0
          %6315 = vmatpush1.bf16.msra.mxu0 0
          %6316 = vmatprep.subr.bf16.mxu0 0
          %6317 = vmatpush1.bf16.msra.mxu0 0
          %6318 = vmatprep.subr.bf16.mxu0 0
          %6319 = vmatpush1.bf16.msra.mxu0 0
          %6320 = vmatprep.subr.bf16.mxu0 0
          %6321 = vmatpush1.bf16.msra.mxu0 0
          %6322 = vmatprep.mubr.bf16.mxu0 0
          %6323 = vmatmul.mubr.bf16.gmra.mrb[0].mxu0 %v6206
          %v6324 = vpop.f32.mrb[0].mxu0
          %v6325 = vadd.f32 %v6243, %v6324
          %v6326 = vpop.f32.mrb[0].mxu0
          %v6327 = vadd.f32 %v6245, %v6326
          %v6328 = vpop.f32.mrb[0].mxu0
          %v6329 = vpop.f32.mrb[0].mxu0
          %6330 = vdwg.mxu0
          %6331 = vmatprep.subr.bf16.mxu0 %v5181
          %6332 = vmatpush1.bf16.msra.mxu0 %v5180
          %6333 = vmatprep.subr.bf16.mxu0 %v5185
          %6334 = vmatpush1.bf16.msra.mxu0 %v5184
          %6335 = vmatprep.subr.bf16.mxu0 %v5189
          %6336 = vmatpush1.bf16.msra.mxu0 %v5188
          %6337 = vmatprep.subr.bf16.mxu0 %v5193
          %6338 = vmatpush1.bf16.msra.mxu0 %v5192
          %6339 = vmatprep.subr.bf16.mxu0 %v5197
          %6340 = vmatpush1.bf16.msra.mxu0 %v5196
          %6341 = vmatprep.subr.bf16.mxu0 %v5201
          %6342 = vmatpush1.bf16.msra.mxu0 %v5200
          %6343 = vmatprep.subr.bf16.mxu0 %v5205
          %6344 = vmatpush1.bf16.msra.mxu0 %v5204
          %6345 = vmatprep.subr.bf16.mxu0 %v5209
          %6346 = vmatpush1.bf16.msra.mxu0 %v5208
          %6347 = vmatprep.subr.bf16.mxu0 0
          %6348 = vmatpush1.bf16.msra.mxu0 0
          %6349 = vmatprep.subr.bf16.mxu0 0
          %6350 = vmatpush1.bf16.msra.mxu0 0
          %6351 = vmatprep.subr.bf16.mxu0 0
          %6352 = vmatpush1.bf16.msra.mxu0 0
          %6353 = vmatprep.subr.bf16.mxu0 0
          %6354 = vmatpush1.bf16.msra.mxu0 0
          %6355 = vmatprep.subr.bf16.mxu0 0
          %6356 = vmatpush1.bf16.msra.mxu0 0
          %6357 = vmatprep.subr.bf16.mxu0 0
          %6358 = vmatpush1.bf16.msra.mxu0 0
          %6359 = vmatprep.subr.bf16.mxu0 0
          %6360 = vmatpush1.bf16.msra.mxu0 0
          %6361 = vmatprep.subr.bf16.mxu0 0
          %6362 = vmatpush1.bf16.msra.mxu0 0
          %6363 = vmatprep.mubr.bf16.mxu0 0
          %6364 = vmatmul.mubr.bf16.gmra.mrb[0].mxu0 %v6206
          %v6365 = vpop.f32.mrb[0].mxu0
          %v6366 = vadd.f32 %v6284, %v6365
          %v6367 = vpop.f32.mrb[0].mxu0
          %v6368 = vadd.f32 %v6286, %v6367
          %v6369 = vpop.f32.mrb[0].mxu0
          %v6370 = vpop.f32.mrb[0].mxu0
          %6371 = vdwg.mxu0
          %v6372 = vadd.f32 %v6325, %v5329
          %v6373 = vadd.f32 %v6327, %v5333
          %v6374 = vadd.f32 %v6366, %v5337
          %v6375 = vadd.f32 %v6368, %v5341
          %v6376 = vxor.u32 %v6372, 2147483648
          %v6377 = vmul.f32 %v6376, 1.442695
          %v6378 = vpow.pop %v6377
          %v6379 = vadd.f32 %v6378, 1.0
          %v6380 = vrcp.pop %v6379
          %v6381 = vmul.f32 1.0, %v6380
          %v6382 = vxor.u32 %v6373, 2147483648
          %v6383 = vmul.f32 %v6382, 1.442695
          %v6384 = vpow.pop %v6383
          %v6385 = vadd.f32 %v6384, 1.0
          %v6386 = vrcp.pop %v6385
          %v6387 = vmul.f32 1.0, %v6386
          %v6388 = vtanh.pop %v6374
          %v6389 = vxor.u32 %v6375, 2147483648
          %v6390 = vmul.f32 %v6389, 1.442695
          %v6391 = vpow.pop %v6390
          %v6392 = vadd.f32 %v6391, 1.0
          %v6393 = vrcp.pop %v6392
          %v6394 = vmul.f32 1.0, %v6393
          %v6395 = vmul.f32 %v6387, %v6059
          %v6396 = vmul.f32 %v6381, %v6388
          %v6397 = vadd.f32 %v6395, %v6396
          %v6398 = vtanh.pop %v6397
          %v6399 = vmul.f32 %v6394, %v6398
          %v6400 = vsel %vm6065, %v6399, %v6058
          %v6401 = vsel %vm6065, %v6397, %v6059
          %vm6402 = vcmp.gt.s32.totalorder %v4437, 4
          %v6403 = vsel %vm6402, 1, 0
          %6404 = vset.pattern.permute.xlu0 0
          %6405 = vperm.xlu0 %6404, %v6403
          %v6406 = vpop.permute.xlu0 %6405
          %vm6407 = vcmp.eq.s32.totalorder %v6406, 1
          %s6408 = scalar_lea.vmem [#allocation3], 32
          %v6409 = vld [vmem:[%s6408] sm:$0xff]
          %6410 = vmatprep.subr.bf16.mxu0 %v4574
          %6411 = vmatpush1.bf16.msra.mxu0 %v4573
          %6412 = vmatprep.subr.bf16.mxu0 %v4578
          %6413 = vmatpush1.bf16.msra.mxu0 %v4577
          %6414 = vmatprep.subr.bf16.mxu0 %v4582
          %6415 = vmatpush1.bf16.msra.mxu0 %v4581
          %6416 = vmatprep.subr.bf16.mxu0 %v4586
          %6417 = vmatpush1.bf16.msra.mxu0 %v4585
          %6418 = vmatprep.subr.bf16.mxu0 %v4590
          %6419 = vmatpush1.bf16.msra.mxu0 %v4589
          %6420 = vmatprep.subr.bf16.mxu0 %v4594
          %6421 = vmatpush1.bf16.msra.mxu0 %v4593
          %6422 = vmatprep.subr.bf16.mxu0 %v4598
          %6423 = vmatpush1.bf16.msra.mxu0 %v4597
          %6424 = vmatprep.subr.bf16.mxu0 %v4602
          %6425 = vmatpush1.bf16.msra.mxu0 %v4601
          %6426 = vmatprep.subr.bf16.mxu0 0
          %6427 = vmatpush1.bf16.msra.mxu0 0
          %6428 = vmatprep.subr.bf16.mxu0 0
          %6429 = vmatpush1.bf16.msra.mxu0 0
          %6430 = vmatprep.subr.bf16.mxu0 0
          %6431 = vmatpush1.bf16.msra.mxu0 0
          %6432 = vmatprep.subr.bf16.mxu0 0
          %6433 = vmatpush1.bf16.msra.mxu0 0
          %6434 = vmatprep.subr.bf16.mxu0 0
          %6435 = vmatpush1.bf16.msra.mxu0 0
          %6436 = vmatprep.subr.bf16.mxu0 0
          %6437 = vmatpush1.bf16.msra.mxu0 0
          %6438 = vmatprep.subr.bf16.mxu0 0
          %6439 = vmatpush1.bf16.msra.mxu0 0
          %6440 = vmatprep.subr.bf16.mxu0 0
          %6441 = vmatpush1.bf16.msra.mxu0 0
          %6442 = vmatprep.mubr.bf16.mxu0 0
          %6443 = vmatmul.mubr.bf16.gmra.mrb[0].mxu0 %v6206
          %v6444 = vpop.f32.mrb[0].mxu0
          %v6445 = vadd.f32 0.0, %v6444
          %v6446 = vpop.f32.mrb[0].mxu0
          %v6447 = vadd.f32 0.0, %v6446
          %v6448 = vpop.f32.mrb[0].mxu0
          %v6449 = vpop.f32.mrb[0].mxu0
          %6450 = vdwg.mxu0
          %6451 = vmatprep.subr.bf16.mxu0 %v4576
          %6452 = vmatpush1.bf16.msra.mxu0 %v4575
          %6453 = vmatprep.subr.bf16.mxu0 %v4580
          %6454 = vmatpush1.bf16.msra.mxu0 %v4579
          %6455 = vmatprep.subr.bf16.mxu0 %v4584
          %6456 = vmatpush1.bf16.msra.mxu0 %v4583
          %6457 = vmatprep.subr.bf16.mxu0 %v4588
          %6458 = vmatpush1.bf16.msra.mxu0 %v4587
          %6459 = vmatprep.subr.bf16.mxu0 %v4592
          %6460 = vmatpush1.bf16.msra.mxu0 %v4591
          %6461 = vmatprep.subr.bf16.mxu0 %v4596
          %6462 = vmatpush1.bf16.msra.mxu0 %v4595
          %6463 = vmatprep.subr.bf16.mxu0 %v4600
          %6464 = vmatpush1.bf16.msra.mxu0 %v4599
          %6465 = vmatprep.subr.bf16.mxu0 %v4604
          %6466 = vmatpush1.bf16.msra.mxu0 %v4603
          %6467 = vmatprep.subr.bf16.mxu0 0
          %6468 = vmatpush1.bf16.msra.mxu0 0
          %6469 = vmatprep.subr.bf16.mxu0 0
          %6470 = vmatpush1.bf16.msra.mxu0 0
          %6471 = vmatprep.subr.bf16.mxu0 0
          %6472 = vmatpush1.bf16.msra.mxu0 0
          %6473 = vmatprep.subr.bf16.mxu0 0
          %6474 = vmatpush1.bf16.msra.mxu0 0
          %6475 = vmatprep.subr.bf16.mxu0 0
          %6476 = vmatpush1.bf16.msra.mxu0 0
          %6477 = vmatprep.subr.bf16.mxu0 0
          %6478 = vmatpush1.bf16.msra.mxu0 0
          %6479 = vmatprep.subr.bf16.mxu0 0
          %6480 = vmatpush1.bf16.msra.mxu0 0
          %6481 = vmatprep.subr.bf16.mxu0 0
          %6482 = vmatpush1.bf16.msra.mxu0 0
          %6483 = vmatprep.mubr.bf16.mxu0 0
          %6484 = vmatmul.mubr.bf16.gmra.mrb[0].mxu0 %v6206
          %v6485 = vpop.f32.mrb[0].mxu0
          %v6486 = vadd.f32 0.0, %v6485
          %v6487 = vpop.f32.mrb[0].mxu0
          %v6488 = vadd.f32 0.0, %v6487
          %v6489 = vpop.f32.mrb[0].mxu0
          %v6490 = vpop.f32.mrb[0].mxu0
          %6491 = vdwg.mxu0
          %v6496 = vcombine.low %v6445, %v6447
          %v6497 = vcombine.low %v6486, %v6488
          %v6499 = vunpack.c.l.s4 1983009808
          %v6500 = vunpack.c.0.s8 %v6499
          %v6501 = vlaneseq
          %v6502 = vshrl.u32 %v6501, 7
          %v6503 = vsub.s32 %v6500, %v6502
          %v6504 = vrot.slane %v6496, %v6503
          %v6506 = vunpack.c.l.s4 1983009808
          %v6507 = vunpack.c.0.s8 %v6506
          %v6508 = vlaneseq
          %v6509 = vshrl.u32 %v6508, 7
          %v6510 = vsub.s32 %v6507, %v6509
          %v6511 = vrot.slane %v6497, %v6510
          %v6512 = vcombine.low %v6504, %v6511
          %v6514 = vadd.f32 %v6409, %v6512
          %v6515 = vxor.u32 %v6514, 2147483648
          %v6516 = vmul.f32 %v6515, 1.442695
          %v6517 = vpow.pop %v6516
          %v6518 = vadd.f32 %v6517, 1.0
          %v6519 = vrcp.pop %v6518
          %v6520 = vmul.f32 1.0, %v6519
          %v6522 = vrot.slane %v6514, 2
          %v6524 = vxor.u32 %v6522, 2147483648
          %v6525 = vmul.f32 %v6524, 1.442695
          %v6526 = vpow.pop %v6525
          %v6527 = vadd.f32 %v6526, 1.0
          %v6528 = vrcp.pop %v6527
          %v6529 = vmul.f32 1.0, %v6528
          %v6530 = vrot.slane %v6514, 4
          %v6532 = vtanh.pop %v6530
          %v6533 = vrot.slane %v6514, 6
          %v6535 = vxor.u32 %v6533, 2147483648
          %v6536 = vmul.f32 %v6535, 1.442695
          %v6537 = vpow.pop %v6536
          %v6538 = vadd.f32 %v6537, 1.0
          %v6539 = vrcp.pop %v6538
          %v6540 = vmul.f32 1.0, %v6539
          %v6541 = vmul.f32 %v6529, %v6205
          %v6542 = vmul.f32 %v6520, %v6532
          %v6543 = vadd.f32 %v6541, %v6542
          %v6544 = vtanh.pop %v6543
          %v6545 = vmul.f32 %v6540, %v6544
          %v6546 = vsel %vm6407, %v6545, %v6204
          %v6547 = vsel %vm6407, %v6543, %v6205
          %v6548 = vpack.c.bf16 %v6546, %v6546
          %v6549 = vpack.c.bf16 %v6400, %v6400
          %6550 = vmatprep.subr.bf16.mxu0 %v4937
          %6551 = vmatpush1.bf16.msra.mxu0 %v4936
          %6552 = vmatprep.subr.bf16.mxu0 %v4941
          %6553 = vmatpush1.bf16.msra.mxu0 %v4940
          %6554 = vmatprep.subr.bf16.mxu0 %v4945
          %6555 = vmatpush1.bf16.msra.mxu0 %v4944
          %6556 = vmatprep.subr.bf16.mxu0 %v4949
          %6557 = vmatpush1.bf16.msra.mxu0 %v4948
          %6558 = vmatprep.subr.bf16.mxu0 %v4953
          %6559 = vmatpush1.bf16.msra.mxu0 %v4952
          %6560 = vmatprep.subr.bf16.mxu0 %v4957
          %6561 = vmatpush1.bf16.msra.mxu0 %v4956
          %6562 = vmatprep.subr.bf16.mxu0 %v4961
          %6563 = vmatpush1.bf16.msra.mxu0 %v4960
          %6564 = vmatprep.subr.bf16.mxu0 %v4965
          %6565 = vmatpush1.bf16.msra.mxu0 %v4964
          %6566 = vmatprep.subr.bf16.mxu0 0
          %6567 = vmatpush1.bf16.msra.mxu0 0
          %6568 = vmatprep.subr.bf16.mxu0 0
          %6569 = vmatpush1.bf16.msra.mxu0 0
          %6570 = vmatprep.subr.bf16.mxu0 0
          %6571 = vmatpush1.bf16.msra.mxu0 0
          %6572 = vmatprep.subr.bf16.mxu0 0
          %6573 = vmatpush1.bf16.msra.mxu0 0
          %6574 = vmatprep.subr.bf16.mxu0 0
          %6575 = vmatpush1.bf16.msra.mxu0 0
          %6576 = vmatprep.subr.bf16.mxu0 0
          %6577 = vmatpush1.bf16.msra.mxu0 0
          %6578 = vmatprep.subr.bf16.mxu0 0
          %6579 = vmatpush1.bf16.msra.mxu0 0
          %6580 = vmatprep.subr.bf16.mxu0 0
          %6581 = vmatpush1.bf16.msra.mxu0 0
          %6582 = vmatprep.mubr.bf16.mxu0 0
          %6583 = vmatmul.mubr.bf16.gmra.mrb[0].mxu0 %v6549
          %v6584 = vpop.f32.mrb[0].mxu0
          %v6585 = vadd.f32 0.0, %v6584
          %v6586 = vpop.f32.mrb[0].mxu0
          %v6587 = vadd.f32 0.0, %v6586
          %v6588 = vpop.f32.mrb[0].mxu0
          %v6589 = vpop.f32.mrb[0].mxu0
          %6590 = vdwg.mxu0
          %6591 = vmatprep.subr.bf16.mxu0 %v4939
          %6592 = vmatpush1.bf16.msra.mxu0 %v4938
          %6593 = vmatprep.subr.bf16.mxu0 %v4943
          %6594 = vmatpush1.bf16.msra.mxu0 %v4942
          %6595 = vmatprep.subr.bf16.mxu0 %v4947
          %6596 = vmatpush1.bf16.msra.mxu0 %v4946
          %6597 = vmatprep.subr.bf16.mxu0 %v4951
          %6598 = vmatpush1.bf16.msra.mxu0 %v4950
          %6599 = vmatprep.subr.bf16.mxu0 %v4955
          %6600 = vmatpush1.bf16.msra.mxu0 %v4954
          %6601 = vmatprep.subr.bf16.mxu0 %v4959
          %6602 = vmatpush1.bf16.msra.mxu0 %v4958
          %6603 = vmatprep.subr.bf16.mxu0 %v4963
          %6604 = vmatpush1.bf16.msra.mxu0 %v4962
          %6605 = vmatprep.subr.bf16.mxu0 %v4967
          %6606 = vmatpush1.bf16.msra.mxu0 %v4966
          %6607 = vmatprep.subr.bf16.mxu0 0
          %6608 = vmatpush1.bf16.msra.mxu0 0
          %6609 = vmatprep.subr.bf16.mxu0 0
          %6610 = vmatpush1.bf16.msra.mxu0 0
          %6611 = vmatprep.subr.bf16.mxu0 0
          %6612 = vmatpush1.bf16.msra.mxu0 0
          %6613 = vmatprep.subr.bf16.mxu0 0
          %6614 = vmatpush1.bf16.msra.mxu0 0
          %6615 = vmatprep.subr.bf16.mxu0 0
          %6616 = vmatpush1.bf16.msra.mxu0 0
          %6617 = vmatprep.subr.bf16.mxu0 0
          %6618 = vmatpush1.bf16.msra.mxu0 0
          %6619 = vmatprep.subr.bf16.mxu0 0
          %6620 = vmatpush1.bf16.msra.mxu0 0
          %6621 = vmatprep.subr.bf16.mxu0 0
          %6622 = vmatpush1.bf16.msra.mxu0 0
          %6623 = vmatprep.mubr.bf16.mxu0 0
          %6624 = vmatmul.mubr.bf16.gmra.mrb[0].mxu0 %v6549
          %v6625 = vpop.f32.mrb[0].mxu0
          %v6626 = vadd.f32 0.0, %v6625
          %v6627 = vpop.f32.mrb[0].mxu0
          %v6628 = vadd.f32 0.0, %v6627
          %v6629 = vpop.f32.mrb[0].mxu0
          %v6630 = vpop.f32.mrb[0].mxu0
          %6631 = vdwg.mxu0
          %6632 = vmatprep.subr.bf16.mxu0 %v5179
          %6633 = vmatpush1.bf16.msra.mxu0 %v5178
          %6634 = vmatprep.subr.bf16.mxu0 %v5183
          %6635 = vmatpush1.bf16.msra.mxu0 %v5182
          %6636 = vmatprep.subr.bf16.mxu0 %v5187
          %6637 = vmatpush1.bf16.msra.mxu0 %v5186
          %6638 = vmatprep.subr.bf16.mxu0 %v5191
          %6639 = vmatpush1.bf16.msra.mxu0 %v5190
          %6640 = vmatprep.subr.bf16.mxu0 %v5195
          %6641 = vmatpush1.bf16.msra.mxu0 %v5194
          %6642 = vmatprep.subr.bf16.mxu0 %v5199
          %6643 = vmatpush1.bf16.msra.mxu0 %v5198
          %6644 = vmatprep.subr.bf16.mxu0 %v5203
          %6645 = vmatpush1.bf16.msra.mxu0 %v5202
          %6646 = vmatprep.subr.bf16.mxu0 %v5207
          %6647 = vmatpush1.bf16.msra.mxu0 %v5206
          %6648 = vmatprep.subr.bf16.mxu0 0
          %6649 = vmatpush1.bf16.msra.mxu0 0
          %6650 = vmatprep.subr.bf16.mxu0 0
          %6651 = vmatpush1.bf16.msra.mxu0 0
          %6652 = vmatprep.subr.bf16.mxu0 0
          %6653 = vmatpush1.bf16.msra.mxu0 0
          %6654 = vmatprep.subr.bf16.mxu0 0
          %6655 = vmatpush1.bf16.msra.mxu0 0
          %6656 = vmatprep.subr.bf16.mxu0 0
          %6657 = vmatpush1.bf16.msra.mxu0 0
          %6658 = vmatprep.subr.bf16.mxu0 0
          %6659 = vmatpush1.bf16.msra.mxu0 0
          %6660 = vmatprep.subr.bf16.mxu0 0
          %6661 = vmatpush1.bf16.msra.mxu0 0
          %6662 = vmatprep.subr.bf16.mxu0 0
          %6663 = vmatpush1.bf16.msra.mxu0 0
          %6664 = vmatprep.mubr.bf16.mxu0 0
          %6665 = vmatmul.mubr.bf16.gmra.mrb[0].mxu0 %v6548
          %v6666 = vpop.f32.mrb[0].mxu0
          %v6667 = vadd.f32 %v6585, %v6666
          %v6668 = vpop.f32.mrb[0].mxu0
          %v6669 = vadd.f32 %v6587, %v6668
          %v6670 = vpop.f32.mrb[0].mxu0
          %v6671 = vpop.f32.mrb[0].mxu0
          %6672 = vdwg.mxu0
          %6673 = vmatprep.subr.bf16.mxu0 %v5181
          %6674 = vmatpush1.bf16.msra.mxu0 %v5180
          %6675 = vmatprep.subr.bf16.mxu0 %v5185
          %6676 = vmatpush1.bf16.msra.mxu0 %v5184
          %6677 = vmatprep.subr.bf16.mxu0 %v5189
          %6678 = vmatpush1.bf16.msra.mxu0 %v5188
          %6679 = vmatprep.subr.bf16.mxu0 %v5193
          %6680 = vmatpush1.bf16.msra.mxu0 %v5192
          %6681 = vmatprep.subr.bf16.mxu0 %v5197
          %6682 = vmatpush1.bf16.msra.mxu0 %v5196
          %6683 = vmatprep.subr.bf16.mxu0 %v5201
          %6684 = vmatpush1.bf16.msra.mxu0 %v5200
          %6685 = vmatprep.subr.bf16.mxu0 %v5205
          %6686 = vmatpush1.bf16.msra.mxu0 %v5204
          %6687 = vmatprep.subr.bf16.mxu0 %v5209
          %6688 = vmatpush1.bf16.msra.mxu0 %v5208
          %6689 = vmatprep.subr.bf16.mxu0 0
          %6690 = vmatpush1.bf16.msra.mxu0 0
          %6691 = vmatprep.subr.bf16.mxu0 0
          %6692 = vmatpush1.bf16.msra.mxu0 0
          %6693 = vmatprep.subr.bf16.mxu0 0
          %6694 = vmatpush1.bf16.msra.mxu0 0
          %6695 = vmatprep.subr.bf16.mxu0 0
          %6696 = vmatpush1.bf16.msra.mxu0 0
          %6697 = vmatprep.subr.bf16.mxu0 0
          %6698 = vmatpush1.bf16.msra.mxu0 0
          %6699 = vmatprep.subr.bf16.mxu0 0
          %6700 = vmatpush1.bf16.msra.mxu0 0
          %6701 = vmatprep.subr.bf16.mxu0 0
          %6702 = vmatpush1.bf16.msra.mxu0 0
          %6703 = vmatprep.subr.bf16.mxu0 0
          %6704 = vmatpush1.bf16.msra.mxu0 0
          %6705 = vmatprep.mubr.bf16.mxu0 0
          %6706 = vmatmul.mubr.bf16.gmra.mrb[0].mxu0 %v6548
          %v6707 = vpop.f32.mrb[0].mxu0
          %v6708 = vadd.f32 %v6626, %v6707
          %v6709 = vpop.f32.mrb[0].mxu0
          %v6710 = vadd.f32 %v6628, %v6709
          %v6711 = vpop.f32.mrb[0].mxu0
          %v6712 = vpop.f32.mrb[0].mxu0
          %6713 = vdwg.mxu0
          %v6714 = vadd.f32 %v6667, %v5329
          %v6715 = vadd.f32 %v6669, %v5333
          %v6716 = vadd.f32 %v6708, %v5337
          %v6717 = vadd.f32 %v6710, %v5341
          %v6718 = vxor.u32 %v6714, 2147483648
          %v6719 = vmul.f32 %v6718, 1.442695
          %v6720 = vpow.pop %v6719
          %v6721 = vadd.f32 %v6720, 1.0
          %v6722 = vrcp.pop %v6721
          %v6723 = vmul.f32 1.0, %v6722
          %v6724 = vxor.u32 %v6715, 2147483648
          %v6725 = vmul.f32 %v6724, 1.442695
          %v6726 = vpow.pop %v6725
          %v6727 = vadd.f32 %v6726, 1.0
          %v6728 = vrcp.pop %v6727
          %v6729 = vmul.f32 1.0, %v6728
          %v6730 = vtanh.pop %v6716
          %v6731 = vxor.u32 %v6717, 2147483648
          %v6732 = vmul.f32 %v6731, 1.442695
          %v6733 = vpow.pop %v6732
          %v6734 = vadd.f32 %v6733, 1.0
          %v6735 = vrcp.pop %v6734
          %v6736 = vmul.f32 1.0, %v6735
          %v6737 = vmul.f32 %v6729, %v6401
          %v6738 = vmul.f32 %v6723, %v6730
          %v6739 = vadd.f32 %v6737, %v6738
          %v6740 = vtanh.pop %v6739
          %v6741 = vmul.f32 %v6736, %v6740
          %v6742 = vsel %vm6407, %v6741, %v6400
          %v6743 = vsel %vm6407, %v6739, %v6401
          %vm6744 = vcmp.gt.s32.totalorder %v4437, 5
          %v6745 = vsel %vm6744, 1, 0
          %6746 = vset.pattern.permute.xlu0 0
          %6747 = vperm.xlu0 %6746, %v6745
          %v6748 = vpop.permute.xlu0 %6747
          %vm6749 = vcmp.eq.s32.totalorder %v6748, 1
          %s6750 = scalar_lea.vmem [#allocation3], 40
          %v6751 = vld [vmem:[%s6750] sm:$0xff]
          %6752 = vmatprep.subr.bf16.mxu0 %v4574
          %6753 = vmatpush1.bf16.msra.mxu0 %v4573
          %6754 = vmatprep.subr.bf16.mxu0 %v4578
          %6755 = vmatpush1.bf16.msra.mxu0 %v4577
          %6756 = vmatprep.subr.bf16.mxu0 %v4582
          %6757 = vmatpush1.bf16.msra.mxu0 %v4581
          %6758 = vmatprep.subr.bf16.mxu0 %v4586
          %6759 = vmatpush1.bf16.msra.mxu0 %v4585
          %6760 = vmatprep.subr.bf16.mxu0 %v4590
          %6761 = vmatpush1.bf16.msra.mxu0 %v4589
          %6762 = vmatprep.subr.bf16.mxu0 %v4594
          %6763 = vmatpush1.bf16.msra.mxu0 %v4593
          %6764 = vmatprep.subr.bf16.mxu0 %v4598
          %6765 = vmatpush1.bf16.msra.mxu0 %v4597
          %6766 = vmatprep.subr.bf16.mxu0 %v4602
          %6767 = vmatpush1.bf16.msra.mxu0 %v4601
          %6768 = vmatprep.subr.bf16.mxu0 0
          %6769 = vmatpush1.bf16.msra.mxu0 0
          %6770 = vmatprep.subr.bf16.mxu0 0
          %6771 = vmatpush1.bf16.msra.mxu0 0
          %6772 = vmatprep.subr.bf16.mxu0 0
          %6773 = vmatpush1.bf16.msra.mxu0 0
          %6774 = vmatprep.subr.bf16.mxu0 0
          %6775 = vmatpush1.bf16.msra.mxu0 0
          %6776 = vmatprep.subr.bf16.mxu0 0
          %6777 = vmatpush1.bf16.msra.mxu0 0
          %6778 = vmatprep.subr.bf16.mxu0 0
          %6779 = vmatpush1.bf16.msra.mxu0 0
          %6780 = vmatprep.subr.bf16.mxu0 0
          %6781 = vmatpush1.bf16.msra.mxu0 0
          %6782 = vmatprep.subr.bf16.mxu0 0
          %6783 = vmatpush1.bf16.msra.mxu0 0
          %6784 = vmatprep.mubr.bf16.mxu0 0
          %6785 = vmatmul.mubr.bf16.gmra.mrb[0].mxu0 %v6548
          %v6786 = vpop.f32.mrb[0].mxu0
          %v6787 = vadd.f32 0.0, %v6786
          %v6788 = vpop.f32.mrb[0].mxu0
          %v6789 = vadd.f32 0.0, %v6788
          %v6790 = vpop.f32.mrb[0].mxu0
          %v6791 = vpop.f32.mrb[0].mxu0
          %6792 = vdwg.mxu0
          %6793 = vmatprep.subr.bf16.mxu0 %v4576
          %6794 = vmatpush1.bf16.msra.mxu0 %v4575
          %6795 = vmatprep.subr.bf16.mxu0 %v4580
          %6796 = vmatpush1.bf16.msra.mxu0 %v4579
          %6797 = vmatprep.subr.bf16.mxu0 %v4584
          %6798 = vmatpush1.bf16.msra.mxu0 %v4583
          %6799 = vmatprep.subr.bf16.mxu0 %v4588
          %6800 = vmatpush1.bf16.msra.mxu0 %v4587
          %6801 = vmatprep.subr.bf16.mxu0 %v4592
          %6802 = vmatpush1.bf16.msra.mxu0 %v4591
          %6803 = vmatprep.subr.bf16.mxu0 %v4596
          %6804 = vmatpush1.bf16.msra.mxu0 %v4595
          %6805 = vmatprep.subr.bf16.mxu0 %v4600
          %6806 = vmatpush1.bf16.msra.mxu0 %v4599
          %6807 = vmatprep.subr.bf16.mxu0 %v4604
          %6808 = vmatpush1.bf16.msra.mxu0 %v4603
          %6809 = vmatprep.subr.bf16.mxu0 0
          %6810 = vmatpush1.bf16.msra.mxu0 0
          %6811 = vmatprep.subr.bf16.mxu0 0
          %6812 = vmatpush1.bf16.msra.mxu0 0
          %6813 = vmatprep.subr.bf16.mxu0 0
          %6814 = vmatpush1.bf16.msra.mxu0 0
          %6815 = vmatprep.subr.bf16.mxu0 0
          %6816 = vmatpush1.bf16.msra.mxu0 0
          %6817 = vmatprep.subr.bf16.mxu0 0
          %6818 = vmatpush1.bf16.msra.mxu0 0
          %6819 = vmatprep.subr.bf16.mxu0 0
          %6820 = vmatpush1.bf16.msra.mxu0 0
          %6821 = vmatprep.subr.bf16.mxu0 0
          %6822 = vmatpush1.bf16.msra.mxu0 0
          %6823 = vmatprep.subr.bf16.mxu0 0
          %6824 = vmatpush1.bf16.msra.mxu0 0
          %6825 = vmatprep.mubr.bf16.mxu0 0
          %6826 = vmatmul.mubr.bf16.gmra.mrb[0].mxu0 %v6548
          %v6827 = vpop.f32.mrb[0].mxu0
          %v6828 = vadd.f32 0.0, %v6827
          %v6829 = vpop.f32.mrb[0].mxu0
          %v6830 = vadd.f32 0.0, %v6829
          %v6831 = vpop.f32.mrb[0].mxu0
          %v6832 = vpop.f32.mrb[0].mxu0
          %6833 = vdwg.mxu0
          %v6838 = vcombine.low %v6787, %v6789
          %v6839 = vcombine.low %v6828, %v6830
          %v6841 = vunpack.c.l.s4 1983009808
          %v6842 = vunpack.c.0.s8 %v6841
          %v6843 = vlaneseq
          %v6844 = vshrl.u32 %v6843, 7
          %v6845 = vsub.s32 %v6842, %v6844
          %v6846 = vrot.slane %v6838, %v6845
          %v6848 = vunpack.c.l.s4 1983009808
          %v6849 = vunpack.c.0.s8 %v6848
          %v6850 = vlaneseq
          %v6851 = vshrl.u32 %v6850, 7
          %v6852 = vsub.s32 %v6849, %v6851
          %v6853 = vrot.slane %v6839, %v6852
          %v6854 = vcombine.low %v6846, %v6853
          %v6856 = vadd.f32 %v6751, %v6854
          %v6857 = vxor.u32 %v6856, 2147483648
          %v6858 = vmul.f32 %v6857, 1.442695
          %v6859 = vpow.pop %v6858
          %v6860 = vadd.f32 %v6859, 1.0
          %v6861 = vrcp.pop %v6860
          %v6862 = vmul.f32 1.0, %v6861
          %v6864 = vrot.slane %v6856, 2
          %v6866 = vxor.u32 %v6864, 2147483648
          %v6867 = vmul.f32 %v6866, 1.442695
          %v6868 = vpow.pop %v6867
          %v6869 = vadd.f32 %v6868, 1.0
          %v6870 = vrcp.pop %v6869
          %v6871 = vmul.f32 1.0, %v6870
          %v6872 = vrot.slane %v6856, 4
          %v6874 = vtanh.pop %v6872
          %v6875 = vrot.slane %v6856, 6
          %v6877 = vxor.u32 %v6875, 2147483648
          %v6878 = vmul.f32 %v6877, 1.442695
          %v6879 = vpow.pop %v6878
          %v6880 = vadd.f32 %v6879, 1.0
          %v6881 = vrcp.pop %v6880
          %v6882 = vmul.f32 1.0, %v6881
          %v6883 = vmul.f32 %v6871, %v6547
          %v6884 = vmul.f32 %v6862, %v6874
          %v6885 = vadd.f32 %v6883, %v6884
          %v6886 = vtanh.pop %v6885
          %v6887 = vmul.f32 %v6882, %v6886
          %v6888 = vsel %vm6749, %v6887, %v6546
          %v6889 = vsel %vm6749, %v6885, %v6547
          %v6890 = vpack.c.bf16 %v6888, %v6888
          %v6891 = vpack.c.bf16 %v6742, %v6742
          %6892 = vmatprep.subr.bf16.mxu0 %v4937
          %6893 = vmatpush1.bf16.msra.mxu0 %v4936
          %6894 = vmatprep.subr.bf16.mxu0 %v4941
          %6895 = vmatpush1.bf16.msra.mxu0 %v4940
          %6896 = vmatprep.subr.bf16.mxu0 %v4945
          %6897 = vmatpush1.bf16.msra.mxu0 %v4944
          %6898 = vmatprep.subr.bf16.mxu0 %v4949
          %6899 = vmatpush1.bf16.msra.mxu0 %v4948
          %6900 = vmatprep.subr.bf16.mxu0 %v4953
          %6901 = vmatpush1.bf16.msra.mxu0 %v4952
          %6902 = vmatprep.subr.bf16.mxu0 %v4957
          %6903 = vmatpush1.bf16.msra.mxu0 %v4956
          %6904 = vmatprep.subr.bf16.mxu0 %v4961
          %6905 = vmatpush1.bf16.msra.mxu0 %v4960
          %6906 = vmatprep.subr.bf16.mxu0 %v4965
          %6907 = vmatpush1.bf16.msra.mxu0 %v4964
          %6908 = vmatprep.subr.bf16.mxu0 0
          %6909 = vmatpush1.bf16.msra.mxu0 0
          %6910 = vmatprep.subr.bf16.mxu0 0
          %6911 = vmatpush1.bf16.msra.mxu0 0
          %6912 = vmatprep.subr.bf16.mxu0 0
          %6913 = vmatpush1.bf16.msra.mxu0 0
          %6914 = vmatprep.subr.bf16.mxu0 0
          %6915 = vmatpush1.bf16.msra.mxu0 0
          %6916 = vmatprep.subr.bf16.mxu0 0
          %6917 = vmatpush1.bf16.msra.mxu0 0
          %6918 = vmatprep.subr.bf16.mxu0 0
          %6919 = vmatpush1.bf16.msra.mxu0 0
          %6920 = vmatprep.subr.bf16.mxu0 0
          %6921 = vmatpush1.bf16.msra.mxu0 0
          %6922 = vmatprep.subr.bf16.mxu0 0
          %6923 = vmatpush1.bf16.msra.mxu0 0
          %6924 = vmatprep.mubr.bf16.mxu0 0
          %6925 = vmatmul.mubr.bf16.gmra.mrb[0].mxu0 %v6891
          %v6926 = vpop.f32.mrb[0].mxu0
          %v6927 = vadd.f32 0.0, %v6926
          %v6928 = vpop.f32.mrb[0].mxu0
          %v6929 = vadd.f32 0.0, %v6928
          %v6930 = vpop.f32.mrb[0].mxu0
          %v6931 = vpop.f32.mrb[0].mxu0
          %6932 = vdwg.mxu0
          %6933 = vmatprep.subr.bf16.mxu0 %v4939
          %6934 = vmatpush1.bf16.msra.mxu0 %v4938
          %6935 = vmatprep.subr.bf16.mxu0 %v4943
          %6936 = vmatpush1.bf16.msra.mxu0 %v4942
          %6937 = vmatprep.subr.bf16.mxu0 %v4947
          %6938 = vmatpush1.bf16.msra.mxu0 %v4946
          %6939 = vmatprep.subr.bf16.mxu0 %v4951
          %6940 = vmatpush1.bf16.msra.mxu0 %v4950
          %6941 = vmatprep.subr.bf16.mxu0 %v4955
          %6942 = vmatpush1.bf16.msra.mxu0 %v4954
          %6943 = vmatprep.subr.bf16.mxu0 %v4959
          %6944 = vmatpush1.bf16.msra.mxu0 %v4958
          %6945 = vmatprep.subr.bf16.mxu0 %v4963
          %6946 = vmatpush1.bf16.msra.mxu0 %v4962
          %6947 = vmatprep.subr.bf16.mxu0 %v4967
          %6948 = vmatpush1.bf16.msra.mxu0 %v4966
          %6949 = vmatprep.subr.bf16.mxu0 0
          %6950 = vmatpush1.bf16.msra.mxu0 0
          %6951 = vmatprep.subr.bf16.mxu0 0
          %6952 = vmatpush1.bf16.msra.mxu0 0
          %6953 = vmatprep.subr.bf16.mxu0 0
          %6954 = vmatpush1.bf16.msra.mxu0 0
          %6955 = vmatprep.subr.bf16.mxu0 0
          %6956 = vmatpush1.bf16.msra.mxu0 0
          %6957 = vmatprep.subr.bf16.mxu0 0
          %6958 = vmatpush1.bf16.msra.mxu0 0
          %6959 = vmatprep.subr.bf16.mxu0 0
          %6960 = vmatpush1.bf16.msra.mxu0 0
          %6961 = vmatprep.subr.bf16.mxu0 0
          %6962 = vmatpush1.bf16.msra.mxu0 0
          %6963 = vmatprep.subr.bf16.mxu0 0
          %6964 = vmatpush1.bf16.msra.mxu0 0
          %6965 = vmatprep.mubr.bf16.mxu0 0
          %6966 = vmatmul.mubr.bf16.gmra.mrb[0].mxu0 %v6891
          %v6967 = vpop.f32.mrb[0].mxu0
          %v6968 = vadd.f32 0.0, %v6967
          %v6969 = vpop.f32.mrb[0].mxu0
          %v6970 = vadd.f32 0.0, %v6969
          %v6971 = vpop.f32.mrb[0].mxu0
          %v6972 = vpop.f32.mrb[0].mxu0
          %6973 = vdwg.mxu0
          %6974 = vmatprep.subr.bf16.mxu0 %v5179
          %6975 = vmatpush1.bf16.msra.mxu0 %v5178
          %6976 = vmatprep.subr.bf16.mxu0 %v5183
          %6977 = vmatpush1.bf16.msra.mxu0 %v5182
          %6978 = vmatprep.subr.bf16.mxu0 %v5187
          %6979 = vmatpush1.bf16.msra.mxu0 %v5186
          %6980 = vmatprep.subr.bf16.mxu0 %v5191
          %6981 = vmatpush1.bf16.msra.mxu0 %v5190
          %6982 = vmatprep.subr.bf16.mxu0 %v5195
          %6983 = vmatpush1.bf16.msra.mxu0 %v5194
          %6984 = vmatprep.subr.bf16.mxu0 %v5199
          %6985 = vmatpush1.bf16.msra.mxu0 %v5198
          %6986 = vmatprep.subr.bf16.mxu0 %v5203
          %6987 = vmatpush1.bf16.msra.mxu0 %v5202
          %6988 = vmatprep.subr.bf16.mxu0 %v5207
          %6989 = vmatpush1.bf16.msra.mxu0 %v5206
          %6990 = vmatprep.subr.bf16.mxu0 0
          %6991 = vmatpush1.bf16.msra.mxu0 0
          %6992 = vmatprep.subr.bf16.mxu0 0
          %6993 = vmatpush1.bf16.msra.mxu0 0
          %6994 = vmatprep.subr.bf16.mxu0 0
          %6995 = vmatpush1.bf16.msra.mxu0 0
          %6996 = vmatprep.subr.bf16.mxu0 0
          %6997 = vmatpush1.bf16.msra.mxu0 0
          %6998 = vmatprep.subr.bf16.mxu0 0
          %6999 = vmatpush1.bf16.msra.mxu0 0
          %7000 = vmatprep.subr.bf16.mxu0 0
          %7001 = vmatpush1.bf16.msra.mxu0 0
          %7002 = vmatprep.subr.bf16.mxu0 0
          %7003 = vmatpush1.bf16.msra.mxu0 0
          %7004 = vmatprep.subr.bf16.mxu0 0
          %7005 = vmatpush1.bf16.msra.mxu0 0
          %7006 = vmatprep.mubr.bf16.mxu0 0
          %7007 = vmatmul.mubr.bf16.gmra.mrb[0].mxu0 %v6890
          %v7008 = vpop.f32.mrb[0].mxu0
          %v7009 = vadd.f32 %v6927, %v7008
          %v7010 = vpop.f32.mrb[0].mxu0
          %v7011 = vadd.f32 %v6929, %v7010
          %v7012 = vpop.f32.mrb[0].mxu0
          %v7013 = vpop.f32.mrb[0].mxu0
          %7014 = vdwg.mxu0
          %7015 = vmatprep.subr.bf16.mxu0 %v5181
          %7016 = vmatpush1.bf16.msra.mxu0 %v5180
          %7017 = vmatprep.subr.bf16.mxu0 %v5185
          %7018 = vmatpush1.bf16.msra.mxu0 %v5184
          %7019 = vmatprep.subr.bf16.mxu0 %v5189
          %7020 = vmatpush1.bf16.msra.mxu0 %v5188
          %7021 = vmatprep.subr.bf16.mxu0 %v5193
          %7022 = vmatpush1.bf16.msra.mxu0 %v5192
          %7023 = vmatprep.subr.bf16.mxu0 %v5197
          %7024 = vmatpush1.bf16.msra.mxu0 %v5196
          %7025 = vmatprep.subr.bf16.mxu0 %v5201
          %7026 = vmatpush1.bf16.msra.mxu0 %v5200
          %7027 = vmatprep.subr.bf16.mxu0 %v5205
          %7028 = vmatpush1.bf16.msra.mxu0 %v5204
          %7029 = vmatprep.subr.bf16.mxu0 %v5209
          %7030 = vmatpush1.bf16.msra.mxu0 %v5208
          %7031 = vmatprep.subr.bf16.mxu0 0
          %7032 = vmatpush1.bf16.msra.mxu0 0
          %7033 = vmatprep.subr.bf16.mxu0 0
          %7034 = vmatpush1.bf16.msra.mxu0 0
          %7035 = vmatprep.subr.bf16.mxu0 0
          %7036 = vmatpush1.bf16.msra.mxu0 0
          %7037 = vmatprep.subr.bf16.mxu0 0
          %7038 = vmatpush1.bf16.msra.mxu0 0
          %7039 = vmatprep.subr.bf16.mxu0 0
          %7040 = vmatpush1.bf16.msra.mxu0 0
          %7041 = vmatprep.subr.bf16.mxu0 0
          %7042 = vmatpush1.bf16.msra.mxu0 0
          %7043 = vmatprep.subr.bf16.mxu0 0
          %7044 = vmatpush1.bf16.msra.mxu0 0
          %7045 = vmatprep.subr.bf16.mxu0 0
          %7046 = vmatpush1.bf16.msra.mxu0 0
          %7047 = vmatprep.mubr.bf16.mxu0 0
          %7048 = vmatmul.mubr.bf16.gmra.mrb[0].mxu0 %v6890
          %v7049 = vpop.f32.mrb[0].mxu0
          %v7050 = vadd.f32 %v6968, %v7049
          %v7051 = vpop.f32.mrb[0].mxu0
          %v7052 = vadd.f32 %v6970, %v7051
          %v7053 = vpop.f32.mrb[0].mxu0
          %v7054 = vpop.f32.mrb[0].mxu0
          %7055 = vdwg.mxu0
          %v7056 = vadd.f32 %v7009, %v5329
          %v7057 = vadd.f32 %v7011, %v5333
          %v7058 = vadd.f32 %v7050, %v5337
          %v7059 = vadd.f32 %v7052, %v5341
          %v7060 = vxor.u32 %v7056, 2147483648
          %v7061 = vmul.f32 %v7060, 1.442695
          %v7062 = vpow.pop %v7061
          %v7063 = vadd.f32 %v7062, 1.0
          %v7064 = vrcp.pop %v7063
          %v7065 = vmul.f32 1.0, %v7064
          %v7066 = vxor.u32 %v7057, 2147483648
          %v7067 = vmul.f32 %v7066, 1.442695
          %v7068 = vpow.pop %v7067
          %v7069 = vadd.f32 %v7068, 1.0
          %v7070 = vrcp.pop %v7069
          %v7071 = vmul.f32 1.0, %v7070
          %v7072 = vtanh.pop %v7058
          %v7073 = vxor.u32 %v7059, 2147483648
          %v7074 = vmul.f32 %v7073, 1.442695
          %v7075 = vpow.pop %v7074
          %v7076 = vadd.f32 %v7075, 1.0
          %v7077 = vrcp.pop %v7076
          %v7078 = vmul.f32 1.0, %v7077
          %v7079 = vmul.f32 %v7071, %v6743
          %v7080 = vmul.f32 %v7065, %v7072
          %v7081 = vadd.f32 %v7079, %v7080
          %v7082 = vtanh.pop %v7081
          %v7083 = vmul.f32 %v7078, %v7082
          %v7084 = vsel %vm6749, %v7083, %v6742
          %v7085 = vsel %vm6749, %v7081, %v6743
          %vm7086 = vcmp.gt.s32.totalorder %v4437, 6
          %v7087 = vsel %vm7086, 1, 0
          %7088 = vset.pattern.permute.xlu0 0
          %7089 = vperm.xlu0 %7088, %v7087
          %v7090 = vpop.permute.xlu0 %7089
          %vm7091 = vcmp.eq.s32.totalorder %v7090, 1
          %s7092 = scalar_lea.vmem [#allocation3], 48
          %v7093 = vld [vmem:[%s7092] sm:$0xff]
          %7094 = vmatprep.subr.bf16.mxu0 %v4574
          %7095 = vmatpush1.bf16.msra.mxu0 %v4573
          %7096 = vmatprep.subr.bf16.mxu0 %v4578
          %7097 = vmatpush1.bf16.msra.mxu0 %v4577
          %7098 = vmatprep.subr.bf16.mxu0 %v4582
          %7099 = vmatpush1.bf16.msra.mxu0 %v4581
          %7100 = vmatprep.subr.bf16.mxu0 %v4586
          %7101 = vmatpush1.bf16.msra.mxu0 %v4585
          %7102 = vmatprep.subr.bf16.mxu0 %v4590
          %7103 = vmatpush1.bf16.msra.mxu0 %v4589
          %7104 = vmatprep.subr.bf16.mxu0 %v4594
          %7105 = vmatpush1.bf16.msra.mxu0 %v4593
          %7106 = vmatprep.subr.bf16.mxu0 %v4598
          %7107 = vmatpush1.bf16.msra.mxu0 %v4597
          %7108 = vmatprep.subr.bf16.mxu0 %v4602
          %7109 = vmatpush1.bf16.msra.mxu0 %v4601
          %7110 = vmatprep.subr.bf16.mxu0 0
          %7111 = vmatpush1.bf16.msra.mxu0 0
          %7112 = vmatprep.subr.bf16.mxu0 0
          %7113 = vmatpush1.bf16.msra.mxu0 0
          %7114 = vmatprep.subr.bf16.mxu0 0
          %7115 = vmatpush1.bf16.msra.mxu0 0
          %7116 = vmatprep.subr.bf16.mxu0 0
          %7117 = vmatpush1.bf16.msra.mxu0 0
          %7118 = vmatprep.subr.bf16.mxu0 0
          %7119 = vmatpush1.bf16.msra.mxu0 0
          %7120 = vmatprep.subr.bf16.mxu0 0
          %7121 = vmatpush1.bf16.msra.mxu0 0
          %7122 = vmatprep.subr.bf16.mxu0 0
          %7123 = vmatpush1.bf16.msra.mxu0 0
          %7124 = vmatprep.subr.bf16.mxu0 0
          %7125 = vmatpush1.bf16.msra.mxu0 0
          %7126 = vmatprep.mubr.bf16.mxu0 0
          %7127 = vmatmul.mubr.bf16.gmra.mrb[0].mxu0 %v6890
          %v7128 = vpop.f32.mrb[0].mxu0
          %v7129 = vadd.f32 0.0, %v7128
          %v7130 = vpop.f32.mrb[0].mxu0
          %v7131 = vadd.f32 0.0, %v7130
          %v7132 = vpop.f32.mrb[0].mxu0
          %v7133 = vpop.f32.mrb[0].mxu0
          %7134 = vdwg.mxu0
          %7135 = vmatprep.subr.bf16.mxu0 %v4576
          %7136 = vmatpush1.bf16.msra.mxu0 %v4575
          %7137 = vmatprep.subr.bf16.mxu0 %v4580
          %7138 = vmatpush1.bf16.msra.mxu0 %v4579
          %7139 = vmatprep.subr.bf16.mxu0 %v4584
          %7140 = vmatpush1.bf16.msra.mxu0 %v4583
          %7141 = vmatprep.subr.bf16.mxu0 %v4588
          %7142 = vmatpush1.bf16.msra.mxu0 %v4587
          %7143 = vmatprep.subr.bf16.mxu0 %v4592
          %7144 = vmatpush1.bf16.msra.mxu0 %v4591
          %7145 = vmatprep.subr.bf16.mxu0 %v4596
          %7146 = vmatpush1.bf16.msra.mxu0 %v4595
          %7147 = vmatprep.subr.bf16.mxu0 %v4600
          %7148 = vmatpush1.bf16.msra.mxu0 %v4599
          %7149 = vmatprep.subr.bf16.mxu0 %v4604
          %7150 = vmatpush1.bf16.msra.mxu0 %v4603
          %7151 = vmatprep.subr.bf16.mxu0 0
          %7152 = vmatpush1.bf16.msra.mxu0 0
          %7153 = vmatprep.subr.bf16.mxu0 0
          %7154 = vmatpush1.bf16.msra.mxu0 0
          %7155 = vmatprep.subr.bf16.mxu0 0
          %7156 = vmatpush1.bf16.msra.mxu0 0
          %7157 = vmatprep.subr.bf16.mxu0 0
          %7158 = vmatpush1.bf16.msra.mxu0 0
          %7159 = vmatprep.subr.bf16.mxu0 0
          %7160 = vmatpush1.bf16.msra.mxu0 0
          %7161 = vmatprep.subr.bf16.mxu0 0
          %7162 = vmatpush1.bf16.msra.mxu0 0
          %7163 = vmatprep.subr.bf16.mxu0 0
          %7164 = vmatpush1.bf16.msra.mxu0 0
          %7165 = vmatprep.subr.bf16.mxu0 0
          %7166 = vmatpush1.bf16.msra.mxu0 0
          %7167 = vmatprep.mubr.bf16.mxu0 0
          %7168 = vmatmul.mubr.bf16.gmra.mrb[0].mxu0 %v6890
          %v7169 = vpop.f32.mrb[0].mxu0
          %v7170 = vadd.f32 0.0, %v7169
          %v7171 = vpop.f32.mrb[0].mxu0
          %v7172 = vadd.f32 0.0, %v7171
          %v7173 = vpop.f32.mrb[0].mxu0
          %v7174 = vpop.f32.mrb[0].mxu0
          %7175 = vdwg.mxu0
          %v7180 = vcombine.low %v7129, %v7131
          %v7181 = vcombine.low %v7170, %v7172
          %v7183 = vunpack.c.l.s4 1983009808
          %v7184 = vunpack.c.0.s8 %v7183
          %v7185 = vlaneseq
          %v7186 = vshrl.u32 %v7185, 7
          %v7187 = vsub.s32 %v7184, %v7186
          %v7188 = vrot.slane %v7180, %v7187
          %v7190 = vunpack.c.l.s4 1983009808
          %v7191 = vunpack.c.0.s8 %v7190
          %v7192 = vlaneseq
          %v7193 = vshrl.u32 %v7192, 7
          %v7194 = vsub.s32 %v7191, %v7193
          %v7195 = vrot.slane %v7181, %v7194
          %v7196 = vcombine.low %v7188, %v7195
          %v7198 = vadd.f32 %v7093, %v7196
          %v7199 = vxor.u32 %v7198, 2147483648
          %v7200 = vmul.f32 %v7199, 1.442695
          %v7201 = vpow.pop %v7200
          %v7202 = vadd.f32 %v7201, 1.0
          %v7203 = vrcp.pop %v7202
          %v7204 = vmul.f32 1.0, %v7203
          %v7206 = vrot.slane %v7198, 2
          %v7208 = vxor.u32 %v7206, 2147483648
          %v7209 = vmul.f32 %v7208, 1.442695
          %v7210 = vpow.pop %v7209
          %v7211 = vadd.f32 %v7210, 1.0
          %v7212 = vrcp.pop %v7211
          %v7213 = vmul.f32 1.0, %v7212
          %v7214 = vrot.slane %v7198, 4
          %v7216 = vtanh.pop %v7214
          %v7217 = vrot.slane %v7198, 6
          %v7219 = vxor.u32 %v7217, 2147483648
          %v7220 = vmul.f32 %v7219, 1.442695
          %v7221 = vpow.pop %v7220
          %v7222 = vadd.f32 %v7221, 1.0
          %v7223 = vrcp.pop %v7222
          %v7224 = vmul.f32 1.0, %v7223
          %v7225 = vmul.f32 %v7213, %v6889
          %v7226 = vmul.f32 %v7204, %v7216
          %v7227 = vadd.f32 %v7225, %v7226
          %v7228 = vtanh.pop %v7227
          %v7229 = vmul.f32 %v7224, %v7228
          %v7230 = vsel %vm7091, %v7229, %v6888
          %v7231 = vsel %vm7091, %v7227, %v6889
          %v7232 = vpack.c.bf16 %v7230, %v7230
          %v7233 = vpack.c.bf16 %v7084, %v7084
          %7234 = vmatprep.subr.bf16.mxu0 %v4937
          %7235 = vmatpush1.bf16.msra.mxu0 %v4936
          %7236 = vmatprep.subr.bf16.mxu0 %v4941
          %7237 = vmatpush1.bf16.msra.mxu0 %v4940
          %7238 = vmatprep.subr.bf16.mxu0 %v4945
          %7239 = vmatpush1.bf16.msra.mxu0 %v4944
          %7240 = vmatprep.subr.bf16.mxu0 %v4949
          %7241 = vmatpush1.bf16.msra.mxu0 %v4948
          %7242 = vmatprep.subr.bf16.mxu0 %v4953
          %7243 = vmatpush1.bf16.msra.mxu0 %v4952
          %7244 = vmatprep.subr.bf16.mxu0 %v4957
          %7245 = vmatpush1.bf16.msra.mxu0 %v4956
          %7246 = vmatprep.subr.bf16.mxu0 %v4961
          %7247 = vmatpush1.bf16.msra.mxu0 %v4960
          %7248 = vmatprep.subr.bf16.mxu0 %v4965
          %7249 = vmatpush1.bf16.msra.mxu0 %v4964
          %7250 = vmatprep.subr.bf16.mxu0 0
          %7251 = vmatpush1.bf16.msra.mxu0 0
          %7252 = vmatprep.subr.bf16.mxu0 0
          %7253 = vmatpush1.bf16.msra.mxu0 0
          %7254 = vmatprep.subr.bf16.mxu0 0
          %7255 = vmatpush1.bf16.msra.mxu0 0
          %7256 = vmatprep.subr.bf16.mxu0 0
          %7257 = vmatpush1.bf16.msra.mxu0 0
          %7258 = vmatprep.subr.bf16.mxu0 0
          %7259 = vmatpush1.bf16.msra.mxu0 0
          %7260 = vmatprep.subr.bf16.mxu0 0
          %7261 = vmatpush1.bf16.msra.mxu0 0
          %7262 = vmatprep.subr.bf16.mxu0 0
          %7263 = vmatpush1.bf16.msra.mxu0 0
          %7264 = vmatprep.subr.bf16.mxu0 0
          %7265 = vmatpush1.bf16.msra.mxu0 0
          %7266 = vmatprep.mubr.bf16.mxu0 0
          %7267 = vmatmul.mubr.bf16.gmra.mrb[0].mxu0 %v7233
          %v7268 = vpop.f32.mrb[0].mxu0
          %v7269 = vadd.f32 0.0, %v7268
          %v7270 = vpop.f32.mrb[0].mxu0
          %v7271 = vadd.f32 0.0, %v7270
          %v7272 = vpop.f32.mrb[0].mxu0
          %v7273 = vpop.f32.mrb[0].mxu0
          %7274 = vdwg.mxu0
          %7275 = vmatprep.subr.bf16.mxu0 %v4939
          %7276 = vmatpush1.bf16.msra.mxu0 %v4938
          %7277 = vmatprep.subr.bf16.mxu0 %v4943
          %7278 = vmatpush1.bf16.msra.mxu0 %v4942
          %7279 = vmatprep.subr.bf16.mxu0 %v4947
          %7280 = vmatpush1.bf16.msra.mxu0 %v4946
          %7281 = vmatprep.subr.bf16.mxu0 %v4951
          %7282 = vmatpush1.bf16.msra.mxu0 %v4950
          %7283 = vmatprep.subr.bf16.mxu0 %v4955
          %7284 = vmatpush1.bf16.msra.mxu0 %v4954
          %7285 = vmatprep.subr.bf16.mxu0 %v4959
          %7286 = vmatpush1.bf16.msra.mxu0 %v4958
          %7287 = vmatprep.subr.bf16.mxu0 %v4963
          %7288 = vmatpush1.bf16.msra.mxu0 %v4962
          %7289 = vmatprep.subr.bf16.mxu0 %v4967
          %7290 = vmatpush1.bf16.msra.mxu0 %v4966
          %7291 = vmatprep.subr.bf16.mxu0 0
          %7292 = vmatpush1.bf16.msra.mxu0 0
          %7293 = vmatprep.subr.bf16.mxu0 0
          %7294 = vmatpush1.bf16.msra.mxu0 0
          %7295 = vmatprep.subr.bf16.mxu0 0
          %7296 = vmatpush1.bf16.msra.mxu0 0
          %7297 = vmatprep.subr.bf16.mxu0 0
          %7298 = vmatpush1.bf16.msra.mxu0 0
          %7299 = vmatprep.subr.bf16.mxu0 0
          %7300 = vmatpush1.bf16.msra.mxu0 0
          %7301 = vmatprep.subr.bf16.mxu0 0
          %7302 = vmatpush1.bf16.msra.mxu0 0
          %7303 = vmatprep.subr.bf16.mxu0 0
          %7304 = vmatpush1.bf16.msra.mxu0 0
          %7305 = vmatprep.subr.bf16.mxu0 0
          %7306 = vmatpush1.bf16.msra.mxu0 0
          %7307 = vmatprep.mubr.bf16.mxu0 0
          %7308 = vmatmul.mubr.bf16.gmra.mrb[0].mxu0 %v7233
          %v7309 = vpop.f32.mrb[0].mxu0
          %v7310 = vadd.f32 0.0, %v7309
          %v7311 = vpop.f32.mrb[0].mxu0
          %v7312 = vadd.f32 0.0, %v7311
          %v7313 = vpop.f32.mrb[0].mxu0
          %v7314 = vpop.f32.mrb[0].mxu0
          %7315 = vdwg.mxu0
          %7316 = vmatprep.subr.bf16.mxu0 %v5179
          %7317 = vmatpush1.bf16.msra.mxu0 %v5178
          %7318 = vmatprep.subr.bf16.mxu0 %v5183
          %7319 = vmatpush1.bf16.msra.mxu0 %v5182
          %7320 = vmatprep.subr.bf16.mxu0 %v5187
          %7321 = vmatpush1.bf16.msra.mxu0 %v5186
          %7322 = vmatprep.subr.bf16.mxu0 %v5191
          %7323 = vmatpush1.bf16.msra.mxu0 %v5190
          %7324 = vmatprep.subr.bf16.mxu0 %v5195
          %7325 = vmatpush1.bf16.msra.mxu0 %v5194
          %7326 = vmatprep.subr.bf16.mxu0 %v5199
          %7327 = vmatpush1.bf16.msra.mxu0 %v5198
          %7328 = vmatprep.subr.bf16.mxu0 %v5203
          %7329 = vmatpush1.bf16.msra.mxu0 %v5202
          %7330 = vmatprep.subr.bf16.mxu0 %v5207
          %7331 = vmatpush1.bf16.msra.mxu0 %v5206
          %7332 = vmatprep.subr.bf16.mxu0 0
          %7333 = vmatpush1.bf16.msra.mxu0 0
          %7334 = vmatprep.subr.bf16.mxu0 0
          %7335 = vmatpush1.bf16.msra.mxu0 0
          %7336 = vmatprep.subr.bf16.mxu0 0
          %7337 = vmatpush1.bf16.msra.mxu0 0
          %7338 = vmatprep.subr.bf16.mxu0 0
          %7339 = vmatpush1.bf16.msra.mxu0 0
          %7340 = vmatprep.subr.bf16.mxu0 0
          %7341 = vmatpush1.bf16.msra.mxu0 0
          %7342 = vmatprep.subr.bf16.mxu0 0
          %7343 = vmatpush1.bf16.msra.mxu0 0
          %7344 = vmatprep.subr.bf16.mxu0 0
          %7345 = vmatpush1.bf16.msra.mxu0 0
          %7346 = vmatprep.subr.bf16.mxu0 0
          %7347 = vmatpush1.bf16.msra.mxu0 0
          %7348 = vmatprep.mubr.bf16.mxu0 0
          %7349 = vmatmul.mubr.bf16.gmra.mrb[0].mxu0 %v7232
          %v7350 = vpop.f32.mrb[0].mxu0
          %v7351 = vadd.f32 %v7269, %v7350
          %v7352 = vpop.f32.mrb[0].mxu0
          %v7353 = vadd.f32 %v7271, %v7352
          %v7354 = vpop.f32.mrb[0].mxu0
          %v7355 = vpop.f32.mrb[0].mxu0
          %7356 = vdwg.mxu0
          %7357 = vmatprep.subr.bf16.mxu0 %v5181
          %7358 = vmatpush1.bf16.msra.mxu0 %v5180
          %7359 = vmatprep.subr.bf16.mxu0 %v5185
          %7360 = vmatpush1.bf16.msra.mxu0 %v5184
          %7361 = vmatprep.subr.bf16.mxu0 %v5189
          %7362 = vmatpush1.bf16.msra.mxu0 %v5188
          %7363 = vmatprep.subr.bf16.mxu0 %v5193
          %7364 = vmatpush1.bf16.msra.mxu0 %v5192
          %7365 = vmatprep.subr.bf16.mxu0 %v5197
          %7366 = vmatpush1.bf16.msra.mxu0 %v5196
          %7367 = vmatprep.subr.bf16.mxu0 %v5201
          %7368 = vmatpush1.bf16.msra.mxu0 %v5200
          %7369 = vmatprep.subr.bf16.mxu0 %v5205
          %7370 = vmatpush1.bf16.msra.mxu0 %v5204
          %7371 = vmatprep.subr.bf16.mxu0 %v5209
          %7372 = vmatpush1.bf16.msra.mxu0 %v5208
          %7373 = vmatprep.subr.bf16.mxu0 0
          %7374 = vmatpush1.bf16.msra.mxu0 0
          %7375 = vmatprep.subr.bf16.mxu0 0
          %7376 = vmatpush1.bf16.msra.mxu0 0
          %7377 = vmatprep.subr.bf16.mxu0 0
          %7378 = vmatpush1.bf16.msra.mxu0 0
          %7379 = vmatprep.subr.bf16.mxu0 0
          %7380 = vmatpush1.bf16.msra.mxu0 0
          %7381 = vmatprep.subr.bf16.mxu0 0
          %7382 = vmatpush1.bf16.msra.mxu0 0
          %7383 = vmatprep.subr.bf16.mxu0 0
          %7384 = vmatpush1.bf16.msra.mxu0 0
          %7385 = vmatprep.subr.bf16.mxu0 0
          %7386 = vmatpush1.bf16.msra.mxu0 0
          %7387 = vmatprep.subr.bf16.mxu0 0
          %7388 = vmatpush1.bf16.msra.mxu0 0
          %7389 = vmatprep.mubr.bf16.mxu0 0
          %7390 = vmatmul.mubr.bf16.gmra.mrb[0].mxu0 %v7232
          %v7391 = vpop.f32.mrb[0].mxu0
          %v7392 = vadd.f32 %v7310, %v7391
          %v7393 = vpop.f32.mrb[0].mxu0
          %v7394 = vadd.f32 %v7312, %v7393
          %v7395 = vpop.f32.mrb[0].mxu0
          %v7396 = vpop.f32.mrb[0].mxu0
          %7397 = vdwg.mxu0
          %v7398 = vadd.f32 %v7351, %v5329
          %v7399 = vadd.f32 %v7353, %v5333
          %v7400 = vadd.f32 %v7392, %v5337
          %v7401 = vadd.f32 %v7394, %v5341
          %v7402 = vxor.u32 %v7398, 2147483648
          %v7403 = vmul.f32 %v7402, 1.442695
          %v7404 = vpow.pop %v7403
          %v7405 = vadd.f32 %v7404, 1.0
          %v7406 = vrcp.pop %v7405
          %v7407 = vmul.f32 1.0, %v7406
          %v7408 = vxor.u32 %v7399, 2147483648
          %v7409 = vmul.f32 %v7408, 1.442695
          %v7410 = vpow.pop %v7409
          %v7411 = vadd.f32 %v7410, 1.0
          %v7412 = vrcp.pop %v7411
          %v7413 = vmul.f32 1.0, %v7412
          %v7414 = vtanh.pop %v7400
          %v7415 = vxor.u32 %v7401, 2147483648
          %v7416 = vmul.f32 %v7415, 1.442695
          %v7417 = vpow.pop %v7416
          %v7418 = vadd.f32 %v7417, 1.0
          %v7419 = vrcp.pop %v7418
          %v7420 = vmul.f32 1.0, %v7419
          %v7421 = vmul.f32 %v7413, %v7085
          %v7422 = vmul.f32 %v7407, %v7414
          %v7423 = vadd.f32 %v7421, %v7422
          %v7424 = vtanh.pop %v7423
          %v7425 = vmul.f32 %v7420, %v7424
          %v7426 = vsel %vm7091, %v7425, %v7084
          %v7427 = vsel %vm7091, %v7423, %v7085
          %vm7428 = vcmp.gt.s32.totalorder %v4437, 7
          %v7429 = vsel %vm7428, 1, 0
          %7430 = vset.pattern.permute.xlu0 0
          %7431 = vperm.xlu0 %7430, %v7429
          %v7432 = vpop.permute.xlu0 %7431
          %vm7433 = vcmp.eq.s32.totalorder %v7432, 1
          %s7434 = scalar_lea.vmem [#allocation3], 56
          %v7435 = vld [vmem:[%s7434] sm:$0xff]
          %7436 = vmatprep.subr.bf16.mxu0 %v4574
          %7437 = vmatpush1.bf16.msra.mxu0 %v4573
          %7438 = vmatprep.subr.bf16.mxu0 %v4578
          %7439 = vmatpush1.bf16.msra.mxu0 %v4577
          %7440 = vmatprep.subr.bf16.mxu0 %v4582
          %7441 = vmatpush1.bf16.msra.mxu0 %v4581
          %7442 = vmatprep.subr.bf16.mxu0 %v4586
          %7443 = vmatpush1.bf16.msra.mxu0 %v4585
          %7444 = vmatprep.subr.bf16.mxu0 %v4590
          %7445 = vmatpush1.bf16.msra.mxu0 %v4589
          %7446 = vmatprep.subr.bf16.mxu0 %v4594
          %7447 = vmatpush1.bf16.msra.mxu0 %v4593
          %7448 = vmatprep.subr.bf16.mxu0 %v4598
          %7449 = vmatpush1.bf16.msra.mxu0 %v4597
          %7450 = vmatprep.subr.bf16.mxu0 %v4602
          %7451 = vmatpush1.bf16.msra.mxu0 %v4601
          %7452 = vmatprep.subr.bf16.mxu0 0
          %7453 = vmatpush1.bf16.msra.mxu0 0
          %7454 = vmatprep.subr.bf16.mxu0 0
          %7455 = vmatpush1.bf16.msra.mxu0 0
          %7456 = vmatprep.subr.bf16.mxu0 0
          %7457 = vmatpush1.bf16.msra.mxu0 0
          %7458 = vmatprep.subr.bf16.mxu0 0
          %7459 = vmatpush1.bf16.msra.mxu0 0
          %7460 = vmatprep.subr.bf16.mxu0 0
          %7461 = vmatpush1.bf16.msra.mxu0 0
          %7462 = vmatprep.subr.bf16.mxu0 0
          %7463 = vmatpush1.bf16.msra.mxu0 0
          %7464 = vmatprep.subr.bf16.mxu0 0
          %7465 = vmatpush1.bf16.msra.mxu0 0
          %7466 = vmatprep.subr.bf16.mxu0 0
          %7467 = vmatpush1.bf16.msra.mxu0 0
          %7468 = vmatprep.mubr.bf16.mxu0 0
          %7469 = vmatmul.mubr.bf16.gmra.mrb[0].mxu0 %v7232
          %v7470 = vpop.f32.mrb[0].mxu0
          %v7471 = vadd.f32 0.0, %v7470
          %v7472 = vpop.f32.mrb[0].mxu0
          %v7473 = vadd.f32 0.0, %v7472
          %v7474 = vpop.f32.mrb[0].mxu0
          %v7475 = vpop.f32.mrb[0].mxu0
          %7476 = vdwg.mxu0
          %7477 = vmatprep.subr.bf16.mxu0 %v4576
          %7478 = vmatpush1.bf16.msra.mxu0 %v4575
          %7479 = vmatprep.subr.bf16.mxu0 %v4580
          %7480 = vmatpush1.bf16.msra.mxu0 %v4579
          %7481 = vmatprep.subr.bf16.mxu0 %v4584
          %7482 = vmatpush1.bf16.msra.mxu0 %v4583
          %7483 = vmatprep.subr.bf16.mxu0 %v4588
          %7484 = vmatpush1.bf16.msra.mxu0 %v4587
          %7485 = vmatprep.subr.bf16.mxu0 %v4592
          %7486 = vmatpush1.bf16.msra.mxu0 %v4591
          %7487 = vmatprep.subr.bf16.mxu0 %v4596
          %7488 = vmatpush1.bf16.msra.mxu0 %v4595
          %7489 = vmatprep.subr.bf16.mxu0 %v4600
          %7490 = vmatpush1.bf16.msra.mxu0 %v4599
          %7491 = vmatprep.subr.bf16.mxu0 %v4604
          %7492 = vmatpush1.bf16.msra.mxu0 %v4603
          %7493 = vmatprep.subr.bf16.mxu0 0
          %7494 = vmatpush1.bf16.msra.mxu0 0
          %7495 = vmatprep.subr.bf16.mxu0 0
          %7496 = vmatpush1.bf16.msra.mxu0 0
          %7497 = vmatprep.subr.bf16.mxu0 0
          %7498 = vmatpush1.bf16.msra.mxu0 0
          %7499 = vmatprep.subr.bf16.mxu0 0
          %7500 = vmatpush1.bf16.msra.mxu0 0
          %7501 = vmatprep.subr.bf16.mxu0 0
          %7502 = vmatpush1.bf16.msra.mxu0 0
          %7503 = vmatprep.subr.bf16.mxu0 0
          %7504 = vmatpush1.bf16.msra.mxu0 0
          %7505 = vmatprep.subr.bf16.mxu0 0
          %7506 = vmatpush1.bf16.msra.mxu0 0
          %7507 = vmatprep.subr.bf16.mxu0 0
          %7508 = vmatpush1.bf16.msra.mxu0 0
          %7509 = vmatprep.mubr.bf16.mxu0 0
          %7510 = vmatmul.mubr.bf16.gmra.mrb[0].mxu0 %v7232
          %v7511 = vpop.f32.mrb[0].mxu0
          %v7512 = vadd.f32 0.0, %v7511
          %v7513 = vpop.f32.mrb[0].mxu0
          %v7514 = vadd.f32 0.0, %v7513
          %v7515 = vpop.f32.mrb[0].mxu0
          %v7516 = vpop.f32.mrb[0].mxu0
          %7517 = vdwg.mxu0
          %v7522 = vcombine.low %v7471, %v7473
          %v7523 = vcombine.low %v7512, %v7514
          %v7525 = vunpack.c.l.s4 1983009808
          %v7526 = vunpack.c.0.s8 %v7525
          %v7527 = vlaneseq
          %v7528 = vshrl.u32 %v7527, 7
          %v7529 = vsub.s32 %v7526, %v7528
          %v7530 = vrot.slane %v7522, %v7529
          %v7532 = vunpack.c.l.s4 1983009808
          %v7533 = vunpack.c.0.s8 %v7532
          %v7534 = vlaneseq
          %v7535 = vshrl.u32 %v7534, 7
          %v7536 = vsub.s32 %v7533, %v7535
          %v7537 = vrot.slane %v7523, %v7536
          %v7538 = vcombine.low %v7530, %v7537
          %v7540 = vadd.f32 %v7435, %v7538
          %v7541 = vxor.u32 %v7540, 2147483648
          %v7542 = vmul.f32 %v7541, 1.442695
          %v7543 = vpow.pop %v7542
          %v7544 = vadd.f32 %v7543, 1.0
          %v7545 = vrcp.pop %v7544
          %v7546 = vmul.f32 1.0, %v7545
          %v7548 = vrot.slane %v7540, 2
          %v7550 = vxor.u32 %v7548, 2147483648
          %v7551 = vmul.f32 %v7550, 1.442695
          %v7552 = vpow.pop %v7551
          %v7553 = vadd.f32 %v7552, 1.0
          %v7554 = vrcp.pop %v7553
          %v7555 = vmul.f32 1.0, %v7554
          %v7556 = vrot.slane %v7540, 4
          %v7558 = vtanh.pop %v7556
          %v7559 = vrot.slane %v7540, 6
          %v7561 = vxor.u32 %v7559, 2147483648
          %v7562 = vmul.f32 %v7561, 1.442695
          %v7563 = vpow.pop %v7562
          %v7564 = vadd.f32 %v7563, 1.0
          %v7565 = vrcp.pop %v7564
          %v7566 = vmul.f32 1.0, %v7565
          %v7567 = vmul.f32 %v7555, %v7231
          %v7568 = vmul.f32 %v7546, %v7558
          %v7569 = vadd.f32 %v7567, %v7568
          %v7570 = vtanh.pop %v7569
          %v7571 = vmul.f32 %v7566, %v7570
          %v7572 = vsel %vm7433, %v7571, %v7230
          %v7573 = vpack.c.bf16 %v7572, %v7572
          %v7574 = vpack.c.bf16 %v7426, %v7426
          %7575 = vmatprep.subr.bf16.mxu0 %v4937
          %7576 = vmatpush1.bf16.msra.mxu0 %v4936
          %7577 = vmatprep.subr.bf16.mxu0 %v4941
          %7578 = vmatpush1.bf16.msra.mxu0 %v4940
          %7579 = vmatprep.subr.bf16.mxu0 %v4945
          %7580 = vmatpush1.bf16.msra.mxu0 %v4944
          %7581 = vmatprep.subr.bf16.mxu0 %v4949
          %7582 = vmatpush1.bf16.msra.mxu0 %v4948
          %7583 = vmatprep.subr.bf16.mxu0 %v4953
          %7584 = vmatpush1.bf16.msra.mxu0 %v4952
          %7585 = vmatprep.subr.bf16.mxu0 %v4957
          %7586 = vmatpush1.bf16.msra.mxu0 %v4956
          %7587 = vmatprep.subr.bf16.mxu0 %v4961
          %7588 = vmatpush1.bf16.msra.mxu0 %v4960
          %7589 = vmatprep.subr.bf16.mxu0 %v4965
          %7590 = vmatpush1.bf16.msra.mxu0 %v4964
          %7591 = vmatprep.subr.bf16.mxu0 0
          %7592 = vmatpush1.bf16.msra.mxu0 0
          %7593 = vmatprep.subr.bf16.mxu0 0
          %7594 = vmatpush1.bf16.msra.mxu0 0
          %7595 = vmatprep.subr.bf16.mxu0 0
          %7596 = vmatpush1.bf16.msra.mxu0 0
          %7597 = vmatprep.subr.bf16.mxu0 0
          %7598 = vmatpush1.bf16.msra.mxu0 0
          %7599 = vmatprep.subr.bf16.mxu0 0
          %7600 = vmatpush1.bf16.msra.mxu0 0
          %7601 = vmatprep.subr.bf16.mxu0 0
          %7602 = vmatpush1.bf16.msra.mxu0 0
          %7603 = vmatprep.subr.bf16.mxu0 0
          %7604 = vmatpush1.bf16.msra.mxu0 0
          %7605 = vmatprep.subr.bf16.mxu0 0
          %7606 = vmatpush1.bf16.msra.mxu0 0
          %7607 = vmatprep.mubr.bf16.mxu0 0
          %7608 = vmatmul.mubr.bf16.gmra.mrb[0].mxu0 %v7574
          %v7609 = vpop.f32.mrb[0].mxu0
          %v7610 = vadd.f32 0.0, %v7609
          %v7611 = vpop.f32.mrb[0].mxu0
          %v7612 = vadd.f32 0.0, %v7611
          %v7613 = vpop.f32.mrb[0].mxu0
          %v7614 = vpop.f32.mrb[0].mxu0
          %7615 = vdwg.mxu0
          %7616 = vmatprep.subr.bf16.mxu0 %v4939
          %7617 = vmatpush1.bf16.msra.mxu0 %v4938
          %7618 = vmatprep.subr.bf16.mxu0 %v4943
          %7619 = vmatpush1.bf16.msra.mxu0 %v4942
          %7620 = vmatprep.subr.bf16.mxu0 %v4947
          %7621 = vmatpush1.bf16.msra.mxu0 %v4946
          %7622 = vmatprep.subr.bf16.mxu0 %v4951
          %7623 = vmatpush1.bf16.msra.mxu0 %v4950
          %7624 = vmatprep.subr.bf16.mxu0 %v4955
          %7625 = vmatpush1.bf16.msra.mxu0 %v4954
          %7626 = vmatprep.subr.bf16.mxu0 %v4959
          %7627 = vmatpush1.bf16.msra.mxu0 %v4958
          %7628 = vmatprep.subr.bf16.mxu0 %v4963
          %7629 = vmatpush1.bf16.msra.mxu0 %v4962
          %7630 = vmatprep.subr.bf16.mxu0 %v4967
          %7631 = vmatpush1.bf16.msra.mxu0 %v4966
          %7632 = vmatprep.subr.bf16.mxu0 0
          %7633 = vmatpush1.bf16.msra.mxu0 0
          %7634 = vmatprep.subr.bf16.mxu0 0
          %7635 = vmatpush1.bf16.msra.mxu0 0
          %7636 = vmatprep.subr.bf16.mxu0 0
          %7637 = vmatpush1.bf16.msra.mxu0 0
          %7638 = vmatprep.subr.bf16.mxu0 0
          %7639 = vmatpush1.bf16.msra.mxu0 0
          %7640 = vmatprep.subr.bf16.mxu0 0
          %7641 = vmatpush1.bf16.msra.mxu0 0
          %7642 = vmatprep.subr.bf16.mxu0 0
          %7643 = vmatpush1.bf16.msra.mxu0 0
          %7644 = vmatprep.subr.bf16.mxu0 0
          %7645 = vmatpush1.bf16.msra.mxu0 0
          %7646 = vmatprep.subr.bf16.mxu0 0
          %7647 = vmatpush1.bf16.msra.mxu0 0
          %7648 = vmatprep.mubr.bf16.mxu0 0
          %7649 = vmatmul.mubr.bf16.gmra.mrb[0].mxu0 %v7574
          %v7650 = vpop.f32.mrb[0].mxu0
          %v7651 = vadd.f32 0.0, %v7650
          %v7652 = vpop.f32.mrb[0].mxu0
          %v7653 = vadd.f32 0.0, %v7652
          %v7654 = vpop.f32.mrb[0].mxu0
          %v7655 = vpop.f32.mrb[0].mxu0
          %7656 = vdwg.mxu0
          %7657 = vmatprep.subr.bf16.mxu0 %v5179
          %7658 = vmatpush1.bf16.msra.mxu0 %v5178
          %7659 = vmatprep.subr.bf16.mxu0 %v5183
          %7660 = vmatpush1.bf16.msra.mxu0 %v5182
          %7661 = vmatprep.subr.bf16.mxu0 %v5187
          %7662 = vmatpush1.bf16.msra.mxu0 %v5186
          %7663 = vmatprep.subr.bf16.mxu0 %v5191
          %7664 = vmatpush1.bf16.msra.mxu0 %v5190
          %7665 = vmatprep.subr.bf16.mxu0 %v5195
          %7666 = vmatpush1.bf16.msra.mxu0 %v5194
          %7667 = vmatprep.subr.bf16.mxu0 %v5199
          %7668 = vmatpush1.bf16.msra.mxu0 %v5198
          %7669 = vmatprep.subr.bf16.mxu0 %v5203
          %7670 = vmatpush1.bf16.msra.mxu0 %v5202
          %7671 = vmatprep.subr.bf16.mxu0 %v5207
          %7672 = vmatpush1.bf16.msra.mxu0 %v5206
          %7673 = vmatprep.subr.bf16.mxu0 0
          %7674 = vmatpush1.bf16.msra.mxu0 0
          %7675 = vmatprep.subr.bf16.mxu0 0
          %7676 = vmatpush1.bf16.msra.mxu0 0
          %7677 = vmatprep.subr.bf16.mxu0 0
          %7678 = vmatpush1.bf16.msra.mxu0 0
          %7679 = vmatprep.subr.bf16.mxu0 0
          %7680 = vmatpush1.bf16.msra.mxu0 0
          %7681 = vmatprep.subr.bf16.mxu0 0
          %7682 = vmatpush1.bf16.msra.mxu0 0
          %7683 = vmatprep.subr.bf16.mxu0 0
          %7684 = vmatpush1.bf16.msra.mxu0 0
          %7685 = vmatprep.subr.bf16.mxu0 0
          %7686 = vmatpush1.bf16.msra.mxu0 0
          %7687 = vmatprep.subr.bf16.mxu0 0
          %7688 = vmatpush1.bf16.msra.mxu0 0
          %7689 = vmatprep.mubr.bf16.mxu0 0
          %7690 = vmatmul.mubr.bf16.gmra.mrb[0].mxu0 %v7573
          %v7691 = vpop.f32.mrb[0].mxu0
          %v7692 = vadd.f32 %v7610, %v7691
          %v7693 = vpop.f32.mrb[0].mxu0
          %v7694 = vadd.f32 %v7612, %v7693
          %v7695 = vpop.f32.mrb[0].mxu0
          %v7696 = vpop.f32.mrb[0].mxu0
          %7697 = vdwg.mxu0
          %7698 = vmatprep.subr.bf16.mxu0 %v5181
          %7699 = vmatpush1.bf16.msra.mxu0 %v5180
          %7700 = vmatprep.subr.bf16.mxu0 %v5185
          %7701 = vmatpush1.bf16.msra.mxu0 %v5184
          %7702 = vmatprep.subr.bf16.mxu0 %v5189
          %7703 = vmatpush1.bf16.msra.mxu0 %v5188
          %7704 = vmatprep.subr.bf16.mxu0 %v5193
          %7705 = vmatpush1.bf16.msra.mxu0 %v5192
          %7706 = vmatprep.subr.bf16.mxu0 %v5197
          %7707 = vmatpush1.bf16.msra.mxu0 %v5196
          %7708 = vmatprep.subr.bf16.mxu0 %v5201
          %7709 = vmatpush1.bf16.msra.mxu0 %v5200
          %7710 = vmatprep.subr.bf16.mxu0 %v5205
          %7711 = vmatpush1.bf16.msra.mxu0 %v5204
          %7712 = vmatprep.subr.bf16.mxu0 %v5209
          %7713 = vmatpush1.bf16.msra.mxu0 %v5208
          %7714 = vmatprep.subr.bf16.mxu0 0
          %7715 = vmatpush1.bf16.msra.mxu0 0
          %7716 = vmatprep.subr.bf16.mxu0 0
          %7717 = vmatpush1.bf16.msra.mxu0 0
          %7718 = vmatprep.subr.bf16.mxu0 0
          %7719 = vmatpush1.bf16.msra.mxu0 0
          %7720 = vmatprep.subr.bf16.mxu0 0
          %7721 = vmatpush1.bf16.msra.mxu0 0
          %7722 = vmatprep.subr.bf16.mxu0 0
          %7723 = vmatpush1.bf16.msra.mxu0 0
          %7724 = vmatprep.subr.bf16.mxu0 0
          %7725 = vmatpush1.bf16.msra.mxu0 0
          %7726 = vmatprep.subr.bf16.mxu0 0
          %7727 = vmatpush1.bf16.msra.mxu0 0
          %7728 = vmatprep.subr.bf16.mxu0 0
          %7729 = vmatpush1.bf16.msra.mxu0 0
          %7730 = vmatprep.mubr.bf16.mxu0 0
          %7731 = vmatmul.mubr.bf16.gmra.mrb[0].mxu0 %v7573
          %v7732 = vpop.f32.mrb[0].mxu0
          %v7733 = vadd.f32 %v7651, %v7732
          %v7734 = vpop.f32.mrb[0].mxu0
          %v7735 = vadd.f32 %v7653, %v7734
          %v7736 = vpop.f32.mrb[0].mxu0
          %v7737 = vpop.f32.mrb[0].mxu0
          %7738 = vdwg.mxu0
          %v7739 = vadd.f32 %v7692, %v5329
          %v7740 = vadd.f32 %v7694, %v5333
          %v7741 = vadd.f32 %v7733, %v5337
          %v7742 = vadd.f32 %v7735, %v5341
          %v7743 = vxor.u32 %v7739, 2147483648
          %v7744 = vmul.f32 %v7743, 1.442695
          %v7745 = vpow.pop %v7744
          %v7746 = vadd.f32 %v7745, 1.0
          %v7747 = vrcp.pop %v7746
          %v7748 = vmul.f32 1.0, %v7747
          %v7749 = vxor.u32 %v7740, 2147483648
          %v7750 = vmul.f32 %v7749, 1.442695
          %v7751 = vpow.pop %v7750
          %v7752 = vadd.f32 %v7751, 1.0
          %v7753 = vrcp.pop %v7752
          %v7754 = vmul.f32 1.0, %v7753
          %v7755 = vtanh.pop %v7741
          %v7756 = vxor.u32 %v7742, 2147483648
          %v7757 = vmul.f32 %v7756, 1.442695
          %v7758 = vpow.pop %v7757
          %v7759 = vadd.f32 %v7758, 1.0
          %v7760 = vrcp.pop %v7759
          %v7761 = vmul.f32 1.0, %v7760
          %v7762 = vmul.f32 %v7754, %v7427
          %v7763 = vmul.f32 %v7748, %v7755
          %v7764 = vadd.f32 %v7762, %v7763
          %v7765 = vtanh.pop %v7764
          %v7766 = vmul.f32 %v7761, %v7765
          %v7767 = vsel %vm7433, %v7766, %v7426
          %v7768 = vmax.f32 %v7767, 0.0
          %v7769 = vpack.c.bf16 %v7768, %v7768
          %v7770 = vld [vmem:[%s8] sm:$0xff]
          %v7771 = vld [vmem:[%s8 + $0x8] sm:$0xff]
          %v7772 = vld [vmem:[%s8 + $0x10] sm:$0xff]
          %v7773 = vld [vmem:[%s8 + $0x18] sm:$0xff]
          %v7774 = vld [vmem:[%s8 + $0x20] sm:$0xff]
          %v7775 = vld [vmem:[%s8 + $0x28] sm:$0xff]
          %v7776 = vld [vmem:[%s8 + $0x30] sm:$0xff]
          %v7777 = vld [vmem:[%s8 + $0x38] sm:$0xff]
          %v7778 = vld [vmem:[%s8 + $0x40] sm:$0xff]
          %v7779 = vld [vmem:[%s8 + $0x48] sm:$0xff]
          %v7780 = vld [vmem:[%s8 + $0x50] sm:$0xff]
          %v7781 = vld [vmem:[%s8 + $0x58] sm:$0xff]
          %v7782 = vld [vmem:[%s8 + $0x60] sm:$0xff]
          %v7783 = vld [vmem:[%s8 + $0x68] sm:$0xff]
          %v7784 = vld [vmem:[%s8 + $0x70] sm:$0xff]
          %v7785 = vld [vmem:[%s8 + $0x78] sm:$0xff]
          %v7786 = vld [vmem:[%s9] sm:$0x3]
          %v7788 = vlaneseq
          %v7789 = vshrl.u32 %v7788, 7
          %v7790 = vsub.s32 0, %v7789
          %v7791 = vrot.slane %v7786, %v7790
          %v7792 = vlaneseq
          %v7793 = vshrl.u32 %v7792, 7
          %v7794 = vsub.s32 1, %v7793
          %v7795 = vrot.slane %v7786, %v7794
          %v7814 = vunpack.c.l.b16 %v7770
          %v7815 = vunpack.c.h.b16 %v7770
          %v7816 = vunpack.c.l.b16 %v7771
          %v7817 = vunpack.c.h.b16 %v7771
          %v7818 = vunpack.c.l.b16 %v7772
          %v7819 = vunpack.c.h.b16 %v7772
          %v7820 = vunpack.c.l.b16 %v7773
          %v7821 = vunpack.c.h.b16 %v7773
          %v7822 = vunpack.c.l.b16 %v7774
          %v7823 = vunpack.c.h.b16 %v7774
          %v7824 = vunpack.c.l.b16 %v7775
          %v7825 = vunpack.c.h.b16 %v7775
          %v7826 = vunpack.c.l.b16 %v7776
          %v7827 = vunpack.c.h.b16 %v7776
          %v7828 = vunpack.c.l.b16 %v7777
          %v7829 = vunpack.c.h.b16 %v7777
          %v7830 = vunpack.c.l.b16 %v7778
          %v7831 = vunpack.c.h.b16 %v7778
          %v7832 = vunpack.c.l.b16 %v7779
          %v7833 = vunpack.c.h.b16 %v7779
          %v7834 = vunpack.c.l.b16 %v7780
          %v7835 = vunpack.c.h.b16 %v7780
          %v7836 = vunpack.c.l.b16 %v7781
          %v7837 = vunpack.c.h.b16 %v7781
          %v7838 = vunpack.c.l.b16 %v7782
          %v7839 = vunpack.c.h.b16 %v7782
          %v7840 = vunpack.c.l.b16 %v7783
          %v7841 = vunpack.c.h.b16 %v7783
          %v7842 = vunpack.c.l.b16 %v7784
          %v7843 = vunpack.c.h.b16 %v7784
          %v7844 = vunpack.c.l.b16 %v7785
          %v7845 = vunpack.c.h.b16 %v7785
          %v7846 = vpack.c.b16 %v7816, %v7814
          %v7847 = vpack.c.b16 %v7817, %v7815
          %v7848 = vpack.c.b16 %v7820, %v7818
          %v7849 = vpack.c.b16 %v7821, %v7819
          %v7850 = vpack.c.b16 %v7824, %v7822
          %v7851 = vpack.c.b16 %v7825, %v7823
          %v7852 = vpack.c.b16 %v7828, %v7826
          %v7853 = vpack.c.b16 %v7829, %v7827
          %v7854 = vpack.c.b16 %v7832, %v7830
          %v7855 = vpack.c.b16 %v7833, %v7831
          %v7856 = vpack.c.b16 %v7836, %v7834
          %v7857 = vpack.c.b16 %v7837, %v7835
          %v7858 = vpack.c.b16 %v7840, %v7838
          %v7859 = vpack.c.b16 %v7841, %v7839
          %v7860 = vpack.c.b16 %v7844, %v7842
          %v7861 = vpack.c.b16 %v7845, %v7843
          %7878 = vmatprep.subr.bf16.mxu0 %v7847
          %7879 = vmatpush1.bf16.msra.mxu0 %v7846
          %7880 = vmatprep.subr.bf16.mxu0 %v7849
          %7881 = vmatpush1.bf16.msra.mxu0 %v7848
          %7882 = vmatprep.subr.bf16.mxu0 %v7851
          %7883 = vmatpush1.bf16.msra.mxu0 %v7850
          %7884 = vmatprep.subr.bf16.mxu0 %v7853
          %7885 = vmatpush1.bf16.msra.mxu0 %v7852
          %7886 = vmatprep.subr.bf16.mxu0 %v7855
          %7887 = vmatpush1.bf16.msra.mxu0 %v7854
          %7888 = vmatprep.subr.bf16.mxu0 %v7857
          %7889 = vmatpush1.bf16.msra.mxu0 %v7856
          %7890 = vmatprep.subr.bf16.mxu0 %v7859
          %7891 = vmatpush1.bf16.msra.mxu0 %v7858
          %7892 = vmatprep.subr.bf16.mxu0 %v7861
          %7893 = vmatpush1.bf16.msra.mxu0 %v7860
          %7894 = vmatprep.subr.bf16.mxu0 0
          %7895 = vmatpush1.bf16.msra.mxu0 0
          %7896 = vmatprep.subr.bf16.mxu0 0
          %7897 = vmatpush1.bf16.msra.mxu0 0
          %7898 = vmatprep.subr.bf16.mxu0 0
          %7899 = vmatpush1.bf16.msra.mxu0 0
          %7900 = vmatprep.subr.bf16.mxu0 0
          %7901 = vmatpush1.bf16.msra.mxu0 0
          %7902 = vmatprep.subr.bf16.mxu0 0
          %7903 = vmatpush1.bf16.msra.mxu0 0
          %7904 = vmatprep.subr.bf16.mxu0 0
          %7905 = vmatpush1.bf16.msra.mxu0 0
          %7906 = vmatprep.subr.bf16.mxu0 0
          %7907 = vmatpush1.bf16.msra.mxu0 0
          %7908 = vmatprep.subr.bf16.mxu0 0
          %7909 = vmatpush1.bf16.msra.mxu0 0
          %7910 = vmatprep.mubr.bf16.mxu0 0
          %7911 = vmatmul.mubr.bf16.gmra.mrb[0].mxu0 %v7769
          %v7912 = vpop.f32.mrb[0].mxu0
          %v7913 = vadd.f32 %v7791, %v7912
          %v7914 = vpop.f32.mrb[0].mxu0
          %v7915 = vadd.f32 %v7795, %v7914
          %v7916 = vpop.f32.mrb[0].mxu0
          %v7917 = vpop.f32.mrb[0].mxu0
          %7918 = vdwg.mxu0
          %v7921 = vcombine.low %v7913, %v7915
          %v7923 = vunpack.c.l.s4 1983009808
          %v7924 = vunpack.c.0.s8 %v7923
          %v7925 = vlaneseq
          %v7926 = vshrl.u32 %v7925, 7
          %v7927 = vsub.s32 %v7924, %v7926
          %v7928 = vrot.slane %v7921, %v7927
          %7930 = vst [vmem:[#allocation5] sm:$0xf] %v7928
        $region91: #{bert_sentence_encoder_lstm.1} parent=78 // pred_fallthru
          _
        // Predicated region
        $region92: #{bert_sentence_encoder_lstm.1} parent=78 // pred_check
          %p7931 = pneg %p255
        $region93: #{bert_sentence_encoder_lstm.1} parent=78 // pred_check_branch
          %7933 = sbr.rel (%p7931) target = $region95
        $region94: #{bert_sentence_encoder_lstm.1} parent=78 // pred_region
          %s7935 = ssub.s32 64, 64
          %7936 = vsyncadd [#allocation6], %s7935
          %s7938 = sshll.u32 [#allocation5], 4
          %s7939 = int_to_ptr.vmem [resolvable:$true] %s7938
          %7941 = dma.vmem_to_hbm [thread:$0]  %s7939, 64, %s10, [#allocation6]
        $region95: #{bert_sentence_encoder_lstm.1} parent=78 // pred_fallthru
          _
        // Predicated region
        $region96: #{bert_sentence_encoder_lstm.1} parent=78 // pred_check
          %p7942 = pneg %p255
        $region97: #{bert_sentence_encoder_lstm.1} parent=78 // pred_check_branch
          %7944 = sbr.rel (%p7942) target = $region99
        $region98: #{bert_sentence_encoder_lstm.1} parent=78 // pred_region
          %7945 = dma.done [#allocation6], 64
        $region99: #{bert_sentence_encoder_lstm.1} parent=78 // pred_fallthru
          _
      $region79: #{bert_sentence_encoder_lstm.1} parent=5 // pred_fallthru
        _
      %p7946 = scmp.le.s32.totalorder 2, %s17
      // Predicated region
      $region100: #{bert_sentence_encoder_lstm.1} parent=5 // pred_check
        %p7947 = pneg %p7946
      $region101: #{bert_sentence_encoder_lstm.1} parent=5 // pred_check_branch
        %7949 = sbr.rel (%p7947) target = $region103
      $region102: #{bert_sentence_encoder_lstm.1} parent=5 // pred_region
        %s7950 = ssub.s32 %s17, 2
      $region103: #{bert_sentence_encoder_lstm.1} parent=5 // pred_fallthru
        _
    $region6: #{bert_sentence_encoder_lstm.1} parent=1 // loop_footer
      %s21 = sadd.s32 1, %s17
    $region7: #{bert_sentence_encoder_lstm.1} parent=1 // loop_footer_branch
      %16 = sbr.rel target = $region3
    $region8: #{bert_sentence_encoder_lstm.1} parent=1 // loop_exit
      _
    %7951 = vsyncpa [#allocation6], 1
    %s7952 = scalar_lea.sflag [#allocation6], 1
    %7953 = vsyncpa %s7952, 1

</llo_original>
